<compile_context>
chip_gen: v7x
topology: tpu7x:2x2x1
jax: 0.10.0
libtpu: 0.0.40
codegen_flags: <defaults>
</compile_context>

<pallas_src>
import functools

import jax
import jax.numpy as jnp
from jax.experimental import pallas as pl
from jax.experimental.pallas import tpu as pltpu

_LN_EPS = 1e-5
_SQRT_HALF = 0.7071067811865476
_ROW_TILE = 512            # rows per grid step for row-wise kernels (v6e sweet spot; ok on v7x)
_ATTN_GROUP = 8            # max (batch,) slices per attention grid step
_VMEM_LIMIT = 48 * 1024 * 1024   # fits v7x 64 MiB physical; raise to ~100 MiB on v5e/v6e


# ----------------------------- in-kernel helpers -----------------------------

def _erf_approx(x):
    # Abramowitz & Stegun 7.1.26, |err| < 1.5e-7 -- indistinguishable from exact
    # erf-GELU at bf16 matmul precision. exp + reciprocal go to the EUP.
    a1, a2, a3, a4, a5 = (0.254829592, -0.284496736, 1.421413741,
                          -1.453152027, 1.061405429)
    p = 0.3275911
    sgn = jnp.where(x >= 0.0, 1.0, -1.0)
    z = jnp.abs(x)
    t = pl.reciprocal(1.0 + p * z, approx=True)          # EUP, frees VALU slots
    poly = t * (a1 + t * (a2 + t * (a3 + t * (a4 + t * a5))))
    return sgn * (1.0 - poly * jnp.exp(-z * z))


def _gelu_exact(x):
    # matches torch.nn.GELU() (erf form) to ~1e-6
    return 0.5 * x * (1.0 + _erf_approx(x * _SQRT_HALF))


def _layernorm(x, g, b, eps):
    mean = jnp.mean(x, axis=-1, keepdims=True)
    var = jnp.mean(jnp.square(x - mean), axis=-1, keepdims=True)
    return (x - mean) * jax.lax.rsqrt(var + eps) * g + b


# ------------------------------- Pallas kernels -------------------------------

def _linear_kernel(x_ref, w_ref, b_ref, o_ref):
    # x: (TM, K) bf16, w: (K, N) bf16, b: (1, N) f32 -> o: (TM, N) bf16
    o_ref[...] = (jnp.dot(x_ref[...], w_ref[...],
                          preferred_element_type=jnp.float32)
                  + b_ref[...]).astype(o_ref.dtype)


def _layernorm_kernel(x_ref, g_ref, b_ref, o_ref, *, eps):
    o_ref[...] = _layernorm(x_ref[...].astype(jnp.float32),
                            g_ref[...], b_ref[...], eps).astype(o_ref.dtype)


def _head_kernel(x_ref, g1_ref, b1_ref, g2_ref, b2_ref, w_ref, b_ref, o_ref, *, eps):
    # Fused: transformer-final LayerNorm -> mlp_head LayerNorm -> Linear.
    # N is padded to a multiple of 128 so every output store is lane-dense.
    x = x_ref[...].astype(jnp.float32)
    xn = _layernorm(x, g1_ref[...], b1_ref[...], eps)      # spatial transformer norm
    xn = _layernorm(xn, g2_ref[...], b2_ref[...], eps)     # mlp_head LayerNorm
    y = jnp.dot(xn.astype(jnp.bfloat16), w_ref[...],
                preferred_element_type=jnp.float32) + b_ref[...]
    o_ref[...] = y.astype(o_ref.dtype)


def _ffn_kernel(x_ref, g_ref, bb_ref, w1_ref, b1_ref, w2_ref, b2_ref, o_ref, *, eps):
    # Fused: LayerNorm -> Linear -> GELU(erf) -> Linear -> +residual
    x = x_ref[...].astype(jnp.float32)
    xn = _layernorm(x, g_ref[...], bb_ref[...], eps)
    h = jnp.dot(xn.astype(jnp.bfloat16), w1_ref[...],
                preferred_element_type=jnp.float32) + b1_ref[...]
    h = _gelu_exact(h)
    y = jnp.dot(h.astype(jnp.bfloat16), w2_ref[...],
                preferred_element_type=jnp.float32) + b2_ref[...]
    o_ref[...] = (y + x).astype(o_ref.dtype)


def _attn_block_kernel(x_ref, g_ref, bb_ref, qkv_w_ref, out_w_ref, out_b_ref,
                       o_ref, *, heads, dim_head, eps):
    # Fused PreNorm + multi-head attention + out projection + residual, all in VMEM.
    # Heads are batched along the leading axis (only lane slices + leading-dim
    # concats / reshapes are used -- no sublane<->lane relayout reshapes), then
    # one batched einsum computes scores / attn@V for all heads at once.
    G, n, D = x_ref.shape
    inner = heads * dim_head
    scale = dim_head ** -0.5

    x = x_ref[...].astype(jnp.float32)                     # (G, n, D)
    xn = _layernorm(x, g_ref[...], bb_ref[...], eps)

    qkv = jax.lax.dot_general(
        xn.reshape(G * n, D).astype(jnp.bfloat16), qkv_w_ref[...],
        (((1,), (0,)), ((), ())),
        preferred_element_type=jnp.float32).reshape(G, n, 3 * inner)

    def head_batch(base):                                  # -> (heads*G, n, dim_head)
        return jnp.concatenate(
            [qkv[:, :, base + h * dim_head: base + (h + 1) * dim_head]
             for h in range(heads)], axis=0)

    q = head_batch(0) * scale                              # scale folded into q
    k = head_batch(inner)
    v = head_batch(2 * inner)

    s = jnp.einsum('bid,bjd->bij',
                   q.astype(jnp.bfloat16), k.astype(jnp.bfloat16),
                   preferred_element_type=jnp.float32)     # (heads*G, n, n)
    s = s - jnp.max(s, axis=-1, keepdims=True)
    p = jnp.exp(s)
    p = p * pl.reciprocal(jnp.sum(p, axis=-1, keepdims=True), approx=True)
    o = jnp.einsum('bij,bjd->bid',
                   p.astype(jnp.bfloat16), v.astype(jnp.bfloat16),
                   preferred_element_type=jnp.float32)     # (heads*G, n, dim_head)

    merged = jnp.concatenate([o[h * G:(h + 1) * G] for h in range(heads)],
                             axis=-1)                      # (G, n, inner)
    out = jax.lax.dot_general(
        merged.reshape(G * n, inner).astype(jnp.bfloat16), out_w_ref[...],
        (((1,), (0,)), ((), ())),
        preferred_element_type=jnp.float32) + out_b_ref[...]
    o_ref[...] = (out.reshape(G, n, D) + x).astype(o_ref.dtype)  # residual


# ------------------------------ Pallas wrappers -------------------------------

def _compiler_params():
    return pltpu.CompilerParams(dimension_semantics=("parallel",),
                                vmem_limit_bytes=_VMEM_LIMIT)


def _wspec(shape):
    # grid-invariant weight block: fetched once, single-buffered (halves weight VMEM,
    # matters at production sizes on v7x's 64 MiB VMEM)
    return pl.BlockSpec(shape, lambda i: (0,) * len(shape),
                        pipeline_mode=pl.Buffered(1))


def _cspec(shape):
    # grid-invariant small constant (bias / gamma / beta)
    return pl.BlockSpec(shape, lambda i: (0,) * len(shape))


def _row_tile(m, tile=_ROW_TILE):
    return m if m <= tile else tile


def _attn_group(bn, group=_ATTN_GROUP):
    # largest divisor of bn that is <= group, preferring >=2 grid steps (megacore)
    if bn <= 1:
        return 1
    g = min(group, max(bn // 2, 1))
    while g > 1 and bn % g != 0:
        g -= 1
    return max(g, 1)


def pallas_linear(x, w, b):
    M, K = x.shape
    N = w.shape[1]
    tm = _row_tile(M)
    return pl.pallas_call(
        _linear_kernel,
        out_shape=jax.ShapeDtypeStruct((M, N), jnp.bfloat16),
        grid=(pl.cdiv(M, tm),),
        in_specs=[pl.BlockSpec((tm, K), lambda i: (i, 0)),
                  _wspec((K, N)),
                  _cspec((1, N))],
        out_specs=pl.BlockSpec((tm, N), lambda i: (i, 0)),
        compiler_params=_compiler_params(),
    )(x.astype(jnp.bfloat16), w, b)


def pallas_layernorm(x, gamma, beta, *, eps=_LN_EPS):
    M, D = x.shape
    tm = _row_tile(M)
    return pl.pallas_call(
        functools.partial(_layernorm_kernel, eps=eps),
        out_shape=jax.ShapeDtypeStruct((M, D), jnp.bfloat16),
        grid=(pl.cdiv(M, tm),),
        in_specs=[pl.BlockSpec((tm, D), lambda i: (i, 0)),
                  _cspec((1, D)), _cspec((1, D))],
        out_specs=pl.BlockSpec((tm, D), lambda i: (i, 0)),
        compiler_params=_compiler_params(),
    )(x.astype(jnp.bfloat16), gamma, beta)


def pallas_head(x, g1, b1, g2, b2, w, b, *, eps=_LN_EPS):
    # double LayerNorm + Linear with lane-padded (>=128-wide) output
    M, D = x.shape
    N = w.shape[1]
    tm = _row_tile(M)
    return pl.pallas_call(
        functools.partial(_head_kernel, eps=eps),
        out_shape=jax.ShapeDtypeStruct((M, N), jnp.float32),
        grid=(pl.cdiv(M, tm),),
        in_specs=[pl.BlockSpec((tm, D), lambda i: (i, 0)),
                  _cspec((1, D)), _cspec((1, D)),
                  _cspec((1, D)), _cspec((1, D)),
                  _wspec((D, N)), _cspec((1, N))],
        out_specs=pl.BlockSpec((tm, N), lambda i: (i, 0)),
        compiler_params=_compiler_params(),
    )(x.astype(jnp.bfloat16), g1, b1, g2, b2, w, b)


def pallas_ffn_block(x3, p, *, eps=_LN_EPS):
    BN, n, D = x3.shape
    M = BN * n
    Hd = p['ff1_w'].shape[1]
    tm = _row_tile(M)
    out = pl.pallas_call(
        functools.partial(_ffn_kernel, eps=eps),
        out_shape=jax.ShapeDtypeStruct((M, D), jnp.bfloat16),
        grid=(pl.cdiv(M, tm),),
        in_specs=[pl.BlockSpec((tm, D), lambda i: (i, 0)),
                  _cspec((1, D)), _cspec((1, D)),
                  _wspec((D, Hd)), _cspec((1, Hd)),
                  _wspec((Hd, D)), _cspec((1, D))],
        out_specs=pl.BlockSpec((tm, D), lambda i: (i, 0)),
        compiler_params=_compiler_params(),
    )(x3.reshape(M, D).astype(jnp.bfloat16),
      p['ln2_g'], p['ln2_b'], p['ff1_w'], p['ff1_b'], p['ff2_w'], p['ff2_b'])
    return out.reshape(BN, n, D)


def pallas_attention_block(x, p, heads, dim_head, *, eps=_LN_EPS):
    BN, n, D = x.shape
    inner = heads * dim_head
    g = _attn_group(BN)
    kern = functools.partial(_attn_block_kernel, heads=heads, dim_head=dim_head,
                             eps=eps)
    # NOTE: Attention here always applies the output projection (project_out);
    # the reference's Identity branch (heads==1 and dim_head==dim) is not hit by
    # TSViT configs.
    return pl.pallas_call(
        kern,
        out_shape=jax.ShapeDtypeStruct((BN, n, D), jnp.bfloat16),
        grid=(pl.cdiv(BN, g),),
        in_specs=[pl.BlockSpec((g, n, D), lambda i: (i, 0, 0)),
                  _cspec((1, D)), _cspec((1, D)),
                  _wspec((D, 3 * inner)),
                  _wspec((inner, D)),
                  _cspec((1, D))],
        out_specs=pl.BlockSpec((g, n, D), lambda i: (i, 0, 0)),
        compiler_params=_compiler_params(),
    )(x.astype(jnp.bfloat16),
      p['ln1_g'], p['ln1_b'], p['qkv_w'], p['out_w'], p['out_b'])


# ---------------------------- Transformer / TSViT -----------------------------

def transformer_layers(x, tp, heads, dim_head):
    # attention / FFN blocks only; the transformer-final LayerNorm is applied
    # (or fused) by the caller so it can be restricted to the tokens actually kept.
    for layer in tp['layers']:
        x = pallas_attention_block(x, layer, heads, dim_head)   # incl. residual
        x = pallas_ffn_block(x, layer)                          # incl. residual
    return x


def tsvit_forward(x, params, cfg):
    # x is channels-last (B, T, H, W, C); equivalent to the PyTorch forward's
    # x.permute(0, 1, 4, 2, 3) followed by the einops rearranges.
    P = cfg['patch_size']
    D = cfg['dim']
    K = cfg['num_classes']
    B, T, H, W, C = x.shape
    np1d = H // P
    NP = np1d * np1d
    Cm1 = C - 1

    # --- temporal position embedding: row gather == one_hot(366) @ W (exact) ---
    xt = x[:, :, 0, 0, -1]                                    # (B, T) day-of-year / 365
    xt_idx = jnp.clip((xt * 365.0001).astype(jnp.int32), 0, 365)
    t_pos = (jnp.take(params['temp_emb_w'], xt_idx.reshape(-1), axis=0)
             + params['temp_emb_b']).reshape(B, T, D).astype(jnp.bfloat16)

    # --- patch embedding: 'b t c (h p1) (w p2) -> (b h w) t (p1 p2 c)' ---------
    xim = x[..., :Cm1]                                        # (B, T, H, W, C-1)
    xr = xim.reshape(B, T, np1d, P, np1d, P, Cm1)
    xr = jnp.transpose(xr, (0, 2, 4, 1, 3, 5, 6))             # b h w t p1 p2 c
    xr = xr.reshape(B * NP * T, P * P * Cm1)
    xe = pallas_linear(xr, params['patch_w'], params['patch_b'])     # bf16
    xe = xe.reshape(B, NP, T, D) + t_pos[:, None, :, :]
    xe = xe.reshape(B * NP, T, D)

    # --- temporal transformer with class tokens --------------------------------
    cls_tok = jnp.broadcast_to(params['temporal_token'], (B * NP, K, D))
    xe = jnp.concatenate([cls_tok, xe], axis=1)               # (B*NP, K+T, D) bf16
    xe = transformer_layers(xe, params['temporal_tr'], cfg['heads'], cfg['dim_head'])
    xe = xe[:, :K]                                            # keep class tokens first,
    xe = pallas_layernorm(xe.reshape(-1, D),                  # then normalize only them
                          params['temporal_tr']['norm_g'],
                          params['temporal_tr']['norm_b']).reshape(B * NP, K, D)

    # --- spatial transformer ----------------------------------------------------
    xs = xe.reshape(B, NP, K, D).transpose(0, 2, 1, 3).reshape(B * K, NP, D)
    xs = xs + params['space_pos']
    xs = transformer_layers(xs, params['space_tr'], cfg['heads'], cfg['dim_head'])

    # --- mlp head: spatial-final LN + head LN + Linear fused, lane-padded N -----
    xf = pallas_head(xs.reshape(-1, D),
                     params['space_tr']['norm_g'], params['space_tr']['norm_b'],
                     params['head_ln_g'], params['head_ln_b'],
                     params['head_w'], params['head_b'])      # (B*K*NP, >=128) f32
    xf = xf[:, :P * P]
    # Mirrors the reference exactly:
    #   reshape(B, K, NP, P*P).permute(0, 2, 3, 1).reshape(B, H, W, K).permute(0, 3, 1, 2)
    xf = xf.reshape(B, K, NP, P * P).transpose(0, 2, 3, 1).reshape(B, H, W, K)
    return jnp.transpose(xf, (0, 3, 1, 2))                    # (B, num_classes, H, W)


# ------------------------------- Parameter init --------------------------------

def _key_iter(key):
    while True:
        key, sub = jax.random.split(key)
        yield sub


def _nrm(key, shape, scale=0.02):
    return (scale * jax.random.normal(key, shape)).astype(jnp.float32)


def init_transformer_params(ki, depth, dim, heads, dim_head, mlp_dim):
    # matmul weights stored in bf16 once; biases / LN params as (1, N) f32
    inner = heads * dim_head
    layers = []
    for _ in range(depth):
        layers.append(dict(
            ln1_g=jnp.ones((1, dim), jnp.float32), ln1_b=jnp.zeros((1, dim), jnp.float32),
            qkv_w=_nrm(next(ki), (dim, 3 * inner)).astype(jnp.bfloat16),
            out_w=_nrm(next(ki), (inner, dim)).astype(jnp.bfloat16),
            out_b=jnp.zeros((1, dim), jnp.float32),
            ln2_g=jnp.ones((1, dim), jnp.float32), ln2_b=jnp.zeros((1, dim), jnp.float32),
            ff1_w=_nrm(next(ki), (dim, mlp_dim)).astype(jnp.bfloat16),
            ff1_b=jnp.zeros((1, mlp_dim), jnp.float32),
            ff2_w=_nrm(next(ki), (mlp_dim, dim)).astype(jnp.bfloat16),
            ff2_b=jnp.zeros((1, dim), jnp.float32),
        ))
    return dict(layers=layers,
                norm_g=jnp.ones((1, dim), jnp.float32),
                norm_b=jnp.zeros((1, dim), jnp.float32))


def init_tsvit_params(key, cfg):
    ki = _key_iter(key)
    P = cfg['patch_size']
    D = cfg['dim']
    patch_dim = (cfg['num_channels'] - 1) * P * P
    np1d = cfg['img_res'] // P
    NP = np1d ** 2
    mlp_dim = D * cfg['scale_dim']
    n_out = P * P
    head_n = max(128, ((n_out + 127) // 128) * 128)           # lane-dense head output
    head_w = jnp.zeros((D, head_n), jnp.float32).at[:, :n_out].set(
        _nrm(next(ki), (D, n_out)))
    return dict(
        patch_w=_nrm(next(ki), (patch_dim, D)).astype(jnp.bfloat16),
        patch_b=jnp.zeros((1, D), jnp.float32),
        temp_emb_w=_nrm(next(ki), (366, D)),
        temp_emb_b=jnp.zeros((D,), jnp.float32),
        temporal_token=jax.random.normal(next(ki), (1, cfg['num_classes'], D),
                                         jnp.float32).astype(jnp.bfloat16),
        space_pos=jax.random.normal(next(ki), (1, NP, D),
                                    jnp.float32).astype(jnp.bfloat16),
        temporal_tr=init_transformer_params(ki, cfg['temporal_depth'], D,
                                            cfg['heads'], cfg['dim_head'], mlp_dim),
        space_tr=init_transformer_params(ki, cfg['spatial_depth'], D,
                                         cfg['heads'], cfg['dim_head'], mlp_dim),
        head_ln_g=jnp.ones((1, D), jnp.float32),
        head_ln_b=jnp.zeros((1, D), jnp.float32),
        head_w=head_w.astype(jnp.bfloat16),
        head_b=jnp.zeros((1, head_n), jnp.float32),
    )


# ------------------------------------ main --------------------------------------

if __name__ == "__main__":
    cfg = dict(img_res=16, patch_size=4, num_classes=4, max_seq_len=8,
               dim=32, temporal_depth=1, spatial_depth=1, heads=2, dim_head=16,
               dropout=0.0, emb_dropout=0.0, pool='cls', scale_dim=2,
               num_channels=4)
    # TODO(synk): dropout layers (p=0.0 here) are identities at inference and are omitted.

    key = jax.random.PRNGKey(0)
    kp, kx, kt = jax.random.split(key, 3)
    params = init_tsvit_params(kp, cfg)

    B = 2
    T = cfg['max_seq_len']
    H = W = cfg['img_res']
    C = cfg['num_channels']

    x_img = jax.random.normal(kx, (B, T, H, W, C - 1), jnp.float32)
    # last channel encodes normalized day-of-year in [0, 1), constant per (b, t) plane
    doy = jax.random.uniform(kt, (B, T), minval=0.0, maxval=1.0)
    doy_plane = jnp.broadcast_to(doy[:, :, None, None, None], (B, T, H, W, 1))
    x = jnp.concatenate([x_img, doy_plane.astype(jnp.float32)], axis=-1)  # (B,T,H,W,C)

    fwd = jax.jit(functools.partial(tsvit_forward, cfg=cfg))
    out = fwd(x, params)
    out = jax.block_until_ready(out)
    assert out.shape == (B, cfg['num_classes'], H, W), out.shape
    assert bool(jnp.all(jnp.isfinite(out)))
    print("KERNEL_OK")
</pallas_src>

<mosaic_0001>
module attributes {stable_mosaic.version = 11 : i64} {
  func.func @_linear_kernel(%arg0: i32, %arg1: memref<256x48xbf16, #tpu.memory_space<vmem>>, %arg2: memref<48x32xbf16, #tpu.memory_space<vmem>>, %arg3: memref<1x32xf32, #tpu.memory_space<vmem>>, %arg4: memref<256x32xbf16, #tpu.memory_space<vmem>>) attributes {dimension_semantics = [#tpu.dimension_semantics<parallel>], iteration_bounds = array<i64: 1>, scalar_prefetch = 0 : i64, scratch_operands = 0 : i64, tpu.core_type = #tpu.core_type<tc>, window_params = [{transform_indices = @transform_0, window_bounds = array<i64: 256, 48>}, {pipeline_mode = #tpu.pipeline_mode<synchronous>, transform_indices = @transform_1, window_bounds = array<i64: 48, 32>}, {pipeline_mode = #tpu.pipeline_mode<synchronous>, transform_indices = @transform_2, window_bounds = array<i64: 1, 32>}, {transform_indices = @transform_3, window_bounds = array<i64: 256, 32>}]} {
    %c0 = arith.constant 0 : index
    %c0_0 = arith.constant 0 : index
    %0 = vector.load %arg1[%c0, %c0_0] : memref<256x48xbf16, #tpu.memory_space<vmem>>, vector<256x48xbf16>
    %c0_1 = arith.constant 0 : index
    %c0_2 = arith.constant 0 : index
    %1 = vector.load %arg2[%c0_1, %c0_2] : memref<48x32xbf16, #tpu.memory_space<vmem>>, vector<48x32xbf16>
    %cst = arith.constant dense<0.000000e+00> : vector<256x32xf32>
    %2 = tpu.matmul %0, %1, %cst {dimension_numbers = #tpu.dot_dimension_numbers<[1], [0], [0], [1], [0, 0, 1, 1], [], []>} : vector<256x48xbf16>, vector<48x32xbf16>, vector<256x32xf32> -> vector<256x32xf32>
    %c0_3 = arith.constant 0 : index
    %c0_4 = arith.constant 0 : index
    %3 = vector.load %arg3[%c0_3, %c0_4] : memref<1x32xf32, #tpu.memory_space<vmem>>, vector<1x32xf32>
    %4 = vector.broadcast %3 : vector<1x32xf32> to vector<256x32xf32>
    %5 = arith.addf %2, %4 : vector<256x32xf32>
    %6 = arith.truncf %5 : vector<256x32xf32> to vector<256x32xbf16>
    %c0_5 = arith.constant 0 : index
    %c0_6 = arith.constant 0 : index
    %7 = vector.load %arg4[%c0_5, %c0_6] : memref<256x32xbf16, #tpu.memory_space<vmem>>, vector<256x32xbf16>
    tpu.vector_store %arg4[%c0_5, %c0_6], %6 {strides = array<i32>} : memref<256x32xbf16, #tpu.memory_space<vmem>>, vector<256x32xbf16>,
    return
  }
  func.func @transform_0(%arg0: i32) -> (i32, i32) {
    %c0_i32 = arith.constant 0 : i32
    %c0_i32_0 = arith.constant 0 : i32
    return %arg0, %c0_i32 : i32, i32
  }
  func.func @transform_1(%arg0: i32) -> (i32, i32) {
    %c0_i32 = arith.constant 0 : i32
    %c0_i32_0 = arith.constant 0 : i32
    %c0_i32_1 = arith.constant 0 : i32
    return %c0_i32, %c0_i32_0 : i32, i32
  }
  func.func @transform_2(%arg0: i32) -> (i32, i32) {
    %c0_i32 = arith.constant 0 : i32
    %c0_i32_0 = arith.constant 0 : i32
    %c0_i32_1 = arith.constant 0 : i32
    return %c0_i32, %c0_i32_0 : i32, i32
  }
  func.func @transform_3(%arg0: i32) -> (i32, i32) {
    %c0_i32 = arith.constant 0 : i32
    %c0_i32_0 = arith.constant 0 : i32
    return %arg0, %c0_i32 : i32, i32
  }
}

module attributes {stable_mosaic.version = 11 : i64} {
  func.func @_attn_block_kernel(%arg0: i32, %arg1: memref<8x12x32xbf16, #tpu.memory_space<vmem>>, %arg2: memref<1x32xf32, #tpu.memory_space<vmem>>, %arg3: memref<1x32xf32, #tpu.memory_space<vmem>>, %arg4: memref<32x96xbf16, #tpu.memory_space<vmem>>, %arg5: memref<32x32xbf16, #tpu.memory_space<vmem>>, %arg6: memref<1x32xf32, #tpu.memory_space<vmem>>, %arg7: memref<8x12x32xbf16, #tpu.memory_space<vmem>>) attributes {dimension_semantics = [#tpu.dimension_semantics<parallel>], iteration_bounds = array<i64: 4>, scalar_prefetch = 0 : i64, scratch_operands = 0 : i64, tpu.core_type = #tpu.core_type<tc>, window_params = [{transform_indices = @transform_0, window_bounds = array<i64: 8, 12, 32>}, {pipeline_mode = #tpu.pipeline_mode<synchronous>, transform_indices = @transform_1, window_bounds = array<i64: 1, 32>}, {pipeline_mode = #tpu.pipeline_mode<synchronous>, transform_indices = @transform_2, window_bounds = array<i64: 1, 32>}, {pipeline_mode = #tpu.pipeline_mode<synchronous>, transform_indices = @transform_3, window_bounds = array<i64: 32, 96>}, {pipeline_mode = #tpu.pipeline_mode<synchronous>, transform_indices = @transform_4, window_bounds = array<i64: 32, 32>}, {pipeline_mode = #tpu.pipeline_mode<synchronous>, transform_indices = @transform_5, window_bounds = array<i64: 1, 32>}, {transform_indices = @transform_6, window_bounds = array<i64: 8, 12, 32>}]} {
    %c0 = arith.constant 0 : index
    %c0_0 = arith.constant 0 : index
    %c0_1 = arith.constant 0 : index
    %0 = vector.load %arg1[%c0, %c0_0, %c0_1] : memref<8x12x32xbf16, #tpu.memory_space<vmem>>, vector<8x12x32xbf16>
    %1 = arith.extf %0 : vector<8x12x32xbf16> to vector<8x12x32xf32>
    %c0_2 = arith.constant 0 : index
    %c0_3 = arith.constant 0 : index
    %2 = vector.load %arg2[%c0_2, %c0_3] : memref<1x32xf32, #tpu.memory_space<vmem>>, vector<1x32xf32>
    %c0_4 = arith.constant 0 : index
    %c0_5 = arith.constant 0 : index
    %3 = vector.load %arg3[%c0_4, %c0_5] : memref<1x32xf32, #tpu.memory_space<vmem>>, vector<1x32xf32>
    %cst = arith.constant dense<0.000000e+00> : vector<8x12xf32>
    %4 = vector.multi_reduction <add>, %1, %cst [2] : vector<8x12x32xf32> to vector<8x12xf32>
    %5 = vector.shape_cast %4 : vector<8x12xf32> to vector<8x12x1xf32>
    %cst_6 = arith.constant 3.200000e+01 : f32
    %6 = vector.broadcast %cst_6 : f32 to vector<8x12x1xf32>
    %7 = arith.divf %5, %6 : vector<8x12x1xf32>
    %8 = vector.broadcast %7 : vector<8x12x1xf32> to vector<8x12x32xf32>
    %9 = arith.subf %1, %8 : vector<8x12x32xf32>
    %10 = arith.mulf %9, %9 : vector<8x12x32xf32>
    %cst_7 = arith.constant dense<0.000000e+00> : vector<8x12xf32>
    %11 = vector.multi_reduction <add>, %10, %cst_7 [2] : vector<8x12x32xf32> to vector<8x12xf32>
    %12 = vector.shape_cast %11 : vector<8x12xf32> to vector<8x12x1xf32>
    %cst_8 = arith.constant 3.200000e+01 : f32
    %13 = vector.broadcast %cst_8 : f32 to vector<8x12x1xf32>
    %14 = arith.divf %12, %13 : vector<8x12x1xf32>
    %15 = vector.broadcast %7 : vector<8x12x1xf32> to vector<8x12x32xf32>
    %16 = arith.subf %1, %15 : vector<8x12x32xf32>
    %cst_9 = arith.constant 9.99999974E-6 : f32
    %17 = vector.broadcast %cst_9 : f32 to vector<8x12x1xf32>
    %18 = arith.addf %14, %17 : vector<8x12x1xf32>
    %19 = math.rsqrt %18 : vector<8x12x1xf32>
    %20 = vector.broadcast %19 : vector<8x12x1xf32> to vector<8x12x32xf32>
    %21 = arith.mulf %16, %20 : vector<8x12x32xf32>
    %22 = vector.shape_cast %2 : vector<1x32xf32> to vector<1x1x32xf32>
    %23 = vector.broadcast %22 : vector<1x1x32xf32> to vector<8x12x32xf32>
    %24 = arith.mulf %21, %23 : vector<8x12x32xf32>
    %25 = vector.shape_cast %3 : vector<1x32xf32> to vector<1x1x32xf32>
    %26 = vector.broadcast %25 : vector<1x1x32xf32> to vector<8x12x32xf32>
    %27 = arith.addf %24, %26 : vector<8x12x32xf32>
    %28 = vector.shape_cast %27 : vector<8x12x32xf32> to vector<96x32xf32>
    %29 = arith.truncf %28 : vector<96x32xf32> to vector<96x32xbf16>
    %c0_10 = arith.constant 0 : index
    %c0_11 = arith.constant 0 : index
    %30 = vector.load %arg4[%c0_10, %c0_11] : memref<32x96xbf16, #tpu.memory_space<vmem>>, vector<32x96xbf16>
    %cst_12 = arith.constant dense<0.000000e+00> : vector<96x96xf32>
    %31 = tpu.matmul %29, %30, %cst_12 {dimension_numbers = #tpu.dot_dimension_numbers<[1], [0], [0], [1], [0, 0, 1, 1], [], []>} : vector<96x32xbf16>, vector<32x96xbf16>, vector<96x96xf32> -> vector<96x96xf32>
    %32 = vector.shape_cast %31 : vector<96x96xf32> to vector<8x12x96xf32>
    %33 = vector.extract_strided_slice %32 {offsets = [0, 0, 0], sizes = [8, 12, 16], strides = [1, 1, 1]} : vector<8x12x96xf32> to vector<8x12x16xf32>
    %34 = vector.extract_strided_slice %32 {offsets = [0, 0, 16], sizes = [8, 12, 16], strides = [1, 1, 1]} : vector<8x12x96xf32> to vector<8x12x16xf32>
    %35 = tpu.concatenate %33, %34 in 0 : vector<8x12x16xf32>, vector<8x12x16xf32> -> vector<16x12x16xf32>
    %cst_13 = arith.constant 2.500000e-01 : f32
    %36 = vector.broadcast %cst_13 : f32 to vector<16x12x16xf32>
    %37 = arith.mulf %35, %36 : vector<16x12x16xf32>
    %38 = vector.extract_strided_slice %32 {offsets = [0, 0, 32], sizes = [8, 12, 16], strides = [1, 1, 1]} : vector<8x12x96xf32> to vector<8x12x16xf32>
    %39 = vector.extract_strided_slice %32 {offsets = [0, 0, 48], sizes = [8, 12, 16], strides = [1, 1, 1]} : vector<8x12x96xf32> to vector<8x12x16xf32>
    %40 = tpu.concatenate %38, %39 in 0 : vector<8x12x16xf32>, vector<8x12x16xf32> -> vector<16x12x16xf32>
    %41 = vector.extract_strided_slice %32 {offsets = [0, 0, 64], sizes = [8, 12, 16], strides = [1, 1, 1]} : vector<8x12x96xf32> to vector<8x12x16xf32>
    %42 = vector.extract_strided_slice %32 {offsets = [0, 0, 80], sizes = [8, 12, 16], strides = [1, 1, 1]} : vector<8x12x96xf32> to vector<8x12x16xf32>
    %43 = tpu.concatenate %41, %42 in 0 : vector<8x12x16xf32>, vector<8x12x16xf32> -> vector<16x12x16xf32>
    %44 = arith.truncf %37 : vector<16x12x16xf32> to vector<16x12x16xbf16>
    %45 = arith.truncf %40 : vector<16x12x16xf32> to vector<16x12x16xbf16>
    "tpu.trace_start"() <{level = 10 : i32, message = "bid,bjd->bij"}> : () -> ()
    %cst_14 = arith.constant dense<0.000000e+00> : vector<16x12x12xf32>
    %46 = tpu.matmul %44, %45, %cst_14 {dimension_numbers = #tpu.dot_dimension_numbers<[2], [2], [1], [1], [0, 0, 0, 1, 1, 1], [0], [0]>} : vector<16x12x16xbf16>, vector<16x12x16xbf16>, vector<16x12x12xf32> -> vector<16x12x12xf32>
    "tpu.trace_stop"() : () -> ()
    %cst_15 = arith.constant dense<0xFF800000> : vector<16x12xf32>
    %47 = vector.multi_reduction <maximumf>, %46, %cst_15 [2] : vector<16x12x12xf32> to vector<16x12xf32>
    %48 = vector.shape_cast %47 : vector<16x12xf32> to vector<16x12x1xf32>
    %49 = vector.broadcast %48 : vector<16x12x1xf32> to vector<16x12x12xf32>
    %50 = arith.subf %46, %49 : vector<16x12x12xf32>
    %51 = math.exp %50 : vector<16x12x12xf32>
    %cst_16 = arith.constant dense<0.000000e+00> : vector<16x12xf32>
    %52 = vector.multi_reduction <add>, %51, %cst_16 [2] : vector<16x12x12xf32> to vector<16x12xf32>
    %53 = vector.shape_cast %52 : vector<16x12xf32> to vector<16x12x1xf32>
    %54 = tpu.reciprocal %53 {approx = true} : vector<16x12x1xf32> -> vector<16x12x1xf32>
    %55 = vector.broadcast %54 : vector<16x12x1xf32> to vector<16x12x12xf32>
    %56 = arith.mulf %51, %55 : vector<16x12x12xf32>
    %57 = arith.truncf %56 : vector<16x12x12xf32> to vector<16x12x12xbf16>
    %58 = arith.truncf %43 : vector<16x12x16xf32> to vector<16x12x16xbf16>
    "tpu.trace_start"() <{level = 10 : i32, message = "bij,bjd->bid"}> : () -> ()
    %cst_17 = arith.constant dense<0.000000e+00> : vector<16x12x16xf32>
    %59 = tpu.matmul %57, %58, %cst_17 {dimension_numbers = #tpu.dot_dimension_numbers<[2], [1], [1], [2], [0, 0, 0, 1, 1, 2], [0], [0]>} : vector<16x12x12xbf16>, vector<16x12x16xbf16>, vector<16x12x16xf32> -> vector<16x12x16xf32>
    "tpu.trace_stop"() : () -> ()
    %60 = vector.extract_strided_slice %59 {offsets = [0, 0, 0], sizes = [8, 12, 16], strides = [1, 1, 1]} : vector<16x12x16xf32> to vector<8x12x16xf32>
    %61 = vector.extract_strided_slice %59 {offsets = [8, 0, 0], sizes = [8, 12, 16], strides = [1, 1, 1]} : vector<16x12x16xf32> to vector<8x12x16xf32>
    %62 = tpu.concatenate %60, %61 in 2 : vector<8x12x16xf32>, vector<8x12x16xf32> -> vector<8x12x32xf32>
    %63 = vector.shape_cast %62 : vector<8x12x32xf32> to vector<96x32xf32>
    %64 = arith.truncf %63 : vector<96x32xf32> to vector<96x32xbf16>
    %c0_18 = arith.constant 0 : index
    %c0_19 = arith.constant 0 : index
    %65 = vector.load %arg5[%c0_18, %c0_19] : memref<32x32xbf16, #tpu.memory_space<vmem>>, vector<32x32xbf16>
    %cst_20 = arith.constant dense<0.000000e+00> : vector<96x32xf32>
    %66 = tpu.matmul %64, %65, %cst_20 {dimension_numbers = #tpu.dot_dimension_numbers<[1], [0], [0], [1], [0, 0, 1, 1], [], []>} : vector<96x32xbf16>, vector<32x32xbf16>, vector<96x32xf32> -> vector<96x32xf32>
    %c0_21 = arith.constant 0 : index
    %c0_22 = arith.constant 0 : index
    %67 = vector.load %arg6[%c0_21, %c0_22] : memref<1x32xf32, #tpu.memory_space<vmem>>, vector<1x32xf32>
    %68 = vector.broadcast %67 : vector<1x32xf32> to vector<96x32xf32>
    %69 = arith.addf %66, %68 : vector<96x32xf32>
    %70 = vector.shape_cast %69 : vector<96x32xf32> to vector<8x12x32xf32>
    %71 = arith.addf %70, %1 : vector<8x12x32xf32>
    %72 = arith.truncf %71 : vector<8x12x32xf32> to vector<8x12x32xbf16>
    %c0_23 = arith.constant 0 : index
    %c0_24 = arith.constant 0 : index
    %c0_25 = arith.constant 0 : index
    %73 = vector.load %arg7[%c0_23, %c0_24, %c0_25] : memref<8x12x32xbf16, #tpu.memory_space<vmem>>, vector<8x12x32xbf16>
    tpu.vector_store %arg7[%c0_23, %c0_24, %c0_25], %72 {strides = array<i32>} : memref<8x12x32xbf16, #tpu.memory_space<vmem>>, vector<8x12x32xbf16>,
    return
  }
  func.func @transform_0(%arg0: i32) -> (i32, i32, i32) {
    %c0_i32 = arith.constant 0 : i32
    %c0_i32_0 = arith.constant 0 : i32
    %c0_i32_1 = arith.constant 0 : i32
    return %arg0, %c0_i32, %c0_i32_0 : i32, i32, i32
  }
  func.func @transform_1(%arg0: i32) -> (i32, i32) {
    %c0_i32 = arith.constant 0 : i32
    %c0_i32_0 = arith.constant 0 : i32
    %c0_i32_1 = arith.constant 0 : i32
    return %c0_i32, %c0_i32_0 : i32, i32
  }
  func.func @transform_2(%arg0: i32) -> (i32, i32) {
    %c0_i32 = arith.constant 0 : i32
    %c0_i32_0 = arith.constant 0 : i32
    %c0_i32_1 = arith.constant 0 : i32
    return %c0_i32, %c0_i32_0 : i32, i32
  }
  func.func @transform_3(%arg0: i32) -> (i32, i32) {
    %c0_i32 = arith.constant 0 : i32
    %c0_i32_0 = arith.constant 0 : i32
    %c0_i32_1 = arith.constant 0 : i32
    return %c0_i32, %c0_i32_0 : i32, i32
  }
  func.func @transform_4(%arg0: i32) -> (i32, i32) {
    %c0_i32 = arith.constant 0 : i32
    %c0_i32_0 = arith.constant 0 : i32
    %c0_i32_1 = arith.constant 0 : i32
    return %c0_i32, %c0_i32_0 : i32, i32
  }
  func.func @transform_5(%arg0: i32) -> (i32, i32) {
    %c0_i32 = arith.constant 0 : i32
    %c0_i32_0 = arith.constant 0 : i32
    %c0_i32_1 = arith.constant 0 : i32
    return %c0_i32, %c0_i32_0 : i32, i32
  }
  func.func @transform_6(%arg0: i32) -> (i32, i32, i32) {
    %c0_i32 = arith.constant 0 : i32
    %c0_i32_0 = arith.constant 0 : i32
    %c0_i32_1 = arith.constant 0 : i32
    return %arg0, %c0_i32, %c0_i32_0 : i32, i32, i32
  }
}

module attributes {stable_mosaic.version = 11 : i64} {
  func.func @_ffn_kernel(%arg0: i32, %arg1: memref<384x32xbf16, #tpu.memory_space<vmem>>, %arg2: memref<1x32xf32, #tpu.memory_space<vmem>>, %arg3: memref<1x32xf32, #tpu.memory_space<vmem>>, %arg4: memref<32x64xbf16, #tpu.memory_space<vmem>>, %arg5: memref<1x64xf32, #tpu.memory_space<vmem>>, %arg6: memref<64x32xbf16, #tpu.memory_space<vmem>>, %arg7: memref<1x32xf32, #tpu.memory_space<vmem>>, %arg8: memref<384x32xbf16, #tpu.memory_space<vmem>>) attributes {dimension_semantics = [#tpu.dimension_semantics<parallel>], iteration_bounds = array<i64: 1>, scalar_prefetch = 0 : i64, scratch_operands = 0 : i64, tpu.core_type = #tpu.core_type<tc>, window_params = [{transform_indices = @transform_0, window_bounds = array<i64: 384, 32>}, {pipeline_mode = #tpu.pipeline_mode<synchronous>, transform_indices = @transform_1, window_bounds = array<i64: 1, 32>}, {pipeline_mode = #tpu.pipeline_mode<synchronous>, transform_indices = @transform_2, window_bounds = array<i64: 1, 32>}, {pipeline_mode = #tpu.pipeline_mode<synchronous>, transform_indices = @transform_3, window_bounds = array<i64: 32, 64>}, {pipeline_mode = #tpu.pipeline_mode<synchronous>, transform_indices = @transform_4, window_bounds = array<i64: 1, 64>}, {pipeline_mode = #tpu.pipeline_mode<synchronous>, transform_indices = @transform_5, window_bounds = array<i64: 64, 32>}, {pipeline_mode = #tpu.pipeline_mode<synchronous>, transform_indices = @transform_6, window_bounds = array<i64: 1, 32>}, {transform_indices = @transform_7, window_bounds = array<i64: 384, 32>}]} {
    %c0 = arith.constant 0 : index
    %c0_0 = arith.constant 0 : index
    %0 = vector.load %arg1[%c0, %c0_0] : memref<384x32xbf16, #tpu.memory_space<vmem>>, vector<384x32xbf16>
    %1 = arith.extf %0 : vector<384x32xbf16> to vector<384x32xf32>
    %c0_1 = arith.constant 0 : index
    %c0_2 = arith.constant 0 : index
    %2 = vector.load %arg2[%c0_1, %c0_2] : memref<1x32xf32, #tpu.memory_space<vmem>>, vector<1x32xf32>
    %c0_3 = arith.constant 0 : index
    %c0_4 = arith.constant 0 : index
    %3 = vector.load %arg3[%c0_3, %c0_4] : memref<1x32xf32, #tpu.memory_space<vmem>>, vector<1x32xf32>
    %cst = arith.constant dense<0.000000e+00> : vector<384xf32>
    %4 = vector.multi_reduction <add>, %1, %cst [1] : vector<384x32xf32> to vector<384xf32>
    %5 = vector.shape_cast %4 : vector<384xf32> to vector<384x1xf32>
    %cst_5 = arith.constant 3.200000e+01 : f32
    %6 = vector.broadcast %cst_5 : f32 to vector<384x1xf32>
    %7 = arith.divf %5, %6 : vector<384x1xf32>
    %8 = vector.broadcast %7 : vector<384x1xf32> to vector<384x32xf32>
    %9 = arith.subf %1, %8 : vector<384x32xf32>
    %10 = arith.mulf %9, %9 : vector<384x32xf32>
    %cst_6 = arith.constant dense<0.000000e+00> : vector<384xf32>
    %11 = vector.multi_reduction <add>, %10, %cst_6 [1] : vector<384x32xf32> to vector<384xf32>
    %12 = vector.shape_cast %11 : vector<384xf32> to vector<384x1xf32>
    %cst_7 = arith.constant 3.200000e+01 : f32
    %13 = vector.broadcast %cst_7 : f32 to vector<384x1xf32>
    %14 = arith.divf %12, %13 : vector<384x1xf32>
    %15 = vector.broadcast %7 : vector<384x1xf32> to vector<384x32xf32>
    %16 = arith.subf %1, %15 : vector<384x32xf32>
    %cst_8 = arith.constant 9.99999974E-6 : f32
    %17 = vector.broadcast %cst_8 : f32 to vector<384x1xf32>
    %18 = arith.addf %14, %17 : vector<384x1xf32>
    %19 = math.rsqrt %18 : vector<384x1xf32>
    %20 = vector.broadcast %19 : vector<384x1xf32> to vector<384x32xf32>
    %21 = arith.mulf %16, %20 : vector<384x32xf32>
    %22 = vector.broadcast %2 : vector<1x32xf32> to vector<384x32xf32>
    %23 = arith.mulf %21, %22 : vector<384x32xf32>
    %24 = vector.broadcast %3 : vector<1x32xf32> to vector<384x32xf32>
    %25 = arith.addf %23, %24 : vector<384x32xf32>
    %26 = arith.truncf %25 : vector<384x32xf32> to vector<384x32xbf16>
    %c0_9 = arith.constant 0 : index
    %c0_10 = arith.constant 0 : index
    %27 = vector.load %arg4[%c0_9, %c0_10] : memref<32x64xbf16, #tpu.memory_space<vmem>>, vector<32x64xbf16>
    %cst_11 = arith.constant dense<0.000000e+00> : vector<384x64xf32>
    %28 = tpu.matmul %26, %27, %cst_11 {dimension_numbers = #tpu.dot_dimension_numbers<[1], [0], [0], [1], [0, 0, 1, 1], [], []>} : vector<384x32xbf16>, vector<32x64xbf16>, vector<384x64xf32> -> vector<384x64xf32>
    %c0_12 = arith.constant 0 : index
    %c0_13 = arith.constant 0 : index
    %29 = vector.load %arg5[%c0_12, %c0_13] : memref<1x64xf32, #tpu.memory_space<vmem>>, vector<1x64xf32>
    %30 = vector.broadcast %29 : vector<1x64xf32> to vector<384x64xf32>
    %31 = arith.addf %28, %30 : vector<384x64xf32>
    %cst_14 = arith.constant 5.000000e-01 : f32
    %32 = vector.broadcast %cst_14 : f32 to vector<384x64xf32>
    %33 = arith.mulf %32, %31 : vector<384x64xf32>
    %cst_15 = arith.constant 0.707106769 : f32
    %34 = vector.broadcast %cst_15 : f32 to vector<384x64xf32>
    %35 = arith.mulf %31, %34 : vector<384x64xf32>
    %cst_16 = arith.constant 0.000000e+00 : f32
    %36 = vector.broadcast %cst_16 : f32 to vector<384x64xf32>
    %37 = arith.cmpf oge, %35, %36 : vector<384x64xf32>
    %cst_17 = arith.constant 1.000000e+00 : f32
    %cst_18 = arith.constant -1.000000e+00 : f32
    %38 = vector.broadcast %cst_17 : f32 to vector<384x64xf32>
    %39 = vector.broadcast %cst_18 : f32 to vector<384x64xf32>
    %40 = arith.select %37, %38, %39 : vector<384x64xi1>, vector<384x64xf32>
    %41 = math.absf %35 : vector<384x64xf32>
    %cst_19 = arith.constant 0.327591091 : f32
    %42 = vector.broadcast %cst_19 : f32 to vector<384x64xf32>
    %43 = arith.mulf %42, %41 : vector<384x64xf32>
    %cst_20 = arith.constant 1.000000e+00 : f32
    %44 = vector.broadcast %cst_20 : f32 to vector<384x64xf32>
    %45 = arith.addf %44, %43 : vector<384x64xf32>
    %46 = tpu.reciprocal %45 {approx = true} : vector<384x64xf32> -> vector<384x64xf32>
    %cst_21 = arith.constant 1.06140542 : f32
    %47 = vector.broadcast %cst_21 : f32 to vector<384x64xf32>
    %48 = arith.mulf %46, %47 : vector<384x64xf32>
    %cst_22 = arith.constant -1.45315206 : f32
    %49 = vector.broadcast %cst_22 : f32 to vector<384x64xf32>
    %50 = arith.addf %49, %48 : vector<384x64xf32>
    %51 = arith.mulf %46, %50 : vector<384x64xf32>
    %cst_23 = arith.constant 1.42141378 : f32
    %52 = vector.broadcast %cst_23 : f32 to vector<384x64xf32>
    %53 = arith.addf %52, %51 : vector<384x64xf32>
    %54 = arith.mulf %46, %53 : vector<384x64xf32>
    %cst_24 = arith.constant -0.284496725 : f32
    %55 = vector.broadcast %cst_24 : f32 to vector<384x64xf32>
    %56 = arith.addf %55, %54 : vector<384x64xf32>
    %57 = arith.mulf %46, %56 : vector<384x64xf32>
    %cst_25 = arith.constant 0.254829586 : f32
    %58 = vector.broadcast %cst_25 : f32 to vector<384x64xf32>
    %59 = arith.addf %58, %57 : vector<384x64xf32>
    %60 = arith.mulf %46, %59 : vector<384x64xf32>
    %cst_26 = arith.constant 0.000000e+00 : f32
    %61 = vector.broadcast %cst_26 : f32 to vector<384x64xf32>
    %62 = arith.subf %61, %41 : vector<384x64xf32>
    %63 = arith.mulf %62, %41 : vector<384x64xf32>
    %64 = math.exp %63 : vector<384x64xf32>
    %65 = arith.mulf %60, %64 : vector<384x64xf32>
    %cst_27 = arith.constant 1.000000e+00 : f32
    %66 = vector.broadcast %cst_27 : f32 to vector<384x64xf32>
    %67 = arith.subf %66, %65 : vector<384x64xf32>
    %68 = arith.mulf %40, %67 : vector<384x64xf32>
    %cst_28 = arith.constant 1.000000e+00 : f32
    %69 = vector.broadcast %cst_28 : f32 to vector<384x64xf32>
    %70 = arith.addf %69, %68 : vector<384x64xf32>
    %71 = arith.mulf %33, %70 : vector<384x64xf32>
    %72 = arith.truncf %71 : vector<384x64xf32> to vector<384x64xbf16>
    %c0_29 = arith.constant 0 : index
    %c0_30 = arith.constant 0 : index
    %73 = vector.load %arg6[%c0_29, %c0_30] : memref<64x32xbf16, #tpu.memory_space<vmem>>, vector<64x32xbf16>
    %cst_31 = arith.constant dense<0.000000e+00> : vector<384x32xf32>
    %74 = tpu.matmul %72, %73, %cst_31 {dimension_numbers = #tpu.dot_dimension_numbers<[1], [0], [0], [1], [0, 0, 1, 1], [], []>} : vector<384x64xbf16>, vector<64x32xbf16>, vector<384x32xf32> -> vector<384x32xf32>
    %c0_32 = arith.constant 0 : index
    %c0_33 = arith.constant 0 : index
    %75 = vector.load %arg7[%c0_32, %c0_33] : memref<1x32xf32, #tpu.memory_space<vmem>>, vector<1x32xf32>
    %76 = vector.broadcast %75 : vector<1x32xf32> to vector<384x32xf32>
    %77 = arith.addf %74, %76 : vector<384x32xf32>
    %78 = arith.addf %77, %1 : vector<384x32xf32>
    %79 = arith.truncf %78 : vector<384x32xf32> to vector<384x32xbf16>
    %c0_34 = arith.constant 0 : index
    %c0_35 = arith.constant 0 : index
    %80 = vector.load %arg8[%c0_34, %c0_35] : memref<384x32xbf16, #tpu.memory_space<vmem>>, vector<384x32xbf16>
    tpu.vector_store %arg8[%c0_34, %c0_35], %79 {strides = array<i32>} : memref<384x32xbf16, #tpu.memory_space<vmem>>, vector<384x32xbf16>,
    return
  }
  func.func @transform_0(%arg0: i32) -> (i32, i32) {
    %c0_i32 = arith.constant 0 : i32
    %c0_i32_0 = arith.constant 0 : i32
    return %arg0, %c0_i32 : i32, i32
  }
  func.func @transform_1(%arg0: i32) -> (i32, i32) {
    %c0_i32 = arith.constant 0 : i32
    %c0_i32_0 = arith.constant 0 : i32
    %c0_i32_1 = arith.constant 0 : i32
    return %c0_i32, %c0_i32_0 : i32, i32
  }
  func.func @transform_2(%arg0: i32) -> (i32, i32) {
    %c0_i32 = arith.constant 0 : i32
    %c0_i32_0 = arith.constant 0 : i32
    %c0_i32_1 = arith.constant 0 : i32
    return %c0_i32, %c0_i32_0 : i32, i32
  }
  func.func @transform_3(%arg0: i32) -> (i32, i32) {
    %c0_i32 = arith.constant 0 : i32
    %c0_i32_0 = arith.constant 0 : i32
    %c0_i32_1 = arith.constant 0 : i32
    return %c0_i32, %c0_i32_0 : i32, i32
  }
  func.func @transform_4(%arg0: i32) -> (i32, i32) {
    %c0_i32 = arith.constant 0 : i32
    %c0_i32_0 = arith.constant 0 : i32
    %c0_i32_1 = arith.constant 0 : i32
    return %c0_i32, %c0_i32_0 : i32, i32
  }
  func.func @transform_5(%arg0: i32) -> (i32, i32) {
    %c0_i32 = arith.constant 0 : i32
    %c0_i32_0 = arith.constant 0 : i32
    %c0_i32_1 = arith.constant 0 : i32
    return %c0_i32, %c0_i32_0 : i32, i32
  }
  func.func @transform_6(%arg0: i32) -> (i32, i32) {
    %c0_i32 = arith.constant 0 : i32
    %c0_i32_0 = arith.constant 0 : i32
    %c0_i32_1 = arith.constant 0 : i32
    return %c0_i32, %c0_i32_0 : i32, i32
  }
  func.func @transform_7(%arg0: i32) -> (i32, i32) {
    %c0_i32 = arith.constant 0 : i32
    %c0_i32_0 = arith.constant 0 : i32
    return %arg0, %c0_i32 : i32, i32
  }
}

module attributes {stable_mosaic.version = 11 : i64} {
  func.func @_layernorm_kernel(%arg0: i32, %arg1: memref<128x32xbf16, #tpu.memory_space<vmem>>, %arg2: memref<1x32xf32, #tpu.memory_space<vmem>>, %arg3: memref<1x32xf32, #tpu.memory_space<vmem>>, %arg4: memref<128x32xbf16, #tpu.memory_space<vmem>>) attributes {dimension_semantics = [#tpu.dimension_semantics<parallel>], iteration_bounds = array<i64: 1>, scalar_prefetch = 0 : i64, scratch_operands = 0 : i64, tpu.core_type = #tpu.core_type<tc>, window_params = [{transform_indices = @transform_0, window_bounds = array<i64: 128, 32>}, {pipeline_mode = #tpu.pipeline_mode<synchronous>, transform_indices = @transform_1, window_bounds = array<i64: 1, 32>}, {pipeline_mode = #tpu.pipeline_mode<synchronous>, transform_indices = @transform_2, window_bounds = array<i64: 1, 32>}, {transform_indices = @transform_3, window_bounds = array<i64: 128, 32>}]} {
    %c0 = arith.constant 0 : index
    %c0_0 = arith.constant 0 : index
    %0 = vector.load %arg1[%c0, %c0_0] : memref<128x32xbf16, #tpu.memory_space<vmem>>, vector<128x32xbf16>
    %1 = arith.extf %0 : vector<128x32xbf16> to vector<128x32xf32>
    %c0_1 = arith.constant 0 : index
    %c0_2 = arith.constant 0 : index
    %2 = vector.load %arg2[%c0_1, %c0_2] : memref<1x32xf32, #tpu.memory_space<vmem>>, vector<1x32xf32>
    %c0_3 = arith.constant 0 : index
    %c0_4 = arith.constant 0 : index
    %3 = vector.load %arg3[%c0_3, %c0_4] : memref<1x32xf32, #tpu.memory_space<vmem>>, vector<1x32xf32>
    %cst = arith.constant dense<0.000000e+00> : vector<128xf32>
    %4 = vector.multi_reduction <add>, %1, %cst [1] : vector<128x32xf32> to vector<128xf32>
    %5 = vector.shape_cast %4 : vector<128xf32> to vector<128x1xf32>
    %cst_5 = arith.constant 3.200000e+01 : f32
    %6 = vector.broadcast %cst_5 : f32 to vector<128x1xf32>
    %7 = arith.divf %5, %6 : vector<128x1xf32>
    %8 = vector.broadcast %7 : vector<128x1xf32> to vector<128x32xf32>
    %9 = arith.subf %1, %8 : vector<128x32xf32>
    %10 = arith.mulf %9, %9 : vector<128x32xf32>
    %cst_6 = arith.constant dense<0.000000e+00> : vector<128xf32>
    %11 = vector.multi_reduction <add>, %10, %cst_6 [1] : vector<128x32xf32> to vector<128xf32>
    %12 = vector.shape_cast %11 : vector<128xf32> to vector<128x1xf32>
    %cst_7 = arith.constant 3.200000e+01 : f32
    %13 = vector.broadcast %cst_7 : f32 to vector<128x1xf32>
    %14 = arith.divf %12, %13 : vector<128x1xf32>
    %15 = vector.broadcast %7 : vector<128x1xf32> to vector<128x32xf32>
    %16 = arith.subf %1, %15 : vector<128x32xf32>
    %cst_8 = arith.constant 9.99999974E-6 : f32
    %17 = vector.broadcast %cst_8 : f32 to vector<128x1xf32>
    %18 = arith.addf %14, %17 : vector<128x1xf32>
    %19 = math.rsqrt %18 : vector<128x1xf32>
    %20 = vector.broadcast %19 : vector<128x1xf32> to vector<128x32xf32>
    %21 = arith.mulf %16, %20 : vector<128x32xf32>
    %22 = vector.broadcast %2 : vector<1x32xf32> to vector<128x32xf32>
    %23 = arith.mulf %21, %22 : vector<128x32xf32>
    %24 = vector.broadcast %3 : vector<1x32xf32> to vector<128x32xf32>
    %25 = arith.addf %23, %24 : vector<128x32xf32>
    %26 = arith.truncf %25 : vector<128x32xf32> to vector<128x32xbf16>
    %c0_9 = arith.constant 0 : index
    %c0_10 = arith.constant 0 : index
    %27 = vector.load %arg4[%c0_9, %c0_10] : memref<128x32xbf16, #tpu.memory_space<vmem>>, vector<128x32xbf16>
    tpu.vector_store %arg4[%c0_9, %c0_10], %26 {strides = array<i32>} : memref<128x32xbf16, #tpu.memory_space<vmem>>, vector<128x32xbf16>,
    return
  }
  func.func @transform_0(%arg0: i32) -> (i32, i32) {
    %c0_i32 = arith.constant 0 : i32
    %c0_i32_0 = arith.constant 0 : i32
    return %arg0, %c0_i32 : i32, i32
  }
  func.func @transform_1(%arg0: i32) -> (i32, i32) {
    %c0_i32 = arith.constant 0 : i32
    %c0_i32_0 = arith.constant 0 : i32
    %c0_i32_1 = arith.constant 0 : i32
    return %c0_i32, %c0_i32_0 : i32, i32
  }
  func.func @transform_2(%arg0: i32) -> (i32, i32) {
    %c0_i32 = arith.constant 0 : i32
    %c0_i32_0 = arith.constant 0 : i32
    %c0_i32_1 = arith.constant 0 : i32
    return %c0_i32, %c0_i32_0 : i32, i32
  }
  func.func @transform_3(%arg0: i32) -> (i32, i32) {
    %c0_i32 = arith.constant 0 : i32
    %c0_i32_0 = arith.constant 0 : i32
    return %arg0, %c0_i32 : i32, i32
  }
}

module attributes {stable_mosaic.version = 11 : i64} {
  func.func @_attn_block_kernel(%arg0: i32, %arg1: memref<4x16x32xbf16, #tpu.memory_space<vmem>>, %arg2: memref<1x32xf32, #tpu.memory_space<vmem>>, %arg3: memref<1x32xf32, #tpu.memory_space<vmem>>, %arg4: memref<32x96xbf16, #tpu.memory_space<vmem>>, %arg5: memref<32x32xbf16, #tpu.memory_space<vmem>>, %arg6: memref<1x32xf32, #tpu.memory_space<vmem>>, %arg7: memref<4x16x32xbf16, #tpu.memory_space<vmem>>) attributes {dimension_semantics = [#tpu.dimension_semantics<parallel>], iteration_bounds = array<i64: 2>, scalar_prefetch = 0 : i64, scratch_operands = 0 : i64, tpu.core_type = #tpu.core_type<tc>, window_params = [{transform_indices = @transform_0, window_bounds = array<i64: 4, 16, 32>}, {pipeline_mode = #tpu.pipeline_mode<synchronous>, transform_indices = @transform_1, window_bounds = array<i64: 1, 32>}, {pipeline_mode = #tpu.pipeline_mode<synchronous>, transform_indices = @transform_2, window_bounds = array<i64: 1, 32>}, {pipeline_mode = #tpu.pipeline_mode<synchronous>, transform_indices = @transform_3, window_bounds = array<i64: 32, 96>}, {pipeline_mode = #tpu.pipeline_mode<synchronous>, transform_indices = @transform_4, window_bounds = array<i64: 32, 32>}, {pipeline_mode = #tpu.pipeline_mode<synchronous>, transform_indices = @transform_5, window_bounds = array<i64: 1, 32>}, {transform_indices = @transform_6, window_bounds = array<i64: 4, 16, 32>}]} {
    %c0 = arith.constant 0 : index
    %c0_0 = arith.constant 0 : index
    %c0_1 = arith.constant 0 : index
    %0 = vector.load %arg1[%c0, %c0_0, %c0_1] : memref<4x16x32xbf16, #tpu.memory_space<vmem>>, vector<4x16x32xbf16>
    %1 = arith.extf %0 : vector<4x16x32xbf16> to vector<4x16x32xf32>
    %c0_2 = arith.constant 0 : index
    %c0_3 = arith.constant 0 : index
    %2 = vector.load %arg2[%c0_2, %c0_3] : memref<1x32xf32, #tpu.memory_space<vmem>>, vector<1x32xf32>
    %c0_4 = arith.constant 0 : index
    %c0_5 = arith.constant 0 : index
    %3 = vector.load %arg3[%c0_4, %c0_5] : memref<1x32xf32, #tpu.memory_space<vmem>>, vector<1x32xf32>
    %cst = arith.constant dense<0.000000e+00> : vector<4x16xf32>
    %4 = vector.multi_reduction <add>, %1, %cst [2] : vector<4x16x32xf32> to vector<4x16xf32>
    %5 = vector.shape_cast %4 : vector<4x16xf32> to vector<4x16x1xf32>
    %cst_6 = arith.constant 3.200000e+01 : f32
    %6 = vector.broadcast %cst_6 : f32 to vector<4x16x1xf32>
    %7 = arith.divf %5, %6 : vector<4x16x1xf32>
    %8 = vector.broadcast %7 : vector<4x16x1xf32> to vector<4x16x32xf32>
    %9 = arith.subf %1, %8 : vector<4x16x32xf32>
    %10 = arith.mulf %9, %9 : vector<4x16x32xf32>
    %cst_7 = arith.constant dense<0.000000e+00> : vector<4x16xf32>
    %11 = vector.multi_reduction <add>, %10, %cst_7 [2] : vector<4x16x32xf32> to vector<4x16xf32>
    %12 = vector.shape_cast %11 : vector<4x16xf32> to vector<4x16x1xf32>
    %cst_8 = arith.constant 3.200000e+01 : f32
    %13 = vector.broadcast %cst_8 : f32 to vector<4x16x1xf32>
    %14 = arith.divf %12, %13 : vector<4x16x1xf32>
    %15 = vector.broadcast %7 : vector<4x16x1xf32> to vector<4x16x32xf32>
    %16 = arith.subf %1, %15 : vector<4x16x32xf32>
    %cst_9 = arith.constant 9.99999974E-6 : f32
    %17 = vector.broadcast %cst_9 : f32 to vector<4x16x1xf32>
    %18 = arith.addf %14, %17 : vector<4x16x1xf32>
    %19 = math.rsqrt %18 : vector<4x16x1xf32>
    %20 = vector.broadcast %19 : vector<4x16x1xf32> to vector<4x16x32xf32>
    %21 = arith.mulf %16, %20 : vector<4x16x32xf32>
    %22 = vector.shape_cast %2 : vector<1x32xf32> to vector<1x1x32xf32>
    %23 = vector.broadcast %22 : vector<1x1x32xf32> to vector<4x16x32xf32>
    %24 = arith.mulf %21, %23 : vector<4x16x32xf32>
    %25 = vector.shape_cast %3 : vector<1x32xf32> to vector<1x1x32xf32>
    %26 = vector.broadcast %25 : vector<1x1x32xf32> to vector<4x16x32xf32>
    %27 = arith.addf %24, %26 : vector<4x16x32xf32>
    %28 = vector.shape_cast %27 : vector<4x16x32xf32> to vector<64x32xf32>
    %29 = arith.truncf %28 : vector<64x32xf32> to vector<64x32xbf16>
    %c0_10 = arith.constant 0 : index
    %c0_11 = arith.constant 0 : index
    %30 = vector.load %arg4[%c0_10, %c0_11] : memref<32x96xbf16, #tpu.memory_space<vmem>>, vector<32x96xbf16>
    %cst_12 = arith.constant dense<0.000000e+00> : vector<64x96xf32>
    %31 = tpu.matmul %29, %30, %cst_12 {dimension_numbers = #tpu.dot_dimension_numbers<[1], [0], [0], [1], [0, 0, 1, 1], [], []>} : vector<64x32xbf16>, vector<32x96xbf16>, vector<64x96xf32> -> vector<64x96xf32>
    %32 = vector.shape_cast %31 : vector<64x96xf32> to vector<4x16x96xf32>
    %33 = vector.extract_strided_slice %32 {offsets = [0, 0, 0], sizes = [4, 16, 16], strides = [1, 1, 1]} : vector<4x16x96xf32> to vector<4x16x16xf32>
    %34 = vector.extract_strided_slice %32 {offsets = [0, 0, 16], sizes = [4, 16, 16], strides = [1, 1, 1]} : vector<4x16x96xf32> to vector<4x16x16xf32>
    %35 = tpu.concatenate %33, %34 in 0 : vector<4x16x16xf32>, vector<4x16x16xf32> -> vector<8x16x16xf32>
    %cst_13 = arith.constant 2.500000e-01 : f32
    %36 = vector.broadcast %cst_13 : f32 to vector<8x16x16xf32>
    %37 = arith.mulf %35, %36 : vector<8x16x16xf32>
    %38 = vector.extract_strided_slice %32 {offsets = [0, 0, 32], sizes = [4, 16, 16], strides = [1, 1, 1]} : vector<4x16x96xf32> to vector<4x16x16xf32>
    %39 = vector.extract_strided_slice %32 {offsets = [0, 0, 48], sizes = [4, 16, 16], strides = [1, 1, 1]} : vector<4x16x96xf32> to vector<4x16x16xf32>
    %40 = tpu.concatenate %38, %39 in 0 : vector<4x16x16xf32>, vector<4x16x16xf32> -> vector<8x16x16xf32>
    %41 = vector.extract_strided_slice %32 {offsets = [0, 0, 64], sizes = [4, 16, 16], strides = [1, 1, 1]} : vector<4x16x96xf32> to vector<4x16x16xf32>
    %42 = vector.extract_strided_slice %32 {offsets = [0, 0, 80], sizes = [4, 16, 16], strides = [1, 1, 1]} : vector<4x16x96xf32> to vector<4x16x16xf32>
    %43 = tpu.concatenate %41, %42 in 0 : vector<4x16x16xf32>, vector<4x16x16xf32> -> vector<8x16x16xf32>
    %44 = arith.truncf %37 : vector<8x16x16xf32> to vector<8x16x16xbf16>
    %45 = arith.truncf %40 : vector<8x16x16xf32> to vector<8x16x16xbf16>
    "tpu.trace_start"() <{level = 10 : i32, message = "bid,bjd->bij"}> : () -> ()
    %cst_14 = arith.constant dense<0.000000e+00> : vector<8x16x16xf32>
    %46 = tpu.matmul %44, %45, %cst_14 {dimension_numbers = #tpu.dot_dimension_numbers<[2], [2], [1], [1], [0, 0, 0, 1, 1, 1], [0], [0]>} : vector<8x16x16xbf16>, vector<8x16x16xbf16>, vector<8x16x16xf32> -> vector<8x16x16xf32>
    "tpu.trace_stop"() : () -> ()
    %cst_15 = arith.constant dense<0xFF800000> : vector<8x16xf32>
    %47 = vector.multi_reduction <maximumf>, %46, %cst_15 [2] : vector<8x16x16xf32> to vector<8x16xf32>
    %48 = vector.shape_cast %47 : vector<8x16xf32> to vector<8x16x1xf32>
    %49 = vector.broadcast %48 : vector<8x16x1xf32> to vector<8x16x16xf32>
    %50 = arith.subf %46, %49 : vector<8x16x16xf32>
    %51 = math.exp %50 : vector<8x16x16xf32>
    %cst_16 = arith.constant dense<0.000000e+00> : vector<8x16xf32>
    %52 = vector.multi_reduction <add>, %51, %cst_16 [2] : vector<8x16x16xf32> to vector<8x16xf32>
    %53 = vector.shape_cast %52 : vector<8x16xf32> to vector<8x16x1xf32>
    %54 = tpu.reciprocal %53 {approx = true} : vector<8x16x1xf32> -> vector<8x16x1xf32>
    %55 = vector.broadcast %54 : vector<8x16x1xf32> to vector<8x16x16xf32>
    %56 = arith.mulf %51, %55 : vector<8x16x16xf32>
    %57 = arith.truncf %56 : vector<8x16x16xf32> to vector<8x16x16xbf16>
    %58 = arith.truncf %43 : vector<8x16x16xf32> to vector<8x16x16xbf16>
    "tpu.trace_start"() <{level = 10 : i32, message = "bij,bjd->bid"}> : () -> ()
    %cst_17 = arith.constant dense<0.000000e+00> : vector<8x16x16xf32>
    %59 = tpu.matmul %57, %58, %cst_17 {dimension_numbers = #tpu.dot_dimension_numbers<[2], [1], [1], [2], [0, 0, 0, 1, 1, 2], [0], [0]>} : vector<8x16x16xbf16>, vector<8x16x16xbf16>, vector<8x16x16xf32> -> vector<8x16x16xf32>
    "tpu.trace_stop"() : () -> ()
    %60 = vector.extract_strided_slice %59 {offsets = [0, 0, 0], sizes = [4, 16, 16], strides = [1, 1, 1]} : vector<8x16x16xf32> to vector<4x16x16xf32>
    %61 = vector.extract_strided_slice %59 {offsets = [4, 0, 0], sizes = [4, 16, 16], strides = [1, 1, 1]} : vector<8x16x16xf32> to vector<4x16x16xf32>
    %62 = tpu.concatenate %60, %61 in 2 : vector<4x16x16xf32>, vector<4x16x16xf32> -> vector<4x16x32xf32>
    %63 = vector.shape_cast %62 : vector<4x16x32xf32> to vector<64x32xf32>
    %64 = arith.truncf %63 : vector<64x32xf32> to vector<64x32xbf16>
    %c0_18 = arith.constant 0 : index
    %c0_19 = arith.constant 0 : index
    %65 = vector.load %arg5[%c0_18, %c0_19] : memref<32x32xbf16, #tpu.memory_space<vmem>>, vector<32x32xbf16>
    %cst_20 = arith.constant dense<0.000000e+00> : vector<64x32xf32>
    %66 = tpu.matmul %64, %65, %cst_20 {dimension_numbers = #tpu.dot_dimension_numbers<[1], [0], [0], [1], [0, 0, 1, 1], [], []>} : vector<64x32xbf16>, vector<32x32xbf16>, vector<64x32xf32> -> vector<64x32xf32>
    %c0_21 = arith.constant 0 : index
    %c0_22 = arith.constant 0 : index
    %67 = vector.load %arg6[%c0_21, %c0_22] : memref<1x32xf32, #tpu.memory_space<vmem>>, vector<1x32xf32>
    %68 = vector.broadcast %67 : vector<1x32xf32> to vector<64x32xf32>
    %69 = arith.addf %66, %68 : vector<64x32xf32>
    %70 = vector.shape_cast %69 : vector<64x32xf32> to vector<4x16x32xf32>
    %71 = arith.addf %70, %1 : vector<4x16x32xf32>
    %72 = arith.truncf %71 : vector<4x16x32xf32> to vector<4x16x32xbf16>
    %c0_23 = arith.constant 0 : index
    %c0_24 = arith.constant 0 : index
    %c0_25 = arith.constant 0 : index
    %73 = vector.load %arg7[%c0_23, %c0_24, %c0_25] : memref<4x16x32xbf16, #tpu.memory_space<vmem>>, vector<4x16x32xbf16>
    tpu.vector_store %arg7[%c0_23, %c0_24, %c0_25], %72 {strides = array<i32>} : memref<4x16x32xbf16, #tpu.memory_space<vmem>>, vector<4x16x32xbf16>,
    return
  }
  func.func @transform_0(%arg0: i32) -> (i32, i32, i32) {
    %c0_i32 = arith.constant 0 : i32
    %c0_i32_0 = arith.constant 0 : i32
    %c0_i32_1 = arith.constant 0 : i32
    return %arg0, %c0_i32, %c0_i32_0 : i32, i32, i32
  }
  func.func @transform_1(%arg0: i32) -> (i32, i32) {
    %c0_i32 = arith.constant 0 : i32
    %c0_i32_0 = arith.constant 0 : i32
    %c0_i32_1 = arith.constant 0 : i32
    return %c0_i32, %c0_i32_0 : i32, i32
  }
  func.func @transform_2(%arg0: i32) -> (i32, i32) {
    %c0_i32 = arith.constant 0 : i32
    %c0_i32_0 = arith.constant 0 : i32
    %c0_i32_1 = arith.constant 0 : i32
    return %c0_i32, %c0_i32_0 : i32, i32
  }
  func.func @transform_3(%arg0: i32) -> (i32, i32) {
    %c0_i32 = arith.constant 0 : i32
    %c0_i32_0 = arith.constant 0 : i32
    %c0_i32_1 = arith.constant 0 : i32
    return %c0_i32, %c0_i32_0 : i32, i32
  }
  func.func @transform_4(%arg0: i32) -> (i32, i32) {
    %c0_i32 = arith.constant 0 : i32
    %c0_i32_0 = arith.constant 0 : i32
    %c0_i32_1 = arith.constant 0 : i32
    return %c0_i32, %c0_i32_0 : i32, i32
  }
  func.func @transform_5(%arg0: i32) -> (i32, i32) {
    %c0_i32 = arith.constant 0 : i32
    %c0_i32_0 = arith.constant 0 : i32
    %c0_i32_1 = arith.constant 0 : i32
    return %c0_i32, %c0_i32_0 : i32, i32
  }
  func.func @transform_6(%arg0: i32) -> (i32, i32, i32) {
    %c0_i32 = arith.constant 0 : i32
    %c0_i32_0 = arith.constant 0 : i32
    %c0_i32_1 = arith.constant 0 : i32
    return %arg0, %c0_i32, %c0_i32_0 : i32, i32, i32
  }
}

module attributes {stable_mosaic.version = 11 : i64} {
  func.func @_ffn_kernel(%arg0: i32, %arg1: memref<128x32xbf16, #tpu.memory_space<vmem>>, %arg2: memref<1x32xf32, #tpu.memory_space<vmem>>, %arg3: memref<1x32xf32, #tpu.memory_space<vmem>>, %arg4: memref<32x64xbf16, #tpu.memory_space<vmem>>, %arg5: memref<1x64xf32, #tpu.memory_space<vmem>>, %arg6: memref<64x32xbf16, #tpu.memory_space<vmem>>, %arg7: memref<1x32xf32, #tpu.memory_space<vmem>>, %arg8: memref<128x32xbf16, #tpu.memory_space<vmem>>) attributes {dimension_semantics = [#tpu.dimension_semantics<parallel>], iteration_bounds = array<i64: 1>, scalar_prefetch = 0 : i64, scratch_operands = 0 : i64, tpu.core_type = #tpu.core_type<tc>, window_params = [{transform_indices = @transform_0, window_bounds = array<i64: 128, 32>}, {pipeline_mode = #tpu.pipeline_mode<synchronous>, transform_indices = @transform_1, window_bounds = array<i64: 1, 32>}, {pipeline_mode = #tpu.pipeline_mode<synchronous>, transform_indices = @transform_2, window_bounds = array<i64: 1, 32>}, {pipeline_mode = #tpu.pipeline_mode<synchronous>, transform_indices = @transform_3, window_bounds = array<i64: 32, 64>}, {pipeline_mode = #tpu.pipeline_mode<synchronous>, transform_indices = @transform_4, window_bounds = array<i64: 1, 64>}, {pipeline_mode = #tpu.pipeline_mode<synchronous>, transform_indices = @transform_5, window_bounds = array<i64: 64, 32>}, {pipeline_mode = #tpu.pipeline_mode<synchronous>, transform_indices = @transform_6, window_bounds = array<i64: 1, 32>}, {transform_indices = @transform_7, window_bounds = array<i64: 128, 32>}]} {
    %c0 = arith.constant 0 : index
    %c0_0 = arith.constant 0 : index
    %0 = vector.load %arg1[%c0, %c0_0] : memref<128x32xbf16, #tpu.memory_space<vmem>>, vector<128x32xbf16>
    %1 = arith.extf %0 : vector<128x32xbf16> to vector<128x32xf32>
    %c0_1 = arith.constant 0 : index
    %c0_2 = arith.constant 0 : index
    %2 = vector.load %arg2[%c0_1, %c0_2] : memref<1x32xf32, #tpu.memory_space<vmem>>, vector<1x32xf32>
    %c0_3 = arith.constant 0 : index
    %c0_4 = arith.constant 0 : index
    %3 = vector.load %arg3[%c0_3, %c0_4] : memref<1x32xf32, #tpu.memory_space<vmem>>, vector<1x32xf32>
    %cst = arith.constant dense<0.000000e+00> : vector<128xf32>
    %4 = vector.multi_reduction <add>, %1, %cst [1] : vector<128x32xf32> to vector<128xf32>
    %5 = vector.shape_cast %4 : vector<128xf32> to vector<128x1xf32>
    %cst_5 = arith.constant 3.200000e+01 : f32
    %6 = vector.broadcast %cst_5 : f32 to vector<128x1xf32>
    %7 = arith.divf %5, %6 : vector<128x1xf32>
    %8 = vector.broadcast %7 : vector<128x1xf32> to vector<128x32xf32>
    %9 = arith.subf %1, %8 : vector<128x32xf32>
    %10 = arith.mulf %9, %9 : vector<128x32xf32>
    %cst_6 = arith.constant dense<0.000000e+00> : vector<128xf32>
    %11 = vector.multi_reduction <add>, %10, %cst_6 [1] : vector<128x32xf32> to vector<128xf32>
    %12 = vector.shape_cast %11 : vector<128xf32> to vector<128x1xf32>
    %cst_7 = arith.constant 3.200000e+01 : f32
    %13 = vector.broadcast %cst_7 : f32 to vector<128x1xf32>
    %14 = arith.divf %12, %13 : vector<128x1xf32>
    %15 = vector.broadcast %7 : vector<128x1xf32> to vector<128x32xf32>
    %16 = arith.subf %1, %15 : vector<128x32xf32>
    %cst_8 = arith.constant 9.99999974E-6 : f32
    %17 = vector.broadcast %cst_8 : f32 to vector<128x1xf32>
    %18 = arith.addf %14, %17 : vector<128x1xf32>
    %19 = math.rsqrt %18 : vector<128x1xf32>
    %20 = vector.broadcast %19 : vector<128x1xf32> to vector<128x32xf32>
    %21 = arith.mulf %16, %20 : vector<128x32xf32>
    %22 = vector.broadcast %2 : vector<1x32xf32> to vector<128x32xf32>
    %23 = arith.mulf %21, %22 : vector<128x32xf32>
    %24 = vector.broadcast %3 : vector<1x32xf32> to vector<128x32xf32>
    %25 = arith.addf %23, %24 : vector<128x32xf32>
    %26 = arith.truncf %25 : vector<128x32xf32> to vector<128x32xbf16>
    %c0_9 = arith.constant 0 : index
    %c0_10 = arith.constant 0 : index
    %27 = vector.load %arg4[%c0_9, %c0_10] : memref<32x64xbf16, #tpu.memory_space<vmem>>, vector<32x64xbf16>
    %cst_11 = arith.constant dense<0.000000e+00> : vector<128x64xf32>
    %28 = tpu.matmul %26, %27, %cst_11 {dimension_numbers = #tpu.dot_dimension_numbers<[1], [0], [0], [1], [0, 0, 1, 1], [], []>} : vector<128x32xbf16>, vector<32x64xbf16>, vector<128x64xf32> -> vector<128x64xf32>
    %c0_12 = arith.constant 0 : index
    %c0_13 = arith.constant 0 : index
    %29 = vector.load %arg5[%c0_12, %c0_13] : memref<1x64xf32, #tpu.memory_space<vmem>>, vector<1x64xf32>
    %30 = vector.broadcast %29 : vector<1x64xf32> to vector<128x64xf32>
    %31 = arith.addf %28, %30 : vector<128x64xf32>
    %cst_14 = arith.constant 5.000000e-01 : f32
    %32 = vector.broadcast %cst_14 : f32 to vector<128x64xf32>
    %33 = arith.mulf %32, %31 : vector<128x64xf32>
    %cst_15 = arith.constant 0.707106769 : f32
    %34 = vector.broadcast %cst_15 : f32 to vector<128x64xf32>
    %35 = arith.mulf %31, %34 : vector<128x64xf32>
    %cst_16 = arith.constant 0.000000e+00 : f32
    %36 = vector.broadcast %cst_16 : f32 to vector<128x64xf32>
    %37 = arith.cmpf oge, %35, %36 : vector<128x64xf32>
    %cst_17 = arith.constant 1.000000e+00 : f32
    %cst_18 = arith.constant -1.000000e+00 : f32
    %38 = vector.broadcast %cst_17 : f32 to vector<128x64xf32>
    %39 = vector.broadcast %cst_18 : f32 to vector<128x64xf32>
    %40 = arith.select %37, %38, %39 : vector<128x64xi1>, vector<128x64xf32>
    %41 = math.absf %35 : vector<128x64xf32>
    %cst_19 = arith.constant 0.327591091 : f32
    %42 = vector.broadcast %cst_19 : f32 to vector<128x64xf32>
    %43 = arith.mulf %42, %41 : vector<128x64xf32>
    %cst_20 = arith.constant 1.000000e+00 : f32
    %44 = vector.broadcast %cst_20 : f32 to vector<128x64xf32>
    %45 = arith.addf %44, %43 : vector<128x64xf32>
    %46 = tpu.reciprocal %45 {approx = true} : vector<128x64xf32> -> vector<128x64xf32>
    %cst_21 = arith.constant 1.06140542 : f32
    %47 = vector.broadcast %cst_21 : f32 to vector<128x64xf32>
    %48 = arith.mulf %46, %47 : vector<128x64xf32>
    %cst_22 = arith.constant -1.45315206 : f32
    %49 = vector.broadcast %cst_22 : f32 to vector<128x64xf32>
    %50 = arith.addf %49, %48 : vector<128x64xf32>
    %51 = arith.mulf %46, %50 : vector<128x64xf32>
    %cst_23 = arith.constant 1.42141378 : f32
    %52 = vector.broadcast %cst_23 : f32 to vector<128x64xf32>
    %53 = arith.addf %52, %51 : vector<128x64xf32>
    %54 = arith.mulf %46, %53 : vector<128x64xf32>
    %cst_24 = arith.constant -0.284496725 : f32
    %55 = vector.broadcast %cst_24 : f32 to vector<128x64xf32>
    %56 = arith.addf %55, %54 : vector<128x64xf32>
    %57 = arith.mulf %46, %56 : vector<128x64xf32>
    %cst_25 = arith.constant 0.254829586 : f32
    %58 = vector.broadcast %cst_25 : f32 to vector<128x64xf32>
    %59 = arith.addf %58, %57 : vector<128x64xf32>
    %60 = arith.mulf %46, %59 : vector<128x64xf32>
    %cst_26 = arith.constant 0.000000e+00 : f32
    %61 = vector.broadcast %cst_26 : f32 to vector<128x64xf32>
    %62 = arith.subf %61, %41 : vector<128x64xf32>
    %63 = arith.mulf %62, %41 : vector<128x64xf32>
    %64 = math.exp %63 : vector<128x64xf32>
    %65 = arith.mulf %60, %64 : vector<128x64xf32>
    %cst_27 = arith.constant 1.000000e+00 : f32
    %66 = vector.broadcast %cst_27 : f32 to vector<128x64xf32>
    %67 = arith.subf %66, %65 : vector<128x64xf32>
    %68 = arith.mulf %40, %67 : vector<128x64xf32>
    %cst_28 = arith.constant 1.000000e+00 : f32
    %69 = vector.broadcast %cst_28 : f32 to vector<128x64xf32>
    %70 = arith.addf %69, %68 : vector<128x64xf32>
    %71 = arith.mulf %33, %70 : vector<128x64xf32>
    %72 = arith.truncf %71 : vector<128x64xf32> to vector<128x64xbf16>
    %c0_29 = arith.constant 0 : index
    %c0_30 = arith.constant 0 : index
    %73 = vector.load %arg6[%c0_29, %c0_30] : memref<64x32xbf16, #tpu.memory_space<vmem>>, vector<64x32xbf16>
    %cst_31 = arith.constant dense<0.000000e+00> : vector<128x32xf32>
    %74 = tpu.matmul %72, %73, %cst_31 {dimension_numbers = #tpu.dot_dimension_numbers<[1], [0], [0], [1], [0, 0, 1, 1], [], []>} : vector<128x64xbf16>, vector<64x32xbf16>, vector<128x32xf32> -> vector<128x32xf32>
    %c0_32 = arith.constant 0 : index
    %c0_33 = arith.constant 0 : index
    %75 = vector.load %arg7[%c0_32, %c0_33] : memref<1x32xf32, #tpu.memory_space<vmem>>, vector<1x32xf32>
    %76 = vector.broadcast %75 : vector<1x32xf32> to vector<128x32xf32>
    %77 = arith.addf %74, %76 : vector<128x32xf32>
    %78 = arith.addf %77, %1 : vector<128x32xf32>
    %79 = arith.truncf %78 : vector<128x32xf32> to vector<128x32xbf16>
    %c0_34 = arith.constant 0 : index
    %c0_35 = arith.constant 0 : index
    %80 = vector.load %arg8[%c0_34, %c0_35] : memref<128x32xbf16, #tpu.memory_space<vmem>>, vector<128x32xbf16>
    tpu.vector_store %arg8[%c0_34, %c0_35], %79 {strides = array<i32>} : memref<128x32xbf16, #tpu.memory_space<vmem>>, vector<128x32xbf16>,
    return
  }
  func.func @transform_0(%arg0: i32) -> (i32, i32) {
    %c0_i32 = arith.constant 0 : i32
    %c0_i32_0 = arith.constant 0 : i32
    return %arg0, %c0_i32 : i32, i32
  }
  func.func @transform_1(%arg0: i32) -> (i32, i32) {
    %c0_i32 = arith.constant 0 : i32
    %c0_i32_0 = arith.constant 0 : i32
    %c0_i32_1 = arith.constant 0 : i32
    return %c0_i32, %c0_i32_0 : i32, i32
  }
  func.func @transform_2(%arg0: i32) -> (i32, i32) {
    %c0_i32 = arith.constant 0 : i32
    %c0_i32_0 = arith.constant 0 : i32
    %c0_i32_1 = arith.constant 0 : i32
    return %c0_i32, %c0_i32_0 : i32, i32
  }
  func.func @transform_3(%arg0: i32) -> (i32, i32) {
    %c0_i32 = arith.constant 0 : i32
    %c0_i32_0 = arith.constant 0 : i32
    %c0_i32_1 = arith.constant 0 : i32
    return %c0_i32, %c0_i32_0 : i32, i32
  }
  func.func @transform_4(%arg0: i32) -> (i32, i32) {
    %c0_i32 = arith.constant 0 : i32
    %c0_i32_0 = arith.constant 0 : i32
    %c0_i32_1 = arith.constant 0 : i32
    return %c0_i32, %c0_i32_0 : i32, i32
  }
  func.func @transform_5(%arg0: i32) -> (i32, i32) {
    %c0_i32 = arith.constant 0 : i32
    %c0_i32_0 = arith.constant 0 : i32
    %c0_i32_1 = arith.constant 0 : i32
    return %c0_i32, %c0_i32_0 : i32, i32
  }
  func.func @transform_6(%arg0: i32) -> (i32, i32) {
    %c0_i32 = arith.constant 0 : i32
    %c0_i32_0 = arith.constant 0 : i32
    %c0_i32_1 = arith.constant 0 : i32
    return %c0_i32, %c0_i32_0 : i32, i32
  }
  func.func @transform_7(%arg0: i32) -> (i32, i32) {
    %c0_i32 = arith.constant 0 : i32
    %c0_i32_0 = arith.constant 0 : i32
    return %arg0, %c0_i32 : i32, i32
  }
}

module attributes {stable_mosaic.version = 11 : i64} {
  func.func @_head_kernel(%arg0: i32, %arg1: memref<128x32xbf16, #tpu.memory_space<vmem>>, %arg2: memref<1x32xf32, #tpu.memory_space<vmem>>, %arg3: memref<1x32xf32, #tpu.memory_space<vmem>>, %arg4: memref<1x32xf32, #tpu.memory_space<vmem>>, %arg5: memref<1x32xf32, #tpu.memory_space<vmem>>, %arg6: memref<32x128xbf16, #tpu.memory_space<vmem>>, %arg7: memref<1x128xf32, #tpu.memory_space<vmem>>, %arg8: memref<128x128xf32, #tpu.memory_space<vmem>>) attributes {dimension_semantics = [#tpu.dimension_semantics<parallel>], iteration_bounds = array<i64: 1>, scalar_prefetch = 0 : i64, scratch_operands = 0 : i64, tpu.core_type = #tpu.core_type<tc>, window_params = [{transform_indices = @transform_0, window_bounds = array<i64: 128, 32>}, {pipeline_mode = #tpu.pipeline_mode<synchronous>, transform_indices = @transform_1, window_bounds = array<i64: 1, 32>}, {pipeline_mode = #tpu.pipeline_mode<synchronous>, transform_indices = @transform_2, window_bounds = array<i64: 1, 32>}, {pipeline_mode = #tpu.pipeline_mode<synchronous>, transform_indices = @transform_3, window_bounds = array<i64: 1, 32>}, {pipeline_mode = #tpu.pipeline_mode<synchronous>, transform_indices = @transform_4, window_bounds = array<i64: 1, 32>}, {pipeline_mode = #tpu.pipeline_mode<synchronous>, transform_indices = @transform_5, window_bounds = array<i64: 32, 128>}, {pipeline_mode = #tpu.pipeline_mode<synchronous>, transform_indices = @transform_6, window_bounds = array<i64: 1, 128>}, {transform_indices = @transform_7, window_bounds = array<i64: 128, 128>}]} {
    %c0 = arith.constant 0 : index
    %c0_0 = arith.constant 0 : index
    %0 = vector.load %arg1[%c0, %c0_0] : memref<128x32xbf16, #tpu.memory_space<vmem>>, vector<128x32xbf16>
    %1 = arith.extf %0 : vector<128x32xbf16> to vector<128x32xf32>
    %c0_1 = arith.constant 0 : index
    %c0_2 = arith.constant 0 : index
    %2 = vector.load %arg2[%c0_1, %c0_2] : memref<1x32xf32, #tpu.memory_space<vmem>>, vector<1x32xf32>
    %c0_3 = arith.constant 0 : index
    %c0_4 = arith.constant 0 : index
    %3 = vector.load %arg3[%c0_3, %c0_4] : memref<1x32xf32, #tpu.memory_space<vmem>>, vector<1x32xf32>
    %cst = arith.constant dense<0.000000e+00> : vector<128xf32>
    %4 = vector.multi_reduction <add>, %1, %cst [1] : vector<128x32xf32> to vector<128xf32>
    %5 = vector.shape_cast %4 : vector<128xf32> to vector<128x1xf32>
    %cst_5 = arith.constant 3.200000e+01 : f32
    %6 = vector.broadcast %cst_5 : f32 to vector<128x1xf32>
    %7 = arith.divf %5, %6 : vector<128x1xf32>
    %8 = vector.broadcast %7 : vector<128x1xf32> to vector<128x32xf32>
    %9 = arith.subf %1, %8 : vector<128x32xf32>
    %10 = arith.mulf %9, %9 : vector<128x32xf32>
    %cst_6 = arith.constant dense<0.000000e+00> : vector<128xf32>
    %11 = vector.multi_reduction <add>, %10, %cst_6 [1] : vector<128x32xf32> to vector<128xf32>
    %12 = vector.shape_cast %11 : vector<128xf32> to vector<128x1xf32>
    %cst_7 = arith.constant 3.200000e+01 : f32
    %13 = vector.broadcast %cst_7 : f32 to vector<128x1xf32>
    %14 = arith.divf %12, %13 : vector<128x1xf32>
    %15 = vector.broadcast %7 : vector<128x1xf32> to vector<128x32xf32>
    %16 = arith.subf %1, %15 : vector<128x32xf32>
    %cst_8 = arith.constant 9.99999974E-6 : f32
    %17 = vector.broadcast %cst_8 : f32 to vector<128x1xf32>
    %18 = arith.addf %14, %17 : vector<128x1xf32>
    %19 = math.rsqrt %18 : vector<128x1xf32>
    %20 = vector.broadcast %19 : vector<128x1xf32> to vector<128x32xf32>
    %21 = arith.mulf %16, %20 : vector<128x32xf32>
    %22 = vector.broadcast %2 : vector<1x32xf32> to vector<128x32xf32>
    %23 = arith.mulf %21, %22 : vector<128x32xf32>
    %24 = vector.broadcast %3 : vector<1x32xf32> to vector<128x32xf32>
    %25 = arith.addf %23, %24 : vector<128x32xf32>
    %c0_9 = arith.constant 0 : index
    %c0_10 = arith.constant 0 : index
    %26 = vector.load %arg4[%c0_9, %c0_10] : memref<1x32xf32, #tpu.memory_space<vmem>>, vector<1x32xf32>
    %c0_11 = arith.constant 0 : index
    %c0_12 = arith.constant 0 : index
    %27 = vector.load %arg5[%c0_11, %c0_12] : memref<1x32xf32, #tpu.memory_space<vmem>>, vector<1x32xf32>
    %cst_13 = arith.constant dense<0.000000e+00> : vector<128xf32>
    %28 = vector.multi_reduction <add>, %25, %cst_13 [1] : vector<128x32xf32> to vector<128xf32>
    %29 = vector.shape_cast %28 : vector<128xf32> to vector<128x1xf32>
    %cst_14 = arith.constant 3.200000e+01 : f32
    %30 = vector.broadcast %cst_14 : f32 to vector<128x1xf32>
    %31 = arith.divf %29, %30 : vector<128x1xf32>
    %32 = vector.broadcast %31 : vector<128x1xf32> to vector<128x32xf32>
    %33 = arith.subf %25, %32 : vector<128x32xf32>
    %34 = arith.mulf %33, %33 : vector<128x32xf32>
    %cst_15 = arith.constant dense<0.000000e+00> : vector<128xf32>
    %35 = vector.multi_reduction <add>, %34, %cst_15 [1] : vector<128x32xf32> to vector<128xf32>
    %36 = vector.shape_cast %35 : vector<128xf32> to vector<128x1xf32>
    %cst_16 = arith.constant 3.200000e+01 : f32
    %37 = vector.broadcast %cst_16 : f32 to vector<128x1xf32>
    %38 = arith.divf %36, %37 : vector<128x1xf32>
    %39 = vector.broadcast %31 : vector<128x1xf32> to vector<128x32xf32>
    %40 = arith.subf %25, %39 : vector<128x32xf32>
    %cst_17 = arith.constant 9.99999974E-6 : f32
    %41 = vector.broadcast %cst_17 : f32 to vector<128x1xf32>
    %42 = arith.addf %38, %41 : vector<128x1xf32>
    %43 = math.rsqrt %42 : vector<128x1xf32>
    %44 = vector.broadcast %43 : vector<128x1xf32> to vector<128x32xf32>
    %45 = arith.mulf %40, %44 : vector<128x32xf32>
    %46 = vector.broadcast %26 : vector<1x32xf32> to vector<128x32xf32>
    %47 = arith.mulf %45, %46 : vector<128x32xf32>
    %48 = vector.broadcast %27 : vector<1x32xf32> to vector<128x32xf32>
    %49 = arith.addf %47, %48 : vector<128x32xf32>
    %50 = arith.truncf %49 : vector<128x32xf32> to vector<128x32xbf16>
    %c0_18 = arith.constant 0 : index
    %c0_19 = arith.constant 0 : index
    %51 = vector.load %arg6[%c0_18, %c0_19] : memref<32x128xbf16, #tpu.memory_space<vmem>>, vector<32x128xbf16>
    %cst_20 = arith.constant dense<0.000000e+00> : vector<128x128xf32>
    %52 = tpu.matmul %50, %51, %cst_20 {dimension_numbers = #tpu.dot_dimension_numbers<[1], [0], [0], [1], [0, 0, 1, 1], [], []>} : vector<128x32xbf16>, vector<32x128xbf16>, vector<128x128xf32> -> vector<128x128xf32>
    %c0_21 = arith.constant 0 : index
    %c0_22 = arith.constant 0 : index
    %53 = vector.load %arg7[%c0_21, %c0_22] : memref<1x128xf32, #tpu.memory_space<vmem>>, vector<1x128xf32>
    %54 = vector.broadcast %53 : vector<1x128xf32> to vector<128x128xf32>
    %55 = arith.addf %52, %54 : vector<128x128xf32>
    %c0_23 = arith.constant 0 : index
    %c0_24 = arith.constant 0 : index
    %56 = vector.load %arg8[%c0_23, %c0_24] : memref<128x128xf32, #tpu.memory_space<vmem>>, vector<128x128xf32>
    tpu.vector_store %arg8[%c0_23, %c0_24], %55 {strides = array<i32>} : memref<128x128xf32, #tpu.memory_space<vmem>>, vector<128x128xf32>,
    return
  }
  func.func @transform_0(%arg0: i32) -> (i32, i32) {
    %c0_i32 = arith.constant 0 : i32
    %c0_i32_0 = arith.constant 0 : i32
    return %arg0, %c0_i32 : i32, i32
  }
  func.func @transform_1(%arg0: i32) -> (i32, i32) {
    %c0_i32 = arith.constant 0 : i32
    %c0_i32_0 = arith.constant 0 : i32
    %c0_i32_1 = arith.constant 0 : i32
    return %c0_i32, %c0_i32_0 : i32, i32
  }
  func.func @transform_2(%arg0: i32) -> (i32, i32) {
    %c0_i32 = arith.constant 0 : i32
    %c0_i32_0 = arith.constant 0 : i32
    %c0_i32_1 = arith.constant 0 : i32
    return %c0_i32, %c0_i32_0 : i32, i32
  }
  func.func @transform_3(%arg0: i32) -> (i32, i32) {
    %c0_i32 = arith.constant 0 : i32
    %c0_i32_0 = arith.constant 0 : i32
    %c0_i32_1 = arith.constant 0 : i32
    return %c0_i32, %c0_i32_0 : i32, i32
  }
  func.func @transform_4(%arg0: i32) -> (i32, i32) {
    %c0_i32 = arith.constant 0 : i32
    %c0_i32_0 = arith.constant 0 : i32
    %c0_i32_1 = arith.constant 0 : i32
    return %c0_i32, %c0_i32_0 : i32, i32
  }
  func.func @transform_5(%arg0: i32) -> (i32, i32) {
    %c0_i32 = arith.constant 0 : i32
    %c0_i32_0 = arith.constant 0 : i32
    %c0_i32_1 = arith.constant 0 : i32
    return %c0_i32, %c0_i32_0 : i32, i32
  }
  func.func @transform_6(%arg0: i32) -> (i32, i32) {
    %c0_i32 = arith.constant 0 : i32
    %c0_i32_0 = arith.constant 0 : i32
    %c0_i32_1 = arith.constant 0 : i32
    return %c0_i32, %c0_i32_0 : i32, i32
  }
  func.func @transform_7(%arg0: i32) -> (i32, i32) {
    %c0_i32 = arith.constant 0 : i32
    %c0_i32_0 = arith.constant 0 : i32
    return %arg0, %c0_i32 : i32, i32
  }
}

</mosaic_0001>

<llo_original>
// kernel: tsvit_forward.7
$region0: #{tsvit_forward.7}
  #allocation0 [shape = 'u32[]', space=smem, size = 0x4, offset = 0x4, fixed_abs, tag = 'smem constant byte address 0x4 - core index']
  #allocation1 [shape = 'u32[144,128]{1,0:T(1,128)}', space=vmem, size = 0x12000, scoped, tag = 'internal scratch']
  %s0 = inlined_call_operand.vmem [shape: bf16[256,48], index: 0, kind: input, shape index: {}]
  %s1 = inlined_call_operand.vmem [shape: bf16[48,32], index: 1, kind: input, shape index: {}]
  %s2 = inlined_call_operand.vmem [shape: f32[1,32], index: 2, kind: input, shape index: {}]
  %s3 = inlined_call_operand.vmem [shape: bf16[256,32], index: 3, kind: output, shape index: {}]
  %s4 = sld [smem:[#allocation0]]
  $region22: #{tsvit_forward.7} parent=0
    _
  %s6 = ssub.s32 1, %s4
  %s7 = scalar_select 0, %s6, %s4
  // Predicated region
  $region2: #{tsvit_forward.7} parent=0 // pred_check
    _
  $region3: #{tsvit_forward.7} parent=0 // pred_check_branch
    %9 = sbr.rel (0) target = $region5
  $region4: #{tsvit_forward.7} parent=0 // pred_region
    _
  $region5: #{tsvit_forward.7} parent=0 // pred_fallthru
    _
  // Predicated region
  $region6: #{tsvit_forward.7} parent=0 // pred_check
    _
  $region7: #{tsvit_forward.7} parent=0 // pred_check_branch
    %11 = sbr.rel (0) target = $region9
  $region8: #{tsvit_forward.7} parent=0 // pred_region
    _
  $region9: #{tsvit_forward.7} parent=0 // pred_fallthru
    _
  // Predicated region
  $region10: #{tsvit_forward.7} parent=0 // pred_check
    _
  $region11: #{tsvit_forward.7} parent=0 // pred_check_branch
    %13 = sbr.rel (0) target = $region13
  $region12: #{tsvit_forward.7} parent=0 // pred_region
    _
  $region13: #{tsvit_forward.7} parent=0 // pred_fallthru
    _
  %v15 = vld [vmem:[%s0] sm:$0xf]
  %v16 = vld [vmem:[%s0 + $0x4] sm:$0xf]
  %v17 = vld [vmem:[%s0 + $0x8] sm:$0xf]
  %v18 = vld [vmem:[%s0 + $0xc] sm:$0xf]
  %v19 = vld [vmem:[%s0 + $0x10] sm:$0xf]
  %v20 = vld [vmem:[%s0 + $0x14] sm:$0xf]
  %v21 = vld [vmem:[%s0 + $0x18] sm:$0xf]
  %v22 = vld [vmem:[%s0 + $0x1c] sm:$0xf]
  %v23 = vld [vmem:[%s0 + $0x20] sm:$0xf]
  %v24 = vld [vmem:[%s0 + $0x24] sm:$0xf]
  %v25 = vld [vmem:[%s0 + $0x28] sm:$0xf]
  %v26 = vld [vmem:[%s0 + $0x2c] sm:$0xf]
  %v27 = vld [vmem:[%s0 + $0x30] sm:$0xf]
  %v28 = vld [vmem:[%s0 + $0x34] sm:$0xf]
  %v29 = vld [vmem:[%s0 + $0x38] sm:$0xf]
  %v30 = vld [vmem:[%s0 + $0x3c] sm:$0xf]
  %v31 = vld [vmem:[%s0 + $0x40] sm:$0xf]
  %v32 = vld [vmem:[%s0 + $0x44] sm:$0xf]
  %v33 = vld [vmem:[%s0 + $0x48] sm:$0xf]
  %v34 = vld [vmem:[%s0 + $0x4c] sm:$0xf]
  %v35 = vld [vmem:[%s0 + $0x50] sm:$0xf]
  %v36 = vld [vmem:[%s0 + $0x54] sm:$0xf]
  %v37 = vld [vmem:[%s0 + $0x58] sm:$0xf]
  %v38 = vld [vmem:[%s0 + $0x5c] sm:$0xf]
  %v39 = vld [vmem:[%s0 + $0x60] sm:$0xf]
  %v40 = vld [vmem:[%s0 + $0x64] sm:$0xf]
  %v41 = vld [vmem:[%s0 + $0x68] sm:$0xf]
  %v42 = vld [vmem:[%s0 + $0x6c] sm:$0xf]
  %v43 = vld [vmem:[%s0 + $0x70] sm:$0xf]
  %v44 = vld [vmem:[%s0 + $0x74] sm:$0xf]
  %v45 = vld [vmem:[%s0 + $0x78] sm:$0xf]
  %v46 = vld [vmem:[%s0 + $0x7c] sm:$0xf]
  %v47 = vld [vmem:[%s1] sm:$0xf]
  %v48 = vld [vmem:[%s1 + $0x4] sm:$0xf]
  %v49 = vld [vmem:[%s1 + $0x8] sm:$0xf]
  %v50 = vld [vmem:[%s1 + $0xc] sm:$0xf]
  %v51 = vld [vmem:[%s1 + $0x10] sm:$0xf]
  %v52 = vld [vmem:[%s1 + $0x14] sm:$0xf]
  %v53 = vld [vmem:[%s2] sm:$0x1]
  %v55 = vlaneseq
  %v56 = vshrl.u32 %v55, 7
  %v57 = vsub.s32 0, %v56
  %v58 = vrot.slane %v53, %v57
  %v92 = vunpack.c.l.b16 %v15
  %v93 = vunpack.c.l.b16 %v16
  %v94 = vunpack.c.l.b16 %v17
  %v95 = vunpack.c.l.b16 %v18
  %v96 = vunpack.c.l.b16 %v19
  %v97 = vunpack.c.l.b16 %v20
  %v98 = vunpack.c.l.b16 %v21
  %v99 = vunpack.c.l.b16 %v22
  %v100 = vunpack.c.l.b16 %v23
  %v101 = vunpack.c.l.b16 %v24
  %v102 = vunpack.c.l.b16 %v25
  %v103 = vunpack.c.l.b16 %v26
  %v104 = vunpack.c.l.b16 %v27
  %v105 = vunpack.c.l.b16 %v28
  %v106 = vunpack.c.l.b16 %v29
  %v107 = vunpack.c.l.b16 %v30
  %v108 = vunpack.c.l.b16 %v31
  %v109 = vunpack.c.l.b16 %v32
  %v110 = vunpack.c.l.b16 %v33
  %v111 = vunpack.c.l.b16 %v34
  %v112 = vunpack.c.l.b16 %v35
  %v113 = vunpack.c.l.b16 %v36
  %v114 = vunpack.c.l.b16 %v37
  %v115 = vunpack.c.l.b16 %v38
  %v116 = vunpack.c.l.b16 %v39
  %v117 = vunpack.c.l.b16 %v40
  %v118 = vunpack.c.l.b16 %v41
  %v119 = vunpack.c.l.b16 %v42
  %v120 = vunpack.c.l.b16 %v43
  %v121 = vunpack.c.l.b16 %v44
  %v122 = vunpack.c.l.b16 %v45
  %v123 = vunpack.c.l.b16 %v46
  %v124 = vpack.c.b16 %v93, %v92
  %v125 = vpack.c.b16 %v95, %v94
  %v126 = vpack.c.b16 %v97, %v96
  %v127 = vpack.c.b16 %v99, %v98
  %v128 = vpack.c.b16 %v101, %v100
  %v129 = vpack.c.b16 %v103, %v102
  %v130 = vpack.c.b16 %v105, %v104
  %v131 = vpack.c.b16 %v107, %v106
  %v132 = vpack.c.b16 %v109, %v108
  %v133 = vpack.c.b16 %v111, %v110
  %v134 = vpack.c.b16 %v113, %v112
  %v135 = vpack.c.b16 %v115, %v114
  %v136 = vpack.c.b16 %v117, %v116
  %v137 = vpack.c.b16 %v119, %v118
  %v138 = vpack.c.b16 %v121, %v120
  %v139 = vpack.c.b16 %v123, %v122
  %v146 = vunpack.c.l.b16 %v47
  %v147 = vunpack.c.l.b16 %v48
  %v148 = vunpack.c.l.b16 %v49
  %v149 = vunpack.c.l.b16 %v50
  %v150 = vunpack.c.l.b16 %v51
  %v151 = vunpack.c.l.b16 %v52
  %v152 = vpack.c.b16 %v147, %v146
  %v153 = vpack.c.b16 %v149, %v148
  %v154 = vpack.c.b16 %v151, %v150
  %vm158 = vcmask 392192
  %v160 = vsel %vm158, %v124, 0
  %v163 = vsel %vm158, %v125, 0
  %v166 = vsel %vm158, %v126, 0
  %v169 = vsel %vm158, %v127, 0
  %v172 = vsel %vm158, %v128, 0
  %v175 = vsel %vm158, %v129, 0
  %v178 = vsel %vm158, %v130, 0
  %v181 = vsel %vm158, %v131, 0
  %v184 = vsel %vm158, %v132, 0
  %v187 = vsel %vm158, %v133, 0
  %v190 = vsel %vm158, %v134, 0
  %v193 = vsel %vm158, %v135, 0
  %v196 = vsel %vm158, %v136, 0
  %v199 = vsel %vm158, %v137, 0
  %v202 = vsel %vm158, %v138, 0
  %v205 = vsel %vm158, %v139, 0
  %207 = vmatprep.subr.bf16.mxu0 0
  %208 = vmatpush1.bf16.msra.mxu0 %v152
  %209 = vmatprep.subr.bf16.mxu0 0
  %210 = vmatpush1.bf16.msra.mxu0 %v153
  %211 = vmatprep.subr.bf16.mxu0 0
  %212 = vmatpush1.bf16.msra.mxu0 %v154
  %213 = vmatprep.subr.bf16.mxu0 0
  %214 = vmatpush1.bf16.msra.mxu0 0
  %215 = vmatprep.subr.bf16.mxu0 0
  %216 = vmatpush1.bf16.msra.mxu0 0
  %217 = vmatprep.subr.bf16.mxu0 0
  %218 = vmatpush1.bf16.msra.mxu0 0
  %219 = vmatprep.subr.bf16.mxu0 0
  %220 = vmatpush1.bf16.msra.mxu0 0
  %221 = vmatprep.subr.bf16.mxu0 0
  %222 = vmatpush1.bf16.msra.mxu0 0
  %223 = vmatprep.subr.bf16.mxu0 0
  %224 = vmatpush1.bf16.msra.mxu0 0
  %225 = vmatprep.subr.bf16.mxu0 0
  %226 = vmatpush1.bf16.msra.mxu0 0
  %227 = vmatprep.subr.bf16.mxu0 0
  %228 = vmatpush1.bf16.msra.mxu0 0
  %229 = vmatprep.subr.bf16.mxu0 0
  %230 = vmatpush1.bf16.msra.mxu0 0
  %231 = vmatprep.subr.bf16.mxu0 0
  %232 = vmatpush1.bf16.msra.mxu0 0
  %233 = vmatprep.subr.bf16.mxu0 0
  %234 = vmatpush1.bf16.msra.mxu0 0
  %235 = vmatprep.subr.bf16.mxu0 0
  %236 = vmatpush1.bf16.msra.mxu0 0
  %237 = vmatprep.subr.bf16.mxu0 0
  %238 = vmatpush1.bf16.msra.mxu0 0
  %239 = vmatprep.mubr.bf16.mxu0 0
  %240 = vmatmul.mubr.bf16.gmra.mrb[0].mxu0 %v160
  %v241 = vpop.f32.mrb[0].mxu0
  %v242 = vadd.f32 %v58, %v241
  %v243 = vpop.f32.mrb[0].mxu0
  %v244 = vpop.f32.mrb[0].mxu0
  %v245 = vadd.f32 %v58, %v244
  %v246 = vpop.f32.mrb[0].mxu0
  %247 = vmatprep.mubr.bf16.mxu0 0
  %248 = vmatmul.mubr.bf16.gmra.mrb[0].mxu0 %v163
  %v249 = vpop.f32.mrb[0].mxu0
  %v250 = vadd.f32 %v58, %v249
  %v251 = vpop.f32.mrb[0].mxu0
  %v252 = vpop.f32.mrb[0].mxu0
  %v253 = vadd.f32 %v58, %v252
  %v254 = vpop.f32.mrb[0].mxu0
  %255 = vmatprep.mubr.bf16.mxu0 0
  %256 = vmatmul.mubr.bf16.gmra.mrb[0].mxu0 %v166
  %v257 = vpop.f32.mrb[0].mxu0
  %v258 = vadd.f32 %v58, %v257
  %v259 = vpop.f32.mrb[0].mxu0
  %v260 = vpop.f32.mrb[0].mxu0
  %v261 = vadd.f32 %v58, %v260
  %v262 = vpop.f32.mrb[0].mxu0
  %263 = vmatprep.mubr.bf16.mxu0 0
  %264 = vmatmul.mubr.bf16.gmra.mrb[0].mxu0 %v169
  %v265 = vpop.f32.mrb[0].mxu0
  %v266 = vadd.f32 %v58, %v265
  %v267 = vpop.f32.mrb[0].mxu0
  %v268 = vpop.f32.mrb[0].mxu0
  %v269 = vadd.f32 %v58, %v268
  %v270 = vpop.f32.mrb[0].mxu0
  %271 = vmatprep.mubr.bf16.mxu0 0
  %272 = vmatmul.mubr.bf16.gmra.mrb[0].mxu0 %v172
  %v273 = vpop.f32.mrb[0].mxu0
  %v274 = vadd.f32 %v58, %v273
  %v275 = vpop.f32.mrb[0].mxu0
  %v276 = vpop.f32.mrb[0].mxu0
  %v277 = vadd.f32 %v58, %v276
  %v278 = vpop.f32.mrb[0].mxu0
  %279 = vmatprep.mubr.bf16.mxu0 0
  %280 = vmatmul.mubr.bf16.gmra.mrb[0].mxu0 %v175
  %v281 = vpop.f32.mrb[0].mxu0
  %v282 = vadd.f32 %v58, %v281
  %v283 = vpop.f32.mrb[0].mxu0
  %v284 = vpop.f32.mrb[0].mxu0
  %v285 = vadd.f32 %v58, %v284
  %v286 = vpop.f32.mrb[0].mxu0
  %287 = vmatprep.mubr.bf16.mxu0 0
  %288 = vmatmul.mubr.bf16.gmra.mrb[0].mxu0 %v178
  %v289 = vpop.f32.mrb[0].mxu0
  %v290 = vadd.f32 %v58, %v289
  %v291 = vpop.f32.mrb[0].mxu0
  %v292 = vpop.f32.mrb[0].mxu0
  %v293 = vadd.f32 %v58, %v292
  %v294 = vpop.f32.mrb[0].mxu0
  %295 = vmatprep.mubr.bf16.mxu0 0
  %296 = vmatmul.mubr.bf16.gmra.mrb[0].mxu0 %v181
  %v297 = vpop.f32.mrb[0].mxu0
  %v298 = vadd.f32 %v58, %v297
  %v299 = vpop.f32.mrb[0].mxu0
  %v300 = vpop.f32.mrb[0].mxu0
  %v301 = vadd.f32 %v58, %v300
  %v302 = vpop.f32.mrb[0].mxu0
  %303 = vmatprep.mubr.bf16.mxu0 0
  %304 = vmatmul.mubr.bf16.gmra.mrb[0].mxu0 %v184
  %v305 = vpop.f32.mrb[0].mxu0
  %v306 = vadd.f32 %v58, %v305
  %v307 = vpop.f32.mrb[0].mxu0
  %v308 = vpop.f32.mrb[0].mxu0
  %v309 = vadd.f32 %v58, %v308
  %v310 = vpop.f32.mrb[0].mxu0
  %311 = vmatprep.mubr.bf16.mxu0 0
  %312 = vmatmul.mubr.bf16.gmra.mrb[0].mxu0 %v187
  %v313 = vpop.f32.mrb[0].mxu0
  %v314 = vadd.f32 %v58, %v313
  %v315 = vpop.f32.mrb[0].mxu0
  %v316 = vpop.f32.mrb[0].mxu0
  %v317 = vadd.f32 %v58, %v316
  %v318 = vpop.f32.mrb[0].mxu0
  %319 = vmatprep.mubr.bf16.mxu0 0
  %320 = vmatmul.mubr.bf16.gmra.mrb[0].mxu0 %v190
  %v321 = vpop.f32.mrb[0].mxu0
  %v322 = vadd.f32 %v58, %v321
  %v323 = vpop.f32.mrb[0].mxu0
  %v324 = vpop.f32.mrb[0].mxu0
  %v325 = vadd.f32 %v58, %v324
  %v326 = vpop.f32.mrb[0].mxu0
  %327 = vmatprep.mubr.bf16.mxu0 0
  %328 = vmatmul.mubr.bf16.gmra.mrb[0].mxu0 %v193
  %v329 = vpop.f32.mrb[0].mxu0
  %v330 = vadd.f32 %v58, %v329
  %v331 = vpop.f32.mrb[0].mxu0
  %v332 = vpop.f32.mrb[0].mxu0
  %v333 = vadd.f32 %v58, %v332
  %v334 = vpop.f32.mrb[0].mxu0
  %335 = vmatprep.mubr.bf16.mxu0 0
  %336 = vmatmul.mubr.bf16.gmra.mrb[0].mxu0 %v196
  %v337 = vpop.f32.mrb[0].mxu0
  %v338 = vadd.f32 %v58, %v337
  %v339 = vpop.f32.mrb[0].mxu0
  %v340 = vpop.f32.mrb[0].mxu0
  %v341 = vadd.f32 %v58, %v340
  %v342 = vpop.f32.mrb[0].mxu0
  %343 = vmatprep.mubr.bf16.mxu0 0
  %344 = vmatmul.mubr.bf16.gmra.mrb[0].mxu0 %v199
  %v345 = vpop.f32.mrb[0].mxu0
  %v346 = vadd.f32 %v58, %v345
  %v347 = vpop.f32.mrb[0].mxu0
  %v348 = vpop.f32.mrb[0].mxu0
  %v349 = vadd.f32 %v58, %v348
  %v350 = vpop.f32.mrb[0].mxu0
  %351 = vmatprep.mubr.bf16.mxu0 0
  %352 = vmatmul.mubr.bf16.gmra.mrb[0].mxu0 %v202
  %v353 = vpop.f32.mrb[0].mxu0
  %v354 = vadd.f32 %v58, %v353
  %v355 = vpop.f32.mrb[0].mxu0
  %v356 = vpop.f32.mrb[0].mxu0
  %v357 = vadd.f32 %v58, %v356
  %v358 = vpop.f32.mrb[0].mxu0
  %359 = vmatprep.mubr.bf16.mxu0 0
  %360 = vmatmul.mubr.bf16.gmra.mrb[0].mxu0 %v205
  %v361 = vpop.f32.mrb[0].mxu0
  %v362 = vadd.f32 %v58, %v361
  %v363 = vpop.f32.mrb[0].mxu0
  %v364 = vpop.f32.mrb[0].mxu0
  %v365 = vadd.f32 %v58, %v364
  %v366 = vpop.f32.mrb[0].mxu0
  %367 = vdwg.mxu0
  %v368 = vpack.c.bf16 %v245, %v242
  %v369 = vpack.c.bf16 %v253, %v250
  %v370 = vpack.c.bf16 %v261, %v258
  %v371 = vpack.c.bf16 %v269, %v266
  %v372 = vpack.c.bf16 %v277, %v274
  %v373 = vpack.c.bf16 %v285, %v282
  %v374 = vpack.c.bf16 %v293, %v290
  %v375 = vpack.c.bf16 %v301, %v298
  %v376 = vpack.c.bf16 %v309, %v306
  %v377 = vpack.c.bf16 %v317, %v314
  %v378 = vpack.c.bf16 %v325, %v322
  %v379 = vpack.c.bf16 %v333, %v330
  %v380 = vpack.c.bf16 %v341, %v338
  %v381 = vpack.c.bf16 %v349, %v346
  %v382 = vpack.c.bf16 %v357, %v354
  %v383 = vpack.c.bf16 %v365, %v362
  %v400 = vunpack.c.l.b16 %v368
  %v401 = vunpack.c.h.b16 %v368
  %v402 = vunpack.c.l.b16 %v369
  %v403 = vunpack.c.h.b16 %v369
  %v404 = vunpack.c.l.b16 %v370
  %v405 = vunpack.c.h.b16 %v370
  %v406 = vunpack.c.l.b16 %v371
  %v407 = vunpack.c.h.b16 %v371
  %v408 = vunpack.c.l.b16 %v372
  %v409 = vunpack.c.h.b16 %v372
  %v410 = vunpack.c.l.b16 %v373
  %v411 = vunpack.c.h.b16 %v373
  %v412 = vunpack.c.l.b16 %v374
  %v413 = vunpack.c.h.b16 %v374
  %v414 = vunpack.c.l.b16 %v375
  %v415 = vunpack.c.h.b16 %v375
  %v416 = vunpack.c.l.b16 %v376
  %v417 = vunpack.c.h.b16 %v376
  %v418 = vunpack.c.l.b16 %v377
  %v419 = vunpack.c.h.b16 %v377
  %v420 = vunpack.c.l.b16 %v378
  %v421 = vunpack.c.h.b16 %v378
  %v422 = vunpack.c.l.b16 %v379
  %v423 = vunpack.c.h.b16 %v379
  %v424 = vunpack.c.l.b16 %v380
  %v425 = vunpack.c.h.b16 %v380
  %v426 = vunpack.c.l.b16 %v381
  %v427 = vunpack.c.h.b16 %v381
  %v428 = vunpack.c.l.b16 %v382
  %v429 = vunpack.c.h.b16 %v382
  %v430 = vunpack.c.l.b16 %v383
  %v431 = vunpack.c.h.b16 %v383
  %v432 = vpack.c.b16 %v400, %v400
  %v433 = vpack.c.b16 %v401, %v401
  %v434 = vpack.c.b16 %v402, %v402
  %v435 = vpack.c.b16 %v403, %v403
  %v436 = vpack.c.b16 %v404, %v404
  %v437 = vpack.c.b16 %v405, %v405
  %v438 = vpack.c.b16 %v406, %v406
  %v439 = vpack.c.b16 %v407, %v407
  %v440 = vpack.c.b16 %v408, %v408
  %v441 = vpack.c.b16 %v409, %v409
  %v442 = vpack.c.b16 %v410, %v410
  %v443 = vpack.c.b16 %v411, %v411
  %v444 = vpack.c.b16 %v412, %v412
  %v445 = vpack.c.b16 %v413, %v413
  %v446 = vpack.c.b16 %v414, %v414
  %v447 = vpack.c.b16 %v415, %v415
  %v448 = vpack.c.b16 %v416, %v416
  %v449 = vpack.c.b16 %v417, %v417
  %v450 = vpack.c.b16 %v418, %v418
  %v451 = vpack.c.b16 %v419, %v419
  %v452 = vpack.c.b16 %v420, %v420
  %v453 = vpack.c.b16 %v421, %v421
  %v454 = vpack.c.b16 %v422, %v422
  %v455 = vpack.c.b16 %v423, %v423
  %v456 = vpack.c.b16 %v424, %v424
  %v457 = vpack.c.b16 %v425, %v425
  %v458 = vpack.c.b16 %v426, %v426
  %v459 = vpack.c.b16 %v427, %v427
  %v460 = vpack.c.b16 %v428, %v428
  %v461 = vpack.c.b16 %v429, %v429
  %v462 = vpack.c.b16 %v430, %v430
  %v463 = vpack.c.b16 %v431, %v431
  %vm496 = vcmask 257024
  %497 = vst.msk [vmem:[%s3] sm:$0xf] %vm496, %v432
  %498 = vst.msk [vmem:[%s3 + $0x4] sm:$0xf] %vm496, %v433
  %499 = vst.msk [vmem:[%s3 + $0x8] sm:$0xf] %vm496, %v434
  %500 = vst.msk [vmem:[%s3 + $0xc] sm:$0xf] %vm496, %v435
  %501 = vst.msk [vmem:[%s3 + $0x10] sm:$0xf] %vm496, %v436
  %502 = vst.msk [vmem:[%s3 + $0x14] sm:$0xf] %vm496, %v437
  %503 = vst.msk [vmem:[%s3 + $0x18] sm:$0xf] %vm496, %v438
  %504 = vst.msk [vmem:[%s3 + $0x1c] sm:$0xf] %vm496, %v439
  %505 = vst.msk [vmem:[%s3 + $0x20] sm:$0xf] %vm496, %v440
  %506 = vst.msk [vmem:[%s3 + $0x24] sm:$0xf] %vm496, %v441
  %507 = vst.msk [vmem:[%s3 + $0x28] sm:$0xf] %vm496, %v442
  %508 = vst.msk [vmem:[%s3 + $0x2c] sm:$0xf] %vm496, %v443
  %509 = vst.msk [vmem:[%s3 + $0x30] sm:$0xf] %vm496, %v444
  %510 = vst.msk [vmem:[%s3 + $0x34] sm:$0xf] %vm496, %v445
  %511 = vst.msk [vmem:[%s3 + $0x38] sm:$0xf] %vm496, %v446
  %512 = vst.msk [vmem:[%s3 + $0x3c] sm:$0xf] %vm496, %v447
  %513 = vst.msk [vmem:[%s3 + $0x40] sm:$0xf] %vm496, %v448
  %514 = vst.msk [vmem:[%s3 + $0x44] sm:$0xf] %vm496, %v449
  %515 = vst.msk [vmem:[%s3 + $0x48] sm:$0xf] %vm496, %v450
  %516 = vst.msk [vmem:[%s3 + $0x4c] sm:$0xf] %vm496, %v451
  %517 = vst.msk [vmem:[%s3 + $0x50] sm:$0xf] %vm496, %v452
  %518 = vst.msk [vmem:[%s3 + $0x54] sm:$0xf] %vm496, %v453
  %519 = vst.msk [vmem:[%s3 + $0x58] sm:$0xf] %vm496, %v454
  %520 = vst.msk [vmem:[%s3 + $0x5c] sm:$0xf] %vm496, %v455
  %521 = vst.msk [vmem:[%s3 + $0x60] sm:$0xf] %vm496, %v456
  %522 = vst.msk [vmem:[%s3 + $0x64] sm:$0xf] %vm496, %v457
  %523 = vst.msk [vmem:[%s3 + $0x68] sm:$0xf] %vm496, %v458
  %524 = vst.msk [vmem:[%s3 + $0x6c] sm:$0xf] %vm496, %v459
  %525 = vst.msk [vmem:[%s3 + $0x70] sm:$0xf] %vm496, %v460
  %526 = vst.msk [vmem:[%s3 + $0x74] sm:$0xf] %vm496, %v461
  %527 = vst.msk [vmem:[%s3 + $0x78] sm:$0xf] %vm496, %v462
  %528 = vst.msk [vmem:[%s3 + $0x7c] sm:$0xf] %vm496, %v463
  // Predicated region
  $region14: #{tsvit_forward.7} parent=0 // pred_check
    _
  $region15: #{tsvit_forward.7} parent=0 // pred_check_branch
    %530 = sbr.rel (0) target = $region17
  $region16: #{tsvit_forward.7} parent=0 // pred_region
    _
  $region17: #{tsvit_forward.7} parent=0 // pred_fallthru
    _
  // Predicated region
  $region18: #{tsvit_forward.7} parent=0 // pred_check
    _
  $region19: #{tsvit_forward.7} parent=0 // pred_check_branch
    %532 = sbr.rel (0) target = $region21
  $region20: #{tsvit_forward.7} parent=0 // pred_region
    _
  $region21: #{tsvit_forward.7} parent=0 // pred_fallthru
    _

// kernel: tsvit_forward.10
$region0: #{tsvit_forward.10}
  #allocation0 [shape = 'u32[]', space=smem, size = 0x4, offset = 0x4, fixed_abs, tag = 'smem constant byte address 0x4 - core index']
  #allocation1 [shape = 'u32[144,128]{1,0:T(1,128)}', space=vmem, size = 0x12000, scoped, tag = 'internal scratch']
  %s0 = inlined_call_operand.vmem [shape: bf16[128,32], index: 0, kind: input, shape index: {}]
  %s1 = inlined_call_operand.vmem [shape: f32[1,32], index: 1, kind: input, shape index: {}]
  %s2 = inlined_call_operand.vmem [shape: f32[1,32], index: 2, kind: input, shape index: {}]
  %s3 = inlined_call_operand.vmem [shape: bf16[128,32], index: 3, kind: output, shape index: {}]
  %s4 = sld [smem:[#allocation0]]
  $region22: #{tsvit_forward.10} parent=0
    _
  %s6 = ssub.s32 1, %s4
  %s7 = scalar_select 0, %s6, %s4
  // Predicated region
  $region2: #{tsvit_forward.10} parent=0 // pred_check
    _
  $region3: #{tsvit_forward.10} parent=0 // pred_check_branch
    %9 = sbr.rel (0) target = $region5
  $region4: #{tsvit_forward.10} parent=0 // pred_region
    _
  $region5: #{tsvit_forward.10} parent=0 // pred_fallthru
    _
  // Predicated region
  $region6: #{tsvit_forward.10} parent=0 // pred_check
    _
  $region7: #{tsvit_forward.10} parent=0 // pred_check_branch
    %11 = sbr.rel (0) target = $region9
  $region8: #{tsvit_forward.10} parent=0 // pred_region
    _
  $region9: #{tsvit_forward.10} parent=0 // pred_fallthru
    _
  // Predicated region
  $region10: #{tsvit_forward.10} parent=0 // pred_check
    _
  $region11: #{tsvit_forward.10} parent=0 // pred_check_branch
    %13 = sbr.rel (0) target = $region13
  $region12: #{tsvit_forward.10} parent=0 // pred_region
    _
  $region13: #{tsvit_forward.10} parent=0 // pred_fallthru
    _
  %v14 = vld [vmem:[%s0] sm:$0xf]
  %v15 = vld [vmem:[%s0 + $0x4] sm:$0xf]
  %v16 = vld [vmem:[%s0 + $0x8] sm:$0xf]
  %v17 = vld [vmem:[%s0 + $0xc] sm:$0xf]
  %v18 = vld [vmem:[%s0 + $0x10] sm:$0xf]
  %v19 = vld [vmem:[%s0 + $0x14] sm:$0xf]
  %v20 = vld [vmem:[%s0 + $0x18] sm:$0xf]
  %v21 = vld [vmem:[%s0 + $0x1c] sm:$0xf]
  %v22 = vld [vmem:[%s0 + $0x20] sm:$0xf]
  %v23 = vld [vmem:[%s0 + $0x24] sm:$0xf]
  %v24 = vld [vmem:[%s0 + $0x28] sm:$0xf]
  %v25 = vld [vmem:[%s0 + $0x2c] sm:$0xf]
  %v26 = vld [vmem:[%s0 + $0x30] sm:$0xf]
  %v27 = vld [vmem:[%s0 + $0x34] sm:$0xf]
  %v28 = vld [vmem:[%s0 + $0x38] sm:$0xf]
  %v29 = vld [vmem:[%s0 + $0x3c] sm:$0xf]
  %v30 = vunpack.c.l.bf16 %v14
  %v31 = vunpack.c.l.bf16 %v15
  %v32 = vunpack.c.l.bf16 %v16
  %v33 = vunpack.c.l.bf16 %v17
  %v34 = vunpack.c.l.bf16 %v18
  %v35 = vunpack.c.l.bf16 %v19
  %v36 = vunpack.c.l.bf16 %v20
  %v37 = vunpack.c.l.bf16 %v21
  %v38 = vunpack.c.l.bf16 %v22
  %v39 = vunpack.c.l.bf16 %v23
  %v40 = vunpack.c.l.bf16 %v24
  %v41 = vunpack.c.l.bf16 %v25
  %v42 = vunpack.c.l.bf16 %v26
  %v43 = vunpack.c.l.bf16 %v27
  %v44 = vunpack.c.l.bf16 %v28
  %v45 = vunpack.c.l.bf16 %v29
  %v46 = vld [vmem:[%s1] sm:$0x1]
  %v47 = vld [vmem:[%s2] sm:$0x1]
  %vm48 = vcmask 261120
  %v49 = vsel %vm48, %v30, 0.0
  %50 = vadd.xlane.f32.xlu0 %v49
  %v51 = vpop.xlane.xlu0 %50
  %v52 = vsel %vm48, %v31, 0.0
  %53 = vadd.xlane.f32.xlu0 %v52
  %v54 = vpop.xlane.xlu0 %53
  %v55 = vsel %vm48, %v32, 0.0
  %56 = vadd.xlane.f32.xlu0 %v55
  %v57 = vpop.xlane.xlu0 %56
  %v58 = vsel %vm48, %v33, 0.0
  %59 = vadd.xlane.f32.xlu0 %v58
  %v60 = vpop.xlane.xlu0 %59
  %v61 = vsel %vm48, %v34, 0.0
  %62 = vadd.xlane.f32.xlu0 %v61
  %v63 = vpop.xlane.xlu0 %62
  %v64 = vsel %vm48, %v35, 0.0
  %65 = vadd.xlane.f32.xlu0 %v64
  %v66 = vpop.xlane.xlu0 %65
  %v67 = vsel %vm48, %v36, 0.0
  %68 = vadd.xlane.f32.xlu0 %v67
  %v69 = vpop.xlane.xlu0 %68
  %v70 = vsel %vm48, %v37, 0.0
  %71 = vadd.xlane.f32.xlu0 %v70
  %v72 = vpop.xlane.xlu0 %71
  %v73 = vsel %vm48, %v38, 0.0
  %74 = vadd.xlane.f32.xlu0 %v73
  %v75 = vpop.xlane.xlu0 %74
  %v76 = vsel %vm48, %v39, 0.0
  %77 = vadd.xlane.f32.xlu0 %v76
  %v78 = vpop.xlane.xlu0 %77
  %v79 = vsel %vm48, %v40, 0.0
  %80 = vadd.xlane.f32.xlu0 %v79
  %v81 = vpop.xlane.xlu0 %80
  %v82 = vsel %vm48, %v41, 0.0
  %83 = vadd.xlane.f32.xlu0 %v82
  %v84 = vpop.xlane.xlu0 %83
  %v85 = vsel %vm48, %v42, 0.0
  %86 = vadd.xlane.f32.xlu0 %v85
  %v87 = vpop.xlane.xlu0 %86
  %v88 = vsel %vm48, %v43, 0.0
  %89 = vadd.xlane.f32.xlu0 %v88
  %v90 = vpop.xlane.xlu0 %89
  %v91 = vsel %vm48, %v44, 0.0
  %92 = vadd.xlane.f32.xlu0 %v91
  %v93 = vpop.xlane.xlu0 %92
  %v94 = vsel %vm48, %v45, 0.0
  %95 = vadd.xlane.f32.xlu0 %v94
  %v96 = vpop.xlane.xlu0 %95
  %v97 = vrcp.pop 32.0
  %v98 = vmul.f32 %v51, %v97
  %v99 = vmul.f32 %v54, %v97
  %v100 = vmul.f32 %v57, %v97
  %v101 = vmul.f32 %v60, %v97
  %v102 = vmul.f32 %v63, %v97
  %v103 = vmul.f32 %v66, %v97
  %v104 = vmul.f32 %v69, %v97
  %v105 = vmul.f32 %v72, %v97
  %v106 = vmul.f32 %v75, %v97
  %v107 = vmul.f32 %v78, %v97
  %v108 = vmul.f32 %v81, %v97
  %v109 = vmul.f32 %v84, %v97
  %v110 = vmul.f32 %v87, %v97
  %v111 = vmul.f32 %v90, %v97
  %v112 = vmul.f32 %v93, %v97
  %v113 = vmul.f32 %v96, %v97
  %v114 = vsub.f32 %v30, %v98
  %v115 = vsub.f32 %v31, %v99
  %v116 = vsub.f32 %v32, %v100
  %v117 = vsub.f32 %v33, %v101
  %v118 = vsub.f32 %v34, %v102
  %v119 = vsub.f32 %v35, %v103
  %v120 = vsub.f32 %v36, %v104
  %v121 = vsub.f32 %v37, %v105
  %v122 = vsub.f32 %v38, %v106
  %v123 = vsub.f32 %v39, %v107
  %v124 = vsub.f32 %v40, %v108
  %v125 = vsub.f32 %v41, %v109
  %v126 = vsub.f32 %v42, %v110
  %v127 = vsub.f32 %v43, %v111
  %v128 = vsub.f32 %v44, %v112
  %v129 = vsub.f32 %v45, %v113
  %v130 = vmul.f32 %v114, %v114
  %v131 = vmul.f32 %v115, %v115
  %v132 = vmul.f32 %v116, %v116
  %v133 = vmul.f32 %v117, %v117
  %v134 = vmul.f32 %v118, %v118
  %v135 = vmul.f32 %v119, %v119
  %v136 = vmul.f32 %v120, %v120
  %v137 = vmul.f32 %v121, %v121
  %v138 = vmul.f32 %v122, %v122
  %v139 = vmul.f32 %v123, %v123
  %v140 = vmul.f32 %v124, %v124
  %v141 = vmul.f32 %v125, %v125
  %v142 = vmul.f32 %v126, %v126
  %v143 = vmul.f32 %v127, %v127
  %v144 = vmul.f32 %v128, %v128
  %v145 = vmul.f32 %v129, %v129
  %v146 = vsel %vm48, %v130, 0.0
  %147 = vadd.xlane.f32.xlu0 %v146
  %v148 = vpop.xlane.xlu0 %147
  %v149 = vsel %vm48, %v131, 0.0
  %150 = vadd.xlane.f32.xlu0 %v149
  %v151 = vpop.xlane.xlu0 %150
  %v152 = vsel %vm48, %v132, 0.0
  %153 = vadd.xlane.f32.xlu0 %v152
  %v154 = vpop.xlane.xlu0 %153
  %v155 = vsel %vm48, %v133, 0.0
  %156 = vadd.xlane.f32.xlu0 %v155
  %v157 = vpop.xlane.xlu0 %156
  %v158 = vsel %vm48, %v134, 0.0
  %159 = vadd.xlane.f32.xlu0 %v158
  %v160 = vpop.xlane.xlu0 %159
  %v161 = vsel %vm48, %v135, 0.0
  %162 = vadd.xlane.f32.xlu0 %v161
  %v163 = vpop.xlane.xlu0 %162
  %v164 = vsel %vm48, %v136, 0.0
  %165 = vadd.xlane.f32.xlu0 %v164
  %v166 = vpop.xlane.xlu0 %165
  %v167 = vsel %vm48, %v137, 0.0
  %168 = vadd.xlane.f32.xlu0 %v167
  %v169 = vpop.xlane.xlu0 %168
  %v170 = vsel %vm48, %v138, 0.0
  %171 = vadd.xlane.f32.xlu0 %v170
  %v172 = vpop.xlane.xlu0 %171
  %v173 = vsel %vm48, %v139, 0.0
  %174 = vadd.xlane.f32.xlu0 %v173
  %v175 = vpop.xlane.xlu0 %174
  %v176 = vsel %vm48, %v140, 0.0
  %177 = vadd.xlane.f32.xlu0 %v176
  %v178 = vpop.xlane.xlu0 %177
  %v179 = vsel %vm48, %v141, 0.0
  %180 = vadd.xlane.f32.xlu0 %v179
  %v181 = vpop.xlane.xlu0 %180
  %v182 = vsel %vm48, %v142, 0.0
  %183 = vadd.xlane.f32.xlu0 %v182
  %v184 = vpop.xlane.xlu0 %183
  %v185 = vsel %vm48, %v143, 0.0
  %186 = vadd.xlane.f32.xlu0 %v185
  %v187 = vpop.xlane.xlu0 %186
  %v188 = vsel %vm48, %v144, 0.0
  %189 = vadd.xlane.f32.xlu0 %v188
  %v190 = vpop.xlane.xlu0 %189
  %v191 = vsel %vm48, %v145, 0.0
  %192 = vadd.xlane.f32.xlu0 %v191
  %v193 = vpop.xlane.xlu0 %192
  %v194 = vmul.f32 %v148, %v97
  %v195 = vmul.f32 %v151, %v97
  %v196 = vmul.f32 %v154, %v97
  %v197 = vmul.f32 %v157, %v97
  %v198 = vmul.f32 %v160, %v97
  %v199 = vmul.f32 %v163, %v97
  %v200 = vmul.f32 %v166, %v97
  %v201 = vmul.f32 %v169, %v97
  %v202 = vmul.f32 %v172, %v97
  %v203 = vmul.f32 %v175, %v97
  %v204 = vmul.f32 %v178, %v97
  %v205 = vmul.f32 %v181, %v97
  %v206 = vmul.f32 %v184, %v97
  %v207 = vmul.f32 %v187, %v97
  %v208 = vmul.f32 %v190, %v97
  %v209 = vmul.f32 %v193, %v97
  %v210 = vadd.f32 %v194, 1e-05
  %v211 = vadd.f32 %v195, 1e-05
  %v212 = vadd.f32 %v196, 1e-05
  %v213 = vadd.f32 %v197, 1e-05
  %v214 = vadd.f32 %v198, 1e-05
  %v215 = vadd.f32 %v199, 1e-05
  %v216 = vadd.f32 %v200, 1e-05
  %v217 = vadd.f32 %v201, 1e-05
  %v218 = vadd.f32 %v202, 1e-05
  %v219 = vadd.f32 %v203, 1e-05
  %v220 = vadd.f32 %v204, 1e-05
  %v221 = vadd.f32 %v205, 1e-05
  %v222 = vadd.f32 %v206, 1e-05
  %v223 = vadd.f32 %v207, 1e-05
  %v224 = vadd.f32 %v208, 1e-05
  %v225 = vadd.f32 %v209, 1e-05
  %v226 = vrsqrt.pop %v210
  %v227 = vrsqrt.pop %v211
  %v228 = vrsqrt.pop %v212
  %v229 = vrsqrt.pop %v213
  %v230 = vrsqrt.pop %v214
  %v231 = vrsqrt.pop %v215
  %v232 = vrsqrt.pop %v216
  %v233 = vrsqrt.pop %v217
  %v234 = vrsqrt.pop %v218
  %v235 = vrsqrt.pop %v219
  %v236 = vrsqrt.pop %v220
  %v237 = vrsqrt.pop %v221
  %v238 = vrsqrt.pop %v222
  %v239 = vrsqrt.pop %v223
  %v240 = vrsqrt.pop %v224
  %v241 = vrsqrt.pop %v225
  %v242 = vmul.f32 %v114, %v226
  %v243 = vmul.f32 %v115, %v227
  %v244 = vmul.f32 %v116, %v228
  %v245 = vmul.f32 %v117, %v229
  %v246 = vmul.f32 %v118, %v230
  %v247 = vmul.f32 %v119, %v231
  %v248 = vmul.f32 %v120, %v232
  %v249 = vmul.f32 %v121, %v233
  %v250 = vmul.f32 %v122, %v234
  %v251 = vmul.f32 %v123, %v235
  %v252 = vmul.f32 %v124, %v236
  %v253 = vmul.f32 %v125, %v237
  %v254 = vmul.f32 %v126, %v238
  %v255 = vmul.f32 %v127, %v239
  %v256 = vmul.f32 %v128, %v240
  %v257 = vmul.f32 %v129, %v241
  %v259 = vlaneseq
  %v260 = vshrl.u32 %v259, 7
  %v261 = vsub.s32 0, %v260
  %v262 = vrot.slane %v46, %v261
  %v264 = vmul.f32 %v242, %v262
  %v265 = vmul.f32 %v243, %v262
  %v266 = vmul.f32 %v244, %v262
  %v267 = vmul.f32 %v245, %v262
  %v268 = vmul.f32 %v246, %v262
  %v269 = vmul.f32 %v247, %v262
  %v270 = vmul.f32 %v248, %v262
  %v271 = vmul.f32 %v249, %v262
  %v272 = vmul.f32 %v250, %v262
  %v273 = vmul.f32 %v251, %v262
  %v274 = vmul.f32 %v252, %v262
  %v275 = vmul.f32 %v253, %v262
  %v276 = vmul.f32 %v254, %v262
  %v277 = vmul.f32 %v255, %v262
  %v278 = vmul.f32 %v256, %v262
  %v279 = vmul.f32 %v257, %v262
  %v281 = vlaneseq
  %v282 = vshrl.u32 %v281, 7
  %v283 = vsub.s32 0, %v282
  %v284 = vrot.slane %v47, %v283
  %v286 = vadd.f32 %v264, %v284
  %v287 = vadd.f32 %v265, %v284
  %v288 = vadd.f32 %v266, %v284
  %v289 = vadd.f32 %v267, %v284
  %v290 = vadd.f32 %v268, %v284
  %v291 = vadd.f32 %v269, %v284
  %v292 = vadd.f32 %v270, %v284
  %v293 = vadd.f32 %v271, %v284
  %v294 = vadd.f32 %v272, %v284
  %v295 = vadd.f32 %v273, %v284
  %v296 = vadd.f32 %v274, %v284
  %v297 = vadd.f32 %v275, %v284
  %v298 = vadd.f32 %v276, %v284
  %v299 = vadd.f32 %v277, %v284
  %v300 = vadd.f32 %v278, %v284
  %v301 = vadd.f32 %v279, %v284
  %v302 = vpack.c.bf16 %v287, %v286
  %v303 = vpack.c.bf16 %v289, %v288
  %v304 = vpack.c.bf16 %v291, %v290
  %v305 = vpack.c.bf16 %v293, %v292
  %v306 = vpack.c.bf16 %v295, %v294
  %v307 = vpack.c.bf16 %v297, %v296
  %v308 = vpack.c.bf16 %v299, %v298
  %v309 = vpack.c.bf16 %v301, %v300
  %v318 = vunpack.c.l.b16 %v302
  %v319 = vunpack.c.h.b16 %v302
  %v320 = vunpack.c.l.b16 %v303
  %v321 = vunpack.c.h.b16 %v303
  %v322 = vunpack.c.l.b16 %v304
  %v323 = vunpack.c.h.b16 %v304
  %v324 = vunpack.c.l.b16 %v305
  %v325 = vunpack.c.h.b16 %v305
  %v326 = vunpack.c.l.b16 %v306
  %v327 = vunpack.c.h.b16 %v306
  %v328 = vunpack.c.l.b16 %v307
  %v329 = vunpack.c.h.b16 %v307
  %v330 = vunpack.c.l.b16 %v308
  %v331 = vunpack.c.h.b16 %v308
  %v332 = vunpack.c.l.b16 %v309
  %v333 = vunpack.c.h.b16 %v309
  %v334 = vpack.c.b16 %v318, %v318
  %v335 = vpack.c.b16 %v319, %v319
  %v336 = vpack.c.b16 %v320, %v320
  %v337 = vpack.c.b16 %v321, %v321
  %v338 = vpack.c.b16 %v322, %v322
  %v339 = vpack.c.b16 %v323, %v323
  %v340 = vpack.c.b16 %v324, %v324
  %v341 = vpack.c.b16 %v325, %v325
  %v342 = vpack.c.b16 %v326, %v326
  %v343 = vpack.c.b16 %v327, %v327
  %v344 = vpack.c.b16 %v328, %v328
  %v345 = vpack.c.b16 %v329, %v329
  %v346 = vpack.c.b16 %v330, %v330
  %v347 = vpack.c.b16 %v331, %v331
  %v348 = vpack.c.b16 %v332, %v332
  %v349 = vpack.c.b16 %v333, %v333
  %vm366 = vcmask 257024
  %367 = vst.msk [vmem:[%s3] sm:$0xf] %vm366, %v334
  %368 = vst.msk [vmem:[%s3 + $0x4] sm:$0xf] %vm366, %v335
  %369 = vst.msk [vmem:[%s3 + $0x8] sm:$0xf] %vm366, %v336
  %370 = vst.msk [vmem:[%s3 + $0xc] sm:$0xf] %vm366, %v337
  %371 = vst.msk [vmem:[%s3 + $0x10] sm:$0xf] %vm366, %v338
  %372 = vst.msk [vmem:[%s3 + $0x14] sm:$0xf] %vm366, %v339
  %373 = vst.msk [vmem:[%s3 + $0x18] sm:$0xf] %vm366, %v340
  %374 = vst.msk [vmem:[%s3 + $0x1c] sm:$0xf] %vm366, %v341
  %375 = vst.msk [vmem:[%s3 + $0x20] sm:$0xf] %vm366, %v342
  %376 = vst.msk [vmem:[%s3 + $0x24] sm:$0xf] %vm366, %v343
  %377 = vst.msk [vmem:[%s3 + $0x28] sm:$0xf] %vm366, %v344
  %378 = vst.msk [vmem:[%s3 + $0x2c] sm:$0xf] %vm366, %v345
  %379 = vst.msk [vmem:[%s3 + $0x30] sm:$0xf] %vm366, %v346
  %380 = vst.msk [vmem:[%s3 + $0x34] sm:$0xf] %vm366, %v347
  %381 = vst.msk [vmem:[%s3 + $0x38] sm:$0xf] %vm366, %v348
  %382 = vst.msk [vmem:[%s3 + $0x3c] sm:$0xf] %vm366, %v349
  // Predicated region
  $region14: #{tsvit_forward.10} parent=0 // pred_check
    _
  $region15: #{tsvit_forward.10} parent=0 // pred_check_branch
    %384 = sbr.rel (0) target = $region17
  $region16: #{tsvit_forward.10} parent=0 // pred_region
    _
  $region17: #{tsvit_forward.10} parent=0 // pred_fallthru
    _
  // Predicated region
  $region18: #{tsvit_forward.10} parent=0 // pred_check
    _
  $region19: #{tsvit_forward.10} parent=0 // pred_check_branch
    %386 = sbr.rel (0) target = $region21
  $region20: #{tsvit_forward.10} parent=0 // pred_region
    _
  $region21: #{tsvit_forward.10} parent=0 // pred_fallthru
    _

// kernel: tsvit_forward.8
$region0: #{tsvit_forward.8}
  #allocation0 [shape = 'u32[]', space=smem, size = 0x4, offset = 0x4, fixed_abs, tag = 'smem constant byte address 0x4 - core index']
  #allocation1 [shape = 'u32[144,128]{1,0:T(1,128)}', space=vmem, size = 0x12000, scoped, tag = 'internal scratch']
  %s0 = inlined_call_operand.vmem [shape: bf16[32,12,32], index: 0, kind: input, shape index: {}]
  %s1 = inlined_call_operand.vmem [shape: f32[1,32], index: 1, kind: input, shape index: {}]
  %s2 = inlined_call_operand.vmem [shape: f32[1,32], index: 2, kind: input, shape index: {}]
  %s3 = inlined_call_operand.vmem [shape: bf16[32,96], index: 3, kind: input, shape index: {}]
  %s4 = inlined_call_operand.vmem [shape: bf16[32,32], index: 4, kind: input, shape index: {}]
  %s5 = inlined_call_operand.vmem [shape: f32[1,32], index: 5, kind: input, shape index: {}]
  %s6 = inlined_call_operand.vmem [shape: bf16[32,12,32], index: 6, kind: output, shape index: {}]
  %s7 = sld [smem:[#allocation0]]
  $region57: #{tsvit_forward.8} parent=0
    _
  %s9 = ssub.s32 1, %s7
  %s10 = scalar_select 0, %s9, %s7
  loop: start=0, step=1, limit=6
  $region2: #{tsvit_forward.8} parent=0 // loop_pre_header
    _
  $region3: #{tsvit_forward.8} parent=0 // loop_header
    %s12 = sphi 0, %s16
    %p13 = scmp.ge.s32.totalorder %s12, 6
    %s22 = sphi 0, %s24
    %s25 = sphi 0, %s22
    %s26 = sphi 0, %s25
    %s42 = sphi 0, %s26
    %s46 = sphi 0, %s46
    %s48 = sphi 0, %s46
    %s49 = sphi 0, %s48
    %s63 = sphi 0, %s49
    %s67 = sphi 0, %s67
    %s69 = sphi 0, %s67
    %s70 = sphi 0, %s69
    %s84 = sphi 0, %s70
    %s88 = sphi 0, %s88
    %s90 = sphi 0, %s88
    %s91 = sphi 0, %s90
    %s105 = sphi 0, %s91
    %s109 = sphi 0, %s109
    %s111 = sphi 0, %s109
    %s112 = sphi 0, %s111
    %s126 = sphi 0, %s112
    %s130 = sphi 0, %s130
    %s132 = sphi 0, %s130
    %s133 = sphi 0, %s132
    %s147 = sphi 0, %s133
    %s153 = sphi 0, %s155
    %s156 = sphi 0, %s153
    %s157 = sphi 0, %s156
    %s173 = sphi 0, %s157
  $region4: #{tsvit_forward.8} parent=0 // loop_header_branch
    %15 = sbr.rel (%p13) target = $region8
  $region5: #{tsvit_forward.8} parent=0 // loop_body
    %s17 = ssub.s32 %s12, 1
    %s18 = ssub.s32 %s12, 2
    %s19 = sadd.s32 %s12, 1
    %s20 = ssub.s32 %s12, %s19
    %p21 = scmp.eq.s32.totalorder %s20, 0
    %s23 = sadd.s32 %s22, 1
    %s24 = scalar_select %p21, %s22, %s23
    %p27 = pneg %p21
    %p28 = scmp.eq.s32.totalorder %s12, 3
    %p29 = por %p27, %p28
    %p30 = scmp.ne.s32.totalorder %s22, %s25
    %p31 = scmp.eq.s32.totalorder %s12, 0
    %p32 = por %p30, %p31
    %p33 = scmp.ne.s32.totalorder %s22, %s25
    %p34 = scmp.eq.s32.totalorder %s17, 3
    %p35 = por %p33, %p34
    %p36 = scmp.ne.s32.totalorder %s25, %s26
    %p37 = scmp.eq.s32.totalorder %s17, 0
    %p38 = por %p36, %p37
    %p39 = scmp.ne.s32.totalorder %s25, %s26
    %p40 = scmp.eq.s32.totalorder %s18, 3
    %p41 = por %p39, %p40
    %p43 = scmp.ne.s32.totalorder %s26, %s42
    %p44 = scmp.eq.s32.totalorder %s18, 0
    %p45 = por %p43, %p44
    %s47 = sadd.s32 %s46, 1
    %p50 = scmp.eq.s32.totalorder %s12, 3
    %p51 = scmp.ne.s32.totalorder %s46, %s48
    %p52 = scmp.eq.s32.totalorder %s12, 0
    %p53 = por %p51, %p52
    %p54 = scmp.ne.s32.totalorder %s46, %s48
    %p55 = scmp.eq.s32.totalorder %s17, 3
    %p56 = por %p54, %p55
    %p57 = scmp.ne.s32.totalorder %s48, %s49
    %p58 = scmp.eq.s32.totalorder %s17, 0
    %p59 = por %p57, %p58
    %p60 = scmp.ne.s32.totalorder %s48, %s49
    %p61 = scmp.eq.s32.totalorder %s18, 3
    %p62 = por %p60, %p61
    %p64 = scmp.ne.s32.totalorder %s49, %s63
    %p65 = scmp.eq.s32.totalorder %s18, 0
    %p66 = por %p64, %p65
    %s68 = sadd.s32 %s67, 1
    %p71 = scmp.eq.s32.totalorder %s12, 3
    %p72 = scmp.ne.s32.totalorder %s67, %s69
    %p73 = scmp.eq.s32.totalorder %s12, 0
    %p74 = por %p72, %p73
    %p75 = scmp.ne.s32.totalorder %s67, %s69
    %p76 = scmp.eq.s32.totalorder %s17, 3
    %p77 = por %p75, %p76
    %p78 = scmp.ne.s32.totalorder %s69, %s70
    %p79 = scmp.eq.s32.totalorder %s17, 0
    %p80 = por %p78, %p79
    %p81 = scmp.ne.s32.totalorder %s69, %s70
    %p82 = scmp.eq.s32.totalorder %s18, 3
    %p83 = por %p81, %p82
    %p85 = scmp.ne.s32.totalorder %s70, %s84
    %p86 = scmp.eq.s32.totalorder %s18, 0
    %p87 = por %p85, %p86
    %s89 = sadd.s32 %s88, 1
    %p92 = scmp.eq.s32.totalorder %s12, 3
    %p93 = scmp.ne.s32.totalorder %s88, %s90
    %p94 = scmp.eq.s32.totalorder %s12, 0
    %p95 = por %p93, %p94
    %p96 = scmp.ne.s32.totalorder %s88, %s90
    %p97 = scmp.eq.s32.totalorder %s17, 3
    %p98 = por %p96, %p97
    %p99 = scmp.ne.s32.totalorder %s90, %s91
    %p100 = scmp.eq.s32.totalorder %s17, 0
    %p101 = por %p99, %p100
    %p102 = scmp.ne.s32.totalorder %s90, %s91
    %p103 = scmp.eq.s32.totalorder %s18, 3
    %p104 = por %p102, %p103
    %p106 = scmp.ne.s32.totalorder %s91, %s105
    %p107 = scmp.eq.s32.totalorder %s18, 0
    %p108 = por %p106, %p107
    %s110 = sadd.s32 %s109, 1
    %p113 = scmp.eq.s32.totalorder %s12, 3
    %p114 = scmp.ne.s32.totalorder %s109, %s111
    %p115 = scmp.eq.s32.totalorder %s12, 0
    %p116 = por %p114, %p115
    %p117 = scmp.ne.s32.totalorder %s109, %s111
    %p118 = scmp.eq.s32.totalorder %s17, 3
    %p119 = por %p117, %p118
    %p120 = scmp.ne.s32.totalorder %s111, %s112
    %p121 = scmp.eq.s32.totalorder %s17, 0
    %p122 = por %p120, %p121
    %p123 = scmp.ne.s32.totalorder %s111, %s112
    %p124 = scmp.eq.s32.totalorder %s18, 3
    %p125 = por %p123, %p124
    %p127 = scmp.ne.s32.totalorder %s112, %s126
    %p128 = scmp.eq.s32.totalorder %s18, 0
    %p129 = por %p127, %p128
    %s131 = sadd.s32 %s130, 1
    %p134 = scmp.eq.s32.totalorder %s12, 3
    %p135 = scmp.ne.s32.totalorder %s130, %s132
    %p136 = scmp.eq.s32.totalorder %s12, 0
    %p137 = por %p135, %p136
    %p138 = scmp.ne.s32.totalorder %s130, %s132
    %p139 = scmp.eq.s32.totalorder %s17, 3
    %p140 = por %p138, %p139
    %p141 = scmp.ne.s32.totalorder %s132, %s133
    %p142 = scmp.eq.s32.totalorder %s17, 0
    %p143 = por %p141, %p142
    %p144 = scmp.ne.s32.totalorder %s132, %s133
    %p145 = scmp.eq.s32.totalorder %s18, 3
    %p146 = por %p144, %p145
    %p148 = scmp.ne.s32.totalorder %s133, %s147
    %p149 = scmp.eq.s32.totalorder %s18, 0
    %p150 = por %p148, %p149
    %s151 = ssub.s32 %s12, %s19
    %p152 = scmp.eq.s32.totalorder %s151, 0
    %s154 = sadd.s32 %s153, 1
    %s155 = scalar_select %p152, %s153, %s154
    %p158 = pneg %p152
    %p159 = scmp.eq.s32.totalorder %s12, 3
    %p160 = por %p158, %p159
    %p161 = scmp.ne.s32.totalorder %s153, %s156
    %p162 = scmp.eq.s32.totalorder %s12, 0
    %p163 = por %p161, %p162
    %p164 = scmp.ne.s32.totalorder %s153, %s156
    %p165 = scmp.eq.s32.totalorder %s17, 3
    %p166 = por %p164, %p165
    %p167 = scmp.ne.s32.totalorder %s156, %s157
    %p168 = scmp.eq.s32.totalorder %s17, 0
    %p169 = por %p167, %p168
    %p170 = scmp.ne.s32.totalorder %s156, %s157
    %p171 = scmp.eq.s32.totalorder %s18, 3
    %p172 = por %p170, %p171
    %p174 = scmp.ne.s32.totalorder %s157, %s173
    %p175 = scmp.eq.s32.totalorder %s18, 0
    %p176 = por %p174, %p175
    %p177 = scmp.le.s32.totalorder 1, %s12
    %p178 = scmp.lt.s32.totalorder %s12, 5
    %p179 = pnand %p177, %p178
    %p180 = pneg %p179
    // Predicated region
    $region9: #{tsvit_forward.8} parent=5 // pred_check
      _
    $region10: #{tsvit_forward.8} parent=5 // pred_check_branch
      %182 = sbr.rel (%p179) target = $region12
    $region11: #{tsvit_forward.8} parent=5 // pred_region
      %s183 = ssub.s32 %s12, 1
      // Predicated region
      $region13: #{tsvit_forward.8} parent=11 // pred_check
        %p184 = pneg %p59
      $region14: #{tsvit_forward.8} parent=11 // pred_check_branch
        %186 = sbr.rel (%p184) target = $region16
      $region15: #{tsvit_forward.8} parent=11 // pred_region
        _
      $region16: #{tsvit_forward.8} parent=11 // pred_fallthru
        _
      // Predicated region
      $region17: #{tsvit_forward.8} parent=11 // pred_check
        %p187 = pneg %p80
      $region18: #{tsvit_forward.8} parent=11 // pred_check_branch
        %189 = sbr.rel (%p187) target = $region20
      $region19: #{tsvit_forward.8} parent=11 // pred_region
        _
      $region20: #{tsvit_forward.8} parent=11 // pred_fallthru
        _
      // Predicated region
      $region21: #{tsvit_forward.8} parent=11 // pred_check
        %p190 = pneg %p101
      $region22: #{tsvit_forward.8} parent=11 // pred_check_branch
        %192 = sbr.rel (%p190) target = $region24
      $region23: #{tsvit_forward.8} parent=11 // pred_region
        _
      $region24: #{tsvit_forward.8} parent=11 // pred_fallthru
        _
      // Predicated region
      $region25: #{tsvit_forward.8} parent=11 // pred_check
        %p193 = pneg %p122
      $region26: #{tsvit_forward.8} parent=11 // pred_check_branch
        %195 = sbr.rel (%p193) target = $region28
      $region27: #{tsvit_forward.8} parent=11 // pred_region
        _
      $region28: #{tsvit_forward.8} parent=11 // pred_fallthru
        _
      // Predicated region
      $region29: #{tsvit_forward.8} parent=11 // pred_check
        %p196 = pneg %p143
      $region30: #{tsvit_forward.8} parent=11 // pred_check_branch
        %198 = sbr.rel (%p196) target = $region32
      $region31: #{tsvit_forward.8} parent=11 // pred_region
        _
      $region32: #{tsvit_forward.8} parent=11 // pred_fallthru
        _
    $region12: #{tsvit_forward.8} parent=5 // pred_fallthru
      _
    %p199 = scmp.lt.s32.totalorder %s12, 4
    // Predicated region
    $region33: #{tsvit_forward.8} parent=5 // pred_check
      %p200 = pneg %p199
    $region34: #{tsvit_forward.8} parent=5 // pred_check_branch
      %202 = sbr.rel (%p200) target = $region36
    $region35: #{tsvit_forward.8} parent=5 // pred_region
      // Predicated region
      $region37: #{tsvit_forward.8} parent=35 // pred_check
        %p203 = pneg %p32
      $region38: #{tsvit_forward.8} parent=35 // pred_check_branch
        %205 = sbr.rel (%p203) target = $region40
      $region39: #{tsvit_forward.8} parent=35 // pred_region
        %s206 = smul.u32 8, %s12
        %p207 = scmp.lt.s32.totalorder %s206, 31
        %s208 = scalar_select %p207, %s206, 31
        %s209 = smul.addr %s208, 2
        %s210 = smul.addr %s209, 4
        %s211 = scalar_lea.vmem %s0, %s210
        %s212 = smul.u32 8, %s12
      $region40: #{tsvit_forward.8} parent=35 // pred_fallthru
        _
    $region36: #{tsvit_forward.8} parent=5 // pred_fallthru
      _
    %p213 = scmp.le.s32.totalorder 1, %s12
    %p214 = scmp.lt.s32.totalorder %s12, 5
    %p215 = pnand %p213, %p214
    %p216 = pneg %p215
    // Predicated region
    $region41: #{tsvit_forward.8} parent=5 // pred_check
      _
    $region42: #{tsvit_forward.8} parent=5 // pred_check_branch
      %218 = sbr.rel (%p215) target = $region44
    $region43: #{tsvit_forward.8} parent=5 // pred_region
      %s219 = ssub.s32 %s12, 1
      %s220 = smul.u32 8, %s17
      %p221 = scmp.lt.s32.totalorder %s220, 31
      %s222 = scalar_select %p221, %s220, 31
      %s223 = smul.addr %s222, 2
      %s224 = smul.addr %s223, 4
      %s225 = scalar_lea.vmem %s0, %s224
      %p226 = pneg %p38
      %p227 = pneg %p35
      %p228 = pneg %p59
      %p229 = pneg %p56
      %p230 = pneg %p80
      %p231 = pneg %p77
      %p232 = pneg %p101
      %p233 = pneg %p98
      %p234 = pneg %p122
      %p235 = pneg %p119
      %p236 = pneg %p143
      %p237 = pneg %p140
      %p238 = pneg %p169
      %p239 = pneg %p166
      %s240 = smul.u32 8, %s17
      %p241 = scmp.lt.s32.totalorder %s240, 31
      %s242 = scalar_select %p241, %s240, 31
      %s243 = smul.addr %s242, 2
      %s244 = smul.addr %s243, 4
      %s245 = scalar_lea.vmem %s6, %s244
      %s246 = smul.u32 8, %s17
      %p247 = scmp.lt.s32.totalorder %s246, 31
      %s248 = scalar_select %p247, %s246, 31
      %s249 = smul.addr %s248, 2
      %s250 = smul.addr %s249, 4
      %s251 = scalar_lea.vmem %s0, %s250
      %s252 = smul.u32 8, %s17
      %s253 = smul.u32 8, %s17
      %p254 = scmp.lt.s32.totalorder %s253, 31
      %s255 = scalar_select %p254, %s253, 31
      %s256 = smul.addr %s255, 2
      %s257 = smul.addr %s256, 4
      %s258 = scalar_lea.vmem %s6, %s257
      %s259 = smul.u32 8, %s17
      %v261 = vld [vmem:[%s251] sm:$0xf]
      %v262 = vld [vmem:[%s251 + $0x4] sm:$0x3]
      %v263 = vld [vmem:[%s251 + $0x8] sm:$0xf]
      %v264 = vld [vmem:[%s251 + $0xc] sm:$0x3]
      %v265 = vld [vmem:[%s251 + $0x10] sm:$0xf]
      %v266 = vld [vmem:[%s251 + $0x14] sm:$0x3]
      %v267 = vld [vmem:[%s251 + $0x18] sm:$0xf]
      %v268 = vld [vmem:[%s251 + $0x1c] sm:$0x3]
      %v269 = vld [vmem:[%s251 + $0x20] sm:$0xf]
      %v270 = vld [vmem:[%s251 + $0x24] sm:$0x3]
      %v271 = vld [vmem:[%s251 + $0x28] sm:$0xf]
      %v272 = vld [vmem:[%s251 + $0x2c] sm:$0x3]
      %v273 = vld [vmem:[%s251 + $0x30] sm:$0xf]
      %v274 = vld [vmem:[%s251 + $0x34] sm:$0x3]
      %v275 = vld [vmem:[%s251 + $0x38] sm:$0xf]
      %v276 = vld [vmem:[%s251 + $0x3c] sm:$0x3]
      %v277 = vunpack.c.l.bf16 %v261
      %v278 = vunpack.c.l.bf16 %v262
      %v279 = vunpack.c.l.bf16 %v263
      %v280 = vunpack.c.l.bf16 %v264
      %v281 = vunpack.c.l.bf16 %v265
      %v282 = vunpack.c.l.bf16 %v266
      %v283 = vunpack.c.l.bf16 %v267
      %v284 = vunpack.c.l.bf16 %v268
      %v285 = vunpack.c.l.bf16 %v269
      %v286 = vunpack.c.l.bf16 %v270
      %v287 = vunpack.c.l.bf16 %v271
      %v288 = vunpack.c.l.bf16 %v272
      %v289 = vunpack.c.l.bf16 %v273
      %v290 = vunpack.c.l.bf16 %v274
      %v291 = vunpack.c.l.bf16 %v275
      %v292 = vunpack.c.l.bf16 %v276
      %v293 = vld [vmem:[%s1] sm:$0x1]
      %v294 = vld [vmem:[%s2] sm:$0x1]
      %vm295 = vcmask 261120
      %v296 = vsel %vm295, %v277, 0.0
      %297 = vadd.xlane.f32.xlu0 %v296
      %v298 = vpop.xlane.xlu0 %297
      %vm299 = vcmask 257024
      %v300 = vsel %vm299, %v278, 0.0
      %301 = vadd.xlane.f32.xlu0 %v300
      %v302 = vpop.xlane.xlu0 %301
      %v303 = vsel %vm295, %v279, 0.0
      %304 = vadd.xlane.f32.xlu0 %v303
      %v305 = vpop.xlane.xlu0 %304
      %v306 = vsel %vm299, %v280, 0.0
      %307 = vadd.xlane.f32.xlu0 %v306
      %v308 = vpop.xlane.xlu0 %307
      %v309 = vsel %vm295, %v281, 0.0
      %310 = vadd.xlane.f32.xlu0 %v309
      %v311 = vpop.xlane.xlu0 %310
      %v312 = vsel %vm299, %v282, 0.0
      %313 = vadd.xlane.f32.xlu0 %v312
      %v314 = vpop.xlane.xlu0 %313
      %v315 = vsel %vm295, %v283, 0.0
      %316 = vadd.xlane.f32.xlu0 %v315
      %v317 = vpop.xlane.xlu0 %316
      %v318 = vsel %vm299, %v284, 0.0
      %319 = vadd.xlane.f32.xlu0 %v318
      %v320 = vpop.xlane.xlu0 %319
      %v321 = vsel %vm295, %v285, 0.0
      %322 = vadd.xlane.f32.xlu0 %v321
      %v323 = vpop.xlane.xlu0 %322
      %v324 = vsel %vm299, %v286, 0.0
      %325 = vadd.xlane.f32.xlu0 %v324
      %v326 = vpop.xlane.xlu0 %325
      %v327 = vsel %vm295, %v287, 0.0
      %328 = vadd.xlane.f32.xlu0 %v327
      %v329 = vpop.xlane.xlu0 %328
      %v330 = vsel %vm299, %v288, 0.0
      %331 = vadd.xlane.f32.xlu0 %v330
      %v332 = vpop.xlane.xlu0 %331
      %v333 = vsel %vm295, %v289, 0.0
      %334 = vadd.xlane.f32.xlu0 %v333
      %v335 = vpop.xlane.xlu0 %334
      %v336 = vsel %vm299, %v290, 0.0
      %337 = vadd.xlane.f32.xlu0 %v336
      %v338 = vpop.xlane.xlu0 %337
      %v339 = vsel %vm295, %v291, 0.0
      %340 = vadd.xlane.f32.xlu0 %v339
      %v341 = vpop.xlane.xlu0 %340
      %v342 = vsel %vm299, %v292, 0.0
      %343 = vadd.xlane.f32.xlu0 %v342
      %v344 = vpop.xlane.xlu0 %343
      %v345 = vrcp.pop 32.0
      %v346 = vmul.f32 %v298, %v345
      %v347 = vmul.f32 %v302, %v345
      %v348 = vmul.f32 %v305, %v345
      %v349 = vmul.f32 %v308, %v345
      %v350 = vmul.f32 %v311, %v345
      %v351 = vmul.f32 %v314, %v345
      %v352 = vmul.f32 %v317, %v345
      %v353 = vmul.f32 %v320, %v345
      %v354 = vmul.f32 %v323, %v345
      %v355 = vmul.f32 %v326, %v345
      %v356 = vmul.f32 %v329, %v345
      %v357 = vmul.f32 %v332, %v345
      %v358 = vmul.f32 %v335, %v345
      %v359 = vmul.f32 %v338, %v345
      %v360 = vmul.f32 %v341, %v345
      %v361 = vmul.f32 %v344, %v345
      %v362 = vsub.f32 %v277, %v346
      %v363 = vsub.f32 %v278, %v347
      %v364 = vsub.f32 %v279, %v348
      %v365 = vsub.f32 %v280, %v349
      %v366 = vsub.f32 %v281, %v350
      %v367 = vsub.f32 %v282, %v351
      %v368 = vsub.f32 %v283, %v352
      %v369 = vsub.f32 %v284, %v353
      %v370 = vsub.f32 %v285, %v354
      %v371 = vsub.f32 %v286, %v355
      %v372 = vsub.f32 %v287, %v356
      %v373 = vsub.f32 %v288, %v357
      %v374 = vsub.f32 %v289, %v358
      %v375 = vsub.f32 %v290, %v359
      %v376 = vsub.f32 %v291, %v360
      %v377 = vsub.f32 %v292, %v361
      %v378 = vmul.f32 %v362, %v362
      %v379 = vmul.f32 %v363, %v363
      %v380 = vmul.f32 %v364, %v364
      %v381 = vmul.f32 %v365, %v365
      %v382 = vmul.f32 %v366, %v366
      %v383 = vmul.f32 %v367, %v367
      %v384 = vmul.f32 %v368, %v368
      %v385 = vmul.f32 %v369, %v369
      %v386 = vmul.f32 %v370, %v370
      %v387 = vmul.f32 %v371, %v371
      %v388 = vmul.f32 %v372, %v372
      %v389 = vmul.f32 %v373, %v373
      %v390 = vmul.f32 %v374, %v374
      %v391 = vmul.f32 %v375, %v375
      %v392 = vmul.f32 %v376, %v376
      %v393 = vmul.f32 %v377, %v377
      %v394 = vsel %vm295, %v378, 0.0
      %395 = vadd.xlane.f32.xlu0 %v394
      %v396 = vpop.xlane.xlu0 %395
      %v397 = vsel %vm299, %v379, 0.0
      %398 = vadd.xlane.f32.xlu0 %v397
      %v399 = vpop.xlane.xlu0 %398
      %v400 = vsel %vm295, %v380, 0.0
      %401 = vadd.xlane.f32.xlu0 %v400
      %v402 = vpop.xlane.xlu0 %401
      %v403 = vsel %vm299, %v381, 0.0
      %404 = vadd.xlane.f32.xlu0 %v403
      %v405 = vpop.xlane.xlu0 %404
      %v406 = vsel %vm295, %v382, 0.0
      %407 = vadd.xlane.f32.xlu0 %v406
      %v408 = vpop.xlane.xlu0 %407
      %v409 = vsel %vm299, %v383, 0.0
      %410 = vadd.xlane.f32.xlu0 %v409
      %v411 = vpop.xlane.xlu0 %410
      %v412 = vsel %vm295, %v384, 0.0
      %413 = vadd.xlane.f32.xlu0 %v412
      %v414 = vpop.xlane.xlu0 %413
      %v415 = vsel %vm299, %v385, 0.0
      %416 = vadd.xlane.f32.xlu0 %v415
      %v417 = vpop.xlane.xlu0 %416
      %v418 = vsel %vm295, %v386, 0.0
      %419 = vadd.xlane.f32.xlu0 %v418
      %v420 = vpop.xlane.xlu0 %419
      %v421 = vsel %vm299, %v387, 0.0
      %422 = vadd.xlane.f32.xlu0 %v421
      %v423 = vpop.xlane.xlu0 %422
      %v424 = vsel %vm295, %v388, 0.0
      %425 = vadd.xlane.f32.xlu0 %v424
      %v426 = vpop.xlane.xlu0 %425
      %v427 = vsel %vm299, %v389, 0.0
      %428 = vadd.xlane.f32.xlu0 %v427
      %v429 = vpop.xlane.xlu0 %428
      %v430 = vsel %vm295, %v390, 0.0
      %431 = vadd.xlane.f32.xlu0 %v430
      %v432 = vpop.xlane.xlu0 %431
      %v433 = vsel %vm299, %v391, 0.0
      %434 = vadd.xlane.f32.xlu0 %v433
      %v435 = vpop.xlane.xlu0 %434
      %v436 = vsel %vm295, %v392, 0.0
      %437 = vadd.xlane.f32.xlu0 %v436
      %v438 = vpop.xlane.xlu0 %437
      %v439 = vsel %vm299, %v393, 0.0
      %440 = vadd.xlane.f32.xlu0 %v439
      %v441 = vpop.xlane.xlu0 %440
      %v442 = vmul.f32 %v396, %v345
      %v443 = vmul.f32 %v399, %v345
      %v444 = vmul.f32 %v402, %v345
      %v445 = vmul.f32 %v405, %v345
      %v446 = vmul.f32 %v408, %v345
      %v447 = vmul.f32 %v411, %v345
      %v448 = vmul.f32 %v414, %v345
      %v449 = vmul.f32 %v417, %v345
      %v450 = vmul.f32 %v420, %v345
      %v451 = vmul.f32 %v423, %v345
      %v452 = vmul.f32 %v426, %v345
      %v453 = vmul.f32 %v429, %v345
      %v454 = vmul.f32 %v432, %v345
      %v455 = vmul.f32 %v435, %v345
      %v456 = vmul.f32 %v438, %v345
      %v457 = vmul.f32 %v441, %v345
      %v458 = vadd.f32 %v442, 1e-05
      %v459 = vadd.f32 %v443, 1e-05
      %v460 = vadd.f32 %v444, 1e-05
      %v461 = vadd.f32 %v445, 1e-05
      %v462 = vadd.f32 %v446, 1e-05
      %v463 = vadd.f32 %v447, 1e-05
      %v464 = vadd.f32 %v448, 1e-05
      %v465 = vadd.f32 %v449, 1e-05
      %v466 = vadd.f32 %v450, 1e-05
      %v467 = vadd.f32 %v451, 1e-05
      %v468 = vadd.f32 %v452, 1e-05
      %v469 = vadd.f32 %v453, 1e-05
      %v470 = vadd.f32 %v454, 1e-05
      %v471 = vadd.f32 %v455, 1e-05
      %v472 = vadd.f32 %v456, 1e-05
      %v473 = vadd.f32 %v457, 1e-05
      %v474 = vrsqrt.pop %v458
      %v475 = vrsqrt.pop %v459
      %v476 = vrsqrt.pop %v460
      %v477 = vrsqrt.pop %v461
      %v478 = vrsqrt.pop %v462
      %v479 = vrsqrt.pop %v463
      %v480 = vrsqrt.pop %v464
      %v481 = vrsqrt.pop %v465
      %v482 = vrsqrt.pop %v466
      %v483 = vrsqrt.pop %v467
      %v484 = vrsqrt.pop %v468
      %v485 = vrsqrt.pop %v469
      %v486 = vrsqrt.pop %v470
      %v487 = vrsqrt.pop %v471
      %v488 = vrsqrt.pop %v472
      %v489 = vrsqrt.pop %v473
      %v490 = vmul.f32 %v362, %v474
      %v491 = vmul.f32 %v363, %v475
      %v492 = vmul.f32 %v364, %v476
      %v493 = vmul.f32 %v365, %v477
      %v494 = vmul.f32 %v366, %v478
      %v495 = vmul.f32 %v367, %v479
      %v496 = vmul.f32 %v368, %v480
      %v497 = vmul.f32 %v369, %v481
      %v498 = vmul.f32 %v370, %v482
      %v499 = vmul.f32 %v371, %v483
      %v500 = vmul.f32 %v372, %v484
      %v501 = vmul.f32 %v373, %v485
      %v502 = vmul.f32 %v374, %v486
      %v503 = vmul.f32 %v375, %v487
      %v504 = vmul.f32 %v376, %v488
      %v505 = vmul.f32 %v377, %v489
      %v507 = vlaneseq
      %v508 = vshrl.u32 %v507, 7
      %v509 = vsub.s32 0, %v508
      %v510 = vrot.slane %v293, %v509
      %v512 = vmul.f32 %v490, %v510
      %v513 = vmul.f32 %v491, %v510
      %v514 = vmul.f32 %v492, %v510
      %v515 = vmul.f32 %v493, %v510
      %v516 = vmul.f32 %v494, %v510
      %v517 = vmul.f32 %v495, %v510
      %v518 = vmul.f32 %v496, %v510
      %v519 = vmul.f32 %v497, %v510
      %v520 = vmul.f32 %v498, %v510
      %v521 = vmul.f32 %v499, %v510
      %v522 = vmul.f32 %v500, %v510
      %v523 = vmul.f32 %v501, %v510
      %v524 = vmul.f32 %v502, %v510
      %v525 = vmul.f32 %v503, %v510
      %v526 = vmul.f32 %v504, %v510
      %v527 = vmul.f32 %v505, %v510
      %v529 = vlaneseq
      %v530 = vshrl.u32 %v529, 7
      %v531 = vsub.s32 0, %v530
      %v532 = vrot.slane %v294, %v531
      %v534 = vadd.f32 %v512, %v532
      %v535 = vadd.f32 %v513, %v532
      %v536 = vadd.f32 %v514, %v532
      %v537 = vadd.f32 %v515, %v532
      %v538 = vadd.f32 %v516, %v532
      %v539 = vadd.f32 %v517, %v532
      %v540 = vadd.f32 %v518, %v532
      %v541 = vadd.f32 %v519, %v532
      %v542 = vadd.f32 %v520, %v532
      %v543 = vadd.f32 %v521, %v532
      %v544 = vadd.f32 %v522, %v532
      %v545 = vadd.f32 %v523, %v532
      %v546 = vadd.f32 %v524, %v532
      %v547 = vadd.f32 %v525, %v532
      %v548 = vadd.f32 %v526, %v532
      %v549 = vadd.f32 %v527, %v532
      %v566 = vcombine.high %v534, %v534
      %v567 = vcombine.high %v536, %v536
      %v568 = vcombine.high %v538, %v538
      %v569 = vcombine.high %v540, %v540
      %v570 = vcombine.high %v542, %v542
      %v571 = vcombine.high %v544, %v544
      %v572 = vcombine.high %v546, %v546
      %v573 = vcombine.high %v548, %v548
      %v574 = vcombine.low %v534, %v566
      %v575 = vcombine.low %v535, %v536
      %v576 = vcombine.low %v567, %v537
      %v577 = vcombine.low %v538, %v568
      %v578 = vcombine.low %v539, %v540
      %v579 = vcombine.low %v569, %v541
      %v580 = vcombine.low %v542, %v570
      %v581 = vcombine.low %v543, %v544
      %v582 = vcombine.low %v571, %v545
      %v583 = vcombine.low %v546, %v572
      %v584 = vcombine.low %v547, %v548
      %v585 = vcombine.low %v573, %v549
      %v598 = vpack.c.bf16 %v575, %v574
      %v599 = vpack.c.bf16 %v577, %v576
      %v600 = vpack.c.bf16 %v579, %v578
      %v601 = vpack.c.bf16 %v581, %v580
      %v602 = vpack.c.bf16 %v583, %v582
      %v603 = vpack.c.bf16 %v585, %v584
      %v604 = vld [vmem:[%s3] sm:$0xf]
      %v605 = vld [vmem:[%s3 + $0x4] sm:$0xf]
      %v606 = vld [vmem:[%s3 + $0x8] sm:$0xf]
      %v607 = vld [vmem:[%s3 + $0xc] sm:$0xf]
      %v612 = vunpack.c.l.b16 %v604
      %v613 = vunpack.c.l.b16 %v605
      %v614 = vunpack.c.l.b16 %v606
      %v615 = vunpack.c.l.b16 %v607
      %v616 = vpack.c.b16 %v613, %v612
      %v617 = vpack.c.b16 %v615, %v614
      %v621 = vsel %vm295, %v598, 0
      %v624 = vsel %vm295, %v599, 0
      %v627 = vsel %vm295, %v600, 0
      %v630 = vsel %vm295, %v601, 0
      %v633 = vsel %vm295, %v602, 0
      %v636 = vsel %vm295, %v603, 0
      %638 = vmatprep.subr.bf16.mxu0 0
      %639 = vmatpush1.bf16.msra.mxu0 %v616
      %640 = vmatprep.subr.bf16.mxu0 0
      %641 = vmatpush1.bf16.msra.mxu0 %v617
      %642 = vmatprep.subr.bf16.mxu0 0
      %643 = vmatpush1.bf16.msra.mxu0 0
      %644 = vmatprep.subr.bf16.mxu0 0
      %645 = vmatpush1.bf16.msra.mxu0 0
      %646 = vmatprep.subr.bf16.mxu0 0
      %647 = vmatpush1.bf16.msra.mxu0 0
      %648 = vmatprep.subr.bf16.mxu0 0
      %649 = vmatpush1.bf16.msra.mxu0 0
      %650 = vmatprep.subr.bf16.mxu0 0
      %651 = vmatpush1.bf16.msra.mxu0 0
      %652 = vmatprep.subr.bf16.mxu0 0
      %653 = vmatpush1.bf16.msra.mxu0 0
      %654 = vmatprep.subr.bf16.mxu0 0
      %655 = vmatpush1.bf16.msra.mxu0 0
      %656 = vmatprep.subr.bf16.mxu0 0
      %657 = vmatpush1.bf16.msra.mxu0 0
      %658 = vmatprep.subr.bf16.mxu0 0
      %659 = vmatpush1.bf16.msra.mxu0 0
      %660 = vmatprep.subr.bf16.mxu0 0
      %661 = vmatpush1.bf16.msra.mxu0 0
      %662 = vmatprep.subr.bf16.mxu0 0
      %663 = vmatpush1.bf16.msra.mxu0 0
      %664 = vmatprep.subr.bf16.mxu0 0
      %665 = vmatpush1.bf16.msra.mxu0 0
      %666 = vmatprep.subr.bf16.mxu0 0
      %667 = vmatpush1.bf16.msra.mxu0 0
      %668 = vmatprep.subr.bf16.mxu0 0
      %669 = vmatpush1.bf16.msra.mxu0 0
      %670 = vmatprep.mubr.bf16.mxu0 0
      %671 = vmatmul.mubr.bf16.gmra.mrb[0].mxu0 %v621
      %v672 = vpop.f32.mrb[0].mxu0
      %v673 = vadd.f32 0.0, %v672
      %v674 = vpop.f32.mrb[0].mxu0
      %v675 = vpop.f32.mrb[0].mxu0
      %v676 = vadd.f32 0.0, %v675
      %v677 = vpop.f32.mrb[0].mxu0
      %678 = vmatprep.mubr.bf16.mxu0 0
      %679 = vmatmul.mubr.bf16.gmra.mrb[0].mxu0 %v624
      %v680 = vpop.f32.mrb[0].mxu0
      %v681 = vadd.f32 0.0, %v680
      %v682 = vpop.f32.mrb[0].mxu0
      %v683 = vpop.f32.mrb[0].mxu0
      %v684 = vadd.f32 0.0, %v683
      %v685 = vpop.f32.mrb[0].mxu0
      %686 = vmatprep.mubr.bf16.mxu0 0
      %687 = vmatmul.mubr.bf16.gmra.mrb[0].mxu0 %v627
      %v688 = vpop.f32.mrb[0].mxu0
      %v689 = vadd.f32 0.0, %v688
      %v690 = vpop.f32.mrb[0].mxu0
      %v691 = vpop.f32.mrb[0].mxu0
      %v692 = vadd.f32 0.0, %v691
      %v693 = vpop.f32.mrb[0].mxu0
      %694 = vmatprep.mubr.bf16.mxu0 0
      %695 = vmatmul.mubr.bf16.gmra.mrb[0].mxu0 %v630
      %v696 = vpop.f32.mrb[0].mxu0
      %v697 = vadd.f32 0.0, %v696
      %v698 = vpop.f32.mrb[0].mxu0
      %v699 = vpop.f32.mrb[0].mxu0
      %v700 = vadd.f32 0.0, %v699
      %v701 = vpop.f32.mrb[0].mxu0
      %702 = vmatprep.mubr.bf16.mxu0 0
      %703 = vmatmul.mubr.bf16.gmra.mrb[0].mxu0 %v633
      %v704 = vpop.f32.mrb[0].mxu0
      %v705 = vadd.f32 0.0, %v704
      %v706 = vpop.f32.mrb[0].mxu0
      %v707 = vpop.f32.mrb[0].mxu0
      %v708 = vadd.f32 0.0, %v707
      %v709 = vpop.f32.mrb[0].mxu0
      %710 = vmatprep.mubr.bf16.mxu0 0
      %711 = vmatmul.mubr.bf16.gmra.mrb[0].mxu0 %v636
      %v712 = vpop.f32.mrb[0].mxu0
      %v713 = vadd.f32 0.0, %v712
      %v714 = vpop.f32.mrb[0].mxu0
      %v715 = vpop.f32.mrb[0].mxu0
      %v716 = vadd.f32 0.0, %v715
      %v717 = vpop.f32.mrb[0].mxu0
      %718 = vdwg.mxu0
      %v731 = vcombine.high %v673, %v673
      %v732 = vcombine.high %v676, %v676
      %v733 = vcombine.high %v681, %v681
      %v734 = vcombine.high %v684, %v684
      %v735 = vcombine.high %v689, %v689
      %v736 = vcombine.high %v692, %v692
      %v737 = vcombine.high %v697, %v697
      %v738 = vcombine.high %v700, %v700
      %v739 = vcombine.high %v705, %v705
      %v740 = vcombine.high %v708, %v708
      %v741 = vcombine.high %v713, %v713
      %v742 = vcombine.high %v716, %v716
      %755 = vrot.lane.b32.xlu0 %v673, 112
      %v756 = vpop.permute.xlu0 %755
      %757 = vrot.lane.b32.xlu0 %v731, 112
      %v758 = vpop.permute.xlu0 %757
      %759 = vrot.lane.b32.xlu0 %v676, 112
      %v760 = vpop.permute.xlu0 %759
      %761 = vrot.lane.b32.xlu0 %v732, 112
      %v762 = vpop.permute.xlu0 %761
      %763 = vrot.lane.b32.xlu0 %v681, 112
      %v764 = vpop.permute.xlu0 %763
      %765 = vrot.lane.b32.xlu0 %v733, 112
      %v766 = vpop.permute.xlu0 %765
      %767 = vrot.lane.b32.xlu0 %v684, 112
      %v768 = vpop.permute.xlu0 %767
      %769 = vrot.lane.b32.xlu0 %v734, 112
      %v770 = vpop.permute.xlu0 %769
      %771 = vrot.lane.b32.xlu0 %v689, 112
      %v772 = vpop.permute.xlu0 %771
      %773 = vrot.lane.b32.xlu0 %v735, 112
      %v774 = vpop.permute.xlu0 %773
      %775 = vrot.lane.b32.xlu0 %v692, 112
      %v776 = vpop.permute.xlu0 %775
      %777 = vrot.lane.b32.xlu0 %v736, 112
      %v778 = vpop.permute.xlu0 %777
      %779 = vrot.lane.b32.xlu0 %v697, 112
      %v780 = vpop.permute.xlu0 %779
      %781 = vrot.lane.b32.xlu0 %v737, 112
      %v782 = vpop.permute.xlu0 %781
      %783 = vrot.lane.b32.xlu0 %v700, 112
      %v784 = vpop.permute.xlu0 %783
      %785 = vrot.lane.b32.xlu0 %v738, 112
      %v786 = vpop.permute.xlu0 %785
      %787 = vrot.lane.b32.xlu0 %v705, 112
      %v788 = vpop.permute.xlu0 %787
      %789 = vrot.lane.b32.xlu0 %v739, 112
      %v790 = vpop.permute.xlu0 %789
      %791 = vrot.lane.b32.xlu0 %v708, 112
      %v792 = vpop.permute.xlu0 %791
      %793 = vrot.lane.b32.xlu0 %v740, 112
      %v794 = vpop.permute.xlu0 %793
      %795 = vrot.lane.b32.xlu0 %v713, 112
      %v796 = vpop.permute.xlu0 %795
      %797 = vrot.lane.b32.xlu0 %v741, 112
      %v798 = vpop.permute.xlu0 %797
      %799 = vrot.lane.b32.xlu0 %v716, 112
      %v800 = vpop.permute.xlu0 %799
      %801 = vrot.lane.b32.xlu0 %v742, 112
      %v802 = vpop.permute.xlu0 %801
      %v827 = vmul.f32 %v673, 0.25
      %v828 = vmul.f32 %v731, 0.25
      %v829 = vmul.f32 %v676, 0.25
      %v830 = vmul.f32 %v732, 0.25
      %v831 = vmul.f32 %v681, 0.25
      %v832 = vmul.f32 %v733, 0.25
      %v833 = vmul.f32 %v684, 0.25
      %v834 = vmul.f32 %v734, 0.25
      %v835 = vmul.f32 %v689, 0.25
      %v836 = vmul.f32 %v735, 0.25
      %v837 = vmul.f32 %v692, 0.25
      %v838 = vmul.f32 %v736, 0.25
      %v839 = vmul.f32 %v697, 0.25
      %v840 = vmul.f32 %v737, 0.25
      %v841 = vmul.f32 %v700, 0.25
      %v842 = vmul.f32 %v738, 0.25
      %v843 = vmul.f32 %v705, 0.25
      %v844 = vmul.f32 %v739, 0.25
      %v845 = vmul.f32 %v708, 0.25
      %v846 = vmul.f32 %v740, 0.25
      %v847 = vmul.f32 %v713, 0.25
      %v848 = vmul.f32 %v741, 0.25
      %v849 = vmul.f32 %v716, 0.25
      %v850 = vmul.f32 %v742, 0.25
      %v851 = vmul.f32 %v756, 0.25
      %v852 = vmul.f32 %v758, 0.25
      %v853 = vmul.f32 %v760, 0.25
      %v854 = vmul.f32 %v762, 0.25
      %v855 = vmul.f32 %v764, 0.25
      %v856 = vmul.f32 %v766, 0.25
      %v857 = vmul.f32 %v768, 0.25
      %v858 = vmul.f32 %v770, 0.25
      %v859 = vmul.f32 %v772, 0.25
      %v860 = vmul.f32 %v774, 0.25
      %v861 = vmul.f32 %v776, 0.25
      %v862 = vmul.f32 %v778, 0.25
      %v863 = vmul.f32 %v780, 0.25
      %v864 = vmul.f32 %v782, 0.25
      %v865 = vmul.f32 %v784, 0.25
      %v866 = vmul.f32 %v786, 0.25
      %v867 = vmul.f32 %v788, 0.25
      %v868 = vmul.f32 %v790, 0.25
      %v869 = vmul.f32 %v792, 0.25
      %v870 = vmul.f32 %v794, 0.25
      %v871 = vmul.f32 %v796, 0.25
      %v872 = vmul.f32 %v798, 0.25
      %v873 = vmul.f32 %v800, 0.25
      %v874 = vmul.f32 %v802, 0.25
      %v907 = vcombine.low %v827, %v828
      %v908 = vcombine.low %v830, %v831
      %v909 = vcombine.low %v833, %v834
      %v910 = vcombine.low %v836, %v837
      %v911 = vcombine.low %v839, %v840
      %v912 = vcombine.low %v842, %v843
      %v913 = vcombine.low %v845, %v846
      %v914 = vcombine.low %v848, %v849
      %v915 = vcombine.low %v851, %v852
      %v916 = vcombine.low %v854, %v855
      %v917 = vcombine.low %v857, %v858
      %v918 = vcombine.low %v860, %v861
      %v919 = vcombine.low %v863, %v864
      %v920 = vcombine.low %v866, %v867
      %v921 = vcombine.low %v869, %v870
      %v922 = vcombine.low %v872, %v873
      %v939 = vpack.c.bf16 %v829, %v907
      %v940 = vpack.c.bf16 %v832, %v908
      %v941 = vpack.c.bf16 %v835, %v909
      %v942 = vpack.c.bf16 %v838, %v910
      %v943 = vpack.c.bf16 %v841, %v911
      %v944 = vpack.c.bf16 %v844, %v912
      %v945 = vpack.c.bf16 %v847, %v913
      %v946 = vpack.c.bf16 %v850, %v914
      %v947 = vpack.c.bf16 %v853, %v915
      %v948 = vpack.c.bf16 %v856, %v916
      %v949 = vpack.c.bf16 %v859, %v917
      %v950 = vpack.c.bf16 %v862, %v918
      %v951 = vpack.c.bf16 %v865, %v919
      %v952 = vpack.c.bf16 %v868, %v920
      %v953 = vpack.c.bf16 %v871, %v921
      %v954 = vpack.c.bf16 %v874, %v922
      %v955 = vcombine.low %v673, %v731
      %v956 = vcombine.low %v732, %v681
      %v957 = vcombine.low %v684, %v734
      %v958 = vcombine.low %v735, %v692
      %v959 = vcombine.low %v697, %v737
      %v960 = vcombine.low %v738, %v705
      %v961 = vcombine.low %v708, %v740
      %v962 = vcombine.low %v741, %v716
      %v963 = vcombine.low %v756, %v758
      %v964 = vcombine.low %v762, %v764
      %v965 = vcombine.low %v768, %v770
      %v966 = vcombine.low %v774, %v776
      %v967 = vcombine.low %v780, %v782
      %v968 = vcombine.low %v786, %v788
      %v969 = vcombine.low %v792, %v794
      %v970 = vcombine.low %v798, %v800
      %v987 = vpack.c.bf16 %v676, %v955
      %v988 = vpack.c.bf16 %v733, %v956
      %v989 = vpack.c.bf16 %v689, %v957
      %v990 = vpack.c.bf16 %v736, %v958
      %v991 = vpack.c.bf16 %v700, %v959
      %v992 = vpack.c.bf16 %v739, %v960
      %v993 = vpack.c.bf16 %v713, %v961
      %v994 = vpack.c.bf16 %v742, %v962
      %v995 = vpack.c.bf16 %v760, %v963
      %v996 = vpack.c.bf16 %v766, %v964
      %v997 = vpack.c.bf16 %v772, %v965
      %v998 = vpack.c.bf16 %v778, %v966
      %v999 = vpack.c.bf16 %v784, %v967
      %v1000 = vpack.c.bf16 %v790, %v968
      %v1001 = vpack.c.bf16 %v796, %v969
      %v1002 = vpack.c.bf16 %v802, %v970
      %1004 = vrot.lane.b32.xlu0 %v987, 96
      %v1005 = vpop.permute.xlu0 %1004
      %vm1006 = vcmask 130048
      %v1008 = vsel %vm1006, %v939, 0
      %v1011 = vsel %vm1006, %v1005, 0
      %1013 = vmatprep.subr.bf16.mxu0 0
      %1014 = vmatpush1.bf16.xpose.msra.mxu0 %v1011
      %1015 = vmatprep.subr.bf16.mxu0 0
      %1016 = vmatpush1.bf16.xpose.msra.mxu0 0
      %1017 = vmatprep.subr.bf16.mxu0 0
      %1018 = vmatpush1.bf16.xpose.msra.mxu0 0
      %1019 = vmatprep.subr.bf16.mxu0 0
      %1020 = vmatpush1.bf16.xpose.msra.mxu0 0
      %1021 = vmatprep.subr.bf16.mxu0 0
      %1022 = vmatpush1.bf16.xpose.msra.mxu0 0
      %1023 = vmatprep.subr.bf16.mxu0 0
      %1024 = vmatpush1.bf16.xpose.msra.mxu0 0
      %1025 = vmatprep.subr.bf16.mxu0 0
      %1026 = vmatpush1.bf16.xpose.msra.mxu0 0
      %1027 = vmatprep.subr.bf16.mxu0 0
      %1028 = vmatpush1.bf16.xpose.msra.mxu0 0
      %1029 = vmatprep.subr.bf16.mxu0 0
      %1030 = vmatpush1.bf16.xpose.msra.mxu0 0
      %1031 = vmatprep.subr.bf16.mxu0 0
      %1032 = vmatpush1.bf16.xpose.msra.mxu0 0
      %1033 = vmatprep.subr.bf16.mxu0 0
      %1034 = vmatpush1.bf16.xpose.msra.mxu0 0
      %1035 = vmatprep.subr.bf16.mxu0 0
      %1036 = vmatpush1.bf16.xpose.msra.mxu0 0
      %1037 = vmatprep.subr.bf16.mxu0 0
      %1038 = vmatpush1.bf16.xpose.msra.mxu0 0
      %1039 = vmatprep.subr.bf16.mxu0 0
      %1040 = vmatpush1.bf16.xpose.msra.mxu0 0
      %1041 = vmatprep.subr.bf16.mxu0 0
      %1042 = vmatpush1.bf16.xpose.msra.mxu0 0
      %1043 = vmatprep.subr.bf16.mxu0 0
      %1044 = vmatpush1.bf16.xpose.msra.mxu0 0
      %1045 = vmatprep.mubr.bf16.mxu0 0
      %1046 = vmatmul.mubr.bf16.gmra.mrb[0].mxu0 %v1008
      %v1047 = vpop.f32.mrb[0].mxu0
      %v1048 = vadd.f32 0.0, %v1047
      %v1049 = vpop.f32.mrb[0].mxu0
      %v1050 = vpop.f32.mrb[0].mxu0
      %v1051 = vadd.f32 0.0, %v1050
      %v1052 = vpop.f32.mrb[0].mxu0
      %1053 = vdwg.mxu0
      %1055 = vrot.lane.b32.xlu0 %v988, 96
      %v1056 = vpop.permute.xlu0 %1055
      %v1058 = vsel %vm1006, %v940, 0
      %v1061 = vsel %vm1006, %v1056, 0
      %1063 = vmatprep.subr.bf16.mxu0 0
      %1064 = vmatpush1.bf16.xpose.msra.mxu0 %v1061
      %1065 = vmatprep.subr.bf16.mxu0 0
      %1066 = vmatpush1.bf16.xpose.msra.mxu0 0
      %1067 = vmatprep.subr.bf16.mxu0 0
      %1068 = vmatpush1.bf16.xpose.msra.mxu0 0
      %1069 = vmatprep.subr.bf16.mxu0 0
      %1070 = vmatpush1.bf16.xpose.msra.mxu0 0
      %1071 = vmatprep.subr.bf16.mxu0 0
      %1072 = vmatpush1.bf16.xpose.msra.mxu0 0
      %1073 = vmatprep.subr.bf16.mxu0 0
      %1074 = vmatpush1.bf16.xpose.msra.mxu0 0
      %1075 = vmatprep.subr.bf16.mxu0 0
      %1076 = vmatpush1.bf16.xpose.msra.mxu0 0
      %1077 = vmatprep.subr.bf16.mxu0 0
      %1078 = vmatpush1.bf16.xpose.msra.mxu0 0
      %1079 = vmatprep.subr.bf16.mxu0 0
      %1080 = vmatpush1.bf16.xpose.msra.mxu0 0
      %1081 = vmatprep.subr.bf16.mxu0 0
      %1082 = vmatpush1.bf16.xpose.msra.mxu0 0
      %1083 = vmatprep.subr.bf16.mxu0 0
      %1084 = vmatpush1.bf16.xpose.msra.mxu0 0
      %1085 = vmatprep.subr.bf16.mxu0 0
      %1086 = vmatpush1.bf16.xpose.msra.mxu0 0
      %1087 = vmatprep.subr.bf16.mxu0 0
      %1088 = vmatpush1.bf16.xpose.msra.mxu0 0
      %1089 = vmatprep.subr.bf16.mxu0 0
      %1090 = vmatpush1.bf16.xpose.msra.mxu0 0
      %1091 = vmatprep.subr.bf16.mxu0 0
      %1092 = vmatpush1.bf16.xpose.msra.mxu0 0
      %1093 = vmatprep.subr.bf16.mxu0 0
      %1094 = vmatpush1.bf16.xpose.msra.mxu0 0
      %1095 = vmatprep.mubr.bf16.mxu0 0
      %1096 = vmatmul.mubr.bf16.gmra.mrb[0].mxu0 %v1058
      %v1097 = vpop.f32.mrb[0].mxu0
      %v1098 = vadd.f32 0.0, %v1097
      %v1099 = vpop.f32.mrb[0].mxu0
      %v1100 = vpop.f32.mrb[0].mxu0
      %v1101 = vadd.f32 0.0, %v1100
      %v1102 = vpop.f32.mrb[0].mxu0
      %1103 = vdwg.mxu0
      %1105 = vrot.lane.b32.xlu0 %v989, 96
      %v1106 = vpop.permute.xlu0 %1105
      %v1108 = vsel %vm1006, %v941, 0
      %v1111 = vsel %vm1006, %v1106, 0
      %1113 = vmatprep.subr.bf16.mxu0 0
      %1114 = vmatpush1.bf16.xpose.msra.mxu0 %v1111
      %1115 = vmatprep.subr.bf16.mxu0 0
      %1116 = vmatpush1.bf16.xpose.msra.mxu0 0
      %1117 = vmatprep.subr.bf16.mxu0 0
      %1118 = vmatpush1.bf16.xpose.msra.mxu0 0
      %1119 = vmatprep.subr.bf16.mxu0 0
      %1120 = vmatpush1.bf16.xpose.msra.mxu0 0
      %1121 = vmatprep.subr.bf16.mxu0 0
      %1122 = vmatpush1.bf16.xpose.msra.mxu0 0
      %1123 = vmatprep.subr.bf16.mxu0 0
      %1124 = vmatpush1.bf16.xpose.msra.mxu0 0
      %1125 = vmatprep.subr.bf16.mxu0 0
      %1126 = vmatpush1.bf16.xpose.msra.mxu0 0
      %1127 = vmatprep.subr.bf16.mxu0 0
      %1128 = vmatpush1.bf16.xpose.msra.mxu0 0
      %1129 = vmatprep.subr.bf16.mxu0 0
      %1130 = vmatpush1.bf16.xpose.msra.mxu0 0
      %1131 = vmatprep.subr.bf16.mxu0 0
      %1132 = vmatpush1.bf16.xpose.msra.mxu0 0
      %1133 = vmatprep.subr.bf16.mxu0 0
      %1134 = vmatpush1.bf16.xpose.msra.mxu0 0
      %1135 = vmatprep.subr.bf16.mxu0 0
      %1136 = vmatpush1.bf16.xpose.msra.mxu0 0
      %1137 = vmatprep.subr.bf16.mxu0 0
      %1138 = vmatpush1.bf16.xpose.msra.mxu0 0
      %1139 = vmatprep.subr.bf16.mxu0 0
      %1140 = vmatpush1.bf16.xpose.msra.mxu0 0
      %1141 = vmatprep.subr.bf16.mxu0 0
      %1142 = vmatpush1.bf16.xpose.msra.mxu0 0
      %1143 = vmatprep.subr.bf16.mxu0 0
      %1144 = vmatpush1.bf16.xpose.msra.mxu0 0
      %1145 = vmatprep.mubr.bf16.mxu0 0
      %1146 = vmatmul.mubr.bf16.gmra.mrb[0].mxu0 %v1108
      %v1147 = vpop.f32.mrb[0].mxu0
      %v1148 = vadd.f32 0.0, %v1147
      %v1149 = vpop.f32.mrb[0].mxu0
      %v1150 = vpop.f32.mrb[0].mxu0
      %v1151 = vadd.f32 0.0, %v1150
      %v1152 = vpop.f32.mrb[0].mxu0
      %1153 = vdwg.mxu0
      %1155 = vrot.lane.b32.xlu0 %v990, 96
      %v1156 = vpop.permute.xlu0 %1155
      %v1158 = vsel %vm1006, %v942, 0
      %v1161 = vsel %vm1006, %v1156, 0
      %1163 = vmatprep.subr.bf16.mxu0 0
      %1164 = vmatpush1.bf16.xpose.msra.mxu0 %v1161
      %1165 = vmatprep.subr.bf16.mxu0 0
      %1166 = vmatpush1.bf16.xpose.msra.mxu0 0
      %1167 = vmatprep.subr.bf16.mxu0 0
      %1168 = vmatpush1.bf16.xpose.msra.mxu0 0
      %1169 = vmatprep.subr.bf16.mxu0 0
      %1170 = vmatpush1.bf16.xpose.msra.mxu0 0
      %1171 = vmatprep.subr.bf16.mxu0 0
      %1172 = vmatpush1.bf16.xpose.msra.mxu0 0
      %1173 = vmatprep.subr.bf16.mxu0 0
      %1174 = vmatpush1.bf16.xpose.msra.mxu0 0
      %1175 = vmatprep.subr.bf16.mxu0 0
      %1176 = vmatpush1.bf16.xpose.msra.mxu0 0
      %1177 = vmatprep.subr.bf16.mxu0 0
      %1178 = vmatpush1.bf16.xpose.msra.mxu0 0
      %1179 = vmatprep.subr.bf16.mxu0 0
      %1180 = vmatpush1.bf16.xpose.msra.mxu0 0
      %1181 = vmatprep.subr.bf16.mxu0 0
      %1182 = vmatpush1.bf16.xpose.msra.mxu0 0
      %1183 = vmatprep.subr.bf16.mxu0 0
      %1184 = vmatpush1.bf16.xpose.msra.mxu0 0
      %1185 = vmatprep.subr.bf16.mxu0 0
      %1186 = vmatpush1.bf16.xpose.msra.mxu0 0
      %1187 = vmatprep.subr.bf16.mxu0 0
      %1188 = vmatpush1.bf16.xpose.msra.mxu0 0
      %1189 = vmatprep.subr.bf16.mxu0 0
      %1190 = vmatpush1.bf16.xpose.msra.mxu0 0
      %1191 = vmatprep.subr.bf16.mxu0 0
      %1192 = vmatpush1.bf16.xpose.msra.mxu0 0
      %1193 = vmatprep.subr.bf16.mxu0 0
      %1194 = vmatpush1.bf16.xpose.msra.mxu0 0
      %1195 = vmatprep.mubr.bf16.mxu0 0
      %1196 = vmatmul.mubr.bf16.gmra.mrb[0].mxu0 %v1158
      %v1197 = vpop.f32.mrb[0].mxu0
      %v1198 = vadd.f32 0.0, %v1197
      %v1199 = vpop.f32.mrb[0].mxu0
      %v1200 = vpop.f32.mrb[0].mxu0
      %v1201 = vadd.f32 0.0, %v1200
      %v1202 = vpop.f32.mrb[0].mxu0
      %1203 = vdwg.mxu0
      %1205 = vrot.lane.b32.xlu0 %v991, 96
      %v1206 = vpop.permute.xlu0 %1205
      %v1208 = vsel %vm1006, %v943, 0
      %v1211 = vsel %vm1006, %v1206, 0
      %1213 = vmatprep.subr.bf16.mxu0 0
      %1214 = vmatpush1.bf16.xpose.msra.mxu0 %v1211
      %1215 = vmatprep.subr.bf16.mxu0 0
      %1216 = vmatpush1.bf16.xpose.msra.mxu0 0
      %1217 = vmatprep.subr.bf16.mxu0 0
      %1218 = vmatpush1.bf16.xpose.msra.mxu0 0
      %1219 = vmatprep.subr.bf16.mxu0 0
      %1220 = vmatpush1.bf16.xpose.msra.mxu0 0
      %1221 = vmatprep.subr.bf16.mxu0 0
      %1222 = vmatpush1.bf16.xpose.msra.mxu0 0
      %1223 = vmatprep.subr.bf16.mxu0 0
      %1224 = vmatpush1.bf16.xpose.msra.mxu0 0
      %1225 = vmatprep.subr.bf16.mxu0 0
      %1226 = vmatpush1.bf16.xpose.msra.mxu0 0
      %1227 = vmatprep.subr.bf16.mxu0 0
      %1228 = vmatpush1.bf16.xpose.msra.mxu0 0
      %1229 = vmatprep.subr.bf16.mxu0 0
      %1230 = vmatpush1.bf16.xpose.msra.mxu0 0
      %1231 = vmatprep.subr.bf16.mxu0 0
      %1232 = vmatpush1.bf16.xpose.msra.mxu0 0
      %1233 = vmatprep.subr.bf16.mxu0 0
      %1234 = vmatpush1.bf16.xpose.msra.mxu0 0
      %1235 = vmatprep.subr.bf16.mxu0 0
      %1236 = vmatpush1.bf16.xpose.msra.mxu0 0
      %1237 = vmatprep.subr.bf16.mxu0 0
      %1238 = vmatpush1.bf16.xpose.msra.mxu0 0
      %1239 = vmatprep.subr.bf16.mxu0 0
      %1240 = vmatpush1.bf16.xpose.msra.mxu0 0
      %1241 = vmatprep.subr.bf16.mxu0 0
      %1242 = vmatpush1.bf16.xpose.msra.mxu0 0
      %1243 = vmatprep.subr.bf16.mxu0 0
      %1244 = vmatpush1.bf16.xpose.msra.mxu0 0
      %1245 = vmatprep.mubr.bf16.mxu0 0
      %1246 = vmatmul.mubr.bf16.gmra.mrb[0].mxu0 %v1208
      %v1247 = vpop.f32.mrb[0].mxu0
      %v1248 = vadd.f32 0.0, %v1247
      %v1249 = vpop.f32.mrb[0].mxu0
      %v1250 = vpop.f32.mrb[0].mxu0
      %v1251 = vadd.f32 0.0, %v1250
      %v1252 = vpop.f32.mrb[0].mxu0
      %1253 = vdwg.mxu0
      %1255 = vrot.lane.b32.xlu0 %v992, 96
      %v1256 = vpop.permute.xlu0 %1255
      %v1258 = vsel %vm1006, %v944, 0
      %v1261 = vsel %vm1006, %v1256, 0
      %1263 = vmatprep.subr.bf16.mxu0 0
      %1264 = vmatpush1.bf16.xpose.msra.mxu0 %v1261
      %1265 = vmatprep.subr.bf16.mxu0 0
      %1266 = vmatpush1.bf16.xpose.msra.mxu0 0
      %1267 = vmatprep.subr.bf16.mxu0 0
      %1268 = vmatpush1.bf16.xpose.msra.mxu0 0
      %1269 = vmatprep.subr.bf16.mxu0 0
      %1270 = vmatpush1.bf16.xpose.msra.mxu0 0
      %1271 = vmatprep.subr.bf16.mxu0 0
      %1272 = vmatpush1.bf16.xpose.msra.mxu0 0
      %1273 = vmatprep.subr.bf16.mxu0 0
      %1274 = vmatpush1.bf16.xpose.msra.mxu0 0
      %1275 = vmatprep.subr.bf16.mxu0 0
      %1276 = vmatpush1.bf16.xpose.msra.mxu0 0
      %1277 = vmatprep.subr.bf16.mxu0 0
      %1278 = vmatpush1.bf16.xpose.msra.mxu0 0
      %1279 = vmatprep.subr.bf16.mxu0 0
      %1280 = vmatpush1.bf16.xpose.msra.mxu0 0
      %1281 = vmatprep.subr.bf16.mxu0 0
      %1282 = vmatpush1.bf16.xpose.msra.mxu0 0
      %1283 = vmatprep.subr.bf16.mxu0 0
      %1284 = vmatpush1.bf16.xpose.msra.mxu0 0
      %1285 = vmatprep.subr.bf16.mxu0 0
      %1286 = vmatpush1.bf16.xpose.msra.mxu0 0
      %1287 = vmatprep.subr.bf16.mxu0 0
      %1288 = vmatpush1.bf16.xpose.msra.mxu0 0
      %1289 = vmatprep.subr.bf16.mxu0 0
      %1290 = vmatpush1.bf16.xpose.msra.mxu0 0
      %1291 = vmatprep.subr.bf16.mxu0 0
      %1292 = vmatpush1.bf16.xpose.msra.mxu0 0
      %1293 = vmatprep.subr.bf16.mxu0 0
      %1294 = vmatpush1.bf16.xpose.msra.mxu0 0
      %1295 = vmatprep.mubr.bf16.mxu0 0
      %1296 = vmatmul.mubr.bf16.gmra.mrb[0].mxu0 %v1258
      %v1297 = vpop.f32.mrb[0].mxu0
      %v1298 = vadd.f32 0.0, %v1297
      %v1299 = vpop.f32.mrb[0].mxu0
      %v1300 = vpop.f32.mrb[0].mxu0
      %v1301 = vadd.f32 0.0, %v1300
      %v1302 = vpop.f32.mrb[0].mxu0
      %1303 = vdwg.mxu0
      %1305 = vrot.lane.b32.xlu0 %v993, 96
      %v1306 = vpop.permute.xlu0 %1305
      %v1308 = vsel %vm1006, %v945, 0
      %v1311 = vsel %vm1006, %v1306, 0
      %1313 = vmatprep.subr.bf16.mxu0 0
      %1314 = vmatpush1.bf16.xpose.msra.mxu0 %v1311
      %1315 = vmatprep.subr.bf16.mxu0 0
      %1316 = vmatpush1.bf16.xpose.msra.mxu0 0
      %1317 = vmatprep.subr.bf16.mxu0 0
      %1318 = vmatpush1.bf16.xpose.msra.mxu0 0
      %1319 = vmatprep.subr.bf16.mxu0 0
      %1320 = vmatpush1.bf16.xpose.msra.mxu0 0
      %1321 = vmatprep.subr.bf16.mxu0 0
      %1322 = vmatpush1.bf16.xpose.msra.mxu0 0
      %1323 = vmatprep.subr.bf16.mxu0 0
      %1324 = vmatpush1.bf16.xpose.msra.mxu0 0
      %1325 = vmatprep.subr.bf16.mxu0 0
      %1326 = vmatpush1.bf16.xpose.msra.mxu0 0
      %1327 = vmatprep.subr.bf16.mxu0 0
      %1328 = vmatpush1.bf16.xpose.msra.mxu0 0
      %1329 = vmatprep.subr.bf16.mxu0 0
      %1330 = vmatpush1.bf16.xpose.msra.mxu0 0
      %1331 = vmatprep.subr.bf16.mxu0 0
      %1332 = vmatpush1.bf16.xpose.msra.mxu0 0
      %1333 = vmatprep.subr.bf16.mxu0 0
      %1334 = vmatpush1.bf16.xpose.msra.mxu0 0
      %1335 = vmatprep.subr.bf16.mxu0 0
      %1336 = vmatpush1.bf16.xpose.msra.mxu0 0
      %1337 = vmatprep.subr.bf16.mxu0 0
      %1338 = vmatpush1.bf16.xpose.msra.mxu0 0
      %1339 = vmatprep.subr.bf16.mxu0 0
      %1340 = vmatpush1.bf16.xpose.msra.mxu0 0
      %1341 = vmatprep.subr.bf16.mxu0 0
      %1342 = vmatpush1.bf16.xpose.msra.mxu0 0
      %1343 = vmatprep.subr.bf16.mxu0 0
      %1344 = vmatpush1.bf16.xpose.msra.mxu0 0
      %1345 = vmatprep.mubr.bf16.mxu0 0
      %1346 = vmatmul.mubr.bf16.gmra.mrb[0].mxu0 %v1308
      %v1347 = vpop.f32.mrb[0].mxu0
      %v1348 = vadd.f32 0.0, %v1347
      %v1349 = vpop.f32.mrb[0].mxu0
      %v1350 = vpop.f32.mrb[0].mxu0
      %v1351 = vadd.f32 0.0, %v1350
      %v1352 = vpop.f32.mrb[0].mxu0
      %1353 = vdwg.mxu0
      %1355 = vrot.lane.b32.xlu0 %v994, 96
      %v1356 = vpop.permute.xlu0 %1355
      %v1358 = vsel %vm1006, %v946, 0
      %v1361 = vsel %vm1006, %v1356, 0
      %1363 = vmatprep.subr.bf16.mxu0 0
      %1364 = vmatpush1.bf16.xpose.msra.mxu0 %v1361
      %1365 = vmatprep.subr.bf16.mxu0 0
      %1366 = vmatpush1.bf16.xpose.msra.mxu0 0
      %1367 = vmatprep.subr.bf16.mxu0 0
      %1368 = vmatpush1.bf16.xpose.msra.mxu0 0
      %1369 = vmatprep.subr.bf16.mxu0 0
      %1370 = vmatpush1.bf16.xpose.msra.mxu0 0
      %1371 = vmatprep.subr.bf16.mxu0 0
      %1372 = vmatpush1.bf16.xpose.msra.mxu0 0
      %1373 = vmatprep.subr.bf16.mxu0 0
      %1374 = vmatpush1.bf16.xpose.msra.mxu0 0
      %1375 = vmatprep.subr.bf16.mxu0 0
      %1376 = vmatpush1.bf16.xpose.msra.mxu0 0
      %1377 = vmatprep.subr.bf16.mxu0 0
      %1378 = vmatpush1.bf16.xpose.msra.mxu0 0
      %1379 = vmatprep.subr.bf16.mxu0 0
      %1380 = vmatpush1.bf16.xpose.msra.mxu0 0
      %1381 = vmatprep.subr.bf16.mxu0 0
      %1382 = vmatpush1.bf16.xpose.msra.mxu0 0
      %1383 = vmatprep.subr.bf16.mxu0 0
      %1384 = vmatpush1.bf16.xpose.msra.mxu0 0
      %1385 = vmatprep.subr.bf16.mxu0 0
      %1386 = vmatpush1.bf16.xpose.msra.mxu0 0
      %1387 = vmatprep.subr.bf16.mxu0 0
      %1388 = vmatpush1.bf16.xpose.msra.mxu0 0
      %1389 = vmatprep.subr.bf16.mxu0 0
      %1390 = vmatpush1.bf16.xpose.msra.mxu0 0
      %1391 = vmatprep.subr.bf16.mxu0 0
      %1392 = vmatpush1.bf16.xpose.msra.mxu0 0
      %1393 = vmatprep.subr.bf16.mxu0 0
      %1394 = vmatpush1.bf16.xpose.msra.mxu0 0
      %1395 = vmatprep.mubr.bf16.mxu0 0
      %1396 = vmatmul.mubr.bf16.gmra.mrb[0].mxu0 %v1358
      %v1397 = vpop.f32.mrb[0].mxu0
      %v1398 = vadd.f32 0.0, %v1397
      %v1399 = vpop.f32.mrb[0].mxu0
      %v1400 = vpop.f32.mrb[0].mxu0
      %v1401 = vadd.f32 0.0, %v1400
      %v1402 = vpop.f32.mrb[0].mxu0
      %1403 = vdwg.mxu0
      %1405 = vrot.lane.b32.xlu0 %v995, 96
      %v1406 = vpop.permute.xlu0 %1405
      %v1408 = vsel %vm1006, %v947, 0
      %v1411 = vsel %vm1006, %v1406, 0
      %1413 = vmatprep.subr.bf16.mxu0 0
      %1414 = vmatpush1.bf16.xpose.msra.mxu0 %v1411
      %1415 = vmatprep.subr.bf16.mxu0 0
      %1416 = vmatpush1.bf16.xpose.msra.mxu0 0
      %1417 = vmatprep.subr.bf16.mxu0 0
      %1418 = vmatpush1.bf16.xpose.msra.mxu0 0
      %1419 = vmatprep.subr.bf16.mxu0 0
      %1420 = vmatpush1.bf16.xpose.msra.mxu0 0
      %1421 = vmatprep.subr.bf16.mxu0 0
      %1422 = vmatpush1.bf16.xpose.msra.mxu0 0
      %1423 = vmatprep.subr.bf16.mxu0 0
      %1424 = vmatpush1.bf16.xpose.msra.mxu0 0
      %1425 = vmatprep.subr.bf16.mxu0 0
      %1426 = vmatpush1.bf16.xpose.msra.mxu0 0
      %1427 = vmatprep.subr.bf16.mxu0 0
      %1428 = vmatpush1.bf16.xpose.msra.mxu0 0
      %1429 = vmatprep.subr.bf16.mxu0 0
      %1430 = vmatpush1.bf16.xpose.msra.mxu0 0
      %1431 = vmatprep.subr.bf16.mxu0 0
      %1432 = vmatpush1.bf16.xpose.msra.mxu0 0
      %1433 = vmatprep.subr.bf16.mxu0 0
      %1434 = vmatpush1.bf16.xpose.msra.mxu0 0
      %1435 = vmatprep.subr.bf16.mxu0 0
      %1436 = vmatpush1.bf16.xpose.msra.mxu0 0
      %1437 = vmatprep.subr.bf16.mxu0 0
      %1438 = vmatpush1.bf16.xpose.msra.mxu0 0
      %1439 = vmatprep.subr.bf16.mxu0 0
      %1440 = vmatpush1.bf16.xpose.msra.mxu0 0
      %1441 = vmatprep.subr.bf16.mxu0 0
      %1442 = vmatpush1.bf16.xpose.msra.mxu0 0
      %1443 = vmatprep.subr.bf16.mxu0 0
      %1444 = vmatpush1.bf16.xpose.msra.mxu0 0
      %1445 = vmatprep.mubr.bf16.mxu0 0
      %1446 = vmatmul.mubr.bf16.gmra.mrb[0].mxu0 %v1408
      %v1447 = vpop.f32.mrb[0].mxu0
      %v1448 = vadd.f32 0.0, %v1447
      %v1449 = vpop.f32.mrb[0].mxu0
      %v1450 = vpop.f32.mrb[0].mxu0
      %v1451 = vadd.f32 0.0, %v1450
      %v1452 = vpop.f32.mrb[0].mxu0
      %1453 = vdwg.mxu0
      %1455 = vrot.lane.b32.xlu0 %v996, 96
      %v1456 = vpop.permute.xlu0 %1455
      %v1458 = vsel %vm1006, %v948, 0
      %v1461 = vsel %vm1006, %v1456, 0
      %1463 = vmatprep.subr.bf16.mxu0 0
      %1464 = vmatpush1.bf16.xpose.msra.mxu0 %v1461
      %1465 = vmatprep.subr.bf16.mxu0 0
      %1466 = vmatpush1.bf16.xpose.msra.mxu0 0
      %1467 = vmatprep.subr.bf16.mxu0 0
      %1468 = vmatpush1.bf16.xpose.msra.mxu0 0
      %1469 = vmatprep.subr.bf16.mxu0 0
      %1470 = vmatpush1.bf16.xpose.msra.mxu0 0
      %1471 = vmatprep.subr.bf16.mxu0 0
      %1472 = vmatpush1.bf16.xpose.msra.mxu0 0
      %1473 = vmatprep.subr.bf16.mxu0 0
      %1474 = vmatpush1.bf16.xpose.msra.mxu0 0
      %1475 = vmatprep.subr.bf16.mxu0 0
      %1476 = vmatpush1.bf16.xpose.msra.mxu0 0
      %1477 = vmatprep.subr.bf16.mxu0 0
      %1478 = vmatpush1.bf16.xpose.msra.mxu0 0
      %1479 = vmatprep.subr.bf16.mxu0 0
      %1480 = vmatpush1.bf16.xpose.msra.mxu0 0
      %1481 = vmatprep.subr.bf16.mxu0 0
      %1482 = vmatpush1.bf16.xpose.msra.mxu0 0
      %1483 = vmatprep.subr.bf16.mxu0 0
      %1484 = vmatpush1.bf16.xpose.msra.mxu0 0
      %1485 = vmatprep.subr.bf16.mxu0 0
      %1486 = vmatpush1.bf16.xpose.msra.mxu0 0
      %1487 = vmatprep.subr.bf16.mxu0 0
      %1488 = vmatpush1.bf16.xpose.msra.mxu0 0
      %1489 = vmatprep.subr.bf16.mxu0 0
      %1490 = vmatpush1.bf16.xpose.msra.mxu0 0
      %1491 = vmatprep.subr.bf16.mxu0 0
      %1492 = vmatpush1.bf16.xpose.msra.mxu0 0
      %1493 = vmatprep.subr.bf16.mxu0 0
      %1494 = vmatpush1.bf16.xpose.msra.mxu0 0
      %1495 = vmatprep.mubr.bf16.mxu0 0
      %1496 = vmatmul.mubr.bf16.gmra.mrb[0].mxu0 %v1458
      %v1497 = vpop.f32.mrb[0].mxu0
      %v1498 = vadd.f32 0.0, %v1497
      %v1499 = vpop.f32.mrb[0].mxu0
      %v1500 = vpop.f32.mrb[0].mxu0
      %v1501 = vadd.f32 0.0, %v1500
      %v1502 = vpop.f32.mrb[0].mxu0
      %1503 = vdwg.mxu0
      %1505 = vrot.lane.b32.xlu0 %v997, 96
      %v1506 = vpop.permute.xlu0 %1505
      %v1508 = vsel %vm1006, %v949, 0
      %v1511 = vsel %vm1006, %v1506, 0
      %1513 = vmatprep.subr.bf16.mxu0 0
      %1514 = vmatpush1.bf16.xpose.msra.mxu0 %v1511
      %1515 = vmatprep.subr.bf16.mxu0 0
      %1516 = vmatpush1.bf16.xpose.msra.mxu0 0
      %1517 = vmatprep.subr.bf16.mxu0 0
      %1518 = vmatpush1.bf16.xpose.msra.mxu0 0
      %1519 = vmatprep.subr.bf16.mxu0 0
      %1520 = vmatpush1.bf16.xpose.msra.mxu0 0
      %1521 = vmatprep.subr.bf16.mxu0 0
      %1522 = vmatpush1.bf16.xpose.msra.mxu0 0
      %1523 = vmatprep.subr.bf16.mxu0 0
      %1524 = vmatpush1.bf16.xpose.msra.mxu0 0
      %1525 = vmatprep.subr.bf16.mxu0 0
      %1526 = vmatpush1.bf16.xpose.msra.mxu0 0
      %1527 = vmatprep.subr.bf16.mxu0 0
      %1528 = vmatpush1.bf16.xpose.msra.mxu0 0
      %1529 = vmatprep.subr.bf16.mxu0 0
      %1530 = vmatpush1.bf16.xpose.msra.mxu0 0
      %1531 = vmatprep.subr.bf16.mxu0 0
      %1532 = vmatpush1.bf16.xpose.msra.mxu0 0
      %1533 = vmatprep.subr.bf16.mxu0 0
      %1534 = vmatpush1.bf16.xpose.msra.mxu0 0
      %1535 = vmatprep.subr.bf16.mxu0 0
      %1536 = vmatpush1.bf16.xpose.msra.mxu0 0
      %1537 = vmatprep.subr.bf16.mxu0 0
      %1538 = vmatpush1.bf16.xpose.msra.mxu0 0
      %1539 = vmatprep.subr.bf16.mxu0 0
      %1540 = vmatpush1.bf16.xpose.msra.mxu0 0
      %1541 = vmatprep.subr.bf16.mxu0 0
      %1542 = vmatpush1.bf16.xpose.msra.mxu0 0
      %1543 = vmatprep.subr.bf16.mxu0 0
      %1544 = vmatpush1.bf16.xpose.msra.mxu0 0
      %1545 = vmatprep.mubr.bf16.mxu0 0
      %1546 = vmatmul.mubr.bf16.gmra.mrb[0].mxu0 %v1508
      %v1547 = vpop.f32.mrb[0].mxu0
      %v1548 = vadd.f32 0.0, %v1547
      %v1549 = vpop.f32.mrb[0].mxu0
      %v1550 = vpop.f32.mrb[0].mxu0
      %v1551 = vadd.f32 0.0, %v1550
      %v1552 = vpop.f32.mrb[0].mxu0
      %1553 = vdwg.mxu0
      %1555 = vrot.lane.b32.xlu0 %v998, 96
      %v1556 = vpop.permute.xlu0 %1555
      %v1558 = vsel %vm1006, %v950, 0
      %v1561 = vsel %vm1006, %v1556, 0
      %1563 = vmatprep.subr.bf16.mxu0 0
      %1564 = vmatpush1.bf16.xpose.msra.mxu0 %v1561
      %1565 = vmatprep.subr.bf16.mxu0 0
      %1566 = vmatpush1.bf16.xpose.msra.mxu0 0
      %1567 = vmatprep.subr.bf16.mxu0 0
      %1568 = vmatpush1.bf16.xpose.msra.mxu0 0
      %1569 = vmatprep.subr.bf16.mxu0 0
      %1570 = vmatpush1.bf16.xpose.msra.mxu0 0
      %1571 = vmatprep.subr.bf16.mxu0 0
      %1572 = vmatpush1.bf16.xpose.msra.mxu0 0
      %1573 = vmatprep.subr.bf16.mxu0 0
      %1574 = vmatpush1.bf16.xpose.msra.mxu0 0
      %1575 = vmatprep.subr.bf16.mxu0 0
      %1576 = vmatpush1.bf16.xpose.msra.mxu0 0
      %1577 = vmatprep.subr.bf16.mxu0 0
      %1578 = vmatpush1.bf16.xpose.msra.mxu0 0
      %1579 = vmatprep.subr.bf16.mxu0 0
      %1580 = vmatpush1.bf16.xpose.msra.mxu0 0
      %1581 = vmatprep.subr.bf16.mxu0 0
      %1582 = vmatpush1.bf16.xpose.msra.mxu0 0
      %1583 = vmatprep.subr.bf16.mxu0 0
      %1584 = vmatpush1.bf16.xpose.msra.mxu0 0
      %1585 = vmatprep.subr.bf16.mxu0 0
      %1586 = vmatpush1.bf16.xpose.msra.mxu0 0
      %1587 = vmatprep.subr.bf16.mxu0 0
      %1588 = vmatpush1.bf16.xpose.msra.mxu0 0
      %1589 = vmatprep.subr.bf16.mxu0 0
      %1590 = vmatpush1.bf16.xpose.msra.mxu0 0
      %1591 = vmatprep.subr.bf16.mxu0 0
      %1592 = vmatpush1.bf16.xpose.msra.mxu0 0
      %1593 = vmatprep.subr.bf16.mxu0 0
      %1594 = vmatpush1.bf16.xpose.msra.mxu0 0
      %1595 = vmatprep.mubr.bf16.mxu0 0
      %1596 = vmatmul.mubr.bf16.gmra.mrb[0].mxu0 %v1558
      %v1597 = vpop.f32.mrb[0].mxu0
      %v1598 = vadd.f32 0.0, %v1597
      %v1599 = vpop.f32.mrb[0].mxu0
      %v1600 = vpop.f32.mrb[0].mxu0
      %v1601 = vadd.f32 0.0, %v1600
      %v1602 = vpop.f32.mrb[0].mxu0
      %1603 = vdwg.mxu0
      %1605 = vrot.lane.b32.xlu0 %v999, 96
      %v1606 = vpop.permute.xlu0 %1605
      %v1608 = vsel %vm1006, %v951, 0
      %v1611 = vsel %vm1006, %v1606, 0
      %1613 = vmatprep.subr.bf16.mxu0 0
      %1614 = vmatpush1.bf16.xpose.msra.mxu0 %v1611
      %1615 = vmatprep.subr.bf16.mxu0 0
      %1616 = vmatpush1.bf16.xpose.msra.mxu0 0
      %1617 = vmatprep.subr.bf16.mxu0 0
      %1618 = vmatpush1.bf16.xpose.msra.mxu0 0
      %1619 = vmatprep.subr.bf16.mxu0 0
      %1620 = vmatpush1.bf16.xpose.msra.mxu0 0
      %1621 = vmatprep.subr.bf16.mxu0 0
      %1622 = vmatpush1.bf16.xpose.msra.mxu0 0
      %1623 = vmatprep.subr.bf16.mxu0 0
      %1624 = vmatpush1.bf16.xpose.msra.mxu0 0
      %1625 = vmatprep.subr.bf16.mxu0 0
      %1626 = vmatpush1.bf16.xpose.msra.mxu0 0
      %1627 = vmatprep.subr.bf16.mxu0 0
      %1628 = vmatpush1.bf16.xpose.msra.mxu0 0
      %1629 = vmatprep.subr.bf16.mxu0 0
      %1630 = vmatpush1.bf16.xpose.msra.mxu0 0
      %1631 = vmatprep.subr.bf16.mxu0 0
      %1632 = vmatpush1.bf16.xpose.msra.mxu0 0
      %1633 = vmatprep.subr.bf16.mxu0 0
      %1634 = vmatpush1.bf16.xpose.msra.mxu0 0
      %1635 = vmatprep.subr.bf16.mxu0 0
      %1636 = vmatpush1.bf16.xpose.msra.mxu0 0
      %1637 = vmatprep.subr.bf16.mxu0 0
      %1638 = vmatpush1.bf16.xpose.msra.mxu0 0
      %1639 = vmatprep.subr.bf16.mxu0 0
      %1640 = vmatpush1.bf16.xpose.msra.mxu0 0
      %1641 = vmatprep.subr.bf16.mxu0 0
      %1642 = vmatpush1.bf16.xpose.msra.mxu0 0
      %1643 = vmatprep.subr.bf16.mxu0 0
      %1644 = vmatpush1.bf16.xpose.msra.mxu0 0
      %1645 = vmatprep.mubr.bf16.mxu0 0
      %1646 = vmatmul.mubr.bf16.gmra.mrb[0].mxu0 %v1608
      %v1647 = vpop.f32.mrb[0].mxu0
      %v1648 = vadd.f32 0.0, %v1647
      %v1649 = vpop.f32.mrb[0].mxu0
      %v1650 = vpop.f32.mrb[0].mxu0
      %v1651 = vadd.f32 0.0, %v1650
      %v1652 = vpop.f32.mrb[0].mxu0
      %1653 = vdwg.mxu0
      %1655 = vrot.lane.b32.xlu0 %v1000, 96
      %v1656 = vpop.permute.xlu0 %1655
      %v1658 = vsel %vm1006, %v952, 0
      %v1661 = vsel %vm1006, %v1656, 0
      %1663 = vmatprep.subr.bf16.mxu0 0
      %1664 = vmatpush1.bf16.xpose.msra.mxu0 %v1661
      %1665 = vmatprep.subr.bf16.mxu0 0
      %1666 = vmatpush1.bf16.xpose.msra.mxu0 0
      %1667 = vmatprep.subr.bf16.mxu0 0
      %1668 = vmatpush1.bf16.xpose.msra.mxu0 0
      %1669 = vmatprep.subr.bf16.mxu0 0
      %1670 = vmatpush1.bf16.xpose.msra.mxu0 0
      %1671 = vmatprep.subr.bf16.mxu0 0
      %1672 = vmatpush1.bf16.xpose.msra.mxu0 0
      %1673 = vmatprep.subr.bf16.mxu0 0
      %1674 = vmatpush1.bf16.xpose.msra.mxu0 0
      %1675 = vmatprep.subr.bf16.mxu0 0
      %1676 = vmatpush1.bf16.xpose.msra.mxu0 0
      %1677 = vmatprep.subr.bf16.mxu0 0
      %1678 = vmatpush1.bf16.xpose.msra.mxu0 0
      %1679 = vmatprep.subr.bf16.mxu0 0
      %1680 = vmatpush1.bf16.xpose.msra.mxu0 0
      %1681 = vmatprep.subr.bf16.mxu0 0
      %1682 = vmatpush1.bf16.xpose.msra.mxu0 0
      %1683 = vmatprep.subr.bf16.mxu0 0
      %1684 = vmatpush1.bf16.xpose.msra.mxu0 0
      %1685 = vmatprep.subr.bf16.mxu0 0
      %1686 = vmatpush1.bf16.xpose.msra.mxu0 0
      %1687 = vmatprep.subr.bf16.mxu0 0
      %1688 = vmatpush1.bf16.xpose.msra.mxu0 0
      %1689 = vmatprep.subr.bf16.mxu0 0
      %1690 = vmatpush1.bf16.xpose.msra.mxu0 0
      %1691 = vmatprep.subr.bf16.mxu0 0
      %1692 = vmatpush1.bf16.xpose.msra.mxu0 0
      %1693 = vmatprep.subr.bf16.mxu0 0
      %1694 = vmatpush1.bf16.xpose.msra.mxu0 0
      %1695 = vmatprep.mubr.bf16.mxu0 0
      %1696 = vmatmul.mubr.bf16.gmra.mrb[0].mxu0 %v1658
      %v1697 = vpop.f32.mrb[0].mxu0
      %v1698 = vadd.f32 0.0, %v1697
      %v1699 = vpop.f32.mrb[0].mxu0
      %v1700 = vpop.f32.mrb[0].mxu0
      %v1701 = vadd.f32 0.0, %v1700
      %v1702 = vpop.f32.mrb[0].mxu0
      %1703 = vdwg.mxu0
      %1705 = vrot.lane.b32.xlu0 %v1001, 96
      %v1706 = vpop.permute.xlu0 %1705
      %v1708 = vsel %vm1006, %v953, 0
      %v1711 = vsel %vm1006, %v1706, 0
      %1713 = vmatprep.subr.bf16.mxu0 0
      %1714 = vmatpush1.bf16.xpose.msra.mxu0 %v1711
      %1715 = vmatprep.subr.bf16.mxu0 0
      %1716 = vmatpush1.bf16.xpose.msra.mxu0 0
      %1717 = vmatprep.subr.bf16.mxu0 0
      %1718 = vmatpush1.bf16.xpose.msra.mxu0 0
      %1719 = vmatprep.subr.bf16.mxu0 0
      %1720 = vmatpush1.bf16.xpose.msra.mxu0 0
      %1721 = vmatprep.subr.bf16.mxu0 0
      %1722 = vmatpush1.bf16.xpose.msra.mxu0 0
      %1723 = vmatprep.subr.bf16.mxu0 0
      %1724 = vmatpush1.bf16.xpose.msra.mxu0 0
      %1725 = vmatprep.subr.bf16.mxu0 0
      %1726 = vmatpush1.bf16.xpose.msra.mxu0 0
      %1727 = vmatprep.subr.bf16.mxu0 0
      %1728 = vmatpush1.bf16.xpose.msra.mxu0 0
      %1729 = vmatprep.subr.bf16.mxu0 0
      %1730 = vmatpush1.bf16.xpose.msra.mxu0 0
      %1731 = vmatprep.subr.bf16.mxu0 0
      %1732 = vmatpush1.bf16.xpose.msra.mxu0 0
      %1733 = vmatprep.subr.bf16.mxu0 0
      %1734 = vmatpush1.bf16.xpose.msra.mxu0 0
      %1735 = vmatprep.subr.bf16.mxu0 0
      %1736 = vmatpush1.bf16.xpose.msra.mxu0 0
      %1737 = vmatprep.subr.bf16.mxu0 0
      %1738 = vmatpush1.bf16.xpose.msra.mxu0 0
      %1739 = vmatprep.subr.bf16.mxu0 0
      %1740 = vmatpush1.bf16.xpose.msra.mxu0 0
      %1741 = vmatprep.subr.bf16.mxu0 0
      %1742 = vmatpush1.bf16.xpose.msra.mxu0 0
      %1743 = vmatprep.subr.bf16.mxu0 0
      %1744 = vmatpush1.bf16.xpose.msra.mxu0 0
      %1745 = vmatprep.mubr.bf16.mxu0 0
      %1746 = vmatmul.mubr.bf16.gmra.mrb[0].mxu0 %v1708
      %v1747 = vpop.f32.mrb[0].mxu0
      %v1748 = vadd.f32 0.0, %v1747
      %v1749 = vpop.f32.mrb[0].mxu0
      %v1750 = vpop.f32.mrb[0].mxu0
      %v1751 = vadd.f32 0.0, %v1750
      %v1752 = vpop.f32.mrb[0].mxu0
      %1753 = vdwg.mxu0
      %1755 = vrot.lane.b32.xlu0 %v1002, 96
      %v1756 = vpop.permute.xlu0 %1755
      %v1758 = vsel %vm1006, %v954, 0
      %v1761 = vsel %vm1006, %v1756, 0
      %1763 = vmatprep.subr.bf16.mxu0 0
      %1764 = vmatpush1.bf16.xpose.msra.mxu0 %v1761
      %1765 = vmatprep.subr.bf16.mxu0 0
      %1766 = vmatpush1.bf16.xpose.msra.mxu0 0
      %1767 = vmatprep.subr.bf16.mxu0 0
      %1768 = vmatpush1.bf16.xpose.msra.mxu0 0
      %1769 = vmatprep.subr.bf16.mxu0 0
      %1770 = vmatpush1.bf16.xpose.msra.mxu0 0
      %1771 = vmatprep.subr.bf16.mxu0 0
      %1772 = vmatpush1.bf16.xpose.msra.mxu0 0
      %1773 = vmatprep.subr.bf16.mxu0 0
      %1774 = vmatpush1.bf16.xpose.msra.mxu0 0
      %1775 = vmatprep.subr.bf16.mxu0 0
      %1776 = vmatpush1.bf16.xpose.msra.mxu0 0
      %1777 = vmatprep.subr.bf16.mxu0 0
      %1778 = vmatpush1.bf16.xpose.msra.mxu0 0
      %1779 = vmatprep.subr.bf16.mxu0 0
      %1780 = vmatpush1.bf16.xpose.msra.mxu0 0
      %1781 = vmatprep.subr.bf16.mxu0 0
      %1782 = vmatpush1.bf16.xpose.msra.mxu0 0
      %1783 = vmatprep.subr.bf16.mxu0 0
      %1784 = vmatpush1.bf16.xpose.msra.mxu0 0
      %1785 = vmatprep.subr.bf16.mxu0 0
      %1786 = vmatpush1.bf16.xpose.msra.mxu0 0
      %1787 = vmatprep.subr.bf16.mxu0 0
      %1788 = vmatpush1.bf16.xpose.msra.mxu0 0
      %1789 = vmatprep.subr.bf16.mxu0 0
      %1790 = vmatpush1.bf16.xpose.msra.mxu0 0
      %1791 = vmatprep.subr.bf16.mxu0 0
      %1792 = vmatpush1.bf16.xpose.msra.mxu0 0
      %1793 = vmatprep.subr.bf16.mxu0 0
      %1794 = vmatpush1.bf16.xpose.msra.mxu0 0
      %1795 = vmatprep.mubr.bf16.mxu0 0
      %1796 = vmatmul.mubr.bf16.gmra.mrb[0].mxu0 %v1758
      %v1797 = vpop.f32.mrb[0].mxu0
      %v1798 = vadd.f32 0.0, %v1797
      %v1799 = vpop.f32.mrb[0].mxu0
      %v1800 = vpop.f32.mrb[0].mxu0
      %v1801 = vadd.f32 0.0, %v1800
      %v1802 = vpop.f32.mrb[0].mxu0
      %1803 = vdwg.mxu0
      %vm1804 = vcmask 97280
      %v1805 = vsel %vm1804, %v1048, -inf
      %1806 = vmax.xlane.f32.xlu0 %v1805
      %v1807 = vpop.xlane.xlu0 %1806
      %vm1808 = vcmask 93184
      %v1809 = vsel %vm1808, %v1051, -inf
      %1810 = vmax.xlane.f32.xlu0 %v1809
      %v1811 = vpop.xlane.xlu0 %1810
      %v1812 = vsel %vm1804, %v1098, -inf
      %1813 = vmax.xlane.f32.xlu0 %v1812
      %v1814 = vpop.xlane.xlu0 %1813
      %v1815 = vsel %vm1808, %v1101, -inf
      %1816 = vmax.xlane.f32.xlu0 %v1815
      %v1817 = vpop.xlane.xlu0 %1816
      %v1818 = vsel %vm1804, %v1148, -inf
      %1819 = vmax.xlane.f32.xlu0 %v1818
      %v1820 = vpop.xlane.xlu0 %1819
      %v1821 = vsel %vm1808, %v1151, -inf
      %1822 = vmax.xlane.f32.xlu0 %v1821
      %v1823 = vpop.xlane.xlu0 %1822
      %v1824 = vsel %vm1804, %v1198, -inf
      %1825 = vmax.xlane.f32.xlu0 %v1824
      %v1826 = vpop.xlane.xlu0 %1825
      %v1827 = vsel %vm1808, %v1201, -inf
      %1828 = vmax.xlane.f32.xlu0 %v1827
      %v1829 = vpop.xlane.xlu0 %1828
      %v1830 = vsel %vm1804, %v1248, -inf
      %1831 = vmax.xlane.f32.xlu0 %v1830
      %v1832 = vpop.xlane.xlu0 %1831
      %v1833 = vsel %vm1808, %v1251, -inf
      %1834 = vmax.xlane.f32.xlu0 %v1833
      %v1835 = vpop.xlane.xlu0 %1834
      %v1836 = vsel %vm1804, %v1298, -inf
      %1837 = vmax.xlane.f32.xlu0 %v1836
      %v1838 = vpop.xlane.xlu0 %1837
      %v1839 = vsel %vm1808, %v1301, -inf
      %1840 = vmax.xlane.f32.xlu0 %v1839
      %v1841 = vpop.xlane.xlu0 %1840
      %v1842 = vsel %vm1804, %v1348, -inf
      %1843 = vmax.xlane.f32.xlu0 %v1842
      %v1844 = vpop.xlane.xlu0 %1843
      %v1845 = vsel %vm1808, %v1351, -inf
      %1846 = vmax.xlane.f32.xlu0 %v1845
      %v1847 = vpop.xlane.xlu0 %1846
      %v1848 = vsel %vm1804, %v1398, -inf
      %1849 = vmax.xlane.f32.xlu0 %v1848
      %v1850 = vpop.xlane.xlu0 %1849
      %v1851 = vsel %vm1808, %v1401, -inf
      %1852 = vmax.xlane.f32.xlu0 %v1851
      %v1853 = vpop.xlane.xlu0 %1852
      %v1854 = vsel %vm1804, %v1448, -inf
      %1855 = vmax.xlane.f32.xlu0 %v1854
      %v1856 = vpop.xlane.xlu0 %1855
      %v1857 = vsel %vm1808, %v1451, -inf
      %1858 = vmax.xlane.f32.xlu0 %v1857
      %v1859 = vpop.xlane.xlu0 %1858
      %v1860 = vsel %vm1804, %v1498, -inf
      %1861 = vmax.xlane.f32.xlu0 %v1860
      %v1862 = vpop.xlane.xlu0 %1861
      %v1863 = vsel %vm1808, %v1501, -inf
      %1864 = vmax.xlane.f32.xlu0 %v1863
      %v1865 = vpop.xlane.xlu0 %1864
      %v1866 = vsel %vm1804, %v1548, -inf
      %1867 = vmax.xlane.f32.xlu0 %v1866
      %v1868 = vpop.xlane.xlu0 %1867
      %v1869 = vsel %vm1808, %v1551, -inf
      %1870 = vmax.xlane.f32.xlu0 %v1869
      %v1871 = vpop.xlane.xlu0 %1870
      %v1872 = vsel %vm1804, %v1598, -inf
      %1873 = vmax.xlane.f32.xlu0 %v1872
      %v1874 = vpop.xlane.xlu0 %1873
      %v1875 = vsel %vm1808, %v1601, -inf
      %1876 = vmax.xlane.f32.xlu0 %v1875
      %v1877 = vpop.xlane.xlu0 %1876
      %v1878 = vsel %vm1804, %v1648, -inf
      %1879 = vmax.xlane.f32.xlu0 %v1878
      %v1880 = vpop.xlane.xlu0 %1879
      %v1881 = vsel %vm1808, %v1651, -inf
      %1882 = vmax.xlane.f32.xlu0 %v1881
      %v1883 = vpop.xlane.xlu0 %1882
      %v1884 = vsel %vm1804, %v1698, -inf
      %1885 = vmax.xlane.f32.xlu0 %v1884
      %v1886 = vpop.xlane.xlu0 %1885
      %v1887 = vsel %vm1808, %v1701, -inf
      %1888 = vmax.xlane.f32.xlu0 %v1887
      %v1889 = vpop.xlane.xlu0 %1888
      %v1890 = vsel %vm1804, %v1748, -inf
      %1891 = vmax.xlane.f32.xlu0 %v1890
      %v1892 = vpop.xlane.xlu0 %1891
      %v1893 = vsel %vm1808, %v1751, -inf
      %1894 = vmax.xlane.f32.xlu0 %v1893
      %v1895 = vpop.xlane.xlu0 %1894
      %v1896 = vsel %vm1804, %v1798, -inf
      %1897 = vmax.xlane.f32.xlu0 %v1896
      %v1898 = vpop.xlane.xlu0 %1897
      %v1899 = vsel %vm1808, %v1801, -inf
      %1900 = vmax.xlane.f32.xlu0 %v1899
      %v1901 = vpop.xlane.xlu0 %1900
      %v1902 = vsub.f32 %v1048, %v1807
      %v1903 = vsub.f32 %v1051, %v1811
      %v1904 = vsub.f32 %v1098, %v1814
      %v1905 = vsub.f32 %v1101, %v1817
      %v1906 = vsub.f32 %v1148, %v1820
      %v1907 = vsub.f32 %v1151, %v1823
      %v1908 = vsub.f32 %v1198, %v1826
      %v1909 = vsub.f32 %v1201, %v1829
      %v1910 = vsub.f32 %v1248, %v1832
      %v1911 = vsub.f32 %v1251, %v1835
      %v1912 = vsub.f32 %v1298, %v1838
      %v1913 = vsub.f32 %v1301, %v1841
      %v1914 = vsub.f32 %v1348, %v1844
      %v1915 = vsub.f32 %v1351, %v1847
      %v1916 = vsub.f32 %v1398, %v1850
      %v1917 = vsub.f32 %v1401, %v1853
      %v1918 = vsub.f32 %v1448, %v1856
      %v1919 = vsub.f32 %v1451, %v1859
      %v1920 = vsub.f32 %v1498, %v1862
      %v1921 = vsub.f32 %v1501, %v1865
      %v1922 = vsub.f32 %v1548, %v1868
      %v1923 = vsub.f32 %v1551, %v1871
      %v1924 = vsub.f32 %v1598, %v1874
      %v1925 = vsub.f32 %v1601, %v1877
      %v1926 = vsub.f32 %v1648, %v1880
      %v1927 = vsub.f32 %v1651, %v1883
      %v1928 = vsub.f32 %v1698, %v1886
      %v1929 = vsub.f32 %v1701, %v1889
      %v1930 = vsub.f32 %v1748, %v1892
      %v1931 = vsub.f32 %v1751, %v1895
      %v1932 = vsub.f32 %v1798, %v1898
      %v1933 = vsub.f32 %v1801, %v1901
      %v1934 = vmul.f32 %v1902, 1.442695
      %v1935 = vpow.pop %v1934
      %v1936 = vmul.f32 %v1903, 1.442695
      %v1937 = vpow.pop %v1936
      %v1938 = vmul.f32 %v1904, 1.442695
      %v1939 = vpow.pop %v1938
      %v1940 = vmul.f32 %v1905, 1.442695
      %v1941 = vpow.pop %v1940
      %v1942 = vmul.f32 %v1906, 1.442695
      %v1943 = vpow.pop %v1942
      %v1944 = vmul.f32 %v1907, 1.442695
      %v1945 = vpow.pop %v1944
      %v1946 = vmul.f32 %v1908, 1.442695
      %v1947 = vpow.pop %v1946
      %v1948 = vmul.f32 %v1909, 1.442695
      %v1949 = vpow.pop %v1948
      %v1950 = vmul.f32 %v1910, 1.442695
      %v1951 = vpow.pop %v1950
      %v1952 = vmul.f32 %v1911, 1.442695
      %v1953 = vpow.pop %v1952
      %v1954 = vmul.f32 %v1912, 1.442695
      %v1955 = vpow.pop %v1954
      %v1956 = vmul.f32 %v1913, 1.442695
      %v1957 = vpow.pop %v1956
      %v1958 = vmul.f32 %v1914, 1.442695
      %v1959 = vpow.pop %v1958
      %v1960 = vmul.f32 %v1915, 1.442695
      %v1961 = vpow.pop %v1960
      %v1962 = vmul.f32 %v1916, 1.442695
      %v1963 = vpow.pop %v1962
      %v1964 = vmul.f32 %v1917, 1.442695
      %v1965 = vpow.pop %v1964
      %v1966 = vmul.f32 %v1918, 1.442695
      %v1967 = vpow.pop %v1966
      %v1968 = vmul.f32 %v1919, 1.442695
      %v1969 = vpow.pop %v1968
      %v1970 = vmul.f32 %v1920, 1.442695
      %v1971 = vpow.pop %v1970
      %v1972 = vmul.f32 %v1921, 1.442695
      %v1973 = vpow.pop %v1972
      %v1974 = vmul.f32 %v1922, 1.442695
      %v1975 = vpow.pop %v1974
      %v1976 = vmul.f32 %v1923, 1.442695
      %v1977 = vpow.pop %v1976
      %v1978 = vmul.f32 %v1924, 1.442695
      %v1979 = vpow.pop %v1978
      %v1980 = vmul.f32 %v1925, 1.442695
      %v1981 = vpow.pop %v1980
      %v1982 = vmul.f32 %v1926, 1.442695
      %v1983 = vpow.pop %v1982
      %v1984 = vmul.f32 %v1927, 1.442695
      %v1985 = vpow.pop %v1984
      %v1986 = vmul.f32 %v1928, 1.442695
      %v1987 = vpow.pop %v1986
      %v1988 = vmul.f32 %v1929, 1.442695
      %v1989 = vpow.pop %v1988
      %v1990 = vmul.f32 %v1930, 1.442695
      %v1991 = vpow.pop %v1990
      %v1992 = vmul.f32 %v1931, 1.442695
      %v1993 = vpow.pop %v1992
      %v1994 = vmul.f32 %v1932, 1.442695
      %v1995 = vpow.pop %v1994
      %v1996 = vmul.f32 %v1933, 1.442695
      %v1997 = vpow.pop %v1996
      %v1998 = vsel %vm1804, %v1935, 0.0
      %1999 = vadd.xlane.f32.xlu0 %v1998
      %v2000 = vpop.xlane.xlu0 %1999
      %v2001 = vsel %vm1808, %v1937, 0.0
      %2002 = vadd.xlane.f32.xlu0 %v2001
      %v2003 = vpop.xlane.xlu0 %2002
      %v2004 = vsel %vm1804, %v1939, 0.0
      %2005 = vadd.xlane.f32.xlu0 %v2004
      %v2006 = vpop.xlane.xlu0 %2005
      %v2007 = vsel %vm1808, %v1941, 0.0
      %2008 = vadd.xlane.f32.xlu0 %v2007
      %v2009 = vpop.xlane.xlu0 %2008
      %v2010 = vsel %vm1804, %v1943, 0.0
      %2011 = vadd.xlane.f32.xlu0 %v2010
      %v2012 = vpop.xlane.xlu0 %2011
      %v2013 = vsel %vm1808, %v1945, 0.0
      %2014 = vadd.xlane.f32.xlu0 %v2013
      %v2015 = vpop.xlane.xlu0 %2014
      %v2016 = vsel %vm1804, %v1947, 0.0
      %2017 = vadd.xlane.f32.xlu0 %v2016
      %v2018 = vpop.xlane.xlu0 %2017
      %v2019 = vsel %vm1808, %v1949, 0.0
      %2020 = vadd.xlane.f32.xlu0 %v2019
      %v2021 = vpop.xlane.xlu0 %2020
      %v2022 = vsel %vm1804, %v1951, 0.0
      %2023 = vadd.xlane.f32.xlu0 %v2022
      %v2024 = vpop.xlane.xlu0 %2023
      %v2025 = vsel %vm1808, %v1953, 0.0
      %2026 = vadd.xlane.f32.xlu0 %v2025
      %v2027 = vpop.xlane.xlu0 %2026
      %v2028 = vsel %vm1804, %v1955, 0.0
      %2029 = vadd.xlane.f32.xlu0 %v2028
      %v2030 = vpop.xlane.xlu0 %2029
      %v2031 = vsel %vm1808, %v1957, 0.0
      %2032 = vadd.xlane.f32.xlu0 %v2031
      %v2033 = vpop.xlane.xlu0 %2032
      %v2034 = vsel %vm1804, %v1959, 0.0
      %2035 = vadd.xlane.f32.xlu0 %v2034
      %v2036 = vpop.xlane.xlu0 %2035
      %v2037 = vsel %vm1808, %v1961, 0.0
      %2038 = vadd.xlane.f32.xlu0 %v2037
      %v2039 = vpop.xlane.xlu0 %2038
      %v2040 = vsel %vm1804, %v1963, 0.0
      %2041 = vadd.xlane.f32.xlu0 %v2040
      %v2042 = vpop.xlane.xlu0 %2041
      %v2043 = vsel %vm1808, %v1965, 0.0
      %2044 = vadd.xlane.f32.xlu0 %v2043
      %v2045 = vpop.xlane.xlu0 %2044
      %v2046 = vsel %vm1804, %v1967, 0.0
      %2047 = vadd.xlane.f32.xlu0 %v2046
      %v2048 = vpop.xlane.xlu0 %2047
      %v2049 = vsel %vm1808, %v1969, 0.0
      %2050 = vadd.xlane.f32.xlu0 %v2049
      %v2051 = vpop.xlane.xlu0 %2050
      %v2052 = vsel %vm1804, %v1971, 0.0
      %2053 = vadd.xlane.f32.xlu0 %v2052
      %v2054 = vpop.xlane.xlu0 %2053
      %v2055 = vsel %vm1808, %v1973, 0.0
      %2056 = vadd.xlane.f32.xlu0 %v2055
      %v2057 = vpop.xlane.xlu0 %2056
      %v2058 = vsel %vm1804, %v1975, 0.0
      %2059 = vadd.xlane.f32.xlu0 %v2058
      %v2060 = vpop.xlane.xlu0 %2059
      %v2061 = vsel %vm1808, %v1977, 0.0
      %2062 = vadd.xlane.f32.xlu0 %v2061
      %v2063 = vpop.xlane.xlu0 %2062
      %v2064 = vsel %vm1804, %v1979, 0.0
      %2065 = vadd.xlane.f32.xlu0 %v2064
      %v2066 = vpop.xlane.xlu0 %2065
      %v2067 = vsel %vm1808, %v1981, 0.0
      %2068 = vadd.xlane.f32.xlu0 %v2067
      %v2069 = vpop.xlane.xlu0 %2068
      %v2070 = vsel %vm1804, %v1983, 0.0
      %2071 = vadd.xlane.f32.xlu0 %v2070
      %v2072 = vpop.xlane.xlu0 %2071
      %v2073 = vsel %vm1808, %v1985, 0.0
      %2074 = vadd.xlane.f32.xlu0 %v2073
      %v2075 = vpop.xlane.xlu0 %2074
      %v2076 = vsel %vm1804, %v1987, 0.0
      %2077 = vadd.xlane.f32.xlu0 %v2076
      %v2078 = vpop.xlane.xlu0 %2077
      %v2079 = vsel %vm1808, %v1989, 0.0
      %2080 = vadd.xlane.f32.xlu0 %v2079
      %v2081 = vpop.xlane.xlu0 %2080
      %v2082 = vsel %vm1804, %v1991, 0.0
      %2083 = vadd.xlane.f32.xlu0 %v2082
      %v2084 = vpop.xlane.xlu0 %2083
      %v2085 = vsel %vm1808, %v1993, 0.0
      %2086 = vadd.xlane.f32.xlu0 %v2085
      %v2087 = vpop.xlane.xlu0 %2086
      %v2088 = vsel %vm1804, %v1995, 0.0
      %2089 = vadd.xlane.f32.xlu0 %v2088
      %v2090 = vpop.xlane.xlu0 %2089
      %v2091 = vsel %vm1808, %v1997, 0.0
      %2092 = vadd.xlane.f32.xlu0 %v2091
      %v2093 = vpop.xlane.xlu0 %2092
      %v2094 = vrcp.pop %v2000
      %v2095 = vrcp.pop %v2003
      %v2096 = vrcp.pop %v2006
      %v2097 = vrcp.pop %v2009
      %v2098 = vrcp.pop %v2012
      %v2099 = vrcp.pop %v2015
      %v2100 = vrcp.pop %v2018
      %v2101 = vrcp.pop %v2021
      %v2102 = vrcp.pop %v2024
      %v2103 = vrcp.pop %v2027
      %v2104 = vrcp.pop %v2030
      %v2105 = vrcp.pop %v2033
      %v2106 = vrcp.pop %v2036
      %v2107 = vrcp.pop %v2039
      %v2108 = vrcp.pop %v2042
      %v2109 = vrcp.pop %v2045
      %v2110 = vrcp.pop %v2048
      %v2111 = vrcp.pop %v2051
      %v2112 = vrcp.pop %v2054
      %v2113 = vrcp.pop %v2057
      %v2114 = vrcp.pop %v2060
      %v2115 = vrcp.pop %v2063
      %v2116 = vrcp.pop %v2066
      %v2117 = vrcp.pop %v2069
      %v2118 = vrcp.pop %v2072
      %v2119 = vrcp.pop %v2075
      %v2120 = vrcp.pop %v2078
      %v2121 = vrcp.pop %v2081
      %v2122 = vrcp.pop %v2084
      %v2123 = vrcp.pop %v2087
      %v2124 = vrcp.pop %v2090
      %v2125 = vrcp.pop %v2093
      %v2126 = vmul.f32 %v1935, %v2094
      %v2127 = vmul.f32 %v1937, %v2095
      %v2128 = vmul.f32 %v1939, %v2096
      %v2129 = vmul.f32 %v1941, %v2097
      %v2130 = vmul.f32 %v1943, %v2098
      %v2131 = vmul.f32 %v1945, %v2099
      %v2132 = vmul.f32 %v1947, %v2100
      %v2133 = vmul.f32 %v1949, %v2101
      %v2134 = vmul.f32 %v1951, %v2102
      %v2135 = vmul.f32 %v1953, %v2103
      %v2136 = vmul.f32 %v1955, %v2104
      %v2137 = vmul.f32 %v1957, %v2105
      %v2138 = vmul.f32 %v1959, %v2106
      %v2139 = vmul.f32 %v1961, %v2107
      %v2140 = vmul.f32 %v1963, %v2108
      %v2141 = vmul.f32 %v1965, %v2109
      %v2142 = vmul.f32 %v1967, %v2110
      %v2143 = vmul.f32 %v1969, %v2111
      %v2144 = vmul.f32 %v1971, %v2112
      %v2145 = vmul.f32 %v1973, %v2113
      %v2146 = vmul.f32 %v1975, %v2114
      %v2147 = vmul.f32 %v1977, %v2115
      %v2148 = vmul.f32 %v1979, %v2116
      %v2149 = vmul.f32 %v1981, %v2117
      %v2150 = vmul.f32 %v1983, %v2118
      %v2151 = vmul.f32 %v1985, %v2119
      %v2152 = vmul.f32 %v1987, %v2120
      %v2153 = vmul.f32 %v1989, %v2121
      %v2154 = vmul.f32 %v1991, %v2122
      %v2155 = vmul.f32 %v1993, %v2123
      %v2156 = vmul.f32 %v1995, %v2124
      %v2157 = vmul.f32 %v1997, %v2125
      %v2158 = vpack.c.bf16 %v2127, %v2126
      %v2159 = vpack.c.bf16 %v2129, %v2128
      %v2160 = vpack.c.bf16 %v2131, %v2130
      %v2161 = vpack.c.bf16 %v2133, %v2132
      %v2162 = vpack.c.bf16 %v2135, %v2134
      %v2163 = vpack.c.bf16 %v2137, %v2136
      %v2164 = vpack.c.bf16 %v2139, %v2138
      %v2165 = vpack.c.bf16 %v2141, %v2140
      %v2166 = vpack.c.bf16 %v2143, %v2142
      %v2167 = vpack.c.bf16 %v2145, %v2144
      %v2168 = vpack.c.bf16 %v2147, %v2146
      %v2169 = vpack.c.bf16 %v2149, %v2148
      %v2170 = vpack.c.bf16 %v2151, %v2150
      %v2171 = vpack.c.bf16 %v2153, %v2152
      %v2172 = vpack.c.bf16 %v2155, %v2154
      %v2173 = vpack.c.bf16 %v2157, %v2156
      %2174 = vrot.lane.b32.xlu0 %v987, 64
      %v2175 = vpop.permute.xlu0 %2174
      %v2177 = vsel %vm1804, %v2158, 0
      %vm2179 = vcmask 1045504
      %v2181 = vsel %vm2179, %v2175, 0
      %2183 = vmatprep.subr.bf16.mxu0 0
      %2184 = vmatpush1.bf16.msra.mxu0 %v2181
      %2185 = vmatprep.subr.bf16.mxu0 0
      %2186 = vmatpush1.bf16.msra.mxu0 0
      %2187 = vmatprep.subr.bf16.mxu0 0
      %2188 = vmatpush1.bf16.msra.mxu0 0
      %2189 = vmatprep.subr.bf16.mxu0 0
      %2190 = vmatpush1.bf16.msra.mxu0 0
      %2191 = vmatprep.subr.bf16.mxu0 0
      %2192 = vmatpush1.bf16.msra.mxu0 0
      %2193 = vmatprep.subr.bf16.mxu0 0
      %2194 = vmatpush1.bf16.msra.mxu0 0
      %2195 = vmatprep.subr.bf16.mxu0 0
      %2196 = vmatpush1.bf16.msra.mxu0 0
      %2197 = vmatprep.subr.bf16.mxu0 0
      %2198 = vmatpush1.bf16.msra.mxu0 0
      %2199 = vmatprep.subr.bf16.mxu0 0
      %2200 = vmatpush1.bf16.msra.mxu0 0
      %2201 = vmatprep.subr.bf16.mxu0 0
      %2202 = vmatpush1.bf16.msra.mxu0 0
      %2203 = vmatprep.subr.bf16.mxu0 0
      %2204 = vmatpush1.bf16.msra.mxu0 0
      %2205 = vmatprep.subr.bf16.mxu0 0
      %2206 = vmatpush1.bf16.msra.mxu0 0
      %2207 = vmatprep.subr.bf16.mxu0 0
      %2208 = vmatpush1.bf16.msra.mxu0 0
      %2209 = vmatprep.subr.bf16.mxu0 0
      %2210 = vmatpush1.bf16.msra.mxu0 0
      %2211 = vmatprep.subr.bf16.mxu0 0
      %2212 = vmatpush1.bf16.msra.mxu0 0
      %2213 = vmatprep.subr.bf16.mxu0 0
      %2214 = vmatpush1.bf16.msra.mxu0 0
      %2215 = vmatprep.mubr.bf16.mxu0 0
      %2216 = vmatmul.mubr.bf16.gmra.mrb[0].mxu0 %v2177
      %v2217 = vpop.f32.mrb[0].mxu0
      %v2218 = vadd.f32 0.0, %v2217
      %v2219 = vpop.f32.mrb[0].mxu0
      %v2220 = vpop.f32.mrb[0].mxu0
      %v2221 = vadd.f32 0.0, %v2220
      %v2222 = vpop.f32.mrb[0].mxu0
      %2223 = vdwg.mxu0
      %2224 = vrot.lane.b32.xlu0 %v988, 64
      %v2225 = vpop.permute.xlu0 %2224
      %v2227 = vsel %vm1804, %v2159, 0
      %v2230 = vsel %vm2179, %v2225, 0
      %2232 = vmatprep.subr.bf16.mxu0 0
      %2233 = vmatpush1.bf16.msra.mxu0 %v2230
      %2234 = vmatprep.subr.bf16.mxu0 0
      %2235 = vmatpush1.bf16.msra.mxu0 0
      %2236 = vmatprep.subr.bf16.mxu0 0
      %2237 = vmatpush1.bf16.msra.mxu0 0
      %2238 = vmatprep.subr.bf16.mxu0 0
      %2239 = vmatpush1.bf16.msra.mxu0 0
      %2240 = vmatprep.subr.bf16.mxu0 0
      %2241 = vmatpush1.bf16.msra.mxu0 0
      %2242 = vmatprep.subr.bf16.mxu0 0
      %2243 = vmatpush1.bf16.msra.mxu0 0
      %2244 = vmatprep.subr.bf16.mxu0 0
      %2245 = vmatpush1.bf16.msra.mxu0 0
      %2246 = vmatprep.subr.bf16.mxu0 0
      %2247 = vmatpush1.bf16.msra.mxu0 0
      %2248 = vmatprep.subr.bf16.mxu0 0
      %2249 = vmatpush1.bf16.msra.mxu0 0
      %2250 = vmatprep.subr.bf16.mxu0 0
      %2251 = vmatpush1.bf16.msra.mxu0 0
      %2252 = vmatprep.subr.bf16.mxu0 0
      %2253 = vmatpush1.bf16.msra.mxu0 0
      %2254 = vmatprep.subr.bf16.mxu0 0
      %2255 = vmatpush1.bf16.msra.mxu0 0
      %2256 = vmatprep.subr.bf16.mxu0 0
      %2257 = vmatpush1.bf16.msra.mxu0 0
      %2258 = vmatprep.subr.bf16.mxu0 0
      %2259 = vmatpush1.bf16.msra.mxu0 0
      %2260 = vmatprep.subr.bf16.mxu0 0
      %2261 = vmatpush1.bf16.msra.mxu0 0
      %2262 = vmatprep.subr.bf16.mxu0 0
      %2263 = vmatpush1.bf16.msra.mxu0 0
      %2264 = vmatprep.mubr.bf16.mxu0 0
      %2265 = vmatmul.mubr.bf16.gmra.mrb[0].mxu0 %v2227
      %v2266 = vpop.f32.mrb[0].mxu0
      %v2267 = vadd.f32 0.0, %v2266
      %v2268 = vpop.f32.mrb[0].mxu0
      %v2269 = vpop.f32.mrb[0].mxu0
      %v2270 = vadd.f32 0.0, %v2269
      %v2271 = vpop.f32.mrb[0].mxu0
      %2272 = vdwg.mxu0
      %2273 = vrot.lane.b32.xlu0 %v989, 64
      %v2274 = vpop.permute.xlu0 %2273
      %v2276 = vsel %vm1804, %v2160, 0
      %v2279 = vsel %vm2179, %v2274, 0
      %2281 = vmatprep.subr.bf16.mxu0 0
      %2282 = vmatpush1.bf16.msra.mxu0 %v2279
      %2283 = vmatprep.subr.bf16.mxu0 0
      %2284 = vmatpush1.bf16.msra.mxu0 0
      %2285 = vmatprep.subr.bf16.mxu0 0
      %2286 = vmatpush1.bf16.msra.mxu0 0
      %2287 = vmatprep.subr.bf16.mxu0 0
      %2288 = vmatpush1.bf16.msra.mxu0 0
      %2289 = vmatprep.subr.bf16.mxu0 0
      %2290 = vmatpush1.bf16.msra.mxu0 0
      %2291 = vmatprep.subr.bf16.mxu0 0
      %2292 = vmatpush1.bf16.msra.mxu0 0
      %2293 = vmatprep.subr.bf16.mxu0 0
      %2294 = vmatpush1.bf16.msra.mxu0 0
      %2295 = vmatprep.subr.bf16.mxu0 0
      %2296 = vmatpush1.bf16.msra.mxu0 0
      %2297 = vmatprep.subr.bf16.mxu0 0
      %2298 = vmatpush1.bf16.msra.mxu0 0
      %2299 = vmatprep.subr.bf16.mxu0 0
      %2300 = vmatpush1.bf16.msra.mxu0 0
      %2301 = vmatprep.subr.bf16.mxu0 0
      %2302 = vmatpush1.bf16.msra.mxu0 0
      %2303 = vmatprep.subr.bf16.mxu0 0
      %2304 = vmatpush1.bf16.msra.mxu0 0
      %2305 = vmatprep.subr.bf16.mxu0 0
      %2306 = vmatpush1.bf16.msra.mxu0 0
      %2307 = vmatprep.subr.bf16.mxu0 0
      %2308 = vmatpush1.bf16.msra.mxu0 0
      %2309 = vmatprep.subr.bf16.mxu0 0
      %2310 = vmatpush1.bf16.msra.mxu0 0
      %2311 = vmatprep.subr.bf16.mxu0 0
      %2312 = vmatpush1.bf16.msra.mxu0 0
      %2313 = vmatprep.mubr.bf16.mxu0 0
      %2314 = vmatmul.mubr.bf16.gmra.mrb[0].mxu0 %v2276
      %v2315 = vpop.f32.mrb[0].mxu0
      %v2316 = vadd.f32 0.0, %v2315
      %v2317 = vpop.f32.mrb[0].mxu0
      %v2318 = vpop.f32.mrb[0].mxu0
      %v2319 = vadd.f32 0.0, %v2318
      %v2320 = vpop.f32.mrb[0].mxu0
      %2321 = vdwg.mxu0
      %2322 = vrot.lane.b32.xlu0 %v990, 64
      %v2323 = vpop.permute.xlu0 %2322
      %v2325 = vsel %vm1804, %v2161, 0
      %v2328 = vsel %vm2179, %v2323, 0
      %2330 = vmatprep.subr.bf16.mxu0 0
      %2331 = vmatpush1.bf16.msra.mxu0 %v2328
      %2332 = vmatprep.subr.bf16.mxu0 0
      %2333 = vmatpush1.bf16.msra.mxu0 0
      %2334 = vmatprep.subr.bf16.mxu0 0
      %2335 = vmatpush1.bf16.msra.mxu0 0
      %2336 = vmatprep.subr.bf16.mxu0 0
      %2337 = vmatpush1.bf16.msra.mxu0 0
      %2338 = vmatprep.subr.bf16.mxu0 0
      %2339 = vmatpush1.bf16.msra.mxu0 0
      %2340 = vmatprep.subr.bf16.mxu0 0
      %2341 = vmatpush1.bf16.msra.mxu0 0
      %2342 = vmatprep.subr.bf16.mxu0 0
      %2343 = vmatpush1.bf16.msra.mxu0 0
      %2344 = vmatprep.subr.bf16.mxu0 0
      %2345 = vmatpush1.bf16.msra.mxu0 0
      %2346 = vmatprep.subr.bf16.mxu0 0
      %2347 = vmatpush1.bf16.msra.mxu0 0
      %2348 = vmatprep.subr.bf16.mxu0 0
      %2349 = vmatpush1.bf16.msra.mxu0 0
      %2350 = vmatprep.subr.bf16.mxu0 0
      %2351 = vmatpush1.bf16.msra.mxu0 0
      %2352 = vmatprep.subr.bf16.mxu0 0
      %2353 = vmatpush1.bf16.msra.mxu0 0
      %2354 = vmatprep.subr.bf16.mxu0 0
      %2355 = vmatpush1.bf16.msra.mxu0 0
      %2356 = vmatprep.subr.bf16.mxu0 0
      %2357 = vmatpush1.bf16.msra.mxu0 0
      %2358 = vmatprep.subr.bf16.mxu0 0
      %2359 = vmatpush1.bf16.msra.mxu0 0
      %2360 = vmatprep.subr.bf16.mxu0 0
      %2361 = vmatpush1.bf16.msra.mxu0 0
      %2362 = vmatprep.mubr.bf16.mxu0 0
      %2363 = vmatmul.mubr.bf16.gmra.mrb[0].mxu0 %v2325
      %v2364 = vpop.f32.mrb[0].mxu0
      %v2365 = vadd.f32 0.0, %v2364
      %v2366 = vpop.f32.mrb[0].mxu0
      %v2367 = vpop.f32.mrb[0].mxu0
      %v2368 = vadd.f32 0.0, %v2367
      %v2369 = vpop.f32.mrb[0].mxu0
      %2370 = vdwg.mxu0
      %2371 = vrot.lane.b32.xlu0 %v991, 64
      %v2372 = vpop.permute.xlu0 %2371
      %v2374 = vsel %vm1804, %v2162, 0
      %v2377 = vsel %vm2179, %v2372, 0
      %2379 = vmatprep.subr.bf16.mxu0 0
      %2380 = vmatpush1.bf16.msra.mxu0 %v2377
      %2381 = vmatprep.subr.bf16.mxu0 0
      %2382 = vmatpush1.bf16.msra.mxu0 0
      %2383 = vmatprep.subr.bf16.mxu0 0
      %2384 = vmatpush1.bf16.msra.mxu0 0
      %2385 = vmatprep.subr.bf16.mxu0 0
      %2386 = vmatpush1.bf16.msra.mxu0 0
      %2387 = vmatprep.subr.bf16.mxu0 0
      %2388 = vmatpush1.bf16.msra.mxu0 0
      %2389 = vmatprep.subr.bf16.mxu0 0
      %2390 = vmatpush1.bf16.msra.mxu0 0
      %2391 = vmatprep.subr.bf16.mxu0 0
      %2392 = vmatpush1.bf16.msra.mxu0 0
      %2393 = vmatprep.subr.bf16.mxu0 0
      %2394 = vmatpush1.bf16.msra.mxu0 0
      %2395 = vmatprep.subr.bf16.mxu0 0
      %2396 = vmatpush1.bf16.msra.mxu0 0
      %2397 = vmatprep.subr.bf16.mxu0 0
      %2398 = vmatpush1.bf16.msra.mxu0 0
      %2399 = vmatprep.subr.bf16.mxu0 0
      %2400 = vmatpush1.bf16.msra.mxu0 0
      %2401 = vmatprep.subr.bf16.mxu0 0
      %2402 = vmatpush1.bf16.msra.mxu0 0
      %2403 = vmatprep.subr.bf16.mxu0 0
      %2404 = vmatpush1.bf16.msra.mxu0 0
      %2405 = vmatprep.subr.bf16.mxu0 0
      %2406 = vmatpush1.bf16.msra.mxu0 0
      %2407 = vmatprep.subr.bf16.mxu0 0
      %2408 = vmatpush1.bf16.msra.mxu0 0
      %2409 = vmatprep.subr.bf16.mxu0 0
      %2410 = vmatpush1.bf16.msra.mxu0 0
      %2411 = vmatprep.mubr.bf16.mxu0 0
      %2412 = vmatmul.mubr.bf16.gmra.mrb[0].mxu0 %v2374
      %v2413 = vpop.f32.mrb[0].mxu0
      %v2414 = vadd.f32 0.0, %v2413
      %v2415 = vpop.f32.mrb[0].mxu0
      %v2416 = vpop.f32.mrb[0].mxu0
      %v2417 = vadd.f32 0.0, %v2416
      %v2418 = vpop.f32.mrb[0].mxu0
      %2419 = vdwg.mxu0
      %2420 = vrot.lane.b32.xlu0 %v992, 64
      %v2421 = vpop.permute.xlu0 %2420
      %v2423 = vsel %vm1804, %v2163, 0
      %v2426 = vsel %vm2179, %v2421, 0
      %2428 = vmatprep.subr.bf16.mxu0 0
      %2429 = vmatpush1.bf16.msra.mxu0 %v2426
      %2430 = vmatprep.subr.bf16.mxu0 0
      %2431 = vmatpush1.bf16.msra.mxu0 0
      %2432 = vmatprep.subr.bf16.mxu0 0
      %2433 = vmatpush1.bf16.msra.mxu0 0
      %2434 = vmatprep.subr.bf16.mxu0 0
      %2435 = vmatpush1.bf16.msra.mxu0 0
      %2436 = vmatprep.subr.bf16.mxu0 0
      %2437 = vmatpush1.bf16.msra.mxu0 0
      %2438 = vmatprep.subr.bf16.mxu0 0
      %2439 = vmatpush1.bf16.msra.mxu0 0
      %2440 = vmatprep.subr.bf16.mxu0 0
      %2441 = vmatpush1.bf16.msra.mxu0 0
      %2442 = vmatprep.subr.bf16.mxu0 0
      %2443 = vmatpush1.bf16.msra.mxu0 0
      %2444 = vmatprep.subr.bf16.mxu0 0
      %2445 = vmatpush1.bf16.msra.mxu0 0
      %2446 = vmatprep.subr.bf16.mxu0 0
      %2447 = vmatpush1.bf16.msra.mxu0 0
      %2448 = vmatprep.subr.bf16.mxu0 0
      %2449 = vmatpush1.bf16.msra.mxu0 0
      %2450 = vmatprep.subr.bf16.mxu0 0
      %2451 = vmatpush1.bf16.msra.mxu0 0
      %2452 = vmatprep.subr.bf16.mxu0 0
      %2453 = vmatpush1.bf16.msra.mxu0 0
      %2454 = vmatprep.subr.bf16.mxu0 0
      %2455 = vmatpush1.bf16.msra.mxu0 0
      %2456 = vmatprep.subr.bf16.mxu0 0
      %2457 = vmatpush1.bf16.msra.mxu0 0
      %2458 = vmatprep.subr.bf16.mxu0 0
      %2459 = vmatpush1.bf16.msra.mxu0 0
      %2460 = vmatprep.mubr.bf16.mxu0 0
      %2461 = vmatmul.mubr.bf16.gmra.mrb[0].mxu0 %v2423
      %v2462 = vpop.f32.mrb[0].mxu0
      %v2463 = vadd.f32 0.0, %v2462
      %v2464 = vpop.f32.mrb[0].mxu0
      %v2465 = vpop.f32.mrb[0].mxu0
      %v2466 = vadd.f32 0.0, %v2465
      %v2467 = vpop.f32.mrb[0].mxu0
      %2468 = vdwg.mxu0
      %2469 = vrot.lane.b32.xlu0 %v993, 64
      %v2470 = vpop.permute.xlu0 %2469
      %v2472 = vsel %vm1804, %v2164, 0
      %v2475 = vsel %vm2179, %v2470, 0
      %2477 = vmatprep.subr.bf16.mxu0 0
      %2478 = vmatpush1.bf16.msra.mxu0 %v2475
      %2479 = vmatprep.subr.bf16.mxu0 0
      %2480 = vmatpush1.bf16.msra.mxu0 0
      %2481 = vmatprep.subr.bf16.mxu0 0
      %2482 = vmatpush1.bf16.msra.mxu0 0
      %2483 = vmatprep.subr.bf16.mxu0 0
      %2484 = vmatpush1.bf16.msra.mxu0 0
      %2485 = vmatprep.subr.bf16.mxu0 0
      %2486 = vmatpush1.bf16.msra.mxu0 0
      %2487 = vmatprep.subr.bf16.mxu0 0
      %2488 = vmatpush1.bf16.msra.mxu0 0
      %2489 = vmatprep.subr.bf16.mxu0 0
      %2490 = vmatpush1.bf16.msra.mxu0 0
      %2491 = vmatprep.subr.bf16.mxu0 0
      %2492 = vmatpush1.bf16.msra.mxu0 0
      %2493 = vmatprep.subr.bf16.mxu0 0
      %2494 = vmatpush1.bf16.msra.mxu0 0
      %2495 = vmatprep.subr.bf16.mxu0 0
      %2496 = vmatpush1.bf16.msra.mxu0 0
      %2497 = vmatprep.subr.bf16.mxu0 0
      %2498 = vmatpush1.bf16.msra.mxu0 0
      %2499 = vmatprep.subr.bf16.mxu0 0
      %2500 = vmatpush1.bf16.msra.mxu0 0
      %2501 = vmatprep.subr.bf16.mxu0 0
      %2502 = vmatpush1.bf16.msra.mxu0 0
      %2503 = vmatprep.subr.bf16.mxu0 0
      %2504 = vmatpush1.bf16.msra.mxu0 0
      %2505 = vmatprep.subr.bf16.mxu0 0
      %2506 = vmatpush1.bf16.msra.mxu0 0
      %2507 = vmatprep.subr.bf16.mxu0 0
      %2508 = vmatpush1.bf16.msra.mxu0 0
      %2509 = vmatprep.mubr.bf16.mxu0 0
      %2510 = vmatmul.mubr.bf16.gmra.mrb[0].mxu0 %v2472
      %v2511 = vpop.f32.mrb[0].mxu0
      %v2512 = vadd.f32 0.0, %v2511
      %v2513 = vpop.f32.mrb[0].mxu0
      %v2514 = vpop.f32.mrb[0].mxu0
      %v2515 = vadd.f32 0.0, %v2514
      %v2516 = vpop.f32.mrb[0].mxu0
      %2517 = vdwg.mxu0
      %2518 = vrot.lane.b32.xlu0 %v994, 64
      %v2519 = vpop.permute.xlu0 %2518
      %v2521 = vsel %vm1804, %v2165, 0
      %v2524 = vsel %vm2179, %v2519, 0
      %2526 = vmatprep.subr.bf16.mxu0 0
      %2527 = vmatpush1.bf16.msra.mxu0 %v2524
      %2528 = vmatprep.subr.bf16.mxu0 0
      %2529 = vmatpush1.bf16.msra.mxu0 0
      %2530 = vmatprep.subr.bf16.mxu0 0
      %2531 = vmatpush1.bf16.msra.mxu0 0
      %2532 = vmatprep.subr.bf16.mxu0 0
      %2533 = vmatpush1.bf16.msra.mxu0 0
      %2534 = vmatprep.subr.bf16.mxu0 0
      %2535 = vmatpush1.bf16.msra.mxu0 0
      %2536 = vmatprep.subr.bf16.mxu0 0
      %2537 = vmatpush1.bf16.msra.mxu0 0
      %2538 = vmatprep.subr.bf16.mxu0 0
      %2539 = vmatpush1.bf16.msra.mxu0 0
      %2540 = vmatprep.subr.bf16.mxu0 0
      %2541 = vmatpush1.bf16.msra.mxu0 0
      %2542 = vmatprep.subr.bf16.mxu0 0
      %2543 = vmatpush1.bf16.msra.mxu0 0
      %2544 = vmatprep.subr.bf16.mxu0 0
      %2545 = vmatpush1.bf16.msra.mxu0 0
      %2546 = vmatprep.subr.bf16.mxu0 0
      %2547 = vmatpush1.bf16.msra.mxu0 0
      %2548 = vmatprep.subr.bf16.mxu0 0
      %2549 = vmatpush1.bf16.msra.mxu0 0
      %2550 = vmatprep.subr.bf16.mxu0 0
      %2551 = vmatpush1.bf16.msra.mxu0 0
      %2552 = vmatprep.subr.bf16.mxu0 0
      %2553 = vmatpush1.bf16.msra.mxu0 0
      %2554 = vmatprep.subr.bf16.mxu0 0
      %2555 = vmatpush1.bf16.msra.mxu0 0
      %2556 = vmatprep.subr.bf16.mxu0 0
      %2557 = vmatpush1.bf16.msra.mxu0 0
      %2558 = vmatprep.mubr.bf16.mxu0 0
      %2559 = vmatmul.mubr.bf16.gmra.mrb[0].mxu0 %v2521
      %v2560 = vpop.f32.mrb[0].mxu0
      %v2561 = vadd.f32 0.0, %v2560
      %v2562 = vpop.f32.mrb[0].mxu0
      %v2563 = vpop.f32.mrb[0].mxu0
      %v2564 = vadd.f32 0.0, %v2563
      %v2565 = vpop.f32.mrb[0].mxu0
      %2566 = vdwg.mxu0
      %2567 = vrot.lane.b32.xlu0 %v995, 64
      %v2568 = vpop.permute.xlu0 %2567
      %v2570 = vsel %vm1804, %v2166, 0
      %v2573 = vsel %vm2179, %v2568, 0
      %2575 = vmatprep.subr.bf16.mxu0 0
      %2576 = vmatpush1.bf16.msra.mxu0 %v2573
      %2577 = vmatprep.subr.bf16.mxu0 0
      %2578 = vmatpush1.bf16.msra.mxu0 0
      %2579 = vmatprep.subr.bf16.mxu0 0
      %2580 = vmatpush1.bf16.msra.mxu0 0
      %2581 = vmatprep.subr.bf16.mxu0 0
      %2582 = vmatpush1.bf16.msra.mxu0 0
      %2583 = vmatprep.subr.bf16.mxu0 0
      %2584 = vmatpush1.bf16.msra.mxu0 0
      %2585 = vmatprep.subr.bf16.mxu0 0
      %2586 = vmatpush1.bf16.msra.mxu0 0
      %2587 = vmatprep.subr.bf16.mxu0 0
      %2588 = vmatpush1.bf16.msra.mxu0 0
      %2589 = vmatprep.subr.bf16.mxu0 0
      %2590 = vmatpush1.bf16.msra.mxu0 0
      %2591 = vmatprep.subr.bf16.mxu0 0
      %2592 = vmatpush1.bf16.msra.mxu0 0
      %2593 = vmatprep.subr.bf16.mxu0 0
      %2594 = vmatpush1.bf16.msra.mxu0 0
      %2595 = vmatprep.subr.bf16.mxu0 0
      %2596 = vmatpush1.bf16.msra.mxu0 0
      %2597 = vmatprep.subr.bf16.mxu0 0
      %2598 = vmatpush1.bf16.msra.mxu0 0
      %2599 = vmatprep.subr.bf16.mxu0 0
      %2600 = vmatpush1.bf16.msra.mxu0 0
      %2601 = vmatprep.subr.bf16.mxu0 0
      %2602 = vmatpush1.bf16.msra.mxu0 0
      %2603 = vmatprep.subr.bf16.mxu0 0
      %2604 = vmatpush1.bf16.msra.mxu0 0
      %2605 = vmatprep.subr.bf16.mxu0 0
      %2606 = vmatpush1.bf16.msra.mxu0 0
      %2607 = vmatprep.mubr.bf16.mxu0 0
      %2608 = vmatmul.mubr.bf16.gmra.mrb[0].mxu0 %v2570
      %v2609 = vpop.f32.mrb[0].mxu0
      %v2610 = vadd.f32 0.0, %v2609
      %v2611 = vpop.f32.mrb[0].mxu0
      %v2612 = vpop.f32.mrb[0].mxu0
      %v2613 = vadd.f32 0.0, %v2612
      %v2614 = vpop.f32.mrb[0].mxu0
      %2615 = vdwg.mxu0
      %2616 = vrot.lane.b32.xlu0 %v996, 64
      %v2617 = vpop.permute.xlu0 %2616
      %v2619 = vsel %vm1804, %v2167, 0
      %v2622 = vsel %vm2179, %v2617, 0
      %2624 = vmatprep.subr.bf16.mxu0 0
      %2625 = vmatpush1.bf16.msra.mxu0 %v2622
      %2626 = vmatprep.subr.bf16.mxu0 0
      %2627 = vmatpush1.bf16.msra.mxu0 0
      %2628 = vmatprep.subr.bf16.mxu0 0
      %2629 = vmatpush1.bf16.msra.mxu0 0
      %2630 = vmatprep.subr.bf16.mxu0 0
      %2631 = vmatpush1.bf16.msra.mxu0 0
      %2632 = vmatprep.subr.bf16.mxu0 0
      %2633 = vmatpush1.bf16.msra.mxu0 0
      %2634 = vmatprep.subr.bf16.mxu0 0
      %2635 = vmatpush1.bf16.msra.mxu0 0
      %2636 = vmatprep.subr.bf16.mxu0 0
      %2637 = vmatpush1.bf16.msra.mxu0 0
      %2638 = vmatprep.subr.bf16.mxu0 0
      %2639 = vmatpush1.bf16.msra.mxu0 0
      %2640 = vmatprep.subr.bf16.mxu0 0
      %2641 = vmatpush1.bf16.msra.mxu0 0
      %2642 = vmatprep.subr.bf16.mxu0 0
      %2643 = vmatpush1.bf16.msra.mxu0 0
      %2644 = vmatprep.subr.bf16.mxu0 0
      %2645 = vmatpush1.bf16.msra.mxu0 0
      %2646 = vmatprep.subr.bf16.mxu0 0
      %2647 = vmatpush1.bf16.msra.mxu0 0
      %2648 = vmatprep.subr.bf16.mxu0 0
      %2649 = vmatpush1.bf16.msra.mxu0 0
      %2650 = vmatprep.subr.bf16.mxu0 0
      %2651 = vmatpush1.bf16.msra.mxu0 0
      %2652 = vmatprep.subr.bf16.mxu0 0
      %2653 = vmatpush1.bf16.msra.mxu0 0
      %2654 = vmatprep.subr.bf16.mxu0 0
      %2655 = vmatpush1.bf16.msra.mxu0 0
      %2656 = vmatprep.mubr.bf16.mxu0 0
      %2657 = vmatmul.mubr.bf16.gmra.mrb[0].mxu0 %v2619
      %v2658 = vpop.f32.mrb[0].mxu0
      %v2659 = vadd.f32 0.0, %v2658
      %v2660 = vpop.f32.mrb[0].mxu0
      %v2661 = vpop.f32.mrb[0].mxu0
      %v2662 = vadd.f32 0.0, %v2661
      %v2663 = vpop.f32.mrb[0].mxu0
      %2664 = vdwg.mxu0
      %2665 = vrot.lane.b32.xlu0 %v997, 64
      %v2666 = vpop.permute.xlu0 %2665
      %v2668 = vsel %vm1804, %v2168, 0
      %v2671 = vsel %vm2179, %v2666, 0
      %2673 = vmatprep.subr.bf16.mxu0 0
      %2674 = vmatpush1.bf16.msra.mxu0 %v2671
      %2675 = vmatprep.subr.bf16.mxu0 0
      %2676 = vmatpush1.bf16.msra.mxu0 0
      %2677 = vmatprep.subr.bf16.mxu0 0
      %2678 = vmatpush1.bf16.msra.mxu0 0
      %2679 = vmatprep.subr.bf16.mxu0 0
      %2680 = vmatpush1.bf16.msra.mxu0 0
      %2681 = vmatprep.subr.bf16.mxu0 0
      %2682 = vmatpush1.bf16.msra.mxu0 0
      %2683 = vmatprep.subr.bf16.mxu0 0
      %2684 = vmatpush1.bf16.msra.mxu0 0
      %2685 = vmatprep.subr.bf16.mxu0 0
      %2686 = vmatpush1.bf16.msra.mxu0 0
      %2687 = vmatprep.subr.bf16.mxu0 0
      %2688 = vmatpush1.bf16.msra.mxu0 0
      %2689 = vmatprep.subr.bf16.mxu0 0
      %2690 = vmatpush1.bf16.msra.mxu0 0
      %2691 = vmatprep.subr.bf16.mxu0 0
      %2692 = vmatpush1.bf16.msra.mxu0 0
      %2693 = vmatprep.subr.bf16.mxu0 0
      %2694 = vmatpush1.bf16.msra.mxu0 0
      %2695 = vmatprep.subr.bf16.mxu0 0
      %2696 = vmatpush1.bf16.msra.mxu0 0
      %2697 = vmatprep.subr.bf16.mxu0 0
      %2698 = vmatpush1.bf16.msra.mxu0 0
      %2699 = vmatprep.subr.bf16.mxu0 0
      %2700 = vmatpush1.bf16.msra.mxu0 0
      %2701 = vmatprep.subr.bf16.mxu0 0
      %2702 = vmatpush1.bf16.msra.mxu0 0
      %2703 = vmatprep.subr.bf16.mxu0 0
      %2704 = vmatpush1.bf16.msra.mxu0 0
      %2705 = vmatprep.mubr.bf16.mxu0 0
      %2706 = vmatmul.mubr.bf16.gmra.mrb[0].mxu0 %v2668
      %v2707 = vpop.f32.mrb[0].mxu0
      %v2708 = vadd.f32 0.0, %v2707
      %v2709 = vpop.f32.mrb[0].mxu0
      %v2710 = vpop.f32.mrb[0].mxu0
      %v2711 = vadd.f32 0.0, %v2710
      %v2712 = vpop.f32.mrb[0].mxu0
      %2713 = vdwg.mxu0
      %2714 = vrot.lane.b32.xlu0 %v998, 64
      %v2715 = vpop.permute.xlu0 %2714
      %v2717 = vsel %vm1804, %v2169, 0
      %v2720 = vsel %vm2179, %v2715, 0
      %2722 = vmatprep.subr.bf16.mxu0 0
      %2723 = vmatpush1.bf16.msra.mxu0 %v2720
      %2724 = vmatprep.subr.bf16.mxu0 0
      %2725 = vmatpush1.bf16.msra.mxu0 0
      %2726 = vmatprep.subr.bf16.mxu0 0
      %2727 = vmatpush1.bf16.msra.mxu0 0
      %2728 = vmatprep.subr.bf16.mxu0 0
      %2729 = vmatpush1.bf16.msra.mxu0 0
      %2730 = vmatprep.subr.bf16.mxu0 0
      %2731 = vmatpush1.bf16.msra.mxu0 0
      %2732 = vmatprep.subr.bf16.mxu0 0
      %2733 = vmatpush1.bf16.msra.mxu0 0
      %2734 = vmatprep.subr.bf16.mxu0 0
      %2735 = vmatpush1.bf16.msra.mxu0 0
      %2736 = vmatprep.subr.bf16.mxu0 0
      %2737 = vmatpush1.bf16.msra.mxu0 0
      %2738 = vmatprep.subr.bf16.mxu0 0
      %2739 = vmatpush1.bf16.msra.mxu0 0
      %2740 = vmatprep.subr.bf16.mxu0 0
      %2741 = vmatpush1.bf16.msra.mxu0 0
      %2742 = vmatprep.subr.bf16.mxu0 0
      %2743 = vmatpush1.bf16.msra.mxu0 0
      %2744 = vmatprep.subr.bf16.mxu0 0
      %2745 = vmatpush1.bf16.msra.mxu0 0
      %2746 = vmatprep.subr.bf16.mxu0 0
      %2747 = vmatpush1.bf16.msra.mxu0 0
      %2748 = vmatprep.subr.bf16.mxu0 0
      %2749 = vmatpush1.bf16.msra.mxu0 0
      %2750 = vmatprep.subr.bf16.mxu0 0
      %2751 = vmatpush1.bf16.msra.mxu0 0
      %2752 = vmatprep.subr.bf16.mxu0 0
      %2753 = vmatpush1.bf16.msra.mxu0 0
      %2754 = vmatprep.mubr.bf16.mxu0 0
      %2755 = vmatmul.mubr.bf16.gmra.mrb[0].mxu0 %v2717
      %v2756 = vpop.f32.mrb[0].mxu0
      %v2757 = vadd.f32 0.0, %v2756
      %v2758 = vpop.f32.mrb[0].mxu0
      %v2759 = vpop.f32.mrb[0].mxu0
      %v2760 = vadd.f32 0.0, %v2759
      %v2761 = vpop.f32.mrb[0].mxu0
      %2762 = vdwg.mxu0
      %2763 = vrot.lane.b32.xlu0 %v999, 64
      %v2764 = vpop.permute.xlu0 %2763
      %v2766 = vsel %vm1804, %v2170, 0
      %v2769 = vsel %vm2179, %v2764, 0
      %2771 = vmatprep.subr.bf16.mxu0 0
      %2772 = vmatpush1.bf16.msra.mxu0 %v2769
      %2773 = vmatprep.subr.bf16.mxu0 0
      %2774 = vmatpush1.bf16.msra.mxu0 0
      %2775 = vmatprep.subr.bf16.mxu0 0
      %2776 = vmatpush1.bf16.msra.mxu0 0
      %2777 = vmatprep.subr.bf16.mxu0 0
      %2778 = vmatpush1.bf16.msra.mxu0 0
      %2779 = vmatprep.subr.bf16.mxu0 0
      %2780 = vmatpush1.bf16.msra.mxu0 0
      %2781 = vmatprep.subr.bf16.mxu0 0
      %2782 = vmatpush1.bf16.msra.mxu0 0
      %2783 = vmatprep.subr.bf16.mxu0 0
      %2784 = vmatpush1.bf16.msra.mxu0 0
      %2785 = vmatprep.subr.bf16.mxu0 0
      %2786 = vmatpush1.bf16.msra.mxu0 0
      %2787 = vmatprep.subr.bf16.mxu0 0
      %2788 = vmatpush1.bf16.msra.mxu0 0
      %2789 = vmatprep.subr.bf16.mxu0 0
      %2790 = vmatpush1.bf16.msra.mxu0 0
      %2791 = vmatprep.subr.bf16.mxu0 0
      %2792 = vmatpush1.bf16.msra.mxu0 0
      %2793 = vmatprep.subr.bf16.mxu0 0
      %2794 = vmatpush1.bf16.msra.mxu0 0
      %2795 = vmatprep.subr.bf16.mxu0 0
      %2796 = vmatpush1.bf16.msra.mxu0 0
      %2797 = vmatprep.subr.bf16.mxu0 0
      %2798 = vmatpush1.bf16.msra.mxu0 0
      %2799 = vmatprep.subr.bf16.mxu0 0
      %2800 = vmatpush1.bf16.msra.mxu0 0
      %2801 = vmatprep.subr.bf16.mxu0 0
      %2802 = vmatpush1.bf16.msra.mxu0 0
      %2803 = vmatprep.mubr.bf16.mxu0 0
      %2804 = vmatmul.mubr.bf16.gmra.mrb[0].mxu0 %v2766
      %v2805 = vpop.f32.mrb[0].mxu0
      %v2806 = vadd.f32 0.0, %v2805
      %v2807 = vpop.f32.mrb[0].mxu0
      %v2808 = vpop.f32.mrb[0].mxu0
      %v2809 = vadd.f32 0.0, %v2808
      %v2810 = vpop.f32.mrb[0].mxu0
      %2811 = vdwg.mxu0
      %2812 = vrot.lane.b32.xlu0 %v1000, 64
      %v2813 = vpop.permute.xlu0 %2812
      %v2815 = vsel %vm1804, %v2171, 0
      %v2818 = vsel %vm2179, %v2813, 0
      %2820 = vmatprep.subr.bf16.mxu0 0
      %2821 = vmatpush1.bf16.msra.mxu0 %v2818
      %2822 = vmatprep.subr.bf16.mxu0 0
      %2823 = vmatpush1.bf16.msra.mxu0 0
      %2824 = vmatprep.subr.bf16.mxu0 0
      %2825 = vmatpush1.bf16.msra.mxu0 0
      %2826 = vmatprep.subr.bf16.mxu0 0
      %2827 = vmatpush1.bf16.msra.mxu0 0
      %2828 = vmatprep.subr.bf16.mxu0 0
      %2829 = vmatpush1.bf16.msra.mxu0 0
      %2830 = vmatprep.subr.bf16.mxu0 0
      %2831 = vmatpush1.bf16.msra.mxu0 0
      %2832 = vmatprep.subr.bf16.mxu0 0
      %2833 = vmatpush1.bf16.msra.mxu0 0
      %2834 = vmatprep.subr.bf16.mxu0 0
      %2835 = vmatpush1.bf16.msra.mxu0 0
      %2836 = vmatprep.subr.bf16.mxu0 0
      %2837 = vmatpush1.bf16.msra.mxu0 0
      %2838 = vmatprep.subr.bf16.mxu0 0
      %2839 = vmatpush1.bf16.msra.mxu0 0
      %2840 = vmatprep.subr.bf16.mxu0 0
      %2841 = vmatpush1.bf16.msra.mxu0 0
      %2842 = vmatprep.subr.bf16.mxu0 0
      %2843 = vmatpush1.bf16.msra.mxu0 0
      %2844 = vmatprep.subr.bf16.mxu0 0
      %2845 = vmatpush1.bf16.msra.mxu0 0
      %2846 = vmatprep.subr.bf16.mxu0 0
      %2847 = vmatpush1.bf16.msra.mxu0 0
      %2848 = vmatprep.subr.bf16.mxu0 0
      %2849 = vmatpush1.bf16.msra.mxu0 0
      %2850 = vmatprep.subr.bf16.mxu0 0
      %2851 = vmatpush1.bf16.msra.mxu0 0
      %2852 = vmatprep.mubr.bf16.mxu0 0
      %2853 = vmatmul.mubr.bf16.gmra.mrb[0].mxu0 %v2815
      %v2854 = vpop.f32.mrb[0].mxu0
      %v2855 = vadd.f32 0.0, %v2854
      %v2856 = vpop.f32.mrb[0].mxu0
      %v2857 = vpop.f32.mrb[0].mxu0
      %v2858 = vadd.f32 0.0, %v2857
      %v2859 = vpop.f32.mrb[0].mxu0
      %2860 = vdwg.mxu0
      %2861 = vrot.lane.b32.xlu0 %v1001, 64
      %v2862 = vpop.permute.xlu0 %2861
      %v2864 = vsel %vm1804, %v2172, 0
      %v2867 = vsel %vm2179, %v2862, 0
      %2869 = vmatprep.subr.bf16.mxu0 0
      %2870 = vmatpush1.bf16.msra.mxu0 %v2867
      %2871 = vmatprep.subr.bf16.mxu0 0
      %2872 = vmatpush1.bf16.msra.mxu0 0
      %2873 = vmatprep.subr.bf16.mxu0 0
      %2874 = vmatpush1.bf16.msra.mxu0 0
      %2875 = vmatprep.subr.bf16.mxu0 0
      %2876 = vmatpush1.bf16.msra.mxu0 0
      %2877 = vmatprep.subr.bf16.mxu0 0
      %2878 = vmatpush1.bf16.msra.mxu0 0
      %2879 = vmatprep.subr.bf16.mxu0 0
      %2880 = vmatpush1.bf16.msra.mxu0 0
      %2881 = vmatprep.subr.bf16.mxu0 0
      %2882 = vmatpush1.bf16.msra.mxu0 0
      %2883 = vmatprep.subr.bf16.mxu0 0
      %2884 = vmatpush1.bf16.msra.mxu0 0
      %2885 = vmatprep.subr.bf16.mxu0 0
      %2886 = vmatpush1.bf16.msra.mxu0 0
      %2887 = vmatprep.subr.bf16.mxu0 0
      %2888 = vmatpush1.bf16.msra.mxu0 0
      %2889 = vmatprep.subr.bf16.mxu0 0
      %2890 = vmatpush1.bf16.msra.mxu0 0
      %2891 = vmatprep.subr.bf16.mxu0 0
      %2892 = vmatpush1.bf16.msra.mxu0 0
      %2893 = vmatprep.subr.bf16.mxu0 0
      %2894 = vmatpush1.bf16.msra.mxu0 0
      %2895 = vmatprep.subr.bf16.mxu0 0
      %2896 = vmatpush1.bf16.msra.mxu0 0
      %2897 = vmatprep.subr.bf16.mxu0 0
      %2898 = vmatpush1.bf16.msra.mxu0 0
      %2899 = vmatprep.subr.bf16.mxu0 0
      %2900 = vmatpush1.bf16.msra.mxu0 0
      %2901 = vmatprep.mubr.bf16.mxu0 0
      %2902 = vmatmul.mubr.bf16.gmra.mrb[0].mxu0 %v2864
      %v2903 = vpop.f32.mrb[0].mxu0
      %v2904 = vadd.f32 0.0, %v2903
      %v2905 = vpop.f32.mrb[0].mxu0
      %v2906 = vpop.f32.mrb[0].mxu0
      %v2907 = vadd.f32 0.0, %v2906
      %v2908 = vpop.f32.mrb[0].mxu0
      %2909 = vdwg.mxu0
      %2910 = vrot.lane.b32.xlu0 %v1002, 64
      %v2911 = vpop.permute.xlu0 %2910
      %v2913 = vsel %vm1804, %v2173, 0
      %v2916 = vsel %vm2179, %v2911, 0
      %2918 = vmatprep.subr.bf16.mxu0 0
      %2919 = vmatpush1.bf16.msra.mxu0 %v2916
      %2920 = vmatprep.subr.bf16.mxu0 0
      %2921 = vmatpush1.bf16.msra.mxu0 0
      %2922 = vmatprep.subr.bf16.mxu0 0
      %2923 = vmatpush1.bf16.msra.mxu0 0
      %2924 = vmatprep.subr.bf16.mxu0 0
      %2925 = vmatpush1.bf16.msra.mxu0 0
      %2926 = vmatprep.subr.bf16.mxu0 0
      %2927 = vmatpush1.bf16.msra.mxu0 0
      %2928 = vmatprep.subr.bf16.mxu0 0
      %2929 = vmatpush1.bf16.msra.mxu0 0
      %2930 = vmatprep.subr.bf16.mxu0 0
      %2931 = vmatpush1.bf16.msra.mxu0 0
      %2932 = vmatprep.subr.bf16.mxu0 0
      %2933 = vmatpush1.bf16.msra.mxu0 0
      %2934 = vmatprep.subr.bf16.mxu0 0
      %2935 = vmatpush1.bf16.msra.mxu0 0
      %2936 = vmatprep.subr.bf16.mxu0 0
      %2937 = vmatpush1.bf16.msra.mxu0 0
      %2938 = vmatprep.subr.bf16.mxu0 0
      %2939 = vmatpush1.bf16.msra.mxu0 0
      %2940 = vmatprep.subr.bf16.mxu0 0
      %2941 = vmatpush1.bf16.msra.mxu0 0
      %2942 = vmatprep.subr.bf16.mxu0 0
      %2943 = vmatpush1.bf16.msra.mxu0 0
      %2944 = vmatprep.subr.bf16.mxu0 0
      %2945 = vmatpush1.bf16.msra.mxu0 0
      %2946 = vmatprep.subr.bf16.mxu0 0
      %2947 = vmatpush1.bf16.msra.mxu0 0
      %2948 = vmatprep.subr.bf16.mxu0 0
      %2949 = vmatpush1.bf16.msra.mxu0 0
      %2950 = vmatprep.mubr.bf16.mxu0 0
      %2951 = vmatmul.mubr.bf16.gmra.mrb[0].mxu0 %v2913
      %v2952 = vpop.f32.mrb[0].mxu0
      %v2953 = vadd.f32 0.0, %v2952
      %v2954 = vpop.f32.mrb[0].mxu0
      %v2955 = vpop.f32.mrb[0].mxu0
      %v2956 = vadd.f32 0.0, %v2955
      %v2957 = vpop.f32.mrb[0].mxu0
      %2958 = vdwg.mxu0
      %2975 = vrot.lane.b32.xlu0 %v2610, 16
      %v2976 = vpop.permute.xlu0 %2975
      %2977 = vrot.lane.b32.xlu0 %v2613, 16
      %v2978 = vpop.permute.xlu0 %2977
      %2979 = vrot.lane.b32.xlu0 %v2659, 16
      %v2980 = vpop.permute.xlu0 %2979
      %2981 = vrot.lane.b32.xlu0 %v2662, 16
      %v2982 = vpop.permute.xlu0 %2981
      %2983 = vrot.lane.b32.xlu0 %v2708, 16
      %v2984 = vpop.permute.xlu0 %2983
      %2985 = vrot.lane.b32.xlu0 %v2711, 16
      %v2986 = vpop.permute.xlu0 %2985
      %2987 = vrot.lane.b32.xlu0 %v2757, 16
      %v2988 = vpop.permute.xlu0 %2987
      %2989 = vrot.lane.b32.xlu0 %v2760, 16
      %v2990 = vpop.permute.xlu0 %2989
      %2991 = vrot.lane.b32.xlu0 %v2806, 16
      %v2992 = vpop.permute.xlu0 %2991
      %2993 = vrot.lane.b32.xlu0 %v2809, 16
      %v2994 = vpop.permute.xlu0 %2993
      %2995 = vrot.lane.b32.xlu0 %v2855, 16
      %v2996 = vpop.permute.xlu0 %2995
      %2997 = vrot.lane.b32.xlu0 %v2858, 16
      %v2998 = vpop.permute.xlu0 %2997
      %2999 = vrot.lane.b32.xlu0 %v2904, 16
      %v3000 = vpop.permute.xlu0 %2999
      %3001 = vrot.lane.b32.xlu0 %v2907, 16
      %v3002 = vpop.permute.xlu0 %3001
      %3003 = vrot.lane.b32.xlu0 %v2953, 16
      %v3004 = vpop.permute.xlu0 %3003
      %3005 = vrot.lane.b32.xlu0 %v2956, 16
      %v3006 = vpop.permute.xlu0 %3005
      %v3023 = vsel %vm1006, %v2218, %v2976
      %v3024 = vsel %vm1006, %v2221, %v2978
      %v3025 = vsel %vm1006, %v2267, %v2980
      %v3026 = vsel %vm1006, %v2270, %v2982
      %v3027 = vsel %vm1006, %v2316, %v2984
      %v3028 = vsel %vm1006, %v2319, %v2986
      %v3029 = vsel %vm1006, %v2365, %v2988
      %v3030 = vsel %vm1006, %v2368, %v2990
      %v3031 = vsel %vm1006, %v2414, %v2992
      %v3032 = vsel %vm1006, %v2417, %v2994
      %v3033 = vsel %vm1006, %v2463, %v2996
      %v3034 = vsel %vm1006, %v2466, %v2998
      %v3035 = vsel %vm1006, %v2512, %v3000
      %v3036 = vsel %vm1006, %v2515, %v3002
      %v3037 = vsel %vm1006, %v2561, %v3004
      %v3038 = vsel %vm1006, %v2564, %v3006
      %v3055 = vcombine.high %v3023, %v3023
      %v3056 = vcombine.high %v3025, %v3025
      %v3057 = vcombine.high %v3027, %v3027
      %v3058 = vcombine.high %v3029, %v3029
      %v3059 = vcombine.high %v3031, %v3031
      %v3060 = vcombine.high %v3033, %v3033
      %v3061 = vcombine.high %v3035, %v3035
      %v3062 = vcombine.high %v3037, %v3037
      %v3063 = vcombine.low %v3023, %v3055
      %v3064 = vcombine.low %v3024, %v3025
      %v3065 = vcombine.low %v3056, %v3026
      %v3066 = vcombine.low %v3027, %v3057
      %v3067 = vcombine.low %v3028, %v3029
      %v3068 = vcombine.low %v3058, %v3030
      %v3069 = vcombine.low %v3031, %v3059
      %v3070 = vcombine.low %v3032, %v3033
      %v3071 = vcombine.low %v3060, %v3034
      %v3072 = vcombine.low %v3035, %v3061
      %v3073 = vcombine.low %v3036, %v3037
      %v3074 = vcombine.low %v3062, %v3038
      %v3087 = vpack.c.bf16 %v3064, %v3063
      %v3088 = vpack.c.bf16 %v3066, %v3065
      %v3089 = vpack.c.bf16 %v3068, %v3067
      %v3090 = vpack.c.bf16 %v3070, %v3069
      %v3091 = vpack.c.bf16 %v3072, %v3071
      %v3092 = vpack.c.bf16 %v3074, %v3073
      %v3093 = vld [vmem:[%s4] sm:$0xf]
      %v3094 = vld [vmem:[%s4 + $0x4] sm:$0xf]
      %v3095 = vld [vmem:[%s4 + $0x8] sm:$0xf]
      %v3096 = vld [vmem:[%s4 + $0xc] sm:$0xf]
      %v3097 = vld [vmem:[%s5] sm:$0x1]
      %v3099 = vlaneseq
      %v3100 = vshrl.u32 %v3099, 7
      %v3101 = vsub.s32 0, %v3100
      %v3102 = vrot.slane %v3097, %v3101
      %v3108 = vunpack.c.l.b16 %v3093
      %v3109 = vunpack.c.l.b16 %v3094
      %v3110 = vunpack.c.l.b16 %v3095
      %v3111 = vunpack.c.l.b16 %v3096
      %v3112 = vpack.c.b16 %v3109, %v3108
      %v3113 = vpack.c.b16 %v3111, %v3110
      %v3117 = vsel %vm295, %v3087, 0
      %v3120 = vsel %vm295, %v3088, 0
      %v3123 = vsel %vm295, %v3089, 0
      %v3126 = vsel %vm295, %v3090, 0
      %v3129 = vsel %vm295, %v3091, 0
      %v3132 = vsel %vm295, %v3092, 0
      %3134 = vmatprep.subr.bf16.mxu0 0
      %3135 = vmatpush1.bf16.msra.mxu0 %v3112
      %3136 = vmatprep.subr.bf16.mxu0 0
      %3137 = vmatpush1.bf16.msra.mxu0 %v3113
      %3138 = vmatprep.subr.bf16.mxu0 0
      %3139 = vmatpush1.bf16.msra.mxu0 0
      %3140 = vmatprep.subr.bf16.mxu0 0
      %3141 = vmatpush1.bf16.msra.mxu0 0
      %3142 = vmatprep.subr.bf16.mxu0 0
      %3143 = vmatpush1.bf16.msra.mxu0 0
      %3144 = vmatprep.subr.bf16.mxu0 0
      %3145 = vmatpush1.bf16.msra.mxu0 0
      %3146 = vmatprep.subr.bf16.mxu0 0
      %3147 = vmatpush1.bf16.msra.mxu0 0
      %3148 = vmatprep.subr.bf16.mxu0 0
      %3149 = vmatpush1.bf16.msra.mxu0 0
      %3150 = vmatprep.subr.bf16.mxu0 0
      %3151 = vmatpush1.bf16.msra.mxu0 0
      %3152 = vmatprep.subr.bf16.mxu0 0
      %3153 = vmatpush1.bf16.msra.mxu0 0
      %3154 = vmatprep.subr.bf16.mxu0 0
      %3155 = vmatpush1.bf16.msra.mxu0 0
      %3156 = vmatprep.subr.bf16.mxu0 0
      %3157 = vmatpush1.bf16.msra.mxu0 0
      %3158 = vmatprep.subr.bf16.mxu0 0
      %3159 = vmatpush1.bf16.msra.mxu0 0
      %3160 = vmatprep.subr.bf16.mxu0 0
      %3161 = vmatpush1.bf16.msra.mxu0 0
      %3162 = vmatprep.subr.bf16.mxu0 0
      %3163 = vmatpush1.bf16.msra.mxu0 0
      %3164 = vmatprep.subr.bf16.mxu0 0
      %3165 = vmatpush1.bf16.msra.mxu0 0
      %3166 = vmatprep.mubr.bf16.mxu0 0
      %3167 = vmatmul.mubr.bf16.gmra.mrb[0].mxu0 %v3117
      %v3168 = vpop.f32.mrb[0].mxu0
      %v3169 = vadd.f32 %v3102, %v3168
      %v3170 = vpop.f32.mrb[0].mxu0
      %v3171 = vpop.f32.mrb[0].mxu0
      %v3172 = vadd.f32 %v3102, %v3171
      %v3173 = vpop.f32.mrb[0].mxu0
      %3174 = vmatprep.mubr.bf16.mxu0 0
      %3175 = vmatmul.mubr.bf16.gmra.mrb[0].mxu0 %v3120
      %v3176 = vpop.f32.mrb[0].mxu0
      %v3177 = vadd.f32 %v3102, %v3176
      %v3178 = vpop.f32.mrb[0].mxu0
      %v3179 = vpop.f32.mrb[0].mxu0
      %v3180 = vadd.f32 %v3102, %v3179
      %v3181 = vpop.f32.mrb[0].mxu0
      %3182 = vmatprep.mubr.bf16.mxu0 0
      %3183 = vmatmul.mubr.bf16.gmra.mrb[0].mxu0 %v3123
      %v3184 = vpop.f32.mrb[0].mxu0
      %v3185 = vadd.f32 %v3102, %v3184
      %v3186 = vpop.f32.mrb[0].mxu0
      %v3187 = vpop.f32.mrb[0].mxu0
      %v3188 = vadd.f32 %v3102, %v3187
      %v3189 = vpop.f32.mrb[0].mxu0
      %3190 = vmatprep.mubr.bf16.mxu0 0
      %3191 = vmatmul.mubr.bf16.gmra.mrb[0].mxu0 %v3126
      %v3192 = vpop.f32.mrb[0].mxu0
      %v3193 = vadd.f32 %v3102, %v3192
      %v3194 = vpop.f32.mrb[0].mxu0
      %v3195 = vpop.f32.mrb[0].mxu0
      %v3196 = vadd.f32 %v3102, %v3195
      %v3197 = vpop.f32.mrb[0].mxu0
      %3198 = vmatprep.mubr.bf16.mxu0 0
      %3199 = vmatmul.mubr.bf16.gmra.mrb[0].mxu0 %v3129
      %v3200 = vpop.f32.mrb[0].mxu0
      %v3201 = vadd.f32 %v3102, %v3200
      %v3202 = vpop.f32.mrb[0].mxu0
      %v3203 = vpop.f32.mrb[0].mxu0
      %v3204 = vadd.f32 %v3102, %v3203
      %v3205 = vpop.f32.mrb[0].mxu0
      %3206 = vmatprep.mubr.bf16.mxu0 0
      %3207 = vmatmul.mubr.bf16.gmra.mrb[0].mxu0 %v3132
      %v3208 = vpop.f32.mrb[0].mxu0
      %v3209 = vadd.f32 %v3102, %v3208
      %v3210 = vpop.f32.mrb[0].mxu0
      %v3211 = vpop.f32.mrb[0].mxu0
      %v3212 = vadd.f32 %v3102, %v3211
      %v3213 = vpop.f32.mrb[0].mxu0
      %3214 = vdwg.mxu0
      %v3227 = vcombine.high %v3169, %v3169
      %v3228 = vcombine.high %v3172, %v3172
      %v3229 = vcombine.high %v3177, %v3177
      %v3230 = vcombine.high %v3180, %v3180
      %v3231 = vcombine.high %v3185, %v3185
      %v3232 = vcombine.high %v3188, %v3188
      %v3233 = vcombine.high %v3193, %v3193
      %v3234 = vcombine.high %v3196, %v3196
      %v3235 = vcombine.high %v3201, %v3201
      %v3236 = vcombine.high %v3204, %v3204
      %v3237 = vcombine.high %v3209, %v3209
      %v3238 = vcombine.high %v3212, %v3212
      %v3259 = vcombine.high %v277, %v277
      %v3260 = vcombine.high %v279, %v279
      %v3261 = vcombine.high %v281, %v281
      %v3262 = vcombine.high %v283, %v283
      %v3263 = vcombine.high %v285, %v285
      %v3264 = vcombine.high %v287, %v287
      %v3265 = vcombine.high %v289, %v289
      %v3266 = vcombine.high %v291, %v291
      %v3275 = vadd.f32 %v3169, %v277
      %v3276 = vadd.f32 %v3227, %v3259
      %v3277 = vadd.f32 %v3172, %v278
      %v3278 = vadd.f32 %v3228, %v279
      %v3279 = vadd.f32 %v3177, %v3260
      %v3280 = vadd.f32 %v3229, %v280
      %v3281 = vadd.f32 %v3180, %v281
      %v3282 = vadd.f32 %v3230, %v3261
      %v3283 = vadd.f32 %v3185, %v282
      %v3284 = vadd.f32 %v3231, %v283
      %v3285 = vadd.f32 %v3188, %v3262
      %v3286 = vadd.f32 %v3232, %v284
      %v3287 = vadd.f32 %v3193, %v285
      %v3288 = vadd.f32 %v3233, %v3263
      %v3289 = vadd.f32 %v3196, %v286
      %v3290 = vadd.f32 %v3234, %v287
      %v3291 = vadd.f32 %v3201, %v3264
      %v3292 = vadd.f32 %v3235, %v288
      %v3293 = vadd.f32 %v3204, %v289
      %v3294 = vadd.f32 %v3236, %v3265
      %v3295 = vadd.f32 %v3209, %v290
      %v3296 = vadd.f32 %v3237, %v291
      %v3297 = vadd.f32 %v3212, %v3266
      %v3298 = vadd.f32 %v3238, %v292
      %v3315 = vcombine.low %v3275, %v3276
      %v3316 = vcombine.low %v3278, %v3279
      %v3317 = vcombine.low %v3281, %v3282
      %v3318 = vcombine.low %v3284, %v3285
      %v3319 = vcombine.low %v3287, %v3288
      %v3320 = vcombine.low %v3290, %v3291
      %v3321 = vcombine.low %v3293, %v3294
      %v3322 = vcombine.low %v3296, %v3297
      %v3331 = vpack.c.bf16 %v3277, %v3315
      %v3332 = vpack.c.bf16 %v3280, %v3316
      %v3333 = vpack.c.bf16 %v3283, %v3317
      %v3334 = vpack.c.bf16 %v3286, %v3318
      %v3335 = vpack.c.bf16 %v3289, %v3319
      %v3336 = vpack.c.bf16 %v3292, %v3320
      %v3337 = vpack.c.bf16 %v3295, %v3321
      %v3338 = vpack.c.bf16 %v3298, %v3322
      %v3347 = vunpack.c.l.b16 %v3331
      %v3348 = vunpack.c.h.b16 %v3331
      %v3349 = vunpack.c.l.b16 %v3332
      %v3350 = vunpack.c.h.b16 %v3332
      %v3351 = vunpack.c.l.b16 %v3333
      %v3352 = vunpack.c.h.b16 %v3333
      %v3353 = vunpack.c.l.b16 %v3334
      %v3354 = vunpack.c.h.b16 %v3334
      %v3355 = vunpack.c.l.b16 %v3335
      %v3356 = vunpack.c.h.b16 %v3335
      %v3357 = vunpack.c.l.b16 %v3336
      %v3358 = vunpack.c.h.b16 %v3336
      %v3359 = vunpack.c.l.b16 %v3337
      %v3360 = vunpack.c.h.b16 %v3337
      %v3361 = vunpack.c.l.b16 %v3338
      %v3362 = vunpack.c.h.b16 %v3338
      %v3363 = vpack.c.b16 %v3347, %v3347
      %v3364 = vpack.c.b16 %v3348, %v3348
      %v3365 = vpack.c.b16 %v3349, %v3349
      %v3366 = vpack.c.b16 %v3350, %v3350
      %v3367 = vpack.c.b16 %v3351, %v3351
      %v3368 = vpack.c.b16 %v3352, %v3352
      %v3369 = vpack.c.b16 %v3353, %v3353
      %v3370 = vpack.c.b16 %v3354, %v3354
      %v3371 = vpack.c.b16 %v3355, %v3355
      %v3372 = vpack.c.b16 %v3356, %v3356
      %v3373 = vpack.c.b16 %v3357, %v3357
      %v3374 = vpack.c.b16 %v3358, %v3358
      %v3375 = vpack.c.b16 %v3359, %v3359
      %v3376 = vpack.c.b16 %v3360, %v3360
      %v3377 = vpack.c.b16 %v3361, %v3361
      %v3378 = vpack.c.b16 %v3362, %v3362
      %3395 = vst.msk [vmem:[%s258] sm:$0xf] %vm299, %v3363
      %vm3396 = vcmask 254976
      %3397 = vst.msk [vmem:[%s258 + $0x4] sm:$0x3] %vm3396, %v3364
      %3398 = vst.msk [vmem:[%s258 + $0x8] sm:$0xf] %vm299, %v3365
      %3399 = vst.msk [vmem:[%s258 + $0xc] sm:$0x3] %vm3396, %v3366
      %3400 = vst.msk [vmem:[%s258 + $0x10] sm:$0xf] %vm299, %v3367
      %3401 = vst.msk [vmem:[%s258 + $0x14] sm:$0x3] %vm3396, %v3368
      %3402 = vst.msk [vmem:[%s258 + $0x18] sm:$0xf] %vm299, %v3369
      %3403 = vst.msk [vmem:[%s258 + $0x1c] sm:$0x3] %vm3396, %v3370
      %3404 = vst.msk [vmem:[%s258 + $0x20] sm:$0xf] %vm299, %v3371
      %3405 = vst.msk [vmem:[%s258 + $0x24] sm:$0x3] %vm3396, %v3372
      %3406 = vst.msk [vmem:[%s258 + $0x28] sm:$0xf] %vm299, %v3373
      %3407 = vst.msk [vmem:[%s258 + $0x2c] sm:$0x3] %vm3396, %v3374
      %3408 = vst.msk [vmem:[%s258 + $0x30] sm:$0xf] %vm299, %v3375
      %3409 = vst.msk [vmem:[%s258 + $0x34] sm:$0x3] %vm3396, %v3376
      %3410 = vst.msk [vmem:[%s258 + $0x38] sm:$0xf] %vm299, %v3377
      %3411 = vst.msk [vmem:[%s258 + $0x3c] sm:$0x3] %vm3396, %v3378
      %s3412 = smul.u32 8, %s17
      %p3413 = scmp.lt.s32.totalorder %s3412, 31
      %s3414 = scalar_select %p3413, %s3412, 31
      %s3415 = smul.addr %s3414, 2
      %s3416 = smul.addr %s3415, 4
      %s3417 = scalar_lea.vmem %s6, %s3416
      // Predicated region
      $region45: #{tsvit_forward.8} parent=43 // pred_check
        %p3418 = pneg %p166
      $region46: #{tsvit_forward.8} parent=43 // pred_check_branch
        %3420 = sbr.rel (%p3418) target = $region48
      $region47: #{tsvit_forward.8} parent=43 // pred_region
        %s3421 = smul.u32 8, %s17
      $region48: #{tsvit_forward.8} parent=43 // pred_fallthru
        _
    $region44: #{tsvit_forward.8} parent=5 // pred_fallthru
      _
    %p3422 = scmp.le.s32.totalorder 2, %s12
    // Predicated region
    $region49: #{tsvit_forward.8} parent=5 // pred_check
      %p3423 = pneg %p3422
    $region50: #{tsvit_forward.8} parent=5 // pred_check_branch
      %3425 = sbr.rel (%p3423) target = $region52
    $region51: #{tsvit_forward.8} parent=5 // pred_region
      %s3426 = ssub.s32 %s12, 2
      // Predicated region
      $region53: #{tsvit_forward.8} parent=51 // pred_check
        %p3427 = pneg %p172
      $region54: #{tsvit_forward.8} parent=51 // pred_check_branch
        %3429 = sbr.rel (%p3427) target = $region56
      $region55: #{tsvit_forward.8} parent=51 // pred_region
        %s3430 = smul.u32 8, %s18
        %p3431 = scmp.lt.s32.totalorder %s3430, 31
        %s3432 = scalar_select %p3431, %s3430, 31
        %s3433 = smul.addr %s3432, 2
        %s3434 = smul.addr %s3433, 4
        %s3435 = scalar_lea.vmem %s6, %s3434
      $region56: #{tsvit_forward.8} parent=51 // pred_fallthru
        _
    $region52: #{tsvit_forward.8} parent=5 // pred_fallthru
      _
  $region6: #{tsvit_forward.8} parent=0 // loop_footer
    %s16 = sadd.s32 1, %s12
  $region7: #{tsvit_forward.8} parent=0 // loop_footer_branch
    %11 = sbr.rel target = $region3
  $region8: #{tsvit_forward.8} parent=0 // loop_exit
    _

// kernel: tsvit_forward.9
$region0: #{tsvit_forward.9}
  #allocation0 [shape = 'u32[]', space=smem, size = 0x4, offset = 0x4, fixed_abs, tag = 'smem constant byte address 0x4 - core index']
  #allocation1 [shape = 'u32[144,128]{1,0:T(1,128)}', space=vmem, size = 0x12000, scoped, tag = 'internal scratch']
  %s0 = inlined_call_operand.vmem [shape: bf16[384,32], index: 0, kind: input, shape index: {}]
  %s1 = inlined_call_operand.vmem [shape: f32[1,32], index: 1, kind: input, shape index: {}]
  %s2 = inlined_call_operand.vmem [shape: f32[1,32], index: 2, kind: input, shape index: {}]
  %s3 = inlined_call_operand.vmem [shape: bf16[32,64], index: 3, kind: input, shape index: {}]
  %s4 = inlined_call_operand.vmem [shape: f32[1,64], index: 4, kind: input, shape index: {}]
  %s5 = inlined_call_operand.vmem [shape: bf16[64,32], index: 5, kind: input, shape index: {}]
  %s6 = inlined_call_operand.vmem [shape: f32[1,32], index: 6, kind: input, shape index: {}]
  %s7 = inlined_call_operand.vmem [shape: bf16[384,32], index: 7, kind: output, shape index: {}]
  %s8 = sld [smem:[#allocation0]]
  $region38: #{tsvit_forward.9} parent=0
    _
  %s10 = ssub.s32 1, %s8
  %s11 = scalar_select 0, %s10, %s8
  // Predicated region
  $region2: #{tsvit_forward.9} parent=0 // pred_check
    _
  $region3: #{tsvit_forward.9} parent=0 // pred_check_branch
    %13 = sbr.rel (0) target = $region5
  $region4: #{tsvit_forward.9} parent=0 // pred_region
    _
  $region5: #{tsvit_forward.9} parent=0 // pred_fallthru
    _
  // Predicated region
  $region6: #{tsvit_forward.9} parent=0 // pred_check
    _
  $region7: #{tsvit_forward.9} parent=0 // pred_check_branch
    %15 = sbr.rel (0) target = $region9
  $region8: #{tsvit_forward.9} parent=0 // pred_region
    _
  $region9: #{tsvit_forward.9} parent=0 // pred_fallthru
    _
  // Predicated region
  $region10: #{tsvit_forward.9} parent=0 // pred_check
    _
  $region11: #{tsvit_forward.9} parent=0 // pred_check_branch
    %17 = sbr.rel (0) target = $region13
  $region12: #{tsvit_forward.9} parent=0 // pred_region
    _
  $region13: #{tsvit_forward.9} parent=0 // pred_fallthru
    _
  // Predicated region
  $region14: #{tsvit_forward.9} parent=0 // pred_check
    _
  $region15: #{tsvit_forward.9} parent=0 // pred_check_branch
    %19 = sbr.rel (0) target = $region17
  $region16: #{tsvit_forward.9} parent=0 // pred_region
    _
  $region17: #{tsvit_forward.9} parent=0 // pred_fallthru
    _
  // Predicated region
  $region18: #{tsvit_forward.9} parent=0 // pred_check
    _
  $region19: #{tsvit_forward.9} parent=0 // pred_check_branch
    %21 = sbr.rel (0) target = $region21
  $region20: #{tsvit_forward.9} parent=0 // pred_region
    _
  $region21: #{tsvit_forward.9} parent=0 // pred_fallthru
    _
  // Predicated region
  $region22: #{tsvit_forward.9} parent=0 // pred_check
    _
  $region23: #{tsvit_forward.9} parent=0 // pred_check_branch
    %23 = sbr.rel (0) target = $region25
  $region24: #{tsvit_forward.9} parent=0 // pred_region
    _
  $region25: #{tsvit_forward.9} parent=0 // pred_fallthru
    _
  // Predicated region
  $region26: #{tsvit_forward.9} parent=0 // pred_check
    _
  $region27: #{tsvit_forward.9} parent=0 // pred_check_branch
    %25 = sbr.rel (0) target = $region29
  $region28: #{tsvit_forward.9} parent=0 // pred_region
    _
  $region29: #{tsvit_forward.9} parent=0 // pred_fallthru
    _
  %v27 = vld [vmem:[%s0] sm:$0xf]
  %v28 = vld [vmem:[%s0 + $0x4] sm:$0xf]
  %v29 = vld [vmem:[%s0 + $0x8] sm:$0xf]
  %v30 = vld [vmem:[%s0 + $0xc] sm:$0xf]
  %v31 = vld [vmem:[%s0 + $0x10] sm:$0xf]
  %v32 = vld [vmem:[%s0 + $0x14] sm:$0xf]
  %v33 = vld [vmem:[%s0 + $0x18] sm:$0xf]
  %v34 = vld [vmem:[%s0 + $0x1c] sm:$0xf]
  %v35 = vld [vmem:[%s0 + $0x20] sm:$0xf]
  %v36 = vld [vmem:[%s0 + $0x24] sm:$0xf]
  %v37 = vld [vmem:[%s0 + $0x28] sm:$0xf]
  %v38 = vld [vmem:[%s0 + $0x2c] sm:$0xf]
  %v39 = vld [vmem:[%s0 + $0x30] sm:$0xf]
  %v40 = vld [vmem:[%s0 + $0x34] sm:$0xf]
  %v41 = vld [vmem:[%s0 + $0x38] sm:$0xf]
  %v42 = vld [vmem:[%s0 + $0x3c] sm:$0xf]
  %v43 = vld [vmem:[%s0 + $0x40] sm:$0xf]
  %v44 = vld [vmem:[%s0 + $0x44] sm:$0xf]
  %v45 = vld [vmem:[%s0 + $0x48] sm:$0xf]
  %v46 = vld [vmem:[%s0 + $0x4c] sm:$0xf]
  %v47 = vld [vmem:[%s0 + $0x50] sm:$0xf]
  %v48 = vld [vmem:[%s0 + $0x54] sm:$0xf]
  %v49 = vld [vmem:[%s0 + $0x58] sm:$0xf]
  %v50 = vld [vmem:[%s0 + $0x5c] sm:$0xf]
  %v51 = vld [vmem:[%s0 + $0x60] sm:$0xf]
  %v52 = vld [vmem:[%s0 + $0x64] sm:$0xf]
  %v53 = vld [vmem:[%s0 + $0x68] sm:$0xf]
  %v54 = vld [vmem:[%s0 + $0x6c] sm:$0xf]
  %v55 = vld [vmem:[%s0 + $0x70] sm:$0xf]
  %v56 = vld [vmem:[%s0 + $0x74] sm:$0xf]
  %v57 = vld [vmem:[%s0 + $0x78] sm:$0xf]
  %v58 = vld [vmem:[%s0 + $0x7c] sm:$0xf]
  %v59 = vld [vmem:[%s0 + $0x80] sm:$0xf]
  %v60 = vld [vmem:[%s0 + $0x84] sm:$0xf]
  %v61 = vld [vmem:[%s0 + $0x88] sm:$0xf]
  %v62 = vld [vmem:[%s0 + $0x8c] sm:$0xf]
  %v63 = vld [vmem:[%s0 + $0x90] sm:$0xf]
  %v64 = vld [vmem:[%s0 + $0x94] sm:$0xf]
  %v65 = vld [vmem:[%s0 + $0x98] sm:$0xf]
  %v66 = vld [vmem:[%s0 + $0x9c] sm:$0xf]
  %v67 = vld [vmem:[%s0 + $0xa0] sm:$0xf]
  %v68 = vld [vmem:[%s0 + $0xa4] sm:$0xf]
  %v69 = vld [vmem:[%s0 + $0xa8] sm:$0xf]
  %v70 = vld [vmem:[%s0 + $0xac] sm:$0xf]
  %v71 = vld [vmem:[%s0 + $0xb0] sm:$0xf]
  %v72 = vld [vmem:[%s0 + $0xb4] sm:$0xf]
  %v73 = vld [vmem:[%s0 + $0xb8] sm:$0xf]
  %v74 = vld [vmem:[%s0 + $0xbc] sm:$0xf]
  %v75 = vunpack.c.l.bf16 %v27
  %v76 = vunpack.c.l.bf16 %v28
  %v77 = vunpack.c.l.bf16 %v29
  %v78 = vunpack.c.l.bf16 %v30
  %v79 = vunpack.c.l.bf16 %v31
  %v80 = vunpack.c.l.bf16 %v32
  %v81 = vunpack.c.l.bf16 %v33
  %v82 = vunpack.c.l.bf16 %v34
  %v83 = vunpack.c.l.bf16 %v35
  %v84 = vunpack.c.l.bf16 %v36
  %v85 = vunpack.c.l.bf16 %v37
  %v86 = vunpack.c.l.bf16 %v38
  %v87 = vunpack.c.l.bf16 %v39
  %v88 = vunpack.c.l.bf16 %v40
  %v89 = vunpack.c.l.bf16 %v41
  %v90 = vunpack.c.l.bf16 %v42
  %v91 = vunpack.c.l.bf16 %v43
  %v92 = vunpack.c.l.bf16 %v44
  %v93 = vunpack.c.l.bf16 %v45
  %v94 = vunpack.c.l.bf16 %v46
  %v95 = vunpack.c.l.bf16 %v47
  %v96 = vunpack.c.l.bf16 %v48
  %v97 = vunpack.c.l.bf16 %v49
  %v98 = vunpack.c.l.bf16 %v50
  %v99 = vunpack.c.l.bf16 %v51
  %v100 = vunpack.c.l.bf16 %v52
  %v101 = vunpack.c.l.bf16 %v53
  %v102 = vunpack.c.l.bf16 %v54
  %v103 = vunpack.c.l.bf16 %v55
  %v104 = vunpack.c.l.bf16 %v56
  %v105 = vunpack.c.l.bf16 %v57
  %v106 = vunpack.c.l.bf16 %v58
  %v107 = vunpack.c.l.bf16 %v59
  %v108 = vunpack.c.l.bf16 %v60
  %v109 = vunpack.c.l.bf16 %v61
  %v110 = vunpack.c.l.bf16 %v62
  %v111 = vunpack.c.l.bf16 %v63
  %v112 = vunpack.c.l.bf16 %v64
  %v113 = vunpack.c.l.bf16 %v65
  %v114 = vunpack.c.l.bf16 %v66
  %v115 = vunpack.c.l.bf16 %v67
  %v116 = vunpack.c.l.bf16 %v68
  %v117 = vunpack.c.l.bf16 %v69
  %v118 = vunpack.c.l.bf16 %v70
  %v119 = vunpack.c.l.bf16 %v71
  %v120 = vunpack.c.l.bf16 %v72
  %v121 = vunpack.c.l.bf16 %v73
  %v122 = vunpack.c.l.bf16 %v74
  %v123 = vld [vmem:[%s1] sm:$0x1]
  %v124 = vld [vmem:[%s2] sm:$0x1]
  %vm125 = vcmask 261120
  %v126 = vsel %vm125, %v75, 0.0
  %127 = vadd.xlane.f32.xlu0 %v126
  %v128 = vpop.xlane.xlu0 %127
  %v129 = vsel %vm125, %v76, 0.0
  %130 = vadd.xlane.f32.xlu0 %v129
  %v131 = vpop.xlane.xlu0 %130
  %v132 = vsel %vm125, %v77, 0.0
  %133 = vadd.xlane.f32.xlu0 %v132
  %v134 = vpop.xlane.xlu0 %133
  %v135 = vsel %vm125, %v78, 0.0
  %136 = vadd.xlane.f32.xlu0 %v135
  %v137 = vpop.xlane.xlu0 %136
  %v138 = vsel %vm125, %v79, 0.0
  %139 = vadd.xlane.f32.xlu0 %v138
  %v140 = vpop.xlane.xlu0 %139
  %v141 = vsel %vm125, %v80, 0.0
  %142 = vadd.xlane.f32.xlu0 %v141
  %v143 = vpop.xlane.xlu0 %142
  %v144 = vsel %vm125, %v81, 0.0
  %145 = vadd.xlane.f32.xlu0 %v144
  %v146 = vpop.xlane.xlu0 %145
  %v147 = vsel %vm125, %v82, 0.0
  %148 = vadd.xlane.f32.xlu0 %v147
  %v149 = vpop.xlane.xlu0 %148
  %v150 = vsel %vm125, %v83, 0.0
  %151 = vadd.xlane.f32.xlu0 %v150
  %v152 = vpop.xlane.xlu0 %151
  %v153 = vsel %vm125, %v84, 0.0
  %154 = vadd.xlane.f32.xlu0 %v153
  %v155 = vpop.xlane.xlu0 %154
  %v156 = vsel %vm125, %v85, 0.0
  %157 = vadd.xlane.f32.xlu0 %v156
  %v158 = vpop.xlane.xlu0 %157
  %v159 = vsel %vm125, %v86, 0.0
  %160 = vadd.xlane.f32.xlu0 %v159
  %v161 = vpop.xlane.xlu0 %160
  %v162 = vsel %vm125, %v87, 0.0
  %163 = vadd.xlane.f32.xlu0 %v162
  %v164 = vpop.xlane.xlu0 %163
  %v165 = vsel %vm125, %v88, 0.0
  %166 = vadd.xlane.f32.xlu0 %v165
  %v167 = vpop.xlane.xlu0 %166
  %v168 = vsel %vm125, %v89, 0.0
  %169 = vadd.xlane.f32.xlu0 %v168
  %v170 = vpop.xlane.xlu0 %169
  %v171 = vsel %vm125, %v90, 0.0
  %172 = vadd.xlane.f32.xlu0 %v171
  %v173 = vpop.xlane.xlu0 %172
  %v174 = vsel %vm125, %v91, 0.0
  %175 = vadd.xlane.f32.xlu0 %v174
  %v176 = vpop.xlane.xlu0 %175
  %v177 = vsel %vm125, %v92, 0.0
  %178 = vadd.xlane.f32.xlu0 %v177
  %v179 = vpop.xlane.xlu0 %178
  %v180 = vsel %vm125, %v93, 0.0
  %181 = vadd.xlane.f32.xlu0 %v180
  %v182 = vpop.xlane.xlu0 %181
  %v183 = vsel %vm125, %v94, 0.0
  %184 = vadd.xlane.f32.xlu0 %v183
  %v185 = vpop.xlane.xlu0 %184
  %v186 = vsel %vm125, %v95, 0.0
  %187 = vadd.xlane.f32.xlu0 %v186
  %v188 = vpop.xlane.xlu0 %187
  %v189 = vsel %vm125, %v96, 0.0
  %190 = vadd.xlane.f32.xlu0 %v189
  %v191 = vpop.xlane.xlu0 %190
  %v192 = vsel %vm125, %v97, 0.0
  %193 = vadd.xlane.f32.xlu0 %v192
  %v194 = vpop.xlane.xlu0 %193
  %v195 = vsel %vm125, %v98, 0.0
  %196 = vadd.xlane.f32.xlu0 %v195
  %v197 = vpop.xlane.xlu0 %196
  %v198 = vsel %vm125, %v99, 0.0
  %199 = vadd.xlane.f32.xlu0 %v198
  %v200 = vpop.xlane.xlu0 %199
  %v201 = vsel %vm125, %v100, 0.0
  %202 = vadd.xlane.f32.xlu0 %v201
  %v203 = vpop.xlane.xlu0 %202
  %v204 = vsel %vm125, %v101, 0.0
  %205 = vadd.xlane.f32.xlu0 %v204
  %v206 = vpop.xlane.xlu0 %205
  %v207 = vsel %vm125, %v102, 0.0
  %208 = vadd.xlane.f32.xlu0 %v207
  %v209 = vpop.xlane.xlu0 %208
  %v210 = vsel %vm125, %v103, 0.0
  %211 = vadd.xlane.f32.xlu0 %v210
  %v212 = vpop.xlane.xlu0 %211
  %v213 = vsel %vm125, %v104, 0.0
  %214 = vadd.xlane.f32.xlu0 %v213
  %v215 = vpop.xlane.xlu0 %214
  %v216 = vsel %vm125, %v105, 0.0
  %217 = vadd.xlane.f32.xlu0 %v216
  %v218 = vpop.xlane.xlu0 %217
  %v219 = vsel %vm125, %v106, 0.0
  %220 = vadd.xlane.f32.xlu0 %v219
  %v221 = vpop.xlane.xlu0 %220
  %v222 = vsel %vm125, %v107, 0.0
  %223 = vadd.xlane.f32.xlu0 %v222
  %v224 = vpop.xlane.xlu0 %223
  %v225 = vsel %vm125, %v108, 0.0
  %226 = vadd.xlane.f32.xlu0 %v225
  %v227 = vpop.xlane.xlu0 %226
  %v228 = vsel %vm125, %v109, 0.0
  %229 = vadd.xlane.f32.xlu0 %v228
  %v230 = vpop.xlane.xlu0 %229
  %v231 = vsel %vm125, %v110, 0.0
  %232 = vadd.xlane.f32.xlu0 %v231
  %v233 = vpop.xlane.xlu0 %232
  %v234 = vsel %vm125, %v111, 0.0
  %235 = vadd.xlane.f32.xlu0 %v234
  %v236 = vpop.xlane.xlu0 %235
  %v237 = vsel %vm125, %v112, 0.0
  %238 = vadd.xlane.f32.xlu0 %v237
  %v239 = vpop.xlane.xlu0 %238
  %v240 = vsel %vm125, %v113, 0.0
  %241 = vadd.xlane.f32.xlu0 %v240
  %v242 = vpop.xlane.xlu0 %241
  %v243 = vsel %vm125, %v114, 0.0
  %244 = vadd.xlane.f32.xlu0 %v243
  %v245 = vpop.xlane.xlu0 %244
  %v246 = vsel %vm125, %v115, 0.0
  %247 = vadd.xlane.f32.xlu0 %v246
  %v248 = vpop.xlane.xlu0 %247
  %v249 = vsel %vm125, %v116, 0.0
  %250 = vadd.xlane.f32.xlu0 %v249
  %v251 = vpop.xlane.xlu0 %250
  %v252 = vsel %vm125, %v117, 0.0
  %253 = vadd.xlane.f32.xlu0 %v252
  %v254 = vpop.xlane.xlu0 %253
  %v255 = vsel %vm125, %v118, 0.0
  %256 = vadd.xlane.f32.xlu0 %v255
  %v257 = vpop.xlane.xlu0 %256
  %v258 = vsel %vm125, %v119, 0.0
  %259 = vadd.xlane.f32.xlu0 %v258
  %v260 = vpop.xlane.xlu0 %259
  %v261 = vsel %vm125, %v120, 0.0
  %262 = vadd.xlane.f32.xlu0 %v261
  %v263 = vpop.xlane.xlu0 %262
  %v264 = vsel %vm125, %v121, 0.0
  %265 = vadd.xlane.f32.xlu0 %v264
  %v266 = vpop.xlane.xlu0 %265
  %v267 = vsel %vm125, %v122, 0.0
  %268 = vadd.xlane.f32.xlu0 %v267
  %v269 = vpop.xlane.xlu0 %268
  %v270 = vrcp.pop 32.0
  %v271 = vmul.f32 %v128, %v270
  %v272 = vmul.f32 %v131, %v270
  %v273 = vmul.f32 %v134, %v270
  %v274 = vmul.f32 %v137, %v270
  %v275 = vmul.f32 %v140, %v270
  %v276 = vmul.f32 %v143, %v270
  %v277 = vmul.f32 %v146, %v270
  %v278 = vmul.f32 %v149, %v270
  %v279 = vmul.f32 %v152, %v270
  %v280 = vmul.f32 %v155, %v270
  %v281 = vmul.f32 %v158, %v270
  %v282 = vmul.f32 %v161, %v270
  %v283 = vmul.f32 %v164, %v270
  %v284 = vmul.f32 %v167, %v270
  %v285 = vmul.f32 %v170, %v270
  %v286 = vmul.f32 %v173, %v270
  %v287 = vmul.f32 %v176, %v270
  %v288 = vmul.f32 %v179, %v270
  %v289 = vmul.f32 %v182, %v270
  %v290 = vmul.f32 %v185, %v270
  %v291 = vmul.f32 %v188, %v270
  %v292 = vmul.f32 %v191, %v270
  %v293 = vmul.f32 %v194, %v270
  %v294 = vmul.f32 %v197, %v270
  %v295 = vmul.f32 %v200, %v270
  %v296 = vmul.f32 %v203, %v270
  %v297 = vmul.f32 %v206, %v270
  %v298 = vmul.f32 %v209, %v270
  %v299 = vmul.f32 %v212, %v270
  %v300 = vmul.f32 %v215, %v270
  %v301 = vmul.f32 %v218, %v270
  %v302 = vmul.f32 %v221, %v270
  %v303 = vmul.f32 %v224, %v270
  %v304 = vmul.f32 %v227, %v270
  %v305 = vmul.f32 %v230, %v270
  %v306 = vmul.f32 %v233, %v270
  %v307 = vmul.f32 %v236, %v270
  %v308 = vmul.f32 %v239, %v270
  %v309 = vmul.f32 %v242, %v270
  %v310 = vmul.f32 %v245, %v270
  %v311 = vmul.f32 %v248, %v270
  %v312 = vmul.f32 %v251, %v270
  %v313 = vmul.f32 %v254, %v270
  %v314 = vmul.f32 %v257, %v270
  %v315 = vmul.f32 %v260, %v270
  %v316 = vmul.f32 %v263, %v270
  %v317 = vmul.f32 %v266, %v270
  %v318 = vmul.f32 %v269, %v270
  %v319 = vsub.f32 %v75, %v271
  %v320 = vsub.f32 %v76, %v272
  %v321 = vsub.f32 %v77, %v273
  %v322 = vsub.f32 %v78, %v274
  %v323 = vsub.f32 %v79, %v275
  %v324 = vsub.f32 %v80, %v276
  %v325 = vsub.f32 %v81, %v277
  %v326 = vsub.f32 %v82, %v278
  %v327 = vsub.f32 %v83, %v279
  %v328 = vsub.f32 %v84, %v280
  %v329 = vsub.f32 %v85, %v281
  %v330 = vsub.f32 %v86, %v282
  %v331 = vsub.f32 %v87, %v283
  %v332 = vsub.f32 %v88, %v284
  %v333 = vsub.f32 %v89, %v285
  %v334 = vsub.f32 %v90, %v286
  %v335 = vsub.f32 %v91, %v287
  %v336 = vsub.f32 %v92, %v288
  %v337 = vsub.f32 %v93, %v289
  %v338 = vsub.f32 %v94, %v290
  %v339 = vsub.f32 %v95, %v291
  %v340 = vsub.f32 %v96, %v292
  %v341 = vsub.f32 %v97, %v293
  %v342 = vsub.f32 %v98, %v294
  %v343 = vsub.f32 %v99, %v295
  %v344 = vsub.f32 %v100, %v296
  %v345 = vsub.f32 %v101, %v297
  %v346 = vsub.f32 %v102, %v298
  %v347 = vsub.f32 %v103, %v299
  %v348 = vsub.f32 %v104, %v300
  %v349 = vsub.f32 %v105, %v301
  %v350 = vsub.f32 %v106, %v302
  %v351 = vsub.f32 %v107, %v303
  %v352 = vsub.f32 %v108, %v304
  %v353 = vsub.f32 %v109, %v305
  %v354 = vsub.f32 %v110, %v306
  %v355 = vsub.f32 %v111, %v307
  %v356 = vsub.f32 %v112, %v308
  %v357 = vsub.f32 %v113, %v309
  %v358 = vsub.f32 %v114, %v310
  %v359 = vsub.f32 %v115, %v311
  %v360 = vsub.f32 %v116, %v312
  %v361 = vsub.f32 %v117, %v313
  %v362 = vsub.f32 %v118, %v314
  %v363 = vsub.f32 %v119, %v315
  %v364 = vsub.f32 %v120, %v316
  %v365 = vsub.f32 %v121, %v317
  %v366 = vsub.f32 %v122, %v318
  %v367 = vmul.f32 %v319, %v319
  %v368 = vmul.f32 %v320, %v320
  %v369 = vmul.f32 %v321, %v321
  %v370 = vmul.f32 %v322, %v322
  %v371 = vmul.f32 %v323, %v323
  %v372 = vmul.f32 %v324, %v324
  %v373 = vmul.f32 %v325, %v325
  %v374 = vmul.f32 %v326, %v326
  %v375 = vmul.f32 %v327, %v327
  %v376 = vmul.f32 %v328, %v328
  %v377 = vmul.f32 %v329, %v329
  %v378 = vmul.f32 %v330, %v330
  %v379 = vmul.f32 %v331, %v331
  %v380 = vmul.f32 %v332, %v332
  %v381 = vmul.f32 %v333, %v333
  %v382 = vmul.f32 %v334, %v334
  %v383 = vmul.f32 %v335, %v335
  %v384 = vmul.f32 %v336, %v336
  %v385 = vmul.f32 %v337, %v337
  %v386 = vmul.f32 %v338, %v338
  %v387 = vmul.f32 %v339, %v339
  %v388 = vmul.f32 %v340, %v340
  %v389 = vmul.f32 %v341, %v341
  %v390 = vmul.f32 %v342, %v342
  %v391 = vmul.f32 %v343, %v343
  %v392 = vmul.f32 %v344, %v344
  %v393 = vmul.f32 %v345, %v345
  %v394 = vmul.f32 %v346, %v346
  %v395 = vmul.f32 %v347, %v347
  %v396 = vmul.f32 %v348, %v348
  %v397 = vmul.f32 %v349, %v349
  %v398 = vmul.f32 %v350, %v350
  %v399 = vmul.f32 %v351, %v351
  %v400 = vmul.f32 %v352, %v352
  %v401 = vmul.f32 %v353, %v353
  %v402 = vmul.f32 %v354, %v354
  %v403 = vmul.f32 %v355, %v355
  %v404 = vmul.f32 %v356, %v356
  %v405 = vmul.f32 %v357, %v357
  %v406 = vmul.f32 %v358, %v358
  %v407 = vmul.f32 %v359, %v359
  %v408 = vmul.f32 %v360, %v360
  %v409 = vmul.f32 %v361, %v361
  %v410 = vmul.f32 %v362, %v362
  %v411 = vmul.f32 %v363, %v363
  %v412 = vmul.f32 %v364, %v364
  %v413 = vmul.f32 %v365, %v365
  %v414 = vmul.f32 %v366, %v366
  %v415 = vsel %vm125, %v367, 0.0
  %416 = vadd.xlane.f32.xlu0 %v415
  %v417 = vpop.xlane.xlu0 %416
  %v418 = vsel %vm125, %v368, 0.0
  %419 = vadd.xlane.f32.xlu0 %v418
  %v420 = vpop.xlane.xlu0 %419
  %v421 = vsel %vm125, %v369, 0.0
  %422 = vadd.xlane.f32.xlu0 %v421
  %v423 = vpop.xlane.xlu0 %422
  %v424 = vsel %vm125, %v370, 0.0
  %425 = vadd.xlane.f32.xlu0 %v424
  %v426 = vpop.xlane.xlu0 %425
  %v427 = vsel %vm125, %v371, 0.0
  %428 = vadd.xlane.f32.xlu0 %v427
  %v429 = vpop.xlane.xlu0 %428
  %v430 = vsel %vm125, %v372, 0.0
  %431 = vadd.xlane.f32.xlu0 %v430
  %v432 = vpop.xlane.xlu0 %431
  %v433 = vsel %vm125, %v373, 0.0
  %434 = vadd.xlane.f32.xlu0 %v433
  %v435 = vpop.xlane.xlu0 %434
  %v436 = vsel %vm125, %v374, 0.0
  %437 = vadd.xlane.f32.xlu0 %v436
  %v438 = vpop.xlane.xlu0 %437
  %v439 = vsel %vm125, %v375, 0.0
  %440 = vadd.xlane.f32.xlu0 %v439
  %v441 = vpop.xlane.xlu0 %440
  %v442 = vsel %vm125, %v376, 0.0
  %443 = vadd.xlane.f32.xlu0 %v442
  %v444 = vpop.xlane.xlu0 %443
  %v445 = vsel %vm125, %v377, 0.0
  %446 = vadd.xlane.f32.xlu0 %v445
  %v447 = vpop.xlane.xlu0 %446
  %v448 = vsel %vm125, %v378, 0.0
  %449 = vadd.xlane.f32.xlu0 %v448
  %v450 = vpop.xlane.xlu0 %449
  %v451 = vsel %vm125, %v379, 0.0
  %452 = vadd.xlane.f32.xlu0 %v451
  %v453 = vpop.xlane.xlu0 %452
  %v454 = vsel %vm125, %v380, 0.0
  %455 = vadd.xlane.f32.xlu0 %v454
  %v456 = vpop.xlane.xlu0 %455
  %v457 = vsel %vm125, %v381, 0.0
  %458 = vadd.xlane.f32.xlu0 %v457
  %v459 = vpop.xlane.xlu0 %458
  %v460 = vsel %vm125, %v382, 0.0
  %461 = vadd.xlane.f32.xlu0 %v460
  %v462 = vpop.xlane.xlu0 %461
  %v463 = vsel %vm125, %v383, 0.0
  %464 = vadd.xlane.f32.xlu0 %v463
  %v465 = vpop.xlane.xlu0 %464
  %v466 = vsel %vm125, %v384, 0.0
  %467 = vadd.xlane.f32.xlu0 %v466
  %v468 = vpop.xlane.xlu0 %467
  %v469 = vsel %vm125, %v385, 0.0
  %470 = vadd.xlane.f32.xlu0 %v469
  %v471 = vpop.xlane.xlu0 %470
  %v472 = vsel %vm125, %v386, 0.0
  %473 = vadd.xlane.f32.xlu0 %v472
  %v474 = vpop.xlane.xlu0 %473
  %v475 = vsel %vm125, %v387, 0.0
  %476 = vadd.xlane.f32.xlu0 %v475
  %v477 = vpop.xlane.xlu0 %476
  %v478 = vsel %vm125, %v388, 0.0
  %479 = vadd.xlane.f32.xlu0 %v478
  %v480 = vpop.xlane.xlu0 %479
  %v481 = vsel %vm125, %v389, 0.0
  %482 = vadd.xlane.f32.xlu0 %v481
  %v483 = vpop.xlane.xlu0 %482
  %v484 = vsel %vm125, %v390, 0.0
  %485 = vadd.xlane.f32.xlu0 %v484
  %v486 = vpop.xlane.xlu0 %485
  %v487 = vsel %vm125, %v391, 0.0
  %488 = vadd.xlane.f32.xlu0 %v487
  %v489 = vpop.xlane.xlu0 %488
  %v490 = vsel %vm125, %v392, 0.0
  %491 = vadd.xlane.f32.xlu0 %v490
  %v492 = vpop.xlane.xlu0 %491
  %v493 = vsel %vm125, %v393, 0.0
  %494 = vadd.xlane.f32.xlu0 %v493
  %v495 = vpop.xlane.xlu0 %494
  %v496 = vsel %vm125, %v394, 0.0
  %497 = vadd.xlane.f32.xlu0 %v496
  %v498 = vpop.xlane.xlu0 %497
  %v499 = vsel %vm125, %v395, 0.0
  %500 = vadd.xlane.f32.xlu0 %v499
  %v501 = vpop.xlane.xlu0 %500
  %v502 = vsel %vm125, %v396, 0.0
  %503 = vadd.xlane.f32.xlu0 %v502
  %v504 = vpop.xlane.xlu0 %503
  %v505 = vsel %vm125, %v397, 0.0
  %506 = vadd.xlane.f32.xlu0 %v505
  %v507 = vpop.xlane.xlu0 %506
  %v508 = vsel %vm125, %v398, 0.0
  %509 = vadd.xlane.f32.xlu0 %v508
  %v510 = vpop.xlane.xlu0 %509
  %v511 = vsel %vm125, %v399, 0.0
  %512 = vadd.xlane.f32.xlu0 %v511
  %v513 = vpop.xlane.xlu0 %512
  %v514 = vsel %vm125, %v400, 0.0
  %515 = vadd.xlane.f32.xlu0 %v514
  %v516 = vpop.xlane.xlu0 %515
  %v517 = vsel %vm125, %v401, 0.0
  %518 = vadd.xlane.f32.xlu0 %v517
  %v519 = vpop.xlane.xlu0 %518
  %v520 = vsel %vm125, %v402, 0.0
  %521 = vadd.xlane.f32.xlu0 %v520
  %v522 = vpop.xlane.xlu0 %521
  %v523 = vsel %vm125, %v403, 0.0
  %524 = vadd.xlane.f32.xlu0 %v523
  %v525 = vpop.xlane.xlu0 %524
  %v526 = vsel %vm125, %v404, 0.0
  %527 = vadd.xlane.f32.xlu0 %v526
  %v528 = vpop.xlane.xlu0 %527
  %v529 = vsel %vm125, %v405, 0.0
  %530 = vadd.xlane.f32.xlu0 %v529
  %v531 = vpop.xlane.xlu0 %530
  %v532 = vsel %vm125, %v406, 0.0
  %533 = vadd.xlane.f32.xlu0 %v532
  %v534 = vpop.xlane.xlu0 %533
  %v535 = vsel %vm125, %v407, 0.0
  %536 = vadd.xlane.f32.xlu0 %v535
  %v537 = vpop.xlane.xlu0 %536
  %v538 = vsel %vm125, %v408, 0.0
  %539 = vadd.xlane.f32.xlu0 %v538
  %v540 = vpop.xlane.xlu0 %539
  %v541 = vsel %vm125, %v409, 0.0
  %542 = vadd.xlane.f32.xlu0 %v541
  %v543 = vpop.xlane.xlu0 %542
  %v544 = vsel %vm125, %v410, 0.0
  %545 = vadd.xlane.f32.xlu0 %v544
  %v546 = vpop.xlane.xlu0 %545
  %v547 = vsel %vm125, %v411, 0.0
  %548 = vadd.xlane.f32.xlu0 %v547
  %v549 = vpop.xlane.xlu0 %548
  %v550 = vsel %vm125, %v412, 0.0
  %551 = vadd.xlane.f32.xlu0 %v550
  %v552 = vpop.xlane.xlu0 %551
  %v553 = vsel %vm125, %v413, 0.0
  %554 = vadd.xlane.f32.xlu0 %v553
  %v555 = vpop.xlane.xlu0 %554
  %v556 = vsel %vm125, %v414, 0.0
  %557 = vadd.xlane.f32.xlu0 %v556
  %v558 = vpop.xlane.xlu0 %557
  %v559 = vmul.f32 %v417, %v270
  %v560 = vmul.f32 %v420, %v270
  %v561 = vmul.f32 %v423, %v270
  %v562 = vmul.f32 %v426, %v270
  %v563 = vmul.f32 %v429, %v270
  %v564 = vmul.f32 %v432, %v270
  %v565 = vmul.f32 %v435, %v270
  %v566 = vmul.f32 %v438, %v270
  %v567 = vmul.f32 %v441, %v270
  %v568 = vmul.f32 %v444, %v270
  %v569 = vmul.f32 %v447, %v270
  %v570 = vmul.f32 %v450, %v270
  %v571 = vmul.f32 %v453, %v270
  %v572 = vmul.f32 %v456, %v270
  %v573 = vmul.f32 %v459, %v270
  %v574 = vmul.f32 %v462, %v270
  %v575 = vmul.f32 %v465, %v270
  %v576 = vmul.f32 %v468, %v270
  %v577 = vmul.f32 %v471, %v270
  %v578 = vmul.f32 %v474, %v270
  %v579 = vmul.f32 %v477, %v270
  %v580 = vmul.f32 %v480, %v270
  %v581 = vmul.f32 %v483, %v270
  %v582 = vmul.f32 %v486, %v270
  %v583 = vmul.f32 %v489, %v270
  %v584 = vmul.f32 %v492, %v270
  %v585 = vmul.f32 %v495, %v270
  %v586 = vmul.f32 %v498, %v270
  %v587 = vmul.f32 %v501, %v270
  %v588 = vmul.f32 %v504, %v270
  %v589 = vmul.f32 %v507, %v270
  %v590 = vmul.f32 %v510, %v270
  %v591 = vmul.f32 %v513, %v270
  %v592 = vmul.f32 %v516, %v270
  %v593 = vmul.f32 %v519, %v270
  %v594 = vmul.f32 %v522, %v270
  %v595 = vmul.f32 %v525, %v270
  %v596 = vmul.f32 %v528, %v270
  %v597 = vmul.f32 %v531, %v270
  %v598 = vmul.f32 %v534, %v270
  %v599 = vmul.f32 %v537, %v270
  %v600 = vmul.f32 %v540, %v270
  %v601 = vmul.f32 %v543, %v270
  %v602 = vmul.f32 %v546, %v270
  %v603 = vmul.f32 %v549, %v270
  %v604 = vmul.f32 %v552, %v270
  %v605 = vmul.f32 %v555, %v270
  %v606 = vmul.f32 %v558, %v270
  %v607 = vadd.f32 %v559, 1e-05
  %v608 = vadd.f32 %v560, 1e-05
  %v609 = vadd.f32 %v561, 1e-05
  %v610 = vadd.f32 %v562, 1e-05
  %v611 = vadd.f32 %v563, 1e-05
  %v612 = vadd.f32 %v564, 1e-05
  %v613 = vadd.f32 %v565, 1e-05
  %v614 = vadd.f32 %v566, 1e-05
  %v615 = vadd.f32 %v567, 1e-05
  %v616 = vadd.f32 %v568, 1e-05
  %v617 = vadd.f32 %v569, 1e-05
  %v618 = vadd.f32 %v570, 1e-05
  %v619 = vadd.f32 %v571, 1e-05
  %v620 = vadd.f32 %v572, 1e-05
  %v621 = vadd.f32 %v573, 1e-05
  %v622 = vadd.f32 %v574, 1e-05
  %v623 = vadd.f32 %v575, 1e-05
  %v624 = vadd.f32 %v576, 1e-05
  %v625 = vadd.f32 %v577, 1e-05
  %v626 = vadd.f32 %v578, 1e-05
  %v627 = vadd.f32 %v579, 1e-05
  %v628 = vadd.f32 %v580, 1e-05
  %v629 = vadd.f32 %v581, 1e-05
  %v630 = vadd.f32 %v582, 1e-05
  %v631 = vadd.f32 %v583, 1e-05
  %v632 = vadd.f32 %v584, 1e-05
  %v633 = vadd.f32 %v585, 1e-05
  %v634 = vadd.f32 %v586, 1e-05
  %v635 = vadd.f32 %v587, 1e-05
  %v636 = vadd.f32 %v588, 1e-05
  %v637 = vadd.f32 %v589, 1e-05
  %v638 = vadd.f32 %v590, 1e-05
  %v639 = vadd.f32 %v591, 1e-05
  %v640 = vadd.f32 %v592, 1e-05
  %v641 = vadd.f32 %v593, 1e-05
  %v642 = vadd.f32 %v594, 1e-05
  %v643 = vadd.f32 %v595, 1e-05
  %v644 = vadd.f32 %v596, 1e-05
  %v645 = vadd.f32 %v597, 1e-05
  %v646 = vadd.f32 %v598, 1e-05
  %v647 = vadd.f32 %v599, 1e-05
  %v648 = vadd.f32 %v600, 1e-05
  %v649 = vadd.f32 %v601, 1e-05
  %v650 = vadd.f32 %v602, 1e-05
  %v651 = vadd.f32 %v603, 1e-05
  %v652 = vadd.f32 %v604, 1e-05
  %v653 = vadd.f32 %v605, 1e-05
  %v654 = vadd.f32 %v606, 1e-05
  %v655 = vrsqrt.pop %v607
  %v656 = vrsqrt.pop %v608
  %v657 = vrsqrt.pop %v609
  %v658 = vrsqrt.pop %v610
  %v659 = vrsqrt.pop %v611
  %v660 = vrsqrt.pop %v612
  %v661 = vrsqrt.pop %v613
  %v662 = vrsqrt.pop %v614
  %v663 = vrsqrt.pop %v615
  %v664 = vrsqrt.pop %v616
  %v665 = vrsqrt.pop %v617
  %v666 = vrsqrt.pop %v618
  %v667 = vrsqrt.pop %v619
  %v668 = vrsqrt.pop %v620
  %v669 = vrsqrt.pop %v621
  %v670 = vrsqrt.pop %v622
  %v671 = vrsqrt.pop %v623
  %v672 = vrsqrt.pop %v624
  %v673 = vrsqrt.pop %v625
  %v674 = vrsqrt.pop %v626
  %v675 = vrsqrt.pop %v627
  %v676 = vrsqrt.pop %v628
  %v677 = vrsqrt.pop %v629
  %v678 = vrsqrt.pop %v630
  %v679 = vrsqrt.pop %v631
  %v680 = vrsqrt.pop %v632
  %v681 = vrsqrt.pop %v633
  %v682 = vrsqrt.pop %v634
  %v683 = vrsqrt.pop %v635
  %v684 = vrsqrt.pop %v636
  %v685 = vrsqrt.pop %v637
  %v686 = vrsqrt.pop %v638
  %v687 = vrsqrt.pop %v639
  %v688 = vrsqrt.pop %v640
  %v689 = vrsqrt.pop %v641
  %v690 = vrsqrt.pop %v642
  %v691 = vrsqrt.pop %v643
  %v692 = vrsqrt.pop %v644
  %v693 = vrsqrt.pop %v645
  %v694 = vrsqrt.pop %v646
  %v695 = vrsqrt.pop %v647
  %v696 = vrsqrt.pop %v648
  %v697 = vrsqrt.pop %v649
  %v698 = vrsqrt.pop %v650
  %v699 = vrsqrt.pop %v651
  %v700 = vrsqrt.pop %v652
  %v701 = vrsqrt.pop %v653
  %v702 = vrsqrt.pop %v654
  %v703 = vmul.f32 %v319, %v655
  %v704 = vmul.f32 %v320, %v656
  %v705 = vmul.f32 %v321, %v657
  %v706 = vmul.f32 %v322, %v658
  %v707 = vmul.f32 %v323, %v659
  %v708 = vmul.f32 %v324, %v660
  %v709 = vmul.f32 %v325, %v661
  %v710 = vmul.f32 %v326, %v662
  %v711 = vmul.f32 %v327, %v663
  %v712 = vmul.f32 %v328, %v664
  %v713 = vmul.f32 %v329, %v665
  %v714 = vmul.f32 %v330, %v666
  %v715 = vmul.f32 %v331, %v667
  %v716 = vmul.f32 %v332, %v668
  %v717 = vmul.f32 %v333, %v669
  %v718 = vmul.f32 %v334, %v670
  %v719 = vmul.f32 %v335, %v671
  %v720 = vmul.f32 %v336, %v672
  %v721 = vmul.f32 %v337, %v673
  %v722 = vmul.f32 %v338, %v674
  %v723 = vmul.f32 %v339, %v675
  %v724 = vmul.f32 %v340, %v676
  %v725 = vmul.f32 %v341, %v677
  %v726 = vmul.f32 %v342, %v678
  %v727 = vmul.f32 %v343, %v679
  %v728 = vmul.f32 %v344, %v680
  %v729 = vmul.f32 %v345, %v681
  %v730 = vmul.f32 %v346, %v682
  %v731 = vmul.f32 %v347, %v683
  %v732 = vmul.f32 %v348, %v684
  %v733 = vmul.f32 %v349, %v685
  %v734 = vmul.f32 %v350, %v686
  %v735 = vmul.f32 %v351, %v687
  %v736 = vmul.f32 %v352, %v688
  %v737 = vmul.f32 %v353, %v689
  %v738 = vmul.f32 %v354, %v690
  %v739 = vmul.f32 %v355, %v691
  %v740 = vmul.f32 %v356, %v692
  %v741 = vmul.f32 %v357, %v693
  %v742 = vmul.f32 %v358, %v694
  %v743 = vmul.f32 %v359, %v695
  %v744 = vmul.f32 %v360, %v696
  %v745 = vmul.f32 %v361, %v697
  %v746 = vmul.f32 %v362, %v698
  %v747 = vmul.f32 %v363, %v699
  %v748 = vmul.f32 %v364, %v700
  %v749 = vmul.f32 %v365, %v701
  %v750 = vmul.f32 %v366, %v702
  %v752 = vlaneseq
  %v753 = vshrl.u32 %v752, 7
  %v754 = vsub.s32 0, %v753
  %v755 = vrot.slane %v123, %v754
  %v757 = vmul.f32 %v703, %v755
  %v758 = vmul.f32 %v704, %v755
  %v759 = vmul.f32 %v705, %v755
  %v760 = vmul.f32 %v706, %v755
  %v761 = vmul.f32 %v707, %v755
  %v762 = vmul.f32 %v708, %v755
  %v763 = vmul.f32 %v709, %v755
  %v764 = vmul.f32 %v710, %v755
  %v765 = vmul.f32 %v711, %v755
  %v766 = vmul.f32 %v712, %v755
  %v767 = vmul.f32 %v713, %v755
  %v768 = vmul.f32 %v714, %v755
  %v769 = vmul.f32 %v715, %v755
  %v770 = vmul.f32 %v716, %v755
  %v771 = vmul.f32 %v717, %v755
  %v772 = vmul.f32 %v718, %v755
  %v773 = vmul.f32 %v719, %v755
  %v774 = vmul.f32 %v720, %v755
  %v775 = vmul.f32 %v721, %v755
  %v776 = vmul.f32 %v722, %v755
  %v777 = vmul.f32 %v723, %v755
  %v778 = vmul.f32 %v724, %v755
  %v779 = vmul.f32 %v725, %v755
  %v780 = vmul.f32 %v726, %v755
  %v781 = vmul.f32 %v727, %v755
  %v782 = vmul.f32 %v728, %v755
  %v783 = vmul.f32 %v729, %v755
  %v784 = vmul.f32 %v730, %v755
  %v785 = vmul.f32 %v731, %v755
  %v786 = vmul.f32 %v732, %v755
  %v787 = vmul.f32 %v733, %v755
  %v788 = vmul.f32 %v734, %v755
  %v789 = vmul.f32 %v735, %v755
  %v790 = vmul.f32 %v736, %v755
  %v791 = vmul.f32 %v737, %v755
  %v792 = vmul.f32 %v738, %v755
  %v793 = vmul.f32 %v739, %v755
  %v794 = vmul.f32 %v740, %v755
  %v795 = vmul.f32 %v741, %v755
  %v796 = vmul.f32 %v742, %v755
  %v797 = vmul.f32 %v743, %v755
  %v798 = vmul.f32 %v744, %v755
  %v799 = vmul.f32 %v745, %v755
  %v800 = vmul.f32 %v746, %v755
  %v801 = vmul.f32 %v747, %v755
  %v802 = vmul.f32 %v748, %v755
  %v803 = vmul.f32 %v749, %v755
  %v804 = vmul.f32 %v750, %v755
  %v806 = vlaneseq
  %v807 = vshrl.u32 %v806, 7
  %v808 = vsub.s32 0, %v807
  %v809 = vrot.slane %v124, %v808
  %v811 = vadd.f32 %v757, %v809
  %v812 = vadd.f32 %v758, %v809
  %v813 = vadd.f32 %v759, %v809
  %v814 = vadd.f32 %v760, %v809
  %v815 = vadd.f32 %v761, %v809
  %v816 = vadd.f32 %v762, %v809
  %v817 = vadd.f32 %v763, %v809
  %v818 = vadd.f32 %v764, %v809
  %v819 = vadd.f32 %v765, %v809
  %v820 = vadd.f32 %v766, %v809
  %v821 = vadd.f32 %v767, %v809
  %v822 = vadd.f32 %v768, %v809
  %v823 = vadd.f32 %v769, %v809
  %v824 = vadd.f32 %v770, %v809
  %v825 = vadd.f32 %v771, %v809
  %v826 = vadd.f32 %v772, %v809
  %v827 = vadd.f32 %v773, %v809
  %v828 = vadd.f32 %v774, %v809
  %v829 = vadd.f32 %v775, %v809
  %v830 = vadd.f32 %v776, %v809
  %v831 = vadd.f32 %v777, %v809
  %v832 = vadd.f32 %v778, %v809
  %v833 = vadd.f32 %v779, %v809
  %v834 = vadd.f32 %v780, %v809
  %v835 = vadd.f32 %v781, %v809
  %v836 = vadd.f32 %v782, %v809
  %v837 = vadd.f32 %v783, %v809
  %v838 = vadd.f32 %v784, %v809
  %v839 = vadd.f32 %v785, %v809
  %v840 = vadd.f32 %v786, %v809
  %v841 = vadd.f32 %v787, %v809
  %v842 = vadd.f32 %v788, %v809
  %v843 = vadd.f32 %v789, %v809
  %v844 = vadd.f32 %v790, %v809
  %v845 = vadd.f32 %v791, %v809
  %v846 = vadd.f32 %v792, %v809
  %v847 = vadd.f32 %v793, %v809
  %v848 = vadd.f32 %v794, %v809
  %v849 = vadd.f32 %v795, %v809
  %v850 = vadd.f32 %v796, %v809
  %v851 = vadd.f32 %v797, %v809
  %v852 = vadd.f32 %v798, %v809
  %v853 = vadd.f32 %v799, %v809
  %v854 = vadd.f32 %v800, %v809
  %v855 = vadd.f32 %v801, %v809
  %v856 = vadd.f32 %v802, %v809
  %v857 = vadd.f32 %v803, %v809
  %v858 = vadd.f32 %v804, %v809
  %v859 = vpack.c.bf16 %v812, %v811
  %v860 = vpack.c.bf16 %v814, %v813
  %v861 = vpack.c.bf16 %v816, %v815
  %v862 = vpack.c.bf16 %v818, %v817
  %v863 = vpack.c.bf16 %v820, %v819
  %v864 = vpack.c.bf16 %v822, %v821
  %v865 = vpack.c.bf16 %v824, %v823
  %v866 = vpack.c.bf16 %v826, %v825
  %v867 = vpack.c.bf16 %v828, %v827
  %v868 = vpack.c.bf16 %v830, %v829
  %v869 = vpack.c.bf16 %v832, %v831
  %v870 = vpack.c.bf16 %v834, %v833
  %v871 = vpack.c.bf16 %v836, %v835
  %v872 = vpack.c.bf16 %v838, %v837
  %v873 = vpack.c.bf16 %v840, %v839
  %v874 = vpack.c.bf16 %v842, %v841
  %v875 = vpack.c.bf16 %v844, %v843
  %v876 = vpack.c.bf16 %v846, %v845
  %v877 = vpack.c.bf16 %v848, %v847
  %v878 = vpack.c.bf16 %v850, %v849
  %v879 = vpack.c.bf16 %v852, %v851
  %v880 = vpack.c.bf16 %v854, %v853
  %v881 = vpack.c.bf16 %v856, %v855
  %v882 = vpack.c.bf16 %v858, %v857
  %v883 = vld [vmem:[%s3] sm:$0xf]
  %v884 = vld [vmem:[%s3 + $0x4] sm:$0xf]
  %v885 = vld [vmem:[%s3 + $0x8] sm:$0xf]
  %v886 = vld [vmem:[%s3 + $0xc] sm:$0xf]
  %v887 = vld [vmem:[%s4] sm:$0x1]
  %v889 = vlaneseq
  %v890 = vshrl.u32 %v889, 7
  %v891 = vsub.s32 0, %v890
  %v892 = vrot.slane %v887, %v891
  %v898 = vunpack.c.l.b16 %v883
  %v899 = vunpack.c.l.b16 %v884
  %v900 = vunpack.c.l.b16 %v885
  %v901 = vunpack.c.l.b16 %v886
  %v902 = vpack.c.b16 %v899, %v898
  %v903 = vpack.c.b16 %v901, %v900
  %v907 = vsel %vm125, %v859, 0
  %v910 = vsel %vm125, %v860, 0
  %v913 = vsel %vm125, %v861, 0
  %v916 = vsel %vm125, %v862, 0
  %v919 = vsel %vm125, %v863, 0
  %v922 = vsel %vm125, %v864, 0
  %v925 = vsel %vm125, %v865, 0
  %v928 = vsel %vm125, %v866, 0
  %v931 = vsel %vm125, %v867, 0
  %v934 = vsel %vm125, %v868, 0
  %v937 = vsel %vm125, %v869, 0
  %v940 = vsel %vm125, %v870, 0
  %v943 = vsel %vm125, %v871, 0
  %v946 = vsel %vm125, %v872, 0
  %v949 = vsel %vm125, %v873, 0
  %v952 = vsel %vm125, %v874, 0
  %v955 = vsel %vm125, %v875, 0
  %v958 = vsel %vm125, %v876, 0
  %v961 = vsel %vm125, %v877, 0
  %v964 = vsel %vm125, %v878, 0
  %v967 = vsel %vm125, %v879, 0
  %v970 = vsel %vm125, %v880, 0
  %v973 = vsel %vm125, %v881, 0
  %v976 = vsel %vm125, %v882, 0
  %978 = vmatprep.subr.bf16.mxu0 0
  %979 = vmatpush1.bf16.msra.mxu0 %v902
  %980 = vmatprep.subr.bf16.mxu0 0
  %981 = vmatpush1.bf16.msra.mxu0 %v903
  %982 = vmatprep.subr.bf16.mxu0 0
  %983 = vmatpush1.bf16.msra.mxu0 0
  %984 = vmatprep.subr.bf16.mxu0 0
  %985 = vmatpush1.bf16.msra.mxu0 0
  %986 = vmatprep.subr.bf16.mxu0 0
  %987 = vmatpush1.bf16.msra.mxu0 0
  %988 = vmatprep.subr.bf16.mxu0 0
  %989 = vmatpush1.bf16.msra.mxu0 0
  %990 = vmatprep.subr.bf16.mxu0 0
  %991 = vmatpush1.bf16.msra.mxu0 0
  %992 = vmatprep.subr.bf16.mxu0 0
  %993 = vmatpush1.bf16.msra.mxu0 0
  %994 = vmatprep.subr.bf16.mxu0 0
  %995 = vmatpush1.bf16.msra.mxu0 0
  %996 = vmatprep.subr.bf16.mxu0 0
  %997 = vmatpush1.bf16.msra.mxu0 0
  %998 = vmatprep.subr.bf16.mxu0 0
  %999 = vmatpush1.bf16.msra.mxu0 0
  %1000 = vmatprep.subr.bf16.mxu0 0
  %1001 = vmatpush1.bf16.msra.mxu0 0
  %1002 = vmatprep.subr.bf16.mxu0 0
  %1003 = vmatpush1.bf16.msra.mxu0 0
  %1004 = vmatprep.subr.bf16.mxu0 0
  %1005 = vmatpush1.bf16.msra.mxu0 0
  %1006 = vmatprep.subr.bf16.mxu0 0
  %1007 = vmatpush1.bf16.msra.mxu0 0
  %1008 = vmatprep.subr.bf16.mxu0 0
  %1009 = vmatpush1.bf16.msra.mxu0 0
  %1010 = vmatprep.mubr.bf16.mxu0 0
  %1011 = vmatmul.mubr.bf16.gmra.mrb[0].mxu0 %v907
  %v1012 = vpop.f32.mrb[0].mxu0
  %v1013 = vadd.f32 %v892, %v1012
  %v1014 = vpop.f32.mrb[0].mxu0
  %v1015 = vpop.f32.mrb[0].mxu0
  %v1016 = vadd.f32 %v892, %v1015
  %v1017 = vpop.f32.mrb[0].mxu0
  %1018 = vmatprep.mubr.bf16.mxu0 0
  %1019 = vmatmul.mubr.bf16.gmra.mrb[0].mxu0 %v910
  %v1020 = vpop.f32.mrb[0].mxu0
  %v1021 = vadd.f32 %v892, %v1020
  %v1022 = vpop.f32.mrb[0].mxu0
  %v1023 = vpop.f32.mrb[0].mxu0
  %v1024 = vadd.f32 %v892, %v1023
  %v1025 = vpop.f32.mrb[0].mxu0
  %1026 = vmatprep.mubr.bf16.mxu0 0
  %1027 = vmatmul.mubr.bf16.gmra.mrb[0].mxu0 %v913
  %v1028 = vpop.f32.mrb[0].mxu0
  %v1029 = vadd.f32 %v892, %v1028
  %v1030 = vpop.f32.mrb[0].mxu0
  %v1031 = vpop.f32.mrb[0].mxu0
  %v1032 = vadd.f32 %v892, %v1031
  %v1033 = vpop.f32.mrb[0].mxu0
  %1034 = vmatprep.mubr.bf16.mxu0 0
  %1035 = vmatmul.mubr.bf16.gmra.mrb[0].mxu0 %v916
  %v1036 = vpop.f32.mrb[0].mxu0
  %v1037 = vadd.f32 %v892, %v1036
  %v1038 = vpop.f32.mrb[0].mxu0
  %v1039 = vpop.f32.mrb[0].mxu0
  %v1040 = vadd.f32 %v892, %v1039
  %v1041 = vpop.f32.mrb[0].mxu0
  %1042 = vmatprep.mubr.bf16.mxu0 0
  %1043 = vmatmul.mubr.bf16.gmra.mrb[0].mxu0 %v919
  %v1044 = vpop.f32.mrb[0].mxu0
  %v1045 = vadd.f32 %v892, %v1044
  %v1046 = vpop.f32.mrb[0].mxu0
  %v1047 = vpop.f32.mrb[0].mxu0
  %v1048 = vadd.f32 %v892, %v1047
  %v1049 = vpop.f32.mrb[0].mxu0
  %1050 = vmatprep.mubr.bf16.mxu0 0
  %1051 = vmatmul.mubr.bf16.gmra.mrb[0].mxu0 %v922
  %v1052 = vpop.f32.mrb[0].mxu0
  %v1053 = vadd.f32 %v892, %v1052
  %v1054 = vpop.f32.mrb[0].mxu0
  %v1055 = vpop.f32.mrb[0].mxu0
  %v1056 = vadd.f32 %v892, %v1055
  %v1057 = vpop.f32.mrb[0].mxu0
  %1058 = vmatprep.mubr.bf16.mxu0 0
  %1059 = vmatmul.mubr.bf16.gmra.mrb[0].mxu0 %v925
  %v1060 = vpop.f32.mrb[0].mxu0
  %v1061 = vadd.f32 %v892, %v1060
  %v1062 = vpop.f32.mrb[0].mxu0
  %v1063 = vpop.f32.mrb[0].mxu0
  %v1064 = vadd.f32 %v892, %v1063
  %v1065 = vpop.f32.mrb[0].mxu0
  %1066 = vmatprep.mubr.bf16.mxu0 0
  %1067 = vmatmul.mubr.bf16.gmra.mrb[0].mxu0 %v928
  %v1068 = vpop.f32.mrb[0].mxu0
  %v1069 = vadd.f32 %v892, %v1068
  %v1070 = vpop.f32.mrb[0].mxu0
  %v1071 = vpop.f32.mrb[0].mxu0
  %v1072 = vadd.f32 %v892, %v1071
  %v1073 = vpop.f32.mrb[0].mxu0
  %1074 = vmatprep.mubr.bf16.mxu0 0
  %1075 = vmatmul.mubr.bf16.gmra.mrb[0].mxu0 %v931
  %v1076 = vpop.f32.mrb[0].mxu0
  %v1077 = vadd.f32 %v892, %v1076
  %v1078 = vpop.f32.mrb[0].mxu0
  %v1079 = vpop.f32.mrb[0].mxu0
  %v1080 = vadd.f32 %v892, %v1079
  %v1081 = vpop.f32.mrb[0].mxu0
  %1082 = vmatprep.mubr.bf16.mxu0 0
  %1083 = vmatmul.mubr.bf16.gmra.mrb[0].mxu0 %v934
  %v1084 = vpop.f32.mrb[0].mxu0
  %v1085 = vadd.f32 %v892, %v1084
  %v1086 = vpop.f32.mrb[0].mxu0
  %v1087 = vpop.f32.mrb[0].mxu0
  %v1088 = vadd.f32 %v892, %v1087
  %v1089 = vpop.f32.mrb[0].mxu0
  %1090 = vmatprep.mubr.bf16.mxu0 0
  %1091 = vmatmul.mubr.bf16.gmra.mrb[0].mxu0 %v937
  %v1092 = vpop.f32.mrb[0].mxu0
  %v1093 = vadd.f32 %v892, %v1092
  %v1094 = vpop.f32.mrb[0].mxu0
  %v1095 = vpop.f32.mrb[0].mxu0
  %v1096 = vadd.f32 %v892, %v1095
  %v1097 = vpop.f32.mrb[0].mxu0
  %1098 = vmatprep.mubr.bf16.mxu0 0
  %1099 = vmatmul.mubr.bf16.gmra.mrb[0].mxu0 %v940
  %v1100 = vpop.f32.mrb[0].mxu0
  %v1101 = vadd.f32 %v892, %v1100
  %v1102 = vpop.f32.mrb[0].mxu0
  %v1103 = vpop.f32.mrb[0].mxu0
  %v1104 = vadd.f32 %v892, %v1103
  %v1105 = vpop.f32.mrb[0].mxu0
  %1106 = vmatprep.mubr.bf16.mxu0 0
  %1107 = vmatmul.mubr.bf16.gmra.mrb[0].mxu0 %v943
  %v1108 = vpop.f32.mrb[0].mxu0
  %v1109 = vadd.f32 %v892, %v1108
  %v1110 = vpop.f32.mrb[0].mxu0
  %v1111 = vpop.f32.mrb[0].mxu0
  %v1112 = vadd.f32 %v892, %v1111
  %v1113 = vpop.f32.mrb[0].mxu0
  %1114 = vmatprep.mubr.bf16.mxu0 0
  %1115 = vmatmul.mubr.bf16.gmra.mrb[0].mxu0 %v946
  %v1116 = vpop.f32.mrb[0].mxu0
  %v1117 = vadd.f32 %v892, %v1116
  %v1118 = vpop.f32.mrb[0].mxu0
  %v1119 = vpop.f32.mrb[0].mxu0
  %v1120 = vadd.f32 %v892, %v1119
  %v1121 = vpop.f32.mrb[0].mxu0
  %1122 = vmatprep.mubr.bf16.mxu0 0
  %1123 = vmatmul.mubr.bf16.gmra.mrb[0].mxu0 %v949
  %v1124 = vpop.f32.mrb[0].mxu0
  %v1125 = vadd.f32 %v892, %v1124
  %v1126 = vpop.f32.mrb[0].mxu0
  %v1127 = vpop.f32.mrb[0].mxu0
  %v1128 = vadd.f32 %v892, %v1127
  %v1129 = vpop.f32.mrb[0].mxu0
  %1130 = vmatprep.mubr.bf16.mxu0 0
  %1131 = vmatmul.mubr.bf16.gmra.mrb[0].mxu0 %v952
  %v1132 = vpop.f32.mrb[0].mxu0
  %v1133 = vadd.f32 %v892, %v1132
  %v1134 = vpop.f32.mrb[0].mxu0
  %v1135 = vpop.f32.mrb[0].mxu0
  %v1136 = vadd.f32 %v892, %v1135
  %v1137 = vpop.f32.mrb[0].mxu0
  %1138 = vmatprep.mubr.bf16.mxu0 0
  %1139 = vmatmul.mubr.bf16.gmra.mrb[0].mxu0 %v955
  %v1140 = vpop.f32.mrb[0].mxu0
  %v1141 = vadd.f32 %v892, %v1140
  %v1142 = vpop.f32.mrb[0].mxu0
  %v1143 = vpop.f32.mrb[0].mxu0
  %v1144 = vadd.f32 %v892, %v1143
  %v1145 = vpop.f32.mrb[0].mxu0
  %1146 = vmatprep.mubr.bf16.mxu0 0
  %1147 = vmatmul.mubr.bf16.gmra.mrb[0].mxu0 %v958
  %v1148 = vpop.f32.mrb[0].mxu0
  %v1149 = vadd.f32 %v892, %v1148
  %v1150 = vpop.f32.mrb[0].mxu0
  %v1151 = vpop.f32.mrb[0].mxu0
  %v1152 = vadd.f32 %v892, %v1151
  %v1153 = vpop.f32.mrb[0].mxu0
  %1154 = vmatprep.mubr.bf16.mxu0 0
  %1155 = vmatmul.mubr.bf16.gmra.mrb[0].mxu0 %v961
  %v1156 = vpop.f32.mrb[0].mxu0
  %v1157 = vadd.f32 %v892, %v1156
  %v1158 = vpop.f32.mrb[0].mxu0
  %v1159 = vpop.f32.mrb[0].mxu0
  %v1160 = vadd.f32 %v892, %v1159
  %v1161 = vpop.f32.mrb[0].mxu0
  %1162 = vmatprep.mubr.bf16.mxu0 0
  %1163 = vmatmul.mubr.bf16.gmra.mrb[0].mxu0 %v964
  %v1164 = vpop.f32.mrb[0].mxu0
  %v1165 = vadd.f32 %v892, %v1164
  %v1166 = vpop.f32.mrb[0].mxu0
  %v1167 = vpop.f32.mrb[0].mxu0
  %v1168 = vadd.f32 %v892, %v1167
  %v1169 = vpop.f32.mrb[0].mxu0
  %1170 = vmatprep.mubr.bf16.mxu0 0
  %1171 = vmatmul.mubr.bf16.gmra.mrb[0].mxu0 %v967
  %v1172 = vpop.f32.mrb[0].mxu0
  %v1173 = vadd.f32 %v892, %v1172
  %v1174 = vpop.f32.mrb[0].mxu0
  %v1175 = vpop.f32.mrb[0].mxu0
  %v1176 = vadd.f32 %v892, %v1175
  %v1177 = vpop.f32.mrb[0].mxu0
  %1178 = vmatprep.mubr.bf16.mxu0 0
  %1179 = vmatmul.mubr.bf16.gmra.mrb[0].mxu0 %v970
  %v1180 = vpop.f32.mrb[0].mxu0
  %v1181 = vadd.f32 %v892, %v1180
  %v1182 = vpop.f32.mrb[0].mxu0
  %v1183 = vpop.f32.mrb[0].mxu0
  %v1184 = vadd.f32 %v892, %v1183
  %v1185 = vpop.f32.mrb[0].mxu0
  %1186 = vmatprep.mubr.bf16.mxu0 0
  %1187 = vmatmul.mubr.bf16.gmra.mrb[0].mxu0 %v973
  %v1188 = vpop.f32.mrb[0].mxu0
  %v1189 = vadd.f32 %v892, %v1188
  %v1190 = vpop.f32.mrb[0].mxu0
  %v1191 = vpop.f32.mrb[0].mxu0
  %v1192 = vadd.f32 %v892, %v1191
  %v1193 = vpop.f32.mrb[0].mxu0
  %1194 = vmatprep.mubr.bf16.mxu0 0
  %1195 = vmatmul.mubr.bf16.gmra.mrb[0].mxu0 %v976
  %v1196 = vpop.f32.mrb[0].mxu0
  %v1197 = vadd.f32 %v892, %v1196
  %v1198 = vpop.f32.mrb[0].mxu0
  %v1199 = vpop.f32.mrb[0].mxu0
  %v1200 = vadd.f32 %v892, %v1199
  %v1201 = vpop.f32.mrb[0].mxu0
  %1202 = vdwg.mxu0
  %v1203 = vmul.f32 %v1013, 0.5
  %v1204 = vmul.f32 %v1016, 0.5
  %v1205 = vmul.f32 %v1021, 0.5
  %v1206 = vmul.f32 %v1024, 0.5
  %v1207 = vmul.f32 %v1029, 0.5
  %v1208 = vmul.f32 %v1032, 0.5
  %v1209 = vmul.f32 %v1037, 0.5
  %v1210 = vmul.f32 %v1040, 0.5
  %v1211 = vmul.f32 %v1045, 0.5
  %v1212 = vmul.f32 %v1048, 0.5
  %v1213 = vmul.f32 %v1053, 0.5
  %v1214 = vmul.f32 %v1056, 0.5
  %v1215 = vmul.f32 %v1061, 0.5
  %v1216 = vmul.f32 %v1064, 0.5
  %v1217 = vmul.f32 %v1069, 0.5
  %v1218 = vmul.f32 %v1072, 0.5
  %v1219 = vmul.f32 %v1077, 0.5
  %v1220 = vmul.f32 %v1080, 0.5
  %v1221 = vmul.f32 %v1085, 0.5
  %v1222 = vmul.f32 %v1088, 0.5
  %v1223 = vmul.f32 %v1093, 0.5
  %v1224 = vmul.f32 %v1096, 0.5
  %v1225 = vmul.f32 %v1101, 0.5
  %v1226 = vmul.f32 %v1104, 0.5
  %v1227 = vmul.f32 %v1109, 0.5
  %v1228 = vmul.f32 %v1112, 0.5
  %v1229 = vmul.f32 %v1117, 0.5
  %v1230 = vmul.f32 %v1120, 0.5
  %v1231 = vmul.f32 %v1125, 0.5
  %v1232 = vmul.f32 %v1128, 0.5
  %v1233 = vmul.f32 %v1133, 0.5
  %v1234 = vmul.f32 %v1136, 0.5
  %v1235 = vmul.f32 %v1141, 0.5
  %v1236 = vmul.f32 %v1144, 0.5
  %v1237 = vmul.f32 %v1149, 0.5
  %v1238 = vmul.f32 %v1152, 0.5
  %v1239 = vmul.f32 %v1157, 0.5
  %v1240 = vmul.f32 %v1160, 0.5
  %v1241 = vmul.f32 %v1165, 0.5
  %v1242 = vmul.f32 %v1168, 0.5
  %v1243 = vmul.f32 %v1173, 0.5
  %v1244 = vmul.f32 %v1176, 0.5
  %v1245 = vmul.f32 %v1181, 0.5
  %v1246 = vmul.f32 %v1184, 0.5
  %v1247 = vmul.f32 %v1189, 0.5
  %v1248 = vmul.f32 %v1192, 0.5
  %v1249 = vmul.f32 %v1197, 0.5
  %v1250 = vmul.f32 %v1200, 0.5
  %v1251 = vmul.f32 %v1013, 0.70710677
  %v1252 = vmul.f32 %v1016, 0.70710677
  %v1253 = vmul.f32 %v1021, 0.70710677
  %v1254 = vmul.f32 %v1024, 0.70710677
  %v1255 = vmul.f32 %v1029, 0.70710677
  %v1256 = vmul.f32 %v1032, 0.70710677
  %v1257 = vmul.f32 %v1037, 0.70710677
  %v1258 = vmul.f32 %v1040, 0.70710677
  %v1259 = vmul.f32 %v1045, 0.70710677
  %v1260 = vmul.f32 %v1048, 0.70710677
  %v1261 = vmul.f32 %v1053, 0.70710677
  %v1262 = vmul.f32 %v1056, 0.70710677
  %v1263 = vmul.f32 %v1061, 0.70710677
  %v1264 = vmul.f32 %v1064, 0.70710677
  %v1265 = vmul.f32 %v1069, 0.70710677
  %v1266 = vmul.f32 %v1072, 0.70710677
  %v1267 = vmul.f32 %v1077, 0.70710677
  %v1268 = vmul.f32 %v1080, 0.70710677
  %v1269 = vmul.f32 %v1085, 0.70710677
  %v1270 = vmul.f32 %v1088, 0.70710677
  %v1271 = vmul.f32 %v1093, 0.70710677
  %v1272 = vmul.f32 %v1096, 0.70710677
  %v1273 = vmul.f32 %v1101, 0.70710677
  %v1274 = vmul.f32 %v1104, 0.70710677
  %v1275 = vmul.f32 %v1109, 0.70710677
  %v1276 = vmul.f32 %v1112, 0.70710677
  %v1277 = vmul.f32 %v1117, 0.70710677
  %v1278 = vmul.f32 %v1120, 0.70710677
  %v1279 = vmul.f32 %v1125, 0.70710677
  %v1280 = vmul.f32 %v1128, 0.70710677
  %v1281 = vmul.f32 %v1133, 0.70710677
  %v1282 = vmul.f32 %v1136, 0.70710677
  %v1283 = vmul.f32 %v1141, 0.70710677
  %v1284 = vmul.f32 %v1144, 0.70710677
  %v1285 = vmul.f32 %v1149, 0.70710677
  %v1286 = vmul.f32 %v1152, 0.70710677
  %v1287 = vmul.f32 %v1157, 0.70710677
  %v1288 = vmul.f32 %v1160, 0.70710677
  %v1289 = vmul.f32 %v1165, 0.70710677
  %v1290 = vmul.f32 %v1168, 0.70710677
  %v1291 = vmul.f32 %v1173, 0.70710677
  %v1292 = vmul.f32 %v1176, 0.70710677
  %v1293 = vmul.f32 %v1181, 0.70710677
  %v1294 = vmul.f32 %v1184, 0.70710677
  %v1295 = vmul.f32 %v1189, 0.70710677
  %v1296 = vmul.f32 %v1192, 0.70710677
  %v1297 = vmul.f32 %v1197, 0.70710677
  %v1298 = vmul.f32 %v1200, 0.70710677
  %vm1299 = vcmp.ge.f32.partialorder %v1251, 0.0
  %vm1300 = vcmp.ge.f32.partialorder %v1252, 0.0
  %vm1301 = vcmp.ge.f32.partialorder %v1253, 0.0
  %vm1302 = vcmp.ge.f32.partialorder %v1254, 0.0
  %vm1303 = vcmp.ge.f32.partialorder %v1255, 0.0
  %vm1304 = vcmp.ge.f32.partialorder %v1256, 0.0
  %vm1305 = vcmp.ge.f32.partialorder %v1257, 0.0
  %vm1306 = vcmp.ge.f32.partialorder %v1258, 0.0
  %vm1307 = vcmp.ge.f32.partialorder %v1259, 0.0
  %vm1308 = vcmp.ge.f32.partialorder %v1260, 0.0
  %vm1309 = vcmp.ge.f32.partialorder %v1261, 0.0
  %vm1310 = vcmp.ge.f32.partialorder %v1262, 0.0
  %vm1311 = vcmp.ge.f32.partialorder %v1263, 0.0
  %vm1312 = vcmp.ge.f32.partialorder %v1264, 0.0
  %vm1313 = vcmp.ge.f32.partialorder %v1265, 0.0
  %vm1314 = vcmp.ge.f32.partialorder %v1266, 0.0
  %vm1315 = vcmp.ge.f32.partialorder %v1267, 0.0
  %vm1316 = vcmp.ge.f32.partialorder %v1268, 0.0
  %vm1317 = vcmp.ge.f32.partialorder %v1269, 0.0
  %vm1318 = vcmp.ge.f32.partialorder %v1270, 0.0
  %vm1319 = vcmp.ge.f32.partialorder %v1271, 0.0
  %vm1320 = vcmp.ge.f32.partialorder %v1272, 0.0
  %vm1321 = vcmp.ge.f32.partialorder %v1273, 0.0
  %vm1322 = vcmp.ge.f32.partialorder %v1274, 0.0
  %vm1323 = vcmp.ge.f32.partialorder %v1275, 0.0
  %vm1324 = vcmp.ge.f32.partialorder %v1276, 0.0
  %vm1325 = vcmp.ge.f32.partialorder %v1277, 0.0
  %vm1326 = vcmp.ge.f32.partialorder %v1278, 0.0
  %vm1327 = vcmp.ge.f32.partialorder %v1279, 0.0
  %vm1328 = vcmp.ge.f32.partialorder %v1280, 0.0
  %vm1329 = vcmp.ge.f32.partialorder %v1281, 0.0
  %vm1330 = vcmp.ge.f32.partialorder %v1282, 0.0
  %vm1331 = vcmp.ge.f32.partialorder %v1283, 0.0
  %vm1332 = vcmp.ge.f32.partialorder %v1284, 0.0
  %vm1333 = vcmp.ge.f32.partialorder %v1285, 0.0
  %vm1334 = vcmp.ge.f32.partialorder %v1286, 0.0
  %vm1335 = vcmp.ge.f32.partialorder %v1287, 0.0
  %vm1336 = vcmp.ge.f32.partialorder %v1288, 0.0
  %vm1337 = vcmp.ge.f32.partialorder %v1289, 0.0
  %vm1338 = vcmp.ge.f32.partialorder %v1290, 0.0
  %vm1339 = vcmp.ge.f32.partialorder %v1291, 0.0
  %vm1340 = vcmp.ge.f32.partialorder %v1292, 0.0
  %vm1341 = vcmp.ge.f32.partialorder %v1293, 0.0
  %vm1342 = vcmp.ge.f32.partialorder %v1294, 0.0
  %vm1343 = vcmp.ge.f32.partialorder %v1295, 0.0
  %vm1344 = vcmp.ge.f32.partialorder %v1296, 0.0
  %vm1345 = vcmp.ge.f32.partialorder %v1297, 0.0
  %vm1346 = vcmp.ge.f32.partialorder %v1298, 0.0
  %v1347 = vsel %vm1299, 1.0, -1.0
  %v1348 = vsel %vm1300, 1.0, -1.0
  %v1349 = vsel %vm1301, 1.0, -1.0
  %v1350 = vsel %vm1302, 1.0, -1.0
  %v1351 = vsel %vm1303, 1.0, -1.0
  %v1352 = vsel %vm1304, 1.0, -1.0
  %v1353 = vsel %vm1305, 1.0, -1.0
  %v1354 = vsel %vm1306, 1.0, -1.0
  %v1355 = vsel %vm1307, 1.0, -1.0
  %v1356 = vsel %vm1308, 1.0, -1.0
  %v1357 = vsel %vm1309, 1.0, -1.0
  %v1358 = vsel %vm1310, 1.0, -1.0
  %v1359 = vsel %vm1311, 1.0, -1.0
  %v1360 = vsel %vm1312, 1.0, -1.0
  %v1361 = vsel %vm1313, 1.0, -1.0
  %v1362 = vsel %vm1314, 1.0, -1.0
  %v1363 = vsel %vm1315, 1.0, -1.0
  %v1364 = vsel %vm1316, 1.0, -1.0
  %v1365 = vsel %vm1317, 1.0, -1.0
  %v1366 = vsel %vm1318, 1.0, -1.0
  %v1367 = vsel %vm1319, 1.0, -1.0
  %v1368 = vsel %vm1320, 1.0, -1.0
  %v1369 = vsel %vm1321, 1.0, -1.0
  %v1370 = vsel %vm1322, 1.0, -1.0
  %v1371 = vsel %vm1323, 1.0, -1.0
  %v1372 = vsel %vm1324, 1.0, -1.0
  %v1373 = vsel %vm1325, 1.0, -1.0
  %v1374 = vsel %vm1326, 1.0, -1.0
  %v1375 = vsel %vm1327, 1.0, -1.0
  %v1376 = vsel %vm1328, 1.0, -1.0
  %v1377 = vsel %vm1329, 1.0, -1.0
  %v1378 = vsel %vm1330, 1.0, -1.0
  %v1379 = vsel %vm1331, 1.0, -1.0
  %v1380 = vsel %vm1332, 1.0, -1.0
  %v1381 = vsel %vm1333, 1.0, -1.0
  %v1382 = vsel %vm1334, 1.0, -1.0
  %v1383 = vsel %vm1335, 1.0, -1.0
  %v1384 = vsel %vm1336, 1.0, -1.0
  %v1385 = vsel %vm1337, 1.0, -1.0
  %v1386 = vsel %vm1338, 1.0, -1.0
  %v1387 = vsel %vm1339, 1.0, -1.0
  %v1388 = vsel %vm1340, 1.0, -1.0
  %v1389 = vsel %vm1341, 1.0, -1.0
  %v1390 = vsel %vm1342, 1.0, -1.0
  %v1391 = vsel %vm1343, 1.0, -1.0
  %v1392 = vsel %vm1344, 1.0, -1.0
  %v1393 = vsel %vm1345, 1.0, -1.0
  %v1394 = vsel %vm1346, 1.0, -1.0
  %v1395 = vand.u32 2147483647, %v1251
  %v1396 = vand.u32 2147483647, %v1252
  %v1397 = vand.u32 2147483647, %v1253
  %v1398 = vand.u32 2147483647, %v1254
  %v1399 = vand.u32 2147483647, %v1255
  %v1400 = vand.u32 2147483647, %v1256
  %v1401 = vand.u32 2147483647, %v1257
  %v1402 = vand.u32 2147483647, %v1258
  %v1403 = vand.u32 2147483647, %v1259
  %v1404 = vand.u32 2147483647, %v1260
  %v1405 = vand.u32 2147483647, %v1261
  %v1406 = vand.u32 2147483647, %v1262
  %v1407 = vand.u32 2147483647, %v1263
  %v1408 = vand.u32 2147483647, %v1264
  %v1409 = vand.u32 2147483647, %v1265
  %v1410 = vand.u32 2147483647, %v1266
  %v1411 = vand.u32 2147483647, %v1267
  %v1412 = vand.u32 2147483647, %v1268
  %v1413 = vand.u32 2147483647, %v1269
  %v1414 = vand.u32 2147483647, %v1270
  %v1415 = vand.u32 2147483647, %v1271
  %v1416 = vand.u32 2147483647, %v1272
  %v1417 = vand.u32 2147483647, %v1273
  %v1418 = vand.u32 2147483647, %v1274
  %v1419 = vand.u32 2147483647, %v1275
  %v1420 = vand.u32 2147483647, %v1276
  %v1421 = vand.u32 2147483647, %v1277
  %v1422 = vand.u32 2147483647, %v1278
  %v1423 = vand.u32 2147483647, %v1279
  %v1424 = vand.u32 2147483647, %v1280
  %v1425 = vand.u32 2147483647, %v1281
  %v1426 = vand.u32 2147483647, %v1282
  %v1427 = vand.u32 2147483647, %v1283
  %v1428 = vand.u32 2147483647, %v1284
  %v1429 = vand.u32 2147483647, %v1285
  %v1430 = vand.u32 2147483647, %v1286
  %v1431 = vand.u32 2147483647, %v1287
  %v1432 = vand.u32 2147483647, %v1288
  %v1433 = vand.u32 2147483647, %v1289
  %v1434 = vand.u32 2147483647, %v1290
  %v1435 = vand.u32 2147483647, %v1291
  %v1436 = vand.u32 2147483647, %v1292
  %v1437 = vand.u32 2147483647, %v1293
  %v1438 = vand.u32 2147483647, %v1294
  %v1439 = vand.u32 2147483647, %v1295
  %v1440 = vand.u32 2147483647, %v1296
  %v1441 = vand.u32 2147483647, %v1297
  %v1442 = vand.u32 2147483647, %v1298
  %v1443 = vmul.f32 %v1395, 0.3275911
  %v1444 = vmul.f32 %v1396, 0.3275911
  %v1445 = vmul.f32 %v1397, 0.3275911
  %v1446 = vmul.f32 %v1398, 0.3275911
  %v1447 = vmul.f32 %v1399, 0.3275911
  %v1448 = vmul.f32 %v1400, 0.3275911
  %v1449 = vmul.f32 %v1401, 0.3275911
  %v1450 = vmul.f32 %v1402, 0.3275911
  %v1451 = vmul.f32 %v1403, 0.3275911
  %v1452 = vmul.f32 %v1404, 0.3275911
  %v1453 = vmul.f32 %v1405, 0.3275911
  %v1454 = vmul.f32 %v1406, 0.3275911
  %v1455 = vmul.f32 %v1407, 0.3275911
  %v1456 = vmul.f32 %v1408, 0.3275911
  %v1457 = vmul.f32 %v1409, 0.3275911
  %v1458 = vmul.f32 %v1410, 0.3275911
  %v1459 = vmul.f32 %v1411, 0.3275911
  %v1460 = vmul.f32 %v1412, 0.3275911
  %v1461 = vmul.f32 %v1413, 0.3275911
  %v1462 = vmul.f32 %v1414, 0.3275911
  %v1463 = vmul.f32 %v1415, 0.3275911
  %v1464 = vmul.f32 %v1416, 0.3275911
  %v1465 = vmul.f32 %v1417, 0.3275911
  %v1466 = vmul.f32 %v1418, 0.3275911
  %v1467 = vmul.f32 %v1419, 0.3275911
  %v1468 = vmul.f32 %v1420, 0.3275911
  %v1469 = vmul.f32 %v1421, 0.3275911
  %v1470 = vmul.f32 %v1422, 0.3275911
  %v1471 = vmul.f32 %v1423, 0.3275911
  %v1472 = vmul.f32 %v1424, 0.3275911
  %v1473 = vmul.f32 %v1425, 0.3275911
  %v1474 = vmul.f32 %v1426, 0.3275911
  %v1475 = vmul.f32 %v1427, 0.3275911
  %v1476 = vmul.f32 %v1428, 0.3275911
  %v1477 = vmul.f32 %v1429, 0.3275911
  %v1478 = vmul.f32 %v1430, 0.3275911
  %v1479 = vmul.f32 %v1431, 0.3275911
  %v1480 = vmul.f32 %v1432, 0.3275911
  %v1481 = vmul.f32 %v1433, 0.3275911
  %v1482 = vmul.f32 %v1434, 0.3275911
  %v1483 = vmul.f32 %v1435, 0.3275911
  %v1484 = vmul.f32 %v1436, 0.3275911
  %v1485 = vmul.f32 %v1437, 0.3275911
  %v1486 = vmul.f32 %v1438, 0.3275911
  %v1487 = vmul.f32 %v1439, 0.3275911
  %v1488 = vmul.f32 %v1440, 0.3275911
  %v1489 = vmul.f32 %v1441, 0.3275911
  %v1490 = vmul.f32 %v1442, 0.3275911
  %v1491 = vadd.f32 %v1443, 1.0
  %v1492 = vadd.f32 %v1444, 1.0
  %v1493 = vadd.f32 %v1445, 1.0
  %v1494 = vadd.f32 %v1446, 1.0
  %v1495 = vadd.f32 %v1447, 1.0
  %v1496 = vadd.f32 %v1448, 1.0
  %v1497 = vadd.f32 %v1449, 1.0
  %v1498 = vadd.f32 %v1450, 1.0
  %v1499 = vadd.f32 %v1451, 1.0
  %v1500 = vadd.f32 %v1452, 1.0
  %v1501 = vadd.f32 %v1453, 1.0
  %v1502 = vadd.f32 %v1454, 1.0
  %v1503 = vadd.f32 %v1455, 1.0
  %v1504 = vadd.f32 %v1456, 1.0
  %v1505 = vadd.f32 %v1457, 1.0
  %v1506 = vadd.f32 %v1458, 1.0
  %v1507 = vadd.f32 %v1459, 1.0
  %v1508 = vadd.f32 %v1460, 1.0
  %v1509 = vadd.f32 %v1461, 1.0
  %v1510 = vadd.f32 %v1462, 1.0
  %v1511 = vadd.f32 %v1463, 1.0
  %v1512 = vadd.f32 %v1464, 1.0
  %v1513 = vadd.f32 %v1465, 1.0
  %v1514 = vadd.f32 %v1466, 1.0
  %v1515 = vadd.f32 %v1467, 1.0
  %v1516 = vadd.f32 %v1468, 1.0
  %v1517 = vadd.f32 %v1469, 1.0
  %v1518 = vadd.f32 %v1470, 1.0
  %v1519 = vadd.f32 %v1471, 1.0
  %v1520 = vadd.f32 %v1472, 1.0
  %v1521 = vadd.f32 %v1473, 1.0
  %v1522 = vadd.f32 %v1474, 1.0
  %v1523 = vadd.f32 %v1475, 1.0
  %v1524 = vadd.f32 %v1476, 1.0
  %v1525 = vadd.f32 %v1477, 1.0
  %v1526 = vadd.f32 %v1478, 1.0
  %v1527 = vadd.f32 %v1479, 1.0
  %v1528 = vadd.f32 %v1480, 1.0
  %v1529 = vadd.f32 %v1481, 1.0
  %v1530 = vadd.f32 %v1482, 1.0
  %v1531 = vadd.f32 %v1483, 1.0
  %v1532 = vadd.f32 %v1484, 1.0
  %v1533 = vadd.f32 %v1485, 1.0
  %v1534 = vadd.f32 %v1486, 1.0
  %v1535 = vadd.f32 %v1487, 1.0
  %v1536 = vadd.f32 %v1488, 1.0
  %v1537 = vadd.f32 %v1489, 1.0
  %v1538 = vadd.f32 %v1490, 1.0
  %v1539 = vrcp.pop %v1491
  %v1540 = vrcp.pop %v1492
  %v1541 = vrcp.pop %v1493
  %v1542 = vrcp.pop %v1494
  %v1543 = vrcp.pop %v1495
  %v1544 = vrcp.pop %v1496
  %v1545 = vrcp.pop %v1497
  %v1546 = vrcp.pop %v1498
  %v1547 = vrcp.pop %v1499
  %v1548 = vrcp.pop %v1500
  %v1549 = vrcp.pop %v1501
  %v1550 = vrcp.pop %v1502
  %v1551 = vrcp.pop %v1503
  %v1552 = vrcp.pop %v1504
  %v1553 = vrcp.pop %v1505
  %v1554 = vrcp.pop %v1506
  %v1555 = vrcp.pop %v1507
  %v1556 = vrcp.pop %v1508
  %v1557 = vrcp.pop %v1509
  %v1558 = vrcp.pop %v1510
  %v1559 = vrcp.pop %v1511
  %v1560 = vrcp.pop %v1512
  %v1561 = vrcp.pop %v1513
  %v1562 = vrcp.pop %v1514
  %v1563 = vrcp.pop %v1515
  %v1564 = vrcp.pop %v1516
  %v1565 = vrcp.pop %v1517
  %v1566 = vrcp.pop %v1518
  %v1567 = vrcp.pop %v1519
  %v1568 = vrcp.pop %v1520
  %v1569 = vrcp.pop %v1521
  %v1570 = vrcp.pop %v1522
  %v1571 = vrcp.pop %v1523
  %v1572 = vrcp.pop %v1524
  %v1573 = vrcp.pop %v1525
  %v1574 = vrcp.pop %v1526
  %v1575 = vrcp.pop %v1527
  %v1576 = vrcp.pop %v1528
  %v1577 = vrcp.pop %v1529
  %v1578 = vrcp.pop %v1530
  %v1579 = vrcp.pop %v1531
  %v1580 = vrcp.pop %v1532
  %v1581 = vrcp.pop %v1533
  %v1582 = vrcp.pop %v1534
  %v1583 = vrcp.pop %v1535
  %v1584 = vrcp.pop %v1536
  %v1585 = vrcp.pop %v1537
  %v1586 = vrcp.pop %v1538
  %v1587 = vmul.f32 %v1539, 1.0614054
  %v1588 = vmul.f32 %v1540, 1.0614054
  %v1589 = vmul.f32 %v1541, 1.0614054
  %v1590 = vmul.f32 %v1542, 1.0614054
  %v1591 = vmul.f32 %v1543, 1.0614054
  %v1592 = vmul.f32 %v1544, 1.0614054
  %v1593 = vmul.f32 %v1545, 1.0614054
  %v1594 = vmul.f32 %v1546, 1.0614054
  %v1595 = vmul.f32 %v1547, 1.0614054
  %v1596 = vmul.f32 %v1548, 1.0614054
  %v1597 = vmul.f32 %v1549, 1.0614054
  %v1598 = vmul.f32 %v1550, 1.0614054
  %v1599 = vmul.f32 %v1551, 1.0614054
  %v1600 = vmul.f32 %v1552, 1.0614054
  %v1601 = vmul.f32 %v1553, 1.0614054
  %v1602 = vmul.f32 %v1554, 1.0614054
  %v1603 = vmul.f32 %v1555, 1.0614054
  %v1604 = vmul.f32 %v1556, 1.0614054
  %v1605 = vmul.f32 %v1557, 1.0614054
  %v1606 = vmul.f32 %v1558, 1.0614054
  %v1607 = vmul.f32 %v1559, 1.0614054
  %v1608 = vmul.f32 %v1560, 1.0614054
  %v1609 = vmul.f32 %v1561, 1.0614054
  %v1610 = vmul.f32 %v1562, 1.0614054
  %v1611 = vmul.f32 %v1563, 1.0614054
  %v1612 = vmul.f32 %v1564, 1.0614054
  %v1613 = vmul.f32 %v1565, 1.0614054
  %v1614 = vmul.f32 %v1566, 1.0614054
  %v1615 = vmul.f32 %v1567, 1.0614054
  %v1616 = vmul.f32 %v1568, 1.0614054
  %v1617 = vmul.f32 %v1569, 1.0614054
  %v1618 = vmul.f32 %v1570, 1.0614054
  %v1619 = vmul.f32 %v1571, 1.0614054
  %v1620 = vmul.f32 %v1572, 1.0614054
  %v1621 = vmul.f32 %v1573, 1.0614054
  %v1622 = vmul.f32 %v1574, 1.0614054
  %v1623 = vmul.f32 %v1575, 1.0614054
  %v1624 = vmul.f32 %v1576, 1.0614054
  %v1625 = vmul.f32 %v1577, 1.0614054
  %v1626 = vmul.f32 %v1578, 1.0614054
  %v1627 = vmul.f32 %v1579, 1.0614054
  %v1628 = vmul.f32 %v1580, 1.0614054
  %v1629 = vmul.f32 %v1581, 1.0614054
  %v1630 = vmul.f32 %v1582, 1.0614054
  %v1631 = vmul.f32 %v1583, 1.0614054
  %v1632 = vmul.f32 %v1584, 1.0614054
  %v1633 = vmul.f32 %v1585, 1.0614054
  %v1634 = vmul.f32 %v1586, 1.0614054
  %v1635 = vadd.f32 %v1587, -1.4531521
  %v1636 = vadd.f32 %v1588, -1.4531521
  %v1637 = vadd.f32 %v1589, -1.4531521
  %v1638 = vadd.f32 %v1590, -1.4531521
  %v1639 = vadd.f32 %v1591, -1.4531521
  %v1640 = vadd.f32 %v1592, -1.4531521
  %v1641 = vadd.f32 %v1593, -1.4531521
  %v1642 = vadd.f32 %v1594, -1.4531521
  %v1643 = vadd.f32 %v1595, -1.4531521
  %v1644 = vadd.f32 %v1596, -1.4531521
  %v1645 = vadd.f32 %v1597, -1.4531521
  %v1646 = vadd.f32 %v1598, -1.4531521
  %v1647 = vadd.f32 %v1599, -1.4531521
  %v1648 = vadd.f32 %v1600, -1.4531521
  %v1649 = vadd.f32 %v1601, -1.4531521
  %v1650 = vadd.f32 %v1602, -1.4531521
  %v1651 = vadd.f32 %v1603, -1.4531521
  %v1652 = vadd.f32 %v1604, -1.4531521
  %v1653 = vadd.f32 %v1605, -1.4531521
  %v1654 = vadd.f32 %v1606, -1.4531521
  %v1655 = vadd.f32 %v1607, -1.4531521
  %v1656 = vadd.f32 %v1608, -1.4531521
  %v1657 = vadd.f32 %v1609, -1.4531521
  %v1658 = vadd.f32 %v1610, -1.4531521
  %v1659 = vadd.f32 %v1611, -1.4531521
  %v1660 = vadd.f32 %v1612, -1.4531521
  %v1661 = vadd.f32 %v1613, -1.4531521
  %v1662 = vadd.f32 %v1614, -1.4531521
  %v1663 = vadd.f32 %v1615, -1.4531521
  %v1664 = vadd.f32 %v1616, -1.4531521
  %v1665 = vadd.f32 %v1617, -1.4531521
  %v1666 = vadd.f32 %v1618, -1.4531521
  %v1667 = vadd.f32 %v1619, -1.4531521
  %v1668 = vadd.f32 %v1620, -1.4531521
  %v1669 = vadd.f32 %v1621, -1.4531521
  %v1670 = vadd.f32 %v1622, -1.4531521
  %v1671 = vadd.f32 %v1623, -1.4531521
  %v1672 = vadd.f32 %v1624, -1.4531521
  %v1673 = vadd.f32 %v1625, -1.4531521
  %v1674 = vadd.f32 %v1626, -1.4531521
  %v1675 = vadd.f32 %v1627, -1.4531521
  %v1676 = vadd.f32 %v1628, -1.4531521
  %v1677 = vadd.f32 %v1629, -1.4531521
  %v1678 = vadd.f32 %v1630, -1.4531521
  %v1679 = vadd.f32 %v1631, -1.4531521
  %v1680 = vadd.f32 %v1632, -1.4531521
  %v1681 = vadd.f32 %v1633, -1.4531521
  %v1682 = vadd.f32 %v1634, -1.4531521
  %v1683 = vmul.f32 %v1539, %v1635
  %v1684 = vmul.f32 %v1540, %v1636
  %v1685 = vmul.f32 %v1541, %v1637
  %v1686 = vmul.f32 %v1542, %v1638
  %v1687 = vmul.f32 %v1543, %v1639
  %v1688 = vmul.f32 %v1544, %v1640
  %v1689 = vmul.f32 %v1545, %v1641
  %v1690 = vmul.f32 %v1546, %v1642
  %v1691 = vmul.f32 %v1547, %v1643
  %v1692 = vmul.f32 %v1548, %v1644
  %v1693 = vmul.f32 %v1549, %v1645
  %v1694 = vmul.f32 %v1550, %v1646
  %v1695 = vmul.f32 %v1551, %v1647
  %v1696 = vmul.f32 %v1552, %v1648
  %v1697 = vmul.f32 %v1553, %v1649
  %v1698 = vmul.f32 %v1554, %v1650
  %v1699 = vmul.f32 %v1555, %v1651
  %v1700 = vmul.f32 %v1556, %v1652
  %v1701 = vmul.f32 %v1557, %v1653
  %v1702 = vmul.f32 %v1558, %v1654
  %v1703 = vmul.f32 %v1559, %v1655
  %v1704 = vmul.f32 %v1560, %v1656
  %v1705 = vmul.f32 %v1561, %v1657
  %v1706 = vmul.f32 %v1562, %v1658
  %v1707 = vmul.f32 %v1563, %v1659
  %v1708 = vmul.f32 %v1564, %v1660
  %v1709 = vmul.f32 %v1565, %v1661
  %v1710 = vmul.f32 %v1566, %v1662
  %v1711 = vmul.f32 %v1567, %v1663
  %v1712 = vmul.f32 %v1568, %v1664
  %v1713 = vmul.f32 %v1569, %v1665
  %v1714 = vmul.f32 %v1570, %v1666
  %v1715 = vmul.f32 %v1571, %v1667
  %v1716 = vmul.f32 %v1572, %v1668
  %v1717 = vmul.f32 %v1573, %v1669
  %v1718 = vmul.f32 %v1574, %v1670
  %v1719 = vmul.f32 %v1575, %v1671
  %v1720 = vmul.f32 %v1576, %v1672
  %v1721 = vmul.f32 %v1577, %v1673
  %v1722 = vmul.f32 %v1578, %v1674
  %v1723 = vmul.f32 %v1579, %v1675
  %v1724 = vmul.f32 %v1580, %v1676
  %v1725 = vmul.f32 %v1581, %v1677
  %v1726 = vmul.f32 %v1582, %v1678
  %v1727 = vmul.f32 %v1583, %v1679
  %v1728 = vmul.f32 %v1584, %v1680
  %v1729 = vmul.f32 %v1585, %v1681
  %v1730 = vmul.f32 %v1586, %v1682
  %v1731 = vadd.f32 %v1683, 1.4214138
  %v1732 = vadd.f32 %v1684, 1.4214138
  %v1733 = vadd.f32 %v1685, 1.4214138
  %v1734 = vadd.f32 %v1686, 1.4214138
  %v1735 = vadd.f32 %v1687, 1.4214138
  %v1736 = vadd.f32 %v1688, 1.4214138
  %v1737 = vadd.f32 %v1689, 1.4214138
  %v1738 = vadd.f32 %v1690, 1.4214138
  %v1739 = vadd.f32 %v1691, 1.4214138
  %v1740 = vadd.f32 %v1692, 1.4214138
  %v1741 = vadd.f32 %v1693, 1.4214138
  %v1742 = vadd.f32 %v1694, 1.4214138
  %v1743 = vadd.f32 %v1695, 1.4214138
  %v1744 = vadd.f32 %v1696, 1.4214138
  %v1745 = vadd.f32 %v1697, 1.4214138
  %v1746 = vadd.f32 %v1698, 1.4214138
  %v1747 = vadd.f32 %v1699, 1.4214138
  %v1748 = vadd.f32 %v1700, 1.4214138
  %v1749 = vadd.f32 %v1701, 1.4214138
  %v1750 = vadd.f32 %v1702, 1.4214138
  %v1751 = vadd.f32 %v1703, 1.4214138
  %v1752 = vadd.f32 %v1704, 1.4214138
  %v1753 = vadd.f32 %v1705, 1.4214138
  %v1754 = vadd.f32 %v1706, 1.4214138
  %v1755 = vadd.f32 %v1707, 1.4214138
  %v1756 = vadd.f32 %v1708, 1.4214138
  %v1757 = vadd.f32 %v1709, 1.4214138
  %v1758 = vadd.f32 %v1710, 1.4214138
  %v1759 = vadd.f32 %v1711, 1.4214138
  %v1760 = vadd.f32 %v1712, 1.4214138
  %v1761 = vadd.f32 %v1713, 1.4214138
  %v1762 = vadd.f32 %v1714, 1.4214138
  %v1763 = vadd.f32 %v1715, 1.4214138
  %v1764 = vadd.f32 %v1716, 1.4214138
  %v1765 = vadd.f32 %v1717, 1.4214138
  %v1766 = vadd.f32 %v1718, 1.4214138
  %v1767 = vadd.f32 %v1719, 1.4214138
  %v1768 = vadd.f32 %v1720, 1.4214138
  %v1769 = vadd.f32 %v1721, 1.4214138
  %v1770 = vadd.f32 %v1722, 1.4214138
  %v1771 = vadd.f32 %v1723, 1.4214138
  %v1772 = vadd.f32 %v1724, 1.4214138
  %v1773 = vadd.f32 %v1725, 1.4214138
  %v1774 = vadd.f32 %v1726, 1.4214138
  %v1775 = vadd.f32 %v1727, 1.4214138
  %v1776 = vadd.f32 %v1728, 1.4214138
  %v1777 = vadd.f32 %v1729, 1.4214138
  %v1778 = vadd.f32 %v1730, 1.4214138
  %v1779 = vmul.f32 %v1539, %v1731
  %v1780 = vmul.f32 %v1540, %v1732
  %v1781 = vmul.f32 %v1541, %v1733
  %v1782 = vmul.f32 %v1542, %v1734
  %v1783 = vmul.f32 %v1543, %v1735
  %v1784 = vmul.f32 %v1544, %v1736
  %v1785 = vmul.f32 %v1545, %v1737
  %v1786 = vmul.f32 %v1546, %v1738
  %v1787 = vmul.f32 %v1547, %v1739
  %v1788 = vmul.f32 %v1548, %v1740
  %v1789 = vmul.f32 %v1549, %v1741
  %v1790 = vmul.f32 %v1550, %v1742
  %v1791 = vmul.f32 %v1551, %v1743
  %v1792 = vmul.f32 %v1552, %v1744
  %v1793 = vmul.f32 %v1553, %v1745
  %v1794 = vmul.f32 %v1554, %v1746
  %v1795 = vmul.f32 %v1555, %v1747
  %v1796 = vmul.f32 %v1556, %v1748
  %v1797 = vmul.f32 %v1557, %v1749
  %v1798 = vmul.f32 %v1558, %v1750
  %v1799 = vmul.f32 %v1559, %v1751
  %v1800 = vmul.f32 %v1560, %v1752
  %v1801 = vmul.f32 %v1561, %v1753
  %v1802 = vmul.f32 %v1562, %v1754
  %v1803 = vmul.f32 %v1563, %v1755
  %v1804 = vmul.f32 %v1564, %v1756
  %v1805 = vmul.f32 %v1565, %v1757
  %v1806 = vmul.f32 %v1566, %v1758
  %v1807 = vmul.f32 %v1567, %v1759
  %v1808 = vmul.f32 %v1568, %v1760
  %v1809 = vmul.f32 %v1569, %v1761
  %v1810 = vmul.f32 %v1570, %v1762
  %v1811 = vmul.f32 %v1571, %v1763
  %v1812 = vmul.f32 %v1572, %v1764
  %v1813 = vmul.f32 %v1573, %v1765
  %v1814 = vmul.f32 %v1574, %v1766
  %v1815 = vmul.f32 %v1575, %v1767
  %v1816 = vmul.f32 %v1576, %v1768
  %v1817 = vmul.f32 %v1577, %v1769
  %v1818 = vmul.f32 %v1578, %v1770
  %v1819 = vmul.f32 %v1579, %v1771
  %v1820 = vmul.f32 %v1580, %v1772
  %v1821 = vmul.f32 %v1581, %v1773
  %v1822 = vmul.f32 %v1582, %v1774
  %v1823 = vmul.f32 %v1583, %v1775
  %v1824 = vmul.f32 %v1584, %v1776
  %v1825 = vmul.f32 %v1585, %v1777
  %v1826 = vmul.f32 %v1586, %v1778
  %v1827 = vadd.f32 %v1779, -0.28449672
  %v1828 = vadd.f32 %v1780, -0.28449672
  %v1829 = vadd.f32 %v1781, -0.28449672
  %v1830 = vadd.f32 %v1782, -0.28449672
  %v1831 = vadd.f32 %v1783, -0.28449672
  %v1832 = vadd.f32 %v1784, -0.28449672
  %v1833 = vadd.f32 %v1785, -0.28449672
  %v1834 = vadd.f32 %v1786, -0.28449672
  %v1835 = vadd.f32 %v1787, -0.28449672
  %v1836 = vadd.f32 %v1788, -0.28449672
  %v1837 = vadd.f32 %v1789, -0.28449672
  %v1838 = vadd.f32 %v1790, -0.28449672
  %v1839 = vadd.f32 %v1791, -0.28449672
  %v1840 = vadd.f32 %v1792, -0.28449672
  %v1841 = vadd.f32 %v1793, -0.28449672
  %v1842 = vadd.f32 %v1794, -0.28449672
  %v1843 = vadd.f32 %v1795, -0.28449672
  %v1844 = vadd.f32 %v1796, -0.28449672
  %v1845 = vadd.f32 %v1797, -0.28449672
  %v1846 = vadd.f32 %v1798, -0.28449672
  %v1847 = vadd.f32 %v1799, -0.28449672
  %v1848 = vadd.f32 %v1800, -0.28449672
  %v1849 = vadd.f32 %v1801, -0.28449672
  %v1850 = vadd.f32 %v1802, -0.28449672
  %v1851 = vadd.f32 %v1803, -0.28449672
  %v1852 = vadd.f32 %v1804, -0.28449672
  %v1853 = vadd.f32 %v1805, -0.28449672
  %v1854 = vadd.f32 %v1806, -0.28449672
  %v1855 = vadd.f32 %v1807, -0.28449672
  %v1856 = vadd.f32 %v1808, -0.28449672
  %v1857 = vadd.f32 %v1809, -0.28449672
  %v1858 = vadd.f32 %v1810, -0.28449672
  %v1859 = vadd.f32 %v1811, -0.28449672
  %v1860 = vadd.f32 %v1812, -0.28449672
  %v1861 = vadd.f32 %v1813, -0.28449672
  %v1862 = vadd.f32 %v1814, -0.28449672
  %v1863 = vadd.f32 %v1815, -0.28449672
  %v1864 = vadd.f32 %v1816, -0.28449672
  %v1865 = vadd.f32 %v1817, -0.28449672
  %v1866 = vadd.f32 %v1818, -0.28449672
  %v1867 = vadd.f32 %v1819, -0.28449672
  %v1868 = vadd.f32 %v1820, -0.28449672
  %v1869 = vadd.f32 %v1821, -0.28449672
  %v1870 = vadd.f32 %v1822, -0.28449672
  %v1871 = vadd.f32 %v1823, -0.28449672
  %v1872 = vadd.f32 %v1824, -0.28449672
  %v1873 = vadd.f32 %v1825, -0.28449672
  %v1874 = vadd.f32 %v1826, -0.28449672
  %v1875 = vmul.f32 %v1539, %v1827
  %v1876 = vmul.f32 %v1540, %v1828
  %v1877 = vmul.f32 %v1541, %v1829
  %v1878 = vmul.f32 %v1542, %v1830
  %v1879 = vmul.f32 %v1543, %v1831
  %v1880 = vmul.f32 %v1544, %v1832
  %v1881 = vmul.f32 %v1545, %v1833
  %v1882 = vmul.f32 %v1546, %v1834
  %v1883 = vmul.f32 %v1547, %v1835
  %v1884 = vmul.f32 %v1548, %v1836
  %v1885 = vmul.f32 %v1549, %v1837
  %v1886 = vmul.f32 %v1550, %v1838
  %v1887 = vmul.f32 %v1551, %v1839
  %v1888 = vmul.f32 %v1552, %v1840
  %v1889 = vmul.f32 %v1553, %v1841
  %v1890 = vmul.f32 %v1554, %v1842
  %v1891 = vmul.f32 %v1555, %v1843
  %v1892 = vmul.f32 %v1556, %v1844
  %v1893 = vmul.f32 %v1557, %v1845
  %v1894 = vmul.f32 %v1558, %v1846
  %v1895 = vmul.f32 %v1559, %v1847
  %v1896 = vmul.f32 %v1560, %v1848
  %v1897 = vmul.f32 %v1561, %v1849
  %v1898 = vmul.f32 %v1562, %v1850
  %v1899 = vmul.f32 %v1563, %v1851
  %v1900 = vmul.f32 %v1564, %v1852
  %v1901 = vmul.f32 %v1565, %v1853
  %v1902 = vmul.f32 %v1566, %v1854
  %v1903 = vmul.f32 %v1567, %v1855
  %v1904 = vmul.f32 %v1568, %v1856
  %v1905 = vmul.f32 %v1569, %v1857
  %v1906 = vmul.f32 %v1570, %v1858
  %v1907 = vmul.f32 %v1571, %v1859
  %v1908 = vmul.f32 %v1572, %v1860
  %v1909 = vmul.f32 %v1573, %v1861
  %v1910 = vmul.f32 %v1574, %v1862
  %v1911 = vmul.f32 %v1575, %v1863
  %v1912 = vmul.f32 %v1576, %v1864
  %v1913 = vmul.f32 %v1577, %v1865
  %v1914 = vmul.f32 %v1578, %v1866
  %v1915 = vmul.f32 %v1579, %v1867
  %v1916 = vmul.f32 %v1580, %v1868
  %v1917 = vmul.f32 %v1581, %v1869
  %v1918 = vmul.f32 %v1582, %v1870
  %v1919 = vmul.f32 %v1583, %v1871
  %v1920 = vmul.f32 %v1584, %v1872
  %v1921 = vmul.f32 %v1585, %v1873
  %v1922 = vmul.f32 %v1586, %v1874
  %v1923 = vadd.f32 %v1875, 0.2548296
  %v1924 = vadd.f32 %v1876, 0.2548296
  %v1925 = vadd.f32 %v1877, 0.2548296
  %v1926 = vadd.f32 %v1878, 0.2548296
  %v1927 = vadd.f32 %v1879, 0.2548296
  %v1928 = vadd.f32 %v1880, 0.2548296
  %v1929 = vadd.f32 %v1881, 0.2548296
  %v1930 = vadd.f32 %v1882, 0.2548296
  %v1931 = vadd.f32 %v1883, 0.2548296
  %v1932 = vadd.f32 %v1884, 0.2548296
  %v1933 = vadd.f32 %v1885, 0.2548296
  %v1934 = vadd.f32 %v1886, 0.2548296
  %v1935 = vadd.f32 %v1887, 0.2548296
  %v1936 = vadd.f32 %v1888, 0.2548296
  %v1937 = vadd.f32 %v1889, 0.2548296
  %v1938 = vadd.f32 %v1890, 0.2548296
  %v1939 = vadd.f32 %v1891, 0.2548296
  %v1940 = vadd.f32 %v1892, 0.2548296
  %v1941 = vadd.f32 %v1893, 0.2548296
  %v1942 = vadd.f32 %v1894, 0.2548296
  %v1943 = vadd.f32 %v1895, 0.2548296
  %v1944 = vadd.f32 %v1896, 0.2548296
  %v1945 = vadd.f32 %v1897, 0.2548296
  %v1946 = vadd.f32 %v1898, 0.2548296
  %v1947 = vadd.f32 %v1899, 0.2548296
  %v1948 = vadd.f32 %v1900, 0.2548296
  %v1949 = vadd.f32 %v1901, 0.2548296
  %v1950 = vadd.f32 %v1902, 0.2548296
  %v1951 = vadd.f32 %v1903, 0.2548296
  %v1952 = vadd.f32 %v1904, 0.2548296
  %v1953 = vadd.f32 %v1905, 0.2548296
  %v1954 = vadd.f32 %v1906, 0.2548296
  %v1955 = vadd.f32 %v1907, 0.2548296
  %v1956 = vadd.f32 %v1908, 0.2548296
  %v1957 = vadd.f32 %v1909, 0.2548296
  %v1958 = vadd.f32 %v1910, 0.2548296
  %v1959 = vadd.f32 %v1911, 0.2548296
  %v1960 = vadd.f32 %v1912, 0.2548296
  %v1961 = vadd.f32 %v1913, 0.2548296
  %v1962 = vadd.f32 %v1914, 0.2548296
  %v1963 = vadd.f32 %v1915, 0.2548296
  %v1964 = vadd.f32 %v1916, 0.2548296
  %v1965 = vadd.f32 %v1917, 0.2548296
  %v1966 = vadd.f32 %v1918, 0.2548296
  %v1967 = vadd.f32 %v1919, 0.2548296
  %v1968 = vadd.f32 %v1920, 0.2548296
  %v1969 = vadd.f32 %v1921, 0.2548296
  %v1970 = vadd.f32 %v1922, 0.2548296
  %v1971 = vmul.f32 %v1539, %v1923
  %v1972 = vmul.f32 %v1540, %v1924
  %v1973 = vmul.f32 %v1541, %v1925
  %v1974 = vmul.f32 %v1542, %v1926
  %v1975 = vmul.f32 %v1543, %v1927
  %v1976 = vmul.f32 %v1544, %v1928
  %v1977 = vmul.f32 %v1545, %v1929
  %v1978 = vmul.f32 %v1546, %v1930
  %v1979 = vmul.f32 %v1547, %v1931
  %v1980 = vmul.f32 %v1548, %v1932
  %v1981 = vmul.f32 %v1549, %v1933
  %v1982 = vmul.f32 %v1550, %v1934
  %v1983 = vmul.f32 %v1551, %v1935
  %v1984 = vmul.f32 %v1552, %v1936
  %v1985 = vmul.f32 %v1553, %v1937
  %v1986 = vmul.f32 %v1554, %v1938
  %v1987 = vmul.f32 %v1555, %v1939
  %v1988 = vmul.f32 %v1556, %v1940
  %v1989 = vmul.f32 %v1557, %v1941
  %v1990 = vmul.f32 %v1558, %v1942
  %v1991 = vmul.f32 %v1559, %v1943
  %v1992 = vmul.f32 %v1560, %v1944
  %v1993 = vmul.f32 %v1561, %v1945
  %v1994 = vmul.f32 %v1562, %v1946
  %v1995 = vmul.f32 %v1563, %v1947
  %v1996 = vmul.f32 %v1564, %v1948
  %v1997 = vmul.f32 %v1565, %v1949
  %v1998 = vmul.f32 %v1566, %v1950
  %v1999 = vmul.f32 %v1567, %v1951
  %v2000 = vmul.f32 %v1568, %v1952
  %v2001 = vmul.f32 %v1569, %v1953
  %v2002 = vmul.f32 %v1570, %v1954
  %v2003 = vmul.f32 %v1571, %v1955
  %v2004 = vmul.f32 %v1572, %v1956
  %v2005 = vmul.f32 %v1573, %v1957
  %v2006 = vmul.f32 %v1574, %v1958
  %v2007 = vmul.f32 %v1575, %v1959
  %v2008 = vmul.f32 %v1576, %v1960
  %v2009 = vmul.f32 %v1577, %v1961
  %v2010 = vmul.f32 %v1578, %v1962
  %v2011 = vmul.f32 %v1579, %v1963
  %v2012 = vmul.f32 %v1580, %v1964
  %v2013 = vmul.f32 %v1581, %v1965
  %v2014 = vmul.f32 %v1582, %v1966
  %v2015 = vmul.f32 %v1583, %v1967
  %v2016 = vmul.f32 %v1584, %v1968
  %v2017 = vmul.f32 %v1585, %v1969
  %v2018 = vmul.f32 %v1586, %v1970
  %v2019 = vsub.f32 0.0, %v1395
  %v2020 = vsub.f32 0.0, %v1396
  %v2021 = vsub.f32 0.0, %v1397
  %v2022 = vsub.f32 0.0, %v1398
  %v2023 = vsub.f32 0.0, %v1399
  %v2024 = vsub.f32 0.0, %v1400
  %v2025 = vsub.f32 0.0, %v1401
  %v2026 = vsub.f32 0.0, %v1402
  %v2027 = vsub.f32 0.0, %v1403
  %v2028 = vsub.f32 0.0, %v1404
  %v2029 = vsub.f32 0.0, %v1405
  %v2030 = vsub.f32 0.0, %v1406
  %v2031 = vsub.f32 0.0, %v1407
  %v2032 = vsub.f32 0.0, %v1408
  %v2033 = vsub.f32 0.0, %v1409
  %v2034 = vsub.f32 0.0, %v1410
  %v2035 = vsub.f32 0.0, %v1411
  %v2036 = vsub.f32 0.0, %v1412
  %v2037 = vsub.f32 0.0, %v1413
  %v2038 = vsub.f32 0.0, %v1414
  %v2039 = vsub.f32 0.0, %v1415
  %v2040 = vsub.f32 0.0, %v1416
  %v2041 = vsub.f32 0.0, %v1417
  %v2042 = vsub.f32 0.0, %v1418
  %v2043 = vsub.f32 0.0, %v1419
  %v2044 = vsub.f32 0.0, %v1420
  %v2045 = vsub.f32 0.0, %v1421
  %v2046 = vsub.f32 0.0, %v1422
  %v2047 = vsub.f32 0.0, %v1423
  %v2048 = vsub.f32 0.0, %v1424
  %v2049 = vsub.f32 0.0, %v1425
  %v2050 = vsub.f32 0.0, %v1426
  %v2051 = vsub.f32 0.0, %v1427
  %v2052 = vsub.f32 0.0, %v1428
  %v2053 = vsub.f32 0.0, %v1429
  %v2054 = vsub.f32 0.0, %v1430
  %v2055 = vsub.f32 0.0, %v1431
  %v2056 = vsub.f32 0.0, %v1432
  %v2057 = vsub.f32 0.0, %v1433
  %v2058 = vsub.f32 0.0, %v1434
  %v2059 = vsub.f32 0.0, %v1435
  %v2060 = vsub.f32 0.0, %v1436
  %v2061 = vsub.f32 0.0, %v1437
  %v2062 = vsub.f32 0.0, %v1438
  %v2063 = vsub.f32 0.0, %v1439
  %v2064 = vsub.f32 0.0, %v1440
  %v2065 = vsub.f32 0.0, %v1441
  %v2066 = vsub.f32 0.0, %v1442
  %v2067 = vmul.f32 %v2019, %v1395
  %v2068 = vmul.f32 %v2020, %v1396
  %v2069 = vmul.f32 %v2021, %v1397
  %v2070 = vmul.f32 %v2022, %v1398
  %v2071 = vmul.f32 %v2023, %v1399
  %v2072 = vmul.f32 %v2024, %v1400
  %v2073 = vmul.f32 %v2025, %v1401
  %v2074 = vmul.f32 %v2026, %v1402
  %v2075 = vmul.f32 %v2027, %v1403
  %v2076 = vmul.f32 %v2028, %v1404
  %v2077 = vmul.f32 %v2029, %v1405
  %v2078 = vmul.f32 %v2030, %v1406
  %v2079 = vmul.f32 %v2031, %v1407
  %v2080 = vmul.f32 %v2032, %v1408
  %v2081 = vmul.f32 %v2033, %v1409
  %v2082 = vmul.f32 %v2034, %v1410
  %v2083 = vmul.f32 %v2035, %v1411
  %v2084 = vmul.f32 %v2036, %v1412
  %v2085 = vmul.f32 %v2037, %v1413
  %v2086 = vmul.f32 %v2038, %v1414
  %v2087 = vmul.f32 %v2039, %v1415
  %v2088 = vmul.f32 %v2040, %v1416
  %v2089 = vmul.f32 %v2041, %v1417
  %v2090 = vmul.f32 %v2042, %v1418
  %v2091 = vmul.f32 %v2043, %v1419
  %v2092 = vmul.f32 %v2044, %v1420
  %v2093 = vmul.f32 %v2045, %v1421
  %v2094 = vmul.f32 %v2046, %v1422
  %v2095 = vmul.f32 %v2047, %v1423
  %v2096 = vmul.f32 %v2048, %v1424
  %v2097 = vmul.f32 %v2049, %v1425
  %v2098 = vmul.f32 %v2050, %v1426
  %v2099 = vmul.f32 %v2051, %v1427
  %v2100 = vmul.f32 %v2052, %v1428
  %v2101 = vmul.f32 %v2053, %v1429
  %v2102 = vmul.f32 %v2054, %v1430
  %v2103 = vmul.f32 %v2055, %v1431
  %v2104 = vmul.f32 %v2056, %v1432
  %v2105 = vmul.f32 %v2057, %v1433
  %v2106 = vmul.f32 %v2058, %v1434
  %v2107 = vmul.f32 %v2059, %v1435
  %v2108 = vmul.f32 %v2060, %v1436
  %v2109 = vmul.f32 %v2061, %v1437
  %v2110 = vmul.f32 %v2062, %v1438
  %v2111 = vmul.f32 %v2063, %v1439
  %v2112 = vmul.f32 %v2064, %v1440
  %v2113 = vmul.f32 %v2065, %v1441
  %v2114 = vmul.f32 %v2066, %v1442
  %v2115 = vmul.f32 %v2067, 1.442695
  %v2116 = vpow.pop %v2115
  %v2117 = vmul.f32 %v2068, 1.442695
  %v2118 = vpow.pop %v2117
  %v2119 = vmul.f32 %v2069, 1.442695
  %v2120 = vpow.pop %v2119
  %v2121 = vmul.f32 %v2070, 1.442695
  %v2122 = vpow.pop %v2121
  %v2123 = vmul.f32 %v2071, 1.442695
  %v2124 = vpow.pop %v2123
  %v2125 = vmul.f32 %v2072, 1.442695
  %v2126 = vpow.pop %v2125
  %v2127 = vmul.f32 %v2073, 1.442695
  %v2128 = vpow.pop %v2127
  %v2129 = vmul.f32 %v2074, 1.442695
  %v2130 = vpow.pop %v2129
  %v2131 = vmul.f32 %v2075, 1.442695
  %v2132 = vpow.pop %v2131
  %v2133 = vmul.f32 %v2076, 1.442695
  %v2134 = vpow.pop %v2133
  %v2135 = vmul.f32 %v2077, 1.442695
  %v2136 = vpow.pop %v2135
  %v2137 = vmul.f32 %v2078, 1.442695
  %v2138 = vpow.pop %v2137
  %v2139 = vmul.f32 %v2079, 1.442695
  %v2140 = vpow.pop %v2139
  %v2141 = vmul.f32 %v2080, 1.442695
  %v2142 = vpow.pop %v2141
  %v2143 = vmul.f32 %v2081, 1.442695
  %v2144 = vpow.pop %v2143
  %v2145 = vmul.f32 %v2082, 1.442695
  %v2146 = vpow.pop %v2145
  %v2147 = vmul.f32 %v2083, 1.442695
  %v2148 = vpow.pop %v2147
  %v2149 = vmul.f32 %v2084, 1.442695
  %v2150 = vpow.pop %v2149
  %v2151 = vmul.f32 %v2085, 1.442695
  %v2152 = vpow.pop %v2151
  %v2153 = vmul.f32 %v2086, 1.442695
  %v2154 = vpow.pop %v2153
  %v2155 = vmul.f32 %v2087, 1.442695
  %v2156 = vpow.pop %v2155
  %v2157 = vmul.f32 %v2088, 1.442695
  %v2158 = vpow.pop %v2157
  %v2159 = vmul.f32 %v2089, 1.442695
  %v2160 = vpow.pop %v2159
  %v2161 = vmul.f32 %v2090, 1.442695
  %v2162 = vpow.pop %v2161
  %v2163 = vmul.f32 %v2091, 1.442695
  %v2164 = vpow.pop %v2163
  %v2165 = vmul.f32 %v2092, 1.442695
  %v2166 = vpow.pop %v2165
  %v2167 = vmul.f32 %v2093, 1.442695
  %v2168 = vpow.pop %v2167
  %v2169 = vmul.f32 %v2094, 1.442695
  %v2170 = vpow.pop %v2169
  %v2171 = vmul.f32 %v2095, 1.442695
  %v2172 = vpow.pop %v2171
  %v2173 = vmul.f32 %v2096, 1.442695
  %v2174 = vpow.pop %v2173
  %v2175 = vmul.f32 %v2097, 1.442695
  %v2176 = vpow.pop %v2175
  %v2177 = vmul.f32 %v2098, 1.442695
  %v2178 = vpow.pop %v2177
  %v2179 = vmul.f32 %v2099, 1.442695
  %v2180 = vpow.pop %v2179
  %v2181 = vmul.f32 %v2100, 1.442695
  %v2182 = vpow.pop %v2181
  %v2183 = vmul.f32 %v2101, 1.442695
  %v2184 = vpow.pop %v2183
  %v2185 = vmul.f32 %v2102, 1.442695
  %v2186 = vpow.pop %v2185
  %v2187 = vmul.f32 %v2103, 1.442695
  %v2188 = vpow.pop %v2187
  %v2189 = vmul.f32 %v2104, 1.442695
  %v2190 = vpow.pop %v2189
  %v2191 = vmul.f32 %v2105, 1.442695
  %v2192 = vpow.pop %v2191
  %v2193 = vmul.f32 %v2106, 1.442695
  %v2194 = vpow.pop %v2193
  %v2195 = vmul.f32 %v2107, 1.442695
  %v2196 = vpow.pop %v2195
  %v2197 = vmul.f32 %v2108, 1.442695
  %v2198 = vpow.pop %v2197
  %v2199 = vmul.f32 %v2109, 1.442695
  %v2200 = vpow.pop %v2199
  %v2201 = vmul.f32 %v2110, 1.442695
  %v2202 = vpow.pop %v2201
  %v2203 = vmul.f32 %v2111, 1.442695
  %v2204 = vpow.pop %v2203
  %v2205 = vmul.f32 %v2112, 1.442695
  %v2206 = vpow.pop %v2205
  %v2207 = vmul.f32 %v2113, 1.442695
  %v2208 = vpow.pop %v2207
  %v2209 = vmul.f32 %v2114, 1.442695
  %v2210 = vpow.pop %v2209
  %v2211 = vmul.f32 %v1971, %v2116
  %v2212 = vmul.f32 %v1972, %v2118
  %v2213 = vmul.f32 %v1973, %v2120
  %v2214 = vmul.f32 %v1974, %v2122
  %v2215 = vmul.f32 %v1975, %v2124
  %v2216 = vmul.f32 %v1976, %v2126
  %v2217 = vmul.f32 %v1977, %v2128
  %v2218 = vmul.f32 %v1978, %v2130
  %v2219 = vmul.f32 %v1979, %v2132
  %v2220 = vmul.f32 %v1980, %v2134
  %v2221 = vmul.f32 %v1981, %v2136
  %v2222 = vmul.f32 %v1982, %v2138
  %v2223 = vmul.f32 %v1983, %v2140
  %v2224 = vmul.f32 %v1984, %v2142
  %v2225 = vmul.f32 %v1985, %v2144
  %v2226 = vmul.f32 %v1986, %v2146
  %v2227 = vmul.f32 %v1987, %v2148
  %v2228 = vmul.f32 %v1988, %v2150
  %v2229 = vmul.f32 %v1989, %v2152
  %v2230 = vmul.f32 %v1990, %v2154
  %v2231 = vmul.f32 %v1991, %v2156
  %v2232 = vmul.f32 %v1992, %v2158
  %v2233 = vmul.f32 %v1993, %v2160
  %v2234 = vmul.f32 %v1994, %v2162
  %v2235 = vmul.f32 %v1995, %v2164
  %v2236 = vmul.f32 %v1996, %v2166
  %v2237 = vmul.f32 %v1997, %v2168
  %v2238 = vmul.f32 %v1998, %v2170
  %v2239 = vmul.f32 %v1999, %v2172
  %v2240 = vmul.f32 %v2000, %v2174
  %v2241 = vmul.f32 %v2001, %v2176
  %v2242 = vmul.f32 %v2002, %v2178
  %v2243 = vmul.f32 %v2003, %v2180
  %v2244 = vmul.f32 %v2004, %v2182
  %v2245 = vmul.f32 %v2005, %v2184
  %v2246 = vmul.f32 %v2006, %v2186
  %v2247 = vmul.f32 %v2007, %v2188
  %v2248 = vmul.f32 %v2008, %v2190
  %v2249 = vmul.f32 %v2009, %v2192
  %v2250 = vmul.f32 %v2010, %v2194
  %v2251 = vmul.f32 %v2011, %v2196
  %v2252 = vmul.f32 %v2012, %v2198
  %v2253 = vmul.f32 %v2013, %v2200
  %v2254 = vmul.f32 %v2014, %v2202
  %v2255 = vmul.f32 %v2015, %v2204
  %v2256 = vmul.f32 %v2016, %v2206
  %v2257 = vmul.f32 %v2017, %v2208
  %v2258 = vmul.f32 %v2018, %v2210
  %v2259 = vsub.f32 1.0, %v2211
  %v2260 = vsub.f32 1.0, %v2212
  %v2261 = vsub.f32 1.0, %v2213
  %v2262 = vsub.f32 1.0, %v2214
  %v2263 = vsub.f32 1.0, %v2215
  %v2264 = vsub.f32 1.0, %v2216
  %v2265 = vsub.f32 1.0, %v2217
  %v2266 = vsub.f32 1.0, %v2218
  %v2267 = vsub.f32 1.0, %v2219
  %v2268 = vsub.f32 1.0, %v2220
  %v2269 = vsub.f32 1.0, %v2221
  %v2270 = vsub.f32 1.0, %v2222
  %v2271 = vsub.f32 1.0, %v2223
  %v2272 = vsub.f32 1.0, %v2224
  %v2273 = vsub.f32 1.0, %v2225
  %v2274 = vsub.f32 1.0, %v2226
  %v2275 = vsub.f32 1.0, %v2227
  %v2276 = vsub.f32 1.0, %v2228
  %v2277 = vsub.f32 1.0, %v2229
  %v2278 = vsub.f32 1.0, %v2230
  %v2279 = vsub.f32 1.0, %v2231
  %v2280 = vsub.f32 1.0, %v2232
  %v2281 = vsub.f32 1.0, %v2233
  %v2282 = vsub.f32 1.0, %v2234
  %v2283 = vsub.f32 1.0, %v2235
  %v2284 = vsub.f32 1.0, %v2236
  %v2285 = vsub.f32 1.0, %v2237
  %v2286 = vsub.f32 1.0, %v2238
  %v2287 = vsub.f32 1.0, %v2239
  %v2288 = vsub.f32 1.0, %v2240
  %v2289 = vsub.f32 1.0, %v2241
  %v2290 = vsub.f32 1.0, %v2242
  %v2291 = vsub.f32 1.0, %v2243
  %v2292 = vsub.f32 1.0, %v2244
  %v2293 = vsub.f32 1.0, %v2245
  %v2294 = vsub.f32 1.0, %v2246
  %v2295 = vsub.f32 1.0, %v2247
  %v2296 = vsub.f32 1.0, %v2248
  %v2297 = vsub.f32 1.0, %v2249
  %v2298 = vsub.f32 1.0, %v2250
  %v2299 = vsub.f32 1.0, %v2251
  %v2300 = vsub.f32 1.0, %v2252
  %v2301 = vsub.f32 1.0, %v2253
  %v2302 = vsub.f32 1.0, %v2254
  %v2303 = vsub.f32 1.0, %v2255
  %v2304 = vsub.f32 1.0, %v2256
  %v2305 = vsub.f32 1.0, %v2257
  %v2306 = vsub.f32 1.0, %v2258
  %v2307 = vmul.f32 %v1347, %v2259
  %v2308 = vmul.f32 %v1348, %v2260
  %v2309 = vmul.f32 %v1349, %v2261
  %v2310 = vmul.f32 %v1350, %v2262
  %v2311 = vmul.f32 %v1351, %v2263
  %v2312 = vmul.f32 %v1352, %v2264
  %v2313 = vmul.f32 %v1353, %v2265
  %v2314 = vmul.f32 %v1354, %v2266
  %v2315 = vmul.f32 %v1355, %v2267
  %v2316 = vmul.f32 %v1356, %v2268
  %v2317 = vmul.f32 %v1357, %v2269
  %v2318 = vmul.f32 %v1358, %v2270
  %v2319 = vmul.f32 %v1359, %v2271
  %v2320 = vmul.f32 %v1360, %v2272
  %v2321 = vmul.f32 %v1361, %v2273
  %v2322 = vmul.f32 %v1362, %v2274
  %v2323 = vmul.f32 %v1363, %v2275
  %v2324 = vmul.f32 %v1364, %v2276
  %v2325 = vmul.f32 %v1365, %v2277
  %v2326 = vmul.f32 %v1366, %v2278
  %v2327 = vmul.f32 %v1367, %v2279
  %v2328 = vmul.f32 %v1368, %v2280
  %v2329 = vmul.f32 %v1369, %v2281
  %v2330 = vmul.f32 %v1370, %v2282
  %v2331 = vmul.f32 %v1371, %v2283
  %v2332 = vmul.f32 %v1372, %v2284
  %v2333 = vmul.f32 %v1373, %v2285
  %v2334 = vmul.f32 %v1374, %v2286
  %v2335 = vmul.f32 %v1375, %v2287
  %v2336 = vmul.f32 %v1376, %v2288
  %v2337 = vmul.f32 %v1377, %v2289
  %v2338 = vmul.f32 %v1378, %v2290
  %v2339 = vmul.f32 %v1379, %v2291
  %v2340 = vmul.f32 %v1380, %v2292
  %v2341 = vmul.f32 %v1381, %v2293
  %v2342 = vmul.f32 %v1382, %v2294
  %v2343 = vmul.f32 %v1383, %v2295
  %v2344 = vmul.f32 %v1384, %v2296
  %v2345 = vmul.f32 %v1385, %v2297
  %v2346 = vmul.f32 %v1386, %v2298
  %v2347 = vmul.f32 %v1387, %v2299
  %v2348 = vmul.f32 %v1388, %v2300
  %v2349 = vmul.f32 %v1389, %v2301
  %v2350 = vmul.f32 %v1390, %v2302
  %v2351 = vmul.f32 %v1391, %v2303
  %v2352 = vmul.f32 %v1392, %v2304
  %v2353 = vmul.f32 %v1393, %v2305
  %v2354 = vmul.f32 %v1394, %v2306
  %v2355 = vadd.f32 %v2307, 1.0
  %v2356 = vadd.f32 %v2308, 1.0
  %v2357 = vadd.f32 %v2309, 1.0
  %v2358 = vadd.f32 %v2310, 1.0
  %v2359 = vadd.f32 %v2311, 1.0
  %v2360 = vadd.f32 %v2312, 1.0
  %v2361 = vadd.f32 %v2313, 1.0
  %v2362 = vadd.f32 %v2314, 1.0
  %v2363 = vadd.f32 %v2315, 1.0
  %v2364 = vadd.f32 %v2316, 1.0
  %v2365 = vadd.f32 %v2317, 1.0
  %v2366 = vadd.f32 %v2318, 1.0
  %v2367 = vadd.f32 %v2319, 1.0
  %v2368 = vadd.f32 %v2320, 1.0
  %v2369 = vadd.f32 %v2321, 1.0
  %v2370 = vadd.f32 %v2322, 1.0
  %v2371 = vadd.f32 %v2323, 1.0
  %v2372 = vadd.f32 %v2324, 1.0
  %v2373 = vadd.f32 %v2325, 1.0
  %v2374 = vadd.f32 %v2326, 1.0
  %v2375 = vadd.f32 %v2327, 1.0
  %v2376 = vadd.f32 %v2328, 1.0
  %v2377 = vadd.f32 %v2329, 1.0
  %v2378 = vadd.f32 %v2330, 1.0
  %v2379 = vadd.f32 %v2331, 1.0
  %v2380 = vadd.f32 %v2332, 1.0
  %v2381 = vadd.f32 %v2333, 1.0
  %v2382 = vadd.f32 %v2334, 1.0
  %v2383 = vadd.f32 %v2335, 1.0
  %v2384 = vadd.f32 %v2336, 1.0
  %v2385 = vadd.f32 %v2337, 1.0
  %v2386 = vadd.f32 %v2338, 1.0
  %v2387 = vadd.f32 %v2339, 1.0
  %v2388 = vadd.f32 %v2340, 1.0
  %v2389 = vadd.f32 %v2341, 1.0
  %v2390 = vadd.f32 %v2342, 1.0
  %v2391 = vadd.f32 %v2343, 1.0
  %v2392 = vadd.f32 %v2344, 1.0
  %v2393 = vadd.f32 %v2345, 1.0
  %v2394 = vadd.f32 %v2346, 1.0
  %v2395 = vadd.f32 %v2347, 1.0
  %v2396 = vadd.f32 %v2348, 1.0
  %v2397 = vadd.f32 %v2349, 1.0
  %v2398 = vadd.f32 %v2350, 1.0
  %v2399 = vadd.f32 %v2351, 1.0
  %v2400 = vadd.f32 %v2352, 1.0
  %v2401 = vadd.f32 %v2353, 1.0
  %v2402 = vadd.f32 %v2354, 1.0
  %v2403 = vmul.f32 %v1203, %v2355
  %v2404 = vmul.f32 %v1204, %v2356
  %v2405 = vmul.f32 %v1205, %v2357
  %v2406 = vmul.f32 %v1206, %v2358
  %v2407 = vmul.f32 %v1207, %v2359
  %v2408 = vmul.f32 %v1208, %v2360
  %v2409 = vmul.f32 %v1209, %v2361
  %v2410 = vmul.f32 %v1210, %v2362
  %v2411 = vmul.f32 %v1211, %v2363
  %v2412 = vmul.f32 %v1212, %v2364
  %v2413 = vmul.f32 %v1213, %v2365
  %v2414 = vmul.f32 %v1214, %v2366
  %v2415 = vmul.f32 %v1215, %v2367
  %v2416 = vmul.f32 %v1216, %v2368
  %v2417 = vmul.f32 %v1217, %v2369
  %v2418 = vmul.f32 %v1218, %v2370
  %v2419 = vmul.f32 %v1219, %v2371
  %v2420 = vmul.f32 %v1220, %v2372
  %v2421 = vmul.f32 %v1221, %v2373
  %v2422 = vmul.f32 %v1222, %v2374
  %v2423 = vmul.f32 %v1223, %v2375
  %v2424 = vmul.f32 %v1224, %v2376
  %v2425 = vmul.f32 %v1225, %v2377
  %v2426 = vmul.f32 %v1226, %v2378
  %v2427 = vmul.f32 %v1227, %v2379
  %v2428 = vmul.f32 %v1228, %v2380
  %v2429 = vmul.f32 %v1229, %v2381
  %v2430 = vmul.f32 %v1230, %v2382
  %v2431 = vmul.f32 %v1231, %v2383
  %v2432 = vmul.f32 %v1232, %v2384
  %v2433 = vmul.f32 %v1233, %v2385
  %v2434 = vmul.f32 %v1234, %v2386
  %v2435 = vmul.f32 %v1235, %v2387
  %v2436 = vmul.f32 %v1236, %v2388
  %v2437 = vmul.f32 %v1237, %v2389
  %v2438 = vmul.f32 %v1238, %v2390
  %v2439 = vmul.f32 %v1239, %v2391
  %v2440 = vmul.f32 %v1240, %v2392
  %v2441 = vmul.f32 %v1241, %v2393
  %v2442 = vmul.f32 %v1242, %v2394
  %v2443 = vmul.f32 %v1243, %v2395
  %v2444 = vmul.f32 %v1244, %v2396
  %v2445 = vmul.f32 %v1245, %v2397
  %v2446 = vmul.f32 %v1246, %v2398
  %v2447 = vmul.f32 %v1247, %v2399
  %v2448 = vmul.f32 %v1248, %v2400
  %v2449 = vmul.f32 %v1249, %v2401
  %v2450 = vmul.f32 %v1250, %v2402
  %v2451 = vpack.c.bf16 %v2404, %v2403
  %v2452 = vpack.c.bf16 %v2406, %v2405
  %v2453 = vpack.c.bf16 %v2408, %v2407
  %v2454 = vpack.c.bf16 %v2410, %v2409
  %v2455 = vpack.c.bf16 %v2412, %v2411
  %v2456 = vpack.c.bf16 %v2414, %v2413
  %v2457 = vpack.c.bf16 %v2416, %v2415
  %v2458 = vpack.c.bf16 %v2418, %v2417
  %v2459 = vpack.c.bf16 %v2420, %v2419
  %v2460 = vpack.c.bf16 %v2422, %v2421
  %v2461 = vpack.c.bf16 %v2424, %v2423
  %v2462 = vpack.c.bf16 %v2426, %v2425
  %v2463 = vpack.c.bf16 %v2428, %v2427
  %v2464 = vpack.c.bf16 %v2430, %v2429
  %v2465 = vpack.c.bf16 %v2432, %v2431
  %v2466 = vpack.c.bf16 %v2434, %v2433
  %v2467 = vpack.c.bf16 %v2436, %v2435
  %v2468 = vpack.c.bf16 %v2438, %v2437
  %v2469 = vpack.c.bf16 %v2440, %v2439
  %v2470 = vpack.c.bf16 %v2442, %v2441
  %v2471 = vpack.c.bf16 %v2444, %v2443
  %v2472 = vpack.c.bf16 %v2446, %v2445
  %v2473 = vpack.c.bf16 %v2448, %v2447
  %v2474 = vpack.c.bf16 %v2450, %v2449
  %v2475 = vld [vmem:[%s5] sm:$0xf]
  %v2476 = vld [vmem:[%s5 + $0x4] sm:$0xf]
  %v2477 = vld [vmem:[%s5 + $0x8] sm:$0xf]
  %v2478 = vld [vmem:[%s5 + $0xc] sm:$0xf]
  %v2479 = vld [vmem:[%s5 + $0x10] sm:$0xf]
  %v2480 = vld [vmem:[%s5 + $0x14] sm:$0xf]
  %v2481 = vld [vmem:[%s5 + $0x18] sm:$0xf]
  %v2482 = vld [vmem:[%s5 + $0x1c] sm:$0xf]
  %v2483 = vld [vmem:[%s6] sm:$0x1]
  %v2485 = vlaneseq
  %v2486 = vshrl.u32 %v2485, 7
  %v2487 = vsub.s32 0, %v2486
  %v2488 = vrot.slane %v2483, %v2487
  %v2498 = vunpack.c.l.b16 %v2475
  %v2499 = vunpack.c.l.b16 %v2476
  %v2500 = vunpack.c.l.b16 %v2477
  %v2501 = vunpack.c.l.b16 %v2478
  %v2502 = vunpack.c.l.b16 %v2479
  %v2503 = vunpack.c.l.b16 %v2480
  %v2504 = vunpack.c.l.b16 %v2481
  %v2505 = vunpack.c.l.b16 %v2482
  %v2506 = vpack.c.b16 %v2499, %v2498
  %v2507 = vpack.c.b16 %v2501, %v2500
  %v2508 = vpack.c.b16 %v2503, %v2502
  %v2509 = vpack.c.b16 %v2505, %v2504
  %vm2514 = vcmask 523264
  %v2516 = vsel %vm2514, %v2451, 0
  %v2519 = vsel %vm2514, %v2452, 0
  %v2522 = vsel %vm2514, %v2453, 0
  %v2525 = vsel %vm2514, %v2454, 0
  %v2528 = vsel %vm2514, %v2455, 0
  %v2531 = vsel %vm2514, %v2456, 0
  %v2534 = vsel %vm2514, %v2457, 0
  %v2537 = vsel %vm2514, %v2458, 0
  %v2540 = vsel %vm2514, %v2459, 0
  %v2543 = vsel %vm2514, %v2460, 0
  %v2546 = vsel %vm2514, %v2461, 0
  %v2549 = vsel %vm2514, %v2462, 0
  %v2552 = vsel %vm2514, %v2463, 0
  %v2555 = vsel %vm2514, %v2464, 0
  %v2558 = vsel %vm2514, %v2465, 0
  %v2561 = vsel %vm2514, %v2466, 0
  %v2564 = vsel %vm2514, %v2467, 0
  %v2567 = vsel %vm2514, %v2468, 0
  %v2570 = vsel %vm2514, %v2469, 0
  %v2573 = vsel %vm2514, %v2470, 0
  %v2576 = vsel %vm2514, %v2471, 0
  %v2579 = vsel %vm2514, %v2472, 0
  %v2582 = vsel %vm2514, %v2473, 0
  %v2585 = vsel %vm2514, %v2474, 0
  %2587 = vmatprep.subr.bf16.mxu0 0
  %2588 = vmatpush1.bf16.msra.mxu0 %v2506
  %2589 = vmatprep.subr.bf16.mxu0 0
  %2590 = vmatpush1.bf16.msra.mxu0 %v2507
  %2591 = vmatprep.subr.bf16.mxu0 0
  %2592 = vmatpush1.bf16.msra.mxu0 %v2508
  %2593 = vmatprep.subr.bf16.mxu0 0
  %2594 = vmatpush1.bf16.msra.mxu0 %v2509
  %2595 = vmatprep.subr.bf16.mxu0 0
  %2596 = vmatpush1.bf16.msra.mxu0 0
  %2597 = vmatprep.subr.bf16.mxu0 0
  %2598 = vmatpush1.bf16.msra.mxu0 0
  %2599 = vmatprep.subr.bf16.mxu0 0
  %2600 = vmatpush1.bf16.msra.mxu0 0
  %2601 = vmatprep.subr.bf16.mxu0 0
  %2602 = vmatpush1.bf16.msra.mxu0 0
  %2603 = vmatprep.subr.bf16.mxu0 0
  %2604 = vmatpush1.bf16.msra.mxu0 0
  %2605 = vmatprep.subr.bf16.mxu0 0
  %2606 = vmatpush1.bf16.msra.mxu0 0
  %2607 = vmatprep.subr.bf16.mxu0 0
  %2608 = vmatpush1.bf16.msra.mxu0 0
  %2609 = vmatprep.subr.bf16.mxu0 0
  %2610 = vmatpush1.bf16.msra.mxu0 0
  %2611 = vmatprep.subr.bf16.mxu0 0
  %2612 = vmatpush1.bf16.msra.mxu0 0
  %2613 = vmatprep.subr.bf16.mxu0 0
  %2614 = vmatpush1.bf16.msra.mxu0 0
  %2615 = vmatprep.subr.bf16.mxu0 0
  %2616 = vmatpush1.bf16.msra.mxu0 0
  %2617 = vmatprep.subr.bf16.mxu0 0
  %2618 = vmatpush1.bf16.msra.mxu0 0
  %2619 = vmatprep.mubr.bf16.mxu0 0
  %2620 = vmatmul.mubr.bf16.gmra.mrb[0].mxu0 %v2516
  %v2621 = vpop.f32.mrb[0].mxu0
  %v2622 = vadd.f32 %v2488, %v2621
  %v2623 = vpop.f32.mrb[0].mxu0
  %v2624 = vpop.f32.mrb[0].mxu0
  %v2625 = vadd.f32 %v2488, %v2624
  %v2626 = vpop.f32.mrb[0].mxu0
  %2627 = vmatprep.mubr.bf16.mxu0 0
  %2628 = vmatmul.mubr.bf16.gmra.mrb[0].mxu0 %v2519
  %v2629 = vpop.f32.mrb[0].mxu0
  %v2630 = vadd.f32 %v2488, %v2629
  %v2631 = vpop.f32.mrb[0].mxu0
  %v2632 = vpop.f32.mrb[0].mxu0
  %v2633 = vadd.f32 %v2488, %v2632
  %v2634 = vpop.f32.mrb[0].mxu0
  %2635 = vmatprep.mubr.bf16.mxu0 0
  %2636 = vmatmul.mubr.bf16.gmra.mrb[0].mxu0 %v2522
  %v2637 = vpop.f32.mrb[0].mxu0
  %v2638 = vadd.f32 %v2488, %v2637
  %v2639 = vpop.f32.mrb[0].mxu0
  %v2640 = vpop.f32.mrb[0].mxu0
  %v2641 = vadd.f32 %v2488, %v2640
  %v2642 = vpop.f32.mrb[0].mxu0
  %2643 = vmatprep.mubr.bf16.mxu0 0
  %2644 = vmatmul.mubr.bf16.gmra.mrb[0].mxu0 %v2525
  %v2645 = vpop.f32.mrb[0].mxu0
  %v2646 = vadd.f32 %v2488, %v2645
  %v2647 = vpop.f32.mrb[0].mxu0
  %v2648 = vpop.f32.mrb[0].mxu0
  %v2649 = vadd.f32 %v2488, %v2648
  %v2650 = vpop.f32.mrb[0].mxu0
  %2651 = vmatprep.mubr.bf16.mxu0 0
  %2652 = vmatmul.mubr.bf16.gmra.mrb[0].mxu0 %v2528
  %v2653 = vpop.f32.mrb[0].mxu0
  %v2654 = vadd.f32 %v2488, %v2653
  %v2655 = vpop.f32.mrb[0].mxu0
  %v2656 = vpop.f32.mrb[0].mxu0
  %v2657 = vadd.f32 %v2488, %v2656
  %v2658 = vpop.f32.mrb[0].mxu0
  %2659 = vmatprep.mubr.bf16.mxu0 0
  %2660 = vmatmul.mubr.bf16.gmra.mrb[0].mxu0 %v2531
  %v2661 = vpop.f32.mrb[0].mxu0
  %v2662 = vadd.f32 %v2488, %v2661
  %v2663 = vpop.f32.mrb[0].mxu0
  %v2664 = vpop.f32.mrb[0].mxu0
  %v2665 = vadd.f32 %v2488, %v2664
  %v2666 = vpop.f32.mrb[0].mxu0
  %2667 = vmatprep.mubr.bf16.mxu0 0
  %2668 = vmatmul.mubr.bf16.gmra.mrb[0].mxu0 %v2534
  %v2669 = vpop.f32.mrb[0].mxu0
  %v2670 = vadd.f32 %v2488, %v2669
  %v2671 = vpop.f32.mrb[0].mxu0
  %v2672 = vpop.f32.mrb[0].mxu0
  %v2673 = vadd.f32 %v2488, %v2672
  %v2674 = vpop.f32.mrb[0].mxu0
  %2675 = vmatprep.mubr.bf16.mxu0 0
  %2676 = vmatmul.mubr.bf16.gmra.mrb[0].mxu0 %v2537
  %v2677 = vpop.f32.mrb[0].mxu0
  %v2678 = vadd.f32 %v2488, %v2677
  %v2679 = vpop.f32.mrb[0].mxu0
  %v2680 = vpop.f32.mrb[0].mxu0
  %v2681 = vadd.f32 %v2488, %v2680
  %v2682 = vpop.f32.mrb[0].mxu0
  %2683 = vmatprep.mubr.bf16.mxu0 0
  %2684 = vmatmul.mubr.bf16.gmra.mrb[0].mxu0 %v2540
  %v2685 = vpop.f32.mrb[0].mxu0
  %v2686 = vadd.f32 %v2488, %v2685
  %v2687 = vpop.f32.mrb[0].mxu0
  %v2688 = vpop.f32.mrb[0].mxu0
  %v2689 = vadd.f32 %v2488, %v2688
  %v2690 = vpop.f32.mrb[0].mxu0
  %2691 = vmatprep.mubr.bf16.mxu0 0
  %2692 = vmatmul.mubr.bf16.gmra.mrb[0].mxu0 %v2543
  %v2693 = vpop.f32.mrb[0].mxu0
  %v2694 = vadd.f32 %v2488, %v2693
  %v2695 = vpop.f32.mrb[0].mxu0
  %v2696 = vpop.f32.mrb[0].mxu0
  %v2697 = vadd.f32 %v2488, %v2696
  %v2698 = vpop.f32.mrb[0].mxu0
  %2699 = vmatprep.mubr.bf16.mxu0 0
  %2700 = vmatmul.mubr.bf16.gmra.mrb[0].mxu0 %v2546
  %v2701 = vpop.f32.mrb[0].mxu0
  %v2702 = vadd.f32 %v2488, %v2701
  %v2703 = vpop.f32.mrb[0].mxu0
  %v2704 = vpop.f32.mrb[0].mxu0
  %v2705 = vadd.f32 %v2488, %v2704
  %v2706 = vpop.f32.mrb[0].mxu0
  %2707 = vmatprep.mubr.bf16.mxu0 0
  %2708 = vmatmul.mubr.bf16.gmra.mrb[0].mxu0 %v2549
  %v2709 = vpop.f32.mrb[0].mxu0
  %v2710 = vadd.f32 %v2488, %v2709
  %v2711 = vpop.f32.mrb[0].mxu0
  %v2712 = vpop.f32.mrb[0].mxu0
  %v2713 = vadd.f32 %v2488, %v2712
  %v2714 = vpop.f32.mrb[0].mxu0
  %2715 = vmatprep.mubr.bf16.mxu0 0
  %2716 = vmatmul.mubr.bf16.gmra.mrb[0].mxu0 %v2552
  %v2717 = vpop.f32.mrb[0].mxu0
  %v2718 = vadd.f32 %v2488, %v2717
  %v2719 = vpop.f32.mrb[0].mxu0
  %v2720 = vpop.f32.mrb[0].mxu0
  %v2721 = vadd.f32 %v2488, %v2720
  %v2722 = vpop.f32.mrb[0].mxu0
  %2723 = vmatprep.mubr.bf16.mxu0 0
  %2724 = vmatmul.mubr.bf16.gmra.mrb[0].mxu0 %v2555
  %v2725 = vpop.f32.mrb[0].mxu0
  %v2726 = vadd.f32 %v2488, %v2725
  %v2727 = vpop.f32.mrb[0].mxu0
  %v2728 = vpop.f32.mrb[0].mxu0
  %v2729 = vadd.f32 %v2488, %v2728
  %v2730 = vpop.f32.mrb[0].mxu0
  %2731 = vmatprep.mubr.bf16.mxu0 0
  %2732 = vmatmul.mubr.bf16.gmra.mrb[0].mxu0 %v2558
  %v2733 = vpop.f32.mrb[0].mxu0
  %v2734 = vadd.f32 %v2488, %v2733
  %v2735 = vpop.f32.mrb[0].mxu0
  %v2736 = vpop.f32.mrb[0].mxu0
  %v2737 = vadd.f32 %v2488, %v2736
  %v2738 = vpop.f32.mrb[0].mxu0
  %2739 = vmatprep.mubr.bf16.mxu0 0
  %2740 = vmatmul.mubr.bf16.gmra.mrb[0].mxu0 %v2561
  %v2741 = vpop.f32.mrb[0].mxu0
  %v2742 = vadd.f32 %v2488, %v2741
  %v2743 = vpop.f32.mrb[0].mxu0
  %v2744 = vpop.f32.mrb[0].mxu0
  %v2745 = vadd.f32 %v2488, %v2744
  %v2746 = vpop.f32.mrb[0].mxu0
  %2747 = vmatprep.mubr.bf16.mxu0 0
  %2748 = vmatmul.mubr.bf16.gmra.mrb[0].mxu0 %v2564
  %v2749 = vpop.f32.mrb[0].mxu0
  %v2750 = vadd.f32 %v2488, %v2749
  %v2751 = vpop.f32.mrb[0].mxu0
  %v2752 = vpop.f32.mrb[0].mxu0
  %v2753 = vadd.f32 %v2488, %v2752
  %v2754 = vpop.f32.mrb[0].mxu0
  %2755 = vmatprep.mubr.bf16.mxu0 0
  %2756 = vmatmul.mubr.bf16.gmra.mrb[0].mxu0 %v2567
  %v2757 = vpop.f32.mrb[0].mxu0
  %v2758 = vadd.f32 %v2488, %v2757
  %v2759 = vpop.f32.mrb[0].mxu0
  %v2760 = vpop.f32.mrb[0].mxu0
  %v2761 = vadd.f32 %v2488, %v2760
  %v2762 = vpop.f32.mrb[0].mxu0
  %2763 = vmatprep.mubr.bf16.mxu0 0
  %2764 = vmatmul.mubr.bf16.gmra.mrb[0].mxu0 %v2570
  %v2765 = vpop.f32.mrb[0].mxu0
  %v2766 = vadd.f32 %v2488, %v2765
  %v2767 = vpop.f32.mrb[0].mxu0
  %v2768 = vpop.f32.mrb[0].mxu0
  %v2769 = vadd.f32 %v2488, %v2768
  %v2770 = vpop.f32.mrb[0].mxu0
  %2771 = vmatprep.mubr.bf16.mxu0 0
  %2772 = vmatmul.mubr.bf16.gmra.mrb[0].mxu0 %v2573
  %v2773 = vpop.f32.mrb[0].mxu0
  %v2774 = vadd.f32 %v2488, %v2773
  %v2775 = vpop.f32.mrb[0].mxu0
  %v2776 = vpop.f32.mrb[0].mxu0
  %v2777 = vadd.f32 %v2488, %v2776
  %v2778 = vpop.f32.mrb[0].mxu0
  %2779 = vmatprep.mubr.bf16.mxu0 0
  %2780 = vmatmul.mubr.bf16.gmra.mrb[0].mxu0 %v2576
  %v2781 = vpop.f32.mrb[0].mxu0
  %v2782 = vadd.f32 %v2488, %v2781
  %v2783 = vpop.f32.mrb[0].mxu0
  %v2784 = vpop.f32.mrb[0].mxu0
  %v2785 = vadd.f32 %v2488, %v2784
  %v2786 = vpop.f32.mrb[0].mxu0
  %2787 = vmatprep.mubr.bf16.mxu0 0
  %2788 = vmatmul.mubr.bf16.gmra.mrb[0].mxu0 %v2579
  %v2789 = vpop.f32.mrb[0].mxu0
  %v2790 = vadd.f32 %v2488, %v2789
  %v2791 = vpop.f32.mrb[0].mxu0
  %v2792 = vpop.f32.mrb[0].mxu0
  %v2793 = vadd.f32 %v2488, %v2792
  %v2794 = vpop.f32.mrb[0].mxu0
  %2795 = vmatprep.mubr.bf16.mxu0 0
  %2796 = vmatmul.mubr.bf16.gmra.mrb[0].mxu0 %v2582
  %v2797 = vpop.f32.mrb[0].mxu0
  %v2798 = vadd.f32 %v2488, %v2797
  %v2799 = vpop.f32.mrb[0].mxu0
  %v2800 = vpop.f32.mrb[0].mxu0
  %v2801 = vadd.f32 %v2488, %v2800
  %v2802 = vpop.f32.mrb[0].mxu0
  %2803 = vmatprep.mubr.bf16.mxu0 0
  %2804 = vmatmul.mubr.bf16.gmra.mrb[0].mxu0 %v2585
  %v2805 = vpop.f32.mrb[0].mxu0
  %v2806 = vadd.f32 %v2488, %v2805
  %v2807 = vpop.f32.mrb[0].mxu0
  %v2808 = vpop.f32.mrb[0].mxu0
  %v2809 = vadd.f32 %v2488, %v2808
  %v2810 = vpop.f32.mrb[0].mxu0
  %2811 = vdwg.mxu0
  %v2812 = vadd.f32 %v2622, %v75
  %v2813 = vadd.f32 %v2625, %v76
  %v2814 = vadd.f32 %v2630, %v77
  %v2815 = vadd.f32 %v2633, %v78
  %v2816 = vadd.f32 %v2638, %v79
  %v2817 = vadd.f32 %v2641, %v80
  %v2818 = vadd.f32 %v2646, %v81
  %v2819 = vadd.f32 %v2649, %v82
  %v2820 = vadd.f32 %v2654, %v83
  %v2821 = vadd.f32 %v2657, %v84
  %v2822 = vadd.f32 %v2662, %v85
  %v2823 = vadd.f32 %v2665, %v86
  %v2824 = vadd.f32 %v2670, %v87
  %v2825 = vadd.f32 %v2673, %v88
  %v2826 = vadd.f32 %v2678, %v89
  %v2827 = vadd.f32 %v2681, %v90
  %v2828 = vadd.f32 %v2686, %v91
  %v2829 = vadd.f32 %v2689, %v92
  %v2830 = vadd.f32 %v2694, %v93
  %v2831 = vadd.f32 %v2697, %v94
  %v2832 = vadd.f32 %v2702, %v95
  %v2833 = vadd.f32 %v2705, %v96
  %v2834 = vadd.f32 %v2710, %v97
  %v2835 = vadd.f32 %v2713, %v98
  %v2836 = vadd.f32 %v2718, %v99
  %v2837 = vadd.f32 %v2721, %v100
  %v2838 = vadd.f32 %v2726, %v101
  %v2839 = vadd.f32 %v2729, %v102
  %v2840 = vadd.f32 %v2734, %v103
  %v2841 = vadd.f32 %v2737, %v104
  %v2842 = vadd.f32 %v2742, %v105
  %v2843 = vadd.f32 %v2745, %v106
  %v2844 = vadd.f32 %v2750, %v107
  %v2845 = vadd.f32 %v2753, %v108
  %v2846 = vadd.f32 %v2758, %v109
  %v2847 = vadd.f32 %v2761, %v110
  %v2848 = vadd.f32 %v2766, %v111
  %v2849 = vadd.f32 %v2769, %v112
  %v2850 = vadd.f32 %v2774, %v113
  %v2851 = vadd.f32 %v2777, %v114
  %v2852 = vadd.f32 %v2782, %v115
  %v2853 = vadd.f32 %v2785, %v116
  %v2854 = vadd.f32 %v2790, %v117
  %v2855 = vadd.f32 %v2793, %v118
  %v2856 = vadd.f32 %v2798, %v119
  %v2857 = vadd.f32 %v2801, %v120
  %v2858 = vadd.f32 %v2806, %v121
  %v2859 = vadd.f32 %v2809, %v122
  %v2860 = vpack.c.bf16 %v2813, %v2812
  %v2861 = vpack.c.bf16 %v2815, %v2814
  %v2862 = vpack.c.bf16 %v2817, %v2816
  %v2863 = vpack.c.bf16 %v2819, %v2818
  %v2864 = vpack.c.bf16 %v2821, %v2820
  %v2865 = vpack.c.bf16 %v2823, %v2822
  %v2866 = vpack.c.bf16 %v2825, %v2824
  %v2867 = vpack.c.bf16 %v2827, %v2826
  %v2868 = vpack.c.bf16 %v2829, %v2828
  %v2869 = vpack.c.bf16 %v2831, %v2830
  %v2870 = vpack.c.bf16 %v2833, %v2832
  %v2871 = vpack.c.bf16 %v2835, %v2834
  %v2872 = vpack.c.bf16 %v2837, %v2836
  %v2873 = vpack.c.bf16 %v2839, %v2838
  %v2874 = vpack.c.bf16 %v2841, %v2840
  %v2875 = vpack.c.bf16 %v2843, %v2842
  %v2876 = vpack.c.bf16 %v2845, %v2844
  %v2877 = vpack.c.bf16 %v2847, %v2846
  %v2878 = vpack.c.bf16 %v2849, %v2848
  %v2879 = vpack.c.bf16 %v2851, %v2850
  %v2880 = vpack.c.bf16 %v2853, %v2852
  %v2881 = vpack.c.bf16 %v2855, %v2854
  %v2882 = vpack.c.bf16 %v2857, %v2856
  %v2883 = vpack.c.bf16 %v2859, %v2858
  %v2908 = vunpack.c.l.b16 %v2860
  %v2909 = vunpack.c.h.b16 %v2860
  %v2910 = vunpack.c.l.b16 %v2861
  %v2911 = vunpack.c.h.b16 %v2861
  %v2912 = vunpack.c.l.b16 %v2862
  %v2913 = vunpack.c.h.b16 %v2862
  %v2914 = vunpack.c.l.b16 %v2863
  %v2915 = vunpack.c.h.b16 %v2863
  %v2916 = vunpack.c.l.b16 %v2864
  %v2917 = vunpack.c.h.b16 %v2864
  %v2918 = vunpack.c.l.b16 %v2865
  %v2919 = vunpack.c.h.b16 %v2865
  %v2920 = vunpack.c.l.b16 %v2866
  %v2921 = vunpack.c.h.b16 %v2866
  %v2922 = vunpack.c.l.b16 %v2867
  %v2923 = vunpack.c.h.b16 %v2867
  %v2924 = vunpack.c.l.b16 %v2868
  %v2925 = vunpack.c.h.b16 %v2868
  %v2926 = vunpack.c.l.b16 %v2869
  %v2927 = vunpack.c.h.b16 %v2869
  %v2928 = vunpack.c.l.b16 %v2870
  %v2929 = vunpack.c.h.b16 %v2870
  %v2930 = vunpack.c.l.b16 %v2871
  %v2931 = vunpack.c.h.b16 %v2871
  %v2932 = vunpack.c.l.b16 %v2872
  %v2933 = vunpack.c.h.b16 %v2872
  %v2934 = vunpack.c.l.b16 %v2873
  %v2935 = vunpack.c.h.b16 %v2873
  %v2936 = vunpack.c.l.b16 %v2874
  %v2937 = vunpack.c.h.b16 %v2874
  %v2938 = vunpack.c.l.b16 %v2875
  %v2939 = vunpack.c.h.b16 %v2875
  %v2940 = vunpack.c.l.b16 %v2876
  %v2941 = vunpack.c.h.b16 %v2876
  %v2942 = vunpack.c.l.b16 %v2877
  %v2943 = vunpack.c.h.b16 %v2877
  %v2944 = vunpack.c.l.b16 %v2878
  %v2945 = vunpack.c.h.b16 %v2878
  %v2946 = vunpack.c.l.b16 %v2879
  %v2947 = vunpack.c.h.b16 %v2879
  %v2948 = vunpack.c.l.b16 %v2880
  %v2949 = vunpack.c.h.b16 %v2880
  %v2950 = vunpack.c.l.b16 %v2881
  %v2951 = vunpack.c.h.b16 %v2881
  %v2952 = vunpack.c.l.b16 %v2882
  %v2953 = vunpack.c.h.b16 %v2882
  %v2954 = vunpack.c.l.b16 %v2883
  %v2955 = vunpack.c.h.b16 %v2883
  %v2956 = vpack.c.b16 %v2908, %v2908
  %v2957 = vpack.c.b16 %v2909, %v2909
  %v2958 = vpack.c.b16 %v2910, %v2910
  %v2959 = vpack.c.b16 %v2911, %v2911
  %v2960 = vpack.c.b16 %v2912, %v2912
  %v2961 = vpack.c.b16 %v2913, %v2913
  %v2962 = vpack.c.b16 %v2914, %v2914
  %v2963 = vpack.c.b16 %v2915, %v2915
  %v2964 = vpack.c.b16 %v2916, %v2916
  %v2965 = vpack.c.b16 %v2917, %v2917
  %v2966 = vpack.c.b16 %v2918, %v2918
  %v2967 = vpack.c.b16 %v2919, %v2919
  %v2968 = vpack.c.b16 %v2920, %v2920
  %v2969 = vpack.c.b16 %v2921, %v2921
  %v2970 = vpack.c.b16 %v2922, %v2922
  %v2971 = vpack.c.b16 %v2923, %v2923
  %v2972 = vpack.c.b16 %v2924, %v2924
  %v2973 = vpack.c.b16 %v2925, %v2925
  %v2974 = vpack.c.b16 %v2926, %v2926
  %v2975 = vpack.c.b16 %v2927, %v2927
  %v2976 = vpack.c.b16 %v2928, %v2928
  %v2977 = vpack.c.b16 %v2929, %v2929
  %v2978 = vpack.c.b16 %v2930, %v2930
  %v2979 = vpack.c.b16 %v2931, %v2931
  %v2980 = vpack.c.b16 %v2932, %v2932
  %v2981 = vpack.c.b16 %v2933, %v2933
  %v2982 = vpack.c.b16 %v2934, %v2934
  %v2983 = vpack.c.b16 %v2935, %v2935
  %v2984 = vpack.c.b16 %v2936, %v2936
  %v2985 = vpack.c.b16 %v2937, %v2937
  %v2986 = vpack.c.b16 %v2938, %v2938
  %v2987 = vpack.c.b16 %v2939, %v2939
  %v2988 = vpack.c.b16 %v2940, %v2940
  %v2989 = vpack.c.b16 %v2941, %v2941
  %v2990 = vpack.c.b16 %v2942, %v2942
  %v2991 = vpack.c.b16 %v2943, %v2943
  %v2992 = vpack.c.b16 %v2944, %v2944
  %v2993 = vpack.c.b16 %v2945, %v2945
  %v2994 = vpack.c.b16 %v2946, %v2946
  %v2995 = vpack.c.b16 %v2947, %v2947
  %v2996 = vpack.c.b16 %v2948, %v2948
  %v2997 = vpack.c.b16 %v2949, %v2949
  %v2998 = vpack.c.b16 %v2950, %v2950
  %v2999 = vpack.c.b16 %v2951, %v2951
  %v3000 = vpack.c.b16 %v2952, %v2952
  %v3001 = vpack.c.b16 %v2953, %v2953
  %v3002 = vpack.c.b16 %v2954, %v2954
  %v3003 = vpack.c.b16 %v2955, %v2955
  %vm3052 = vcmask 257024
  %3053 = vst.msk [vmem:[%s7] sm:$0xf] %vm3052, %v2956
  %3054 = vst.msk [vmem:[%s7 + $0x4] sm:$0xf] %vm3052, %v2957
  %3055 = vst.msk [vmem:[%s7 + $0x8] sm:$0xf] %vm3052, %v2958
  %3056 = vst.msk [vmem:[%s7 + $0xc] sm:$0xf] %vm3052, %v2959
  %3057 = vst.msk [vmem:[%s7 + $0x10] sm:$0xf] %vm3052, %v2960
  %3058 = vst.msk [vmem:[%s7 + $0x14] sm:$0xf] %vm3052, %v2961
  %3059 = vst.msk [vmem:[%s7 + $0x18] sm:$0xf] %vm3052, %v2962
  %3060 = vst.msk [vmem:[%s7 + $0x1c] sm:$0xf] %vm3052, %v2963
  %3061 = vst.msk [vmem:[%s7 + $0x20] sm:$0xf] %vm3052, %v2964
  %3062 = vst.msk [vmem:[%s7 + $0x24] sm:$0xf] %vm3052, %v2965
  %3063 = vst.msk [vmem:[%s7 + $0x28] sm:$0xf] %vm3052, %v2966
  %3064 = vst.msk [vmem:[%s7 + $0x2c] sm:$0xf] %vm3052, %v2967
  %3065 = vst.msk [vmem:[%s7 + $0x30] sm:$0xf] %vm3052, %v2968
  %3066 = vst.msk [vmem:[%s7 + $0x34] sm:$0xf] %vm3052, %v2969
  %3067 = vst.msk [vmem:[%s7 + $0x38] sm:$0xf] %vm3052, %v2970
  %3068 = vst.msk [vmem:[%s7 + $0x3c] sm:$0xf] %vm3052, %v2971
  %3069 = vst.msk [vmem:[%s7 + $0x40] sm:$0xf] %vm3052, %v2972
  %3070 = vst.msk [vmem:[%s7 + $0x44] sm:$0xf] %vm3052, %v2973
  %3071 = vst.msk [vmem:[%s7 + $0x48] sm:$0xf] %vm3052, %v2974
  %3072 = vst.msk [vmem:[%s7 + $0x4c] sm:$0xf] %vm3052, %v2975
  %3073 = vst.msk [vmem:[%s7 + $0x50] sm:$0xf] %vm3052, %v2976
  %3074 = vst.msk [vmem:[%s7 + $0x54] sm:$0xf] %vm3052, %v2977
  %3075 = vst.msk [vmem:[%s7 + $0x58] sm:$0xf] %vm3052, %v2978
  %3076 = vst.msk [vmem:[%s7 + $0x5c] sm:$0xf] %vm3052, %v2979
  %3077 = vst.msk [vmem:[%s7 + $0x60] sm:$0xf] %vm3052, %v2980
  %3078 = vst.msk [vmem:[%s7 + $0x64] sm:$0xf] %vm3052, %v2981
  %3079 = vst.msk [vmem:[%s7 + $0x68] sm:$0xf] %vm3052, %v2982
  %3080 = vst.msk [vmem:[%s7 + $0x6c] sm:$0xf] %vm3052, %v2983
  %3081 = vst.msk [vmem:[%s7 + $0x70] sm:$0xf] %vm3052, %v2984
  %3082 = vst.msk [vmem:[%s7 + $0x74] sm:$0xf] %vm3052, %v2985
  %3083 = vst.msk [vmem:[%s7 + $0x78] sm:$0xf] %vm3052, %v2986
  %3084 = vst.msk [vmem:[%s7 + $0x7c] sm:$0xf] %vm3052, %v2987
  %3085 = vst.msk [vmem:[%s7 + $0x80] sm:$0xf] %vm3052, %v2988
  %3086 = vst.msk [vmem:[%s7 + $0x84] sm:$0xf] %vm3052, %v2989
  %3087 = vst.msk [vmem:[%s7 + $0x88] sm:$0xf] %vm3052, %v2990
  %3088 = vst.msk [vmem:[%s7 + $0x8c] sm:$0xf] %vm3052, %v2991
  %3089 = vst.msk [vmem:[%s7 + $0x90] sm:$0xf] %vm3052, %v2992
  %3090 = vst.msk [vmem:[%s7 + $0x94] sm:$0xf] %vm3052, %v2993
  %3091 = vst.msk [vmem:[%s7 + $0x98] sm:$0xf] %vm3052, %v2994
  %3092 = vst.msk [vmem:[%s7 + $0x9c] sm:$0xf] %vm3052, %v2995
  %3093 = vst.msk [vmem:[%s7 + $0xa0] sm:$0xf] %vm3052, %v2996
  %3094 = vst.msk [vmem:[%s7 + $0xa4] sm:$0xf] %vm3052, %v2997
  %3095 = vst.msk [vmem:[%s7 + $0xa8] sm:$0xf] %vm3052, %v2998
  %3096 = vst.msk [vmem:[%s7 + $0xac] sm:$0xf] %vm3052, %v2999
  %3097 = vst.msk [vmem:[%s7 + $0xb0] sm:$0xf] %vm3052, %v3000
  %3098 = vst.msk [vmem:[%s7 + $0xb4] sm:$0xf] %vm3052, %v3001
  %3099 = vst.msk [vmem:[%s7 + $0xb8] sm:$0xf] %vm3052, %v3002
  %3100 = vst.msk [vmem:[%s7 + $0xbc] sm:$0xf] %vm3052, %v3003
  // Predicated region
  $region30: #{tsvit_forward.9} parent=0 // pred_check
    _
  $region31: #{tsvit_forward.9} parent=0 // pred_check_branch
    %3102 = sbr.rel (0) target = $region33
  $region32: #{tsvit_forward.9} parent=0 // pred_region
    _
  $region33: #{tsvit_forward.9} parent=0 // pred_fallthru
    _
  // Predicated region
  $region34: #{tsvit_forward.9} parent=0 // pred_check
    _
  $region35: #{tsvit_forward.9} parent=0 // pred_check_branch
    %3104 = sbr.rel (0) target = $region37
  $region36: #{tsvit_forward.9} parent=0 // pred_region
    _
  $region37: #{tsvit_forward.9} parent=0 // pred_fallthru
    _

// kernel: tsvit_forward.11
$region0: #{tsvit_forward.11}
  #allocation0 [shape = 'u32[]', space=smem, size = 0x4, offset = 0x4, fixed_abs, tag = 'smem constant byte address 0x4 - core index']
  #allocation1 [shape = 'u32[144,128]{1,0:T(1,128)}', space=vmem, size = 0x12000, scoped, tag = 'internal scratch']
  %s0 = inlined_call_operand.vmem [shape: bf16[8,16,32], index: 0, kind: input, shape index: {}]
  %s1 = inlined_call_operand.vmem [shape: f32[1,32], index: 1, kind: input, shape index: {}]
  %s2 = inlined_call_operand.vmem [shape: f32[1,32], index: 2, kind: input, shape index: {}]
  %s3 = inlined_call_operand.vmem [shape: bf16[32,96], index: 3, kind: input, shape index: {}]
  %s4 = inlined_call_operand.vmem [shape: bf16[32,32], index: 4, kind: input, shape index: {}]
  %s5 = inlined_call_operand.vmem [shape: f32[1,32], index: 5, kind: input, shape index: {}]
  %s6 = inlined_call_operand.vmem [shape: bf16[8,16,32], index: 6, kind: output, shape index: {}]
  %s7 = sld [smem:[#allocation0]]
  $region57: #{tsvit_forward.11} parent=0
    _
  %s9 = ssub.s32 1, %s7
  %s10 = scalar_select 0, %s9, %s7
  loop: start=0, step=1, limit=4
  $region2: #{tsvit_forward.11} parent=0 // loop_pre_header
    _
  $region3: #{tsvit_forward.11} parent=0 // loop_header
    %s12 = sphi 0, %s16
    %p13 = scmp.ge.s32.totalorder %s12, 4
    %s22 = sphi 0, %s24
    %s25 = sphi 0, %s22
    %s26 = sphi 0, %s25
    %s42 = sphi 0, %s26
    %s46 = sphi 0, %s46
    %s48 = sphi 0, %s46
    %s49 = sphi 0, %s48
    %s63 = sphi 0, %s49
    %s67 = sphi 0, %s67
    %s69 = sphi 0, %s67
    %s70 = sphi 0, %s69
    %s84 = sphi 0, %s70
    %s88 = sphi 0, %s88
    %s90 = sphi 0, %s88
    %s91 = sphi 0, %s90
    %s105 = sphi 0, %s91
    %s109 = sphi 0, %s109
    %s111 = sphi 0, %s109
    %s112 = sphi 0, %s111
    %s126 = sphi 0, %s112
    %s130 = sphi 0, %s130
    %s132 = sphi 0, %s130
    %s133 = sphi 0, %s132
    %s147 = sphi 0, %s133
    %s153 = sphi 0, %s155
    %s156 = sphi 0, %s153
    %s157 = sphi 0, %s156
    %s173 = sphi 0, %s157
  $region4: #{tsvit_forward.11} parent=0 // loop_header_branch
    %15 = sbr.rel (%p13) target = $region8
  $region5: #{tsvit_forward.11} parent=0 // loop_body
    %s17 = ssub.s32 %s12, 1
    %s18 = ssub.s32 %s12, 2
    %s19 = sadd.s32 %s12, 1
    %s20 = ssub.s32 %s12, %s19
    %p21 = scmp.eq.s32.totalorder %s20, 0
    %s23 = sadd.s32 %s22, 1
    %s24 = scalar_select %p21, %s22, %s23
    %p27 = pneg %p21
    %p28 = scmp.eq.s32.totalorder %s12, 1
    %p29 = por %p27, %p28
    %p30 = scmp.ne.s32.totalorder %s22, %s25
    %p31 = scmp.eq.s32.totalorder %s12, 0
    %p32 = por %p30, %p31
    %p33 = scmp.ne.s32.totalorder %s22, %s25
    %p34 = scmp.eq.s32.totalorder %s17, 1
    %p35 = por %p33, %p34
    %p36 = scmp.ne.s32.totalorder %s25, %s26
    %p37 = scmp.eq.s32.totalorder %s17, 0
    %p38 = por %p36, %p37
    %p39 = scmp.ne.s32.totalorder %s25, %s26
    %p40 = scmp.eq.s32.totalorder %s18, 1
    %p41 = por %p39, %p40
    %p43 = scmp.ne.s32.totalorder %s26, %s42
    %p44 = scmp.eq.s32.totalorder %s18, 0
    %p45 = por %p43, %p44
    %s47 = sadd.s32 %s46, 1
    %p50 = scmp.eq.s32.totalorder %s12, 1
    %p51 = scmp.ne.s32.totalorder %s46, %s48
    %p52 = scmp.eq.s32.totalorder %s12, 0
    %p53 = por %p51, %p52
    %p54 = scmp.ne.s32.totalorder %s46, %s48
    %p55 = scmp.eq.s32.totalorder %s17, 1
    %p56 = por %p54, %p55
    %p57 = scmp.ne.s32.totalorder %s48, %s49
    %p58 = scmp.eq.s32.totalorder %s17, 0
    %p59 = por %p57, %p58
    %p60 = scmp.ne.s32.totalorder %s48, %s49
    %p61 = scmp.eq.s32.totalorder %s18, 1
    %p62 = por %p60, %p61
    %p64 = scmp.ne.s32.totalorder %s49, %s63
    %p65 = scmp.eq.s32.totalorder %s18, 0
    %p66 = por %p64, %p65
    %s68 = sadd.s32 %s67, 1
    %p71 = scmp.eq.s32.totalorder %s12, 1
    %p72 = scmp.ne.s32.totalorder %s67, %s69
    %p73 = scmp.eq.s32.totalorder %s12, 0
    %p74 = por %p72, %p73
    %p75 = scmp.ne.s32.totalorder %s67, %s69
    %p76 = scmp.eq.s32.totalorder %s17, 1
    %p77 = por %p75, %p76
    %p78 = scmp.ne.s32.totalorder %s69, %s70
    %p79 = scmp.eq.s32.totalorder %s17, 0
    %p80 = por %p78, %p79
    %p81 = scmp.ne.s32.totalorder %s69, %s70
    %p82 = scmp.eq.s32.totalorder %s18, 1
    %p83 = por %p81, %p82
    %p85 = scmp.ne.s32.totalorder %s70, %s84
    %p86 = scmp.eq.s32.totalorder %s18, 0
    %p87 = por %p85, %p86
    %s89 = sadd.s32 %s88, 1
    %p92 = scmp.eq.s32.totalorder %s12, 1
    %p93 = scmp.ne.s32.totalorder %s88, %s90
    %p94 = scmp.eq.s32.totalorder %s12, 0
    %p95 = por %p93, %p94
    %p96 = scmp.ne.s32.totalorder %s88, %s90
    %p97 = scmp.eq.s32.totalorder %s17, 1
    %p98 = por %p96, %p97
    %p99 = scmp.ne.s32.totalorder %s90, %s91
    %p100 = scmp.eq.s32.totalorder %s17, 0
    %p101 = por %p99, %p100
    %p102 = scmp.ne.s32.totalorder %s90, %s91
    %p103 = scmp.eq.s32.totalorder %s18, 1
    %p104 = por %p102, %p103
    %p106 = scmp.ne.s32.totalorder %s91, %s105
    %p107 = scmp.eq.s32.totalorder %s18, 0
    %p108 = por %p106, %p107
    %s110 = sadd.s32 %s109, 1
    %p113 = scmp.eq.s32.totalorder %s12, 1
    %p114 = scmp.ne.s32.totalorder %s109, %s111
    %p115 = scmp.eq.s32.totalorder %s12, 0
    %p116 = por %p114, %p115
    %p117 = scmp.ne.s32.totalorder %s109, %s111
    %p118 = scmp.eq.s32.totalorder %s17, 1
    %p119 = por %p117, %p118
    %p120 = scmp.ne.s32.totalorder %s111, %s112
    %p121 = scmp.eq.s32.totalorder %s17, 0
    %p122 = por %p120, %p121
    %p123 = scmp.ne.s32.totalorder %s111, %s112
    %p124 = scmp.eq.s32.totalorder %s18, 1
    %p125 = por %p123, %p124
    %p127 = scmp.ne.s32.totalorder %s112, %s126
    %p128 = scmp.eq.s32.totalorder %s18, 0
    %p129 = por %p127, %p128
    %s131 = sadd.s32 %s130, 1
    %p134 = scmp.eq.s32.totalorder %s12, 1
    %p135 = scmp.ne.s32.totalorder %s130, %s132
    %p136 = scmp.eq.s32.totalorder %s12, 0
    %p137 = por %p135, %p136
    %p138 = scmp.ne.s32.totalorder %s130, %s132
    %p139 = scmp.eq.s32.totalorder %s17, 1
    %p140 = por %p138, %p139
    %p141 = scmp.ne.s32.totalorder %s132, %s133
    %p142 = scmp.eq.s32.totalorder %s17, 0
    %p143 = por %p141, %p142
    %p144 = scmp.ne.s32.totalorder %s132, %s133
    %p145 = scmp.eq.s32.totalorder %s18, 1
    %p146 = por %p144, %p145
    %p148 = scmp.ne.s32.totalorder %s133, %s147
    %p149 = scmp.eq.s32.totalorder %s18, 0
    %p150 = por %p148, %p149
    %s151 = ssub.s32 %s12, %s19
    %p152 = scmp.eq.s32.totalorder %s151, 0
    %s154 = sadd.s32 %s153, 1
    %s155 = scalar_select %p152, %s153, %s154
    %p158 = pneg %p152
    %p159 = scmp.eq.s32.totalorder %s12, 1
    %p160 = por %p158, %p159
    %p161 = scmp.ne.s32.totalorder %s153, %s156
    %p162 = scmp.eq.s32.totalorder %s12, 0
    %p163 = por %p161, %p162
    %p164 = scmp.ne.s32.totalorder %s153, %s156
    %p165 = scmp.eq.s32.totalorder %s17, 1
    %p166 = por %p164, %p165
    %p167 = scmp.ne.s32.totalorder %s156, %s157
    %p168 = scmp.eq.s32.totalorder %s17, 0
    %p169 = por %p167, %p168
    %p170 = scmp.ne.s32.totalorder %s156, %s157
    %p171 = scmp.eq.s32.totalorder %s18, 1
    %p172 = por %p170, %p171
    %p174 = scmp.ne.s32.totalorder %s157, %s173
    %p175 = scmp.eq.s32.totalorder %s18, 0
    %p176 = por %p174, %p175
    %p177 = scmp.le.s32.totalorder 1, %s12
    %p178 = scmp.lt.s32.totalorder %s12, 3
    %p179 = pnand %p177, %p178
    %p180 = pneg %p179
    // Predicated region
    $region9: #{tsvit_forward.11} parent=5 // pred_check
      _
    $region10: #{tsvit_forward.11} parent=5 // pred_check_branch
      %182 = sbr.rel (%p179) target = $region12
    $region11: #{tsvit_forward.11} parent=5 // pred_region
      %s183 = ssub.s32 %s12, 1
      // Predicated region
      $region13: #{tsvit_forward.11} parent=11 // pred_check
        %p184 = pneg %p59
      $region14: #{tsvit_forward.11} parent=11 // pred_check_branch
        %186 = sbr.rel (%p184) target = $region16
      $region15: #{tsvit_forward.11} parent=11 // pred_region
        _
      $region16: #{tsvit_forward.11} parent=11 // pred_fallthru
        _
      // Predicated region
      $region17: #{tsvit_forward.11} parent=11 // pred_check
        %p187 = pneg %p80
      $region18: #{tsvit_forward.11} parent=11 // pred_check_branch
        %189 = sbr.rel (%p187) target = $region20
      $region19: #{tsvit_forward.11} parent=11 // pred_region
        _
      $region20: #{tsvit_forward.11} parent=11 // pred_fallthru
        _
      // Predicated region
      $region21: #{tsvit_forward.11} parent=11 // pred_check
        %p190 = pneg %p101
      $region22: #{tsvit_forward.11} parent=11 // pred_check_branch
        %192 = sbr.rel (%p190) target = $region24
      $region23: #{tsvit_forward.11} parent=11 // pred_region
        _
      $region24: #{tsvit_forward.11} parent=11 // pred_fallthru
        _
      // Predicated region
      $region25: #{tsvit_forward.11} parent=11 // pred_check
        %p193 = pneg %p122
      $region26: #{tsvit_forward.11} parent=11 // pred_check_branch
        %195 = sbr.rel (%p193) target = $region28
      $region27: #{tsvit_forward.11} parent=11 // pred_region
        _
      $region28: #{tsvit_forward.11} parent=11 // pred_fallthru
        _
      // Predicated region
      $region29: #{tsvit_forward.11} parent=11 // pred_check
        %p196 = pneg %p143
      $region30: #{tsvit_forward.11} parent=11 // pred_check_branch
        %198 = sbr.rel (%p196) target = $region32
      $region31: #{tsvit_forward.11} parent=11 // pred_region
        _
      $region32: #{tsvit_forward.11} parent=11 // pred_fallthru
        _
    $region12: #{tsvit_forward.11} parent=5 // pred_fallthru
      _
    %p199 = scmp.lt.s32.totalorder %s12, 2
    // Predicated region
    $region33: #{tsvit_forward.11} parent=5 // pred_check
      %p200 = pneg %p199
    $region34: #{tsvit_forward.11} parent=5 // pred_check_branch
      %202 = sbr.rel (%p200) target = $region36
    $region35: #{tsvit_forward.11} parent=5 // pred_region
      // Predicated region
      $region37: #{tsvit_forward.11} parent=35 // pred_check
        %p203 = pneg %p32
      $region38: #{tsvit_forward.11} parent=35 // pred_check_branch
        %205 = sbr.rel (%p203) target = $region40
      $region39: #{tsvit_forward.11} parent=35 // pred_region
        %s206 = smul.u32 4, %s12
        %p207 = scmp.lt.s32.totalorder %s206, 7
        %s208 = scalar_select %p207, %s206, 7
        %s209 = smul.addr %s208, 2
        %s210 = smul.addr %s209, 4
        %s211 = scalar_lea.vmem %s0, %s210
        %s212 = smul.u32 4, %s12
      $region40: #{tsvit_forward.11} parent=35 // pred_fallthru
        _
    $region36: #{tsvit_forward.11} parent=5 // pred_fallthru
      _
    %p213 = scmp.le.s32.totalorder 1, %s12
    %p214 = scmp.lt.s32.totalorder %s12, 3
    %p215 = pnand %p213, %p214
    %p216 = pneg %p215
    // Predicated region
    $region41: #{tsvit_forward.11} parent=5 // pred_check
      _
    $region42: #{tsvit_forward.11} parent=5 // pred_check_branch
      %218 = sbr.rel (%p215) target = $region44
    $region43: #{tsvit_forward.11} parent=5 // pred_region
      %s219 = ssub.s32 %s12, 1
      %s220 = smul.u32 4, %s17
      %p221 = scmp.lt.s32.totalorder %s220, 7
      %s222 = scalar_select %p221, %s220, 7
      %s223 = smul.addr %s222, 2
      %s224 = smul.addr %s223, 4
      %s225 = scalar_lea.vmem %s0, %s224
      %p226 = pneg %p38
      %p227 = pneg %p35
      %p228 = pneg %p59
      %p229 = pneg %p56
      %p230 = pneg %p80
      %p231 = pneg %p77
      %p232 = pneg %p101
      %p233 = pneg %p98
      %p234 = pneg %p122
      %p235 = pneg %p119
      %p236 = pneg %p143
      %p237 = pneg %p140
      %p238 = pneg %p169
      %p239 = pneg %p166
      %s240 = smul.u32 4, %s17
      %p241 = scmp.lt.s32.totalorder %s240, 7
      %s242 = scalar_select %p241, %s240, 7
      %s243 = smul.addr %s242, 2
      %s244 = smul.addr %s243, 4
      %s245 = scalar_lea.vmem %s6, %s244
      %s246 = smul.u32 4, %s17
      %p247 = scmp.lt.s32.totalorder %s246, 7
      %s248 = scalar_select %p247, %s246, 7
      %s249 = smul.addr %s248, 2
      %s250 = smul.addr %s249, 4
      %s251 = scalar_lea.vmem %s0, %s250
      %s252 = smul.u32 4, %s17
      %s253 = smul.u32 4, %s17
      %p254 = scmp.lt.s32.totalorder %s253, 7
      %s255 = scalar_select %p254, %s253, 7
      %s256 = smul.addr %s255, 2
      %s257 = smul.addr %s256, 4
      %s258 = scalar_lea.vmem %s6, %s257
      %s259 = smul.u32 4, %s17
      %v261 = vld [vmem:[%s251] sm:$0xf]
      %v262 = vld [vmem:[%s251 + $0x4] sm:$0xf]
      %v263 = vld [vmem:[%s251 + $0x8] sm:$0xf]
      %v264 = vld [vmem:[%s251 + $0xc] sm:$0xf]
      %v265 = vld [vmem:[%s251 + $0x10] sm:$0xf]
      %v266 = vld [vmem:[%s251 + $0x14] sm:$0xf]
      %v267 = vld [vmem:[%s251 + $0x18] sm:$0xf]
      %v268 = vld [vmem:[%s251 + $0x1c] sm:$0xf]
      %v269 = vunpack.c.l.bf16 %v261
      %v270 = vunpack.c.l.bf16 %v262
      %v271 = vunpack.c.l.bf16 %v263
      %v272 = vunpack.c.l.bf16 %v264
      %v273 = vunpack.c.l.bf16 %v265
      %v274 = vunpack.c.l.bf16 %v266
      %v275 = vunpack.c.l.bf16 %v267
      %v276 = vunpack.c.l.bf16 %v268
      %v277 = vld [vmem:[%s1] sm:$0x1]
      %v278 = vld [vmem:[%s2] sm:$0x1]
      %vm279 = vcmask 261120
      %v280 = vsel %vm279, %v269, 0.0
      %281 = vadd.xlane.f32.xlu0 %v280
      %v282 = vpop.xlane.xlu0 %281
      %v283 = vsel %vm279, %v270, 0.0
      %284 = vadd.xlane.f32.xlu0 %v283
      %v285 = vpop.xlane.xlu0 %284
      %v286 = vsel %vm279, %v271, 0.0
      %287 = vadd.xlane.f32.xlu0 %v286
      %v288 = vpop.xlane.xlu0 %287
      %v289 = vsel %vm279, %v272, 0.0
      %290 = vadd.xlane.f32.xlu0 %v289
      %v291 = vpop.xlane.xlu0 %290
      %v292 = vsel %vm279, %v273, 0.0
      %293 = vadd.xlane.f32.xlu0 %v292
      %v294 = vpop.xlane.xlu0 %293
      %v295 = vsel %vm279, %v274, 0.0
      %296 = vadd.xlane.f32.xlu0 %v295
      %v297 = vpop.xlane.xlu0 %296
      %v298 = vsel %vm279, %v275, 0.0
      %299 = vadd.xlane.f32.xlu0 %v298
      %v300 = vpop.xlane.xlu0 %299
      %v301 = vsel %vm279, %v276, 0.0
      %302 = vadd.xlane.f32.xlu0 %v301
      %v303 = vpop.xlane.xlu0 %302
      %v304 = vrcp.pop 32.0
      %v305 = vmul.f32 %v282, %v304
      %v306 = vmul.f32 %v285, %v304
      %v307 = vmul.f32 %v288, %v304
      %v308 = vmul.f32 %v291, %v304
      %v309 = vmul.f32 %v294, %v304
      %v310 = vmul.f32 %v297, %v304
      %v311 = vmul.f32 %v300, %v304
      %v312 = vmul.f32 %v303, %v304
      %v313 = vsub.f32 %v269, %v305
      %v314 = vsub.f32 %v270, %v306
      %v315 = vsub.f32 %v271, %v307
      %v316 = vsub.f32 %v272, %v308
      %v317 = vsub.f32 %v273, %v309
      %v318 = vsub.f32 %v274, %v310
      %v319 = vsub.f32 %v275, %v311
      %v320 = vsub.f32 %v276, %v312
      %v321 = vmul.f32 %v313, %v313
      %v322 = vmul.f32 %v314, %v314
      %v323 = vmul.f32 %v315, %v315
      %v324 = vmul.f32 %v316, %v316
      %v325 = vmul.f32 %v317, %v317
      %v326 = vmul.f32 %v318, %v318
      %v327 = vmul.f32 %v319, %v319
      %v328 = vmul.f32 %v320, %v320
      %v329 = vsel %vm279, %v321, 0.0
      %330 = vadd.xlane.f32.xlu0 %v329
      %v331 = vpop.xlane.xlu0 %330
      %v332 = vsel %vm279, %v322, 0.0
      %333 = vadd.xlane.f32.xlu0 %v332
      %v334 = vpop.xlane.xlu0 %333
      %v335 = vsel %vm279, %v323, 0.0
      %336 = vadd.xlane.f32.xlu0 %v335
      %v337 = vpop.xlane.xlu0 %336
      %v338 = vsel %vm279, %v324, 0.0
      %339 = vadd.xlane.f32.xlu0 %v338
      %v340 = vpop.xlane.xlu0 %339
      %v341 = vsel %vm279, %v325, 0.0
      %342 = vadd.xlane.f32.xlu0 %v341
      %v343 = vpop.xlane.xlu0 %342
      %v344 = vsel %vm279, %v326, 0.0
      %345 = vadd.xlane.f32.xlu0 %v344
      %v346 = vpop.xlane.xlu0 %345
      %v347 = vsel %vm279, %v327, 0.0
      %348 = vadd.xlane.f32.xlu0 %v347
      %v349 = vpop.xlane.xlu0 %348
      %v350 = vsel %vm279, %v328, 0.0
      %351 = vadd.xlane.f32.xlu0 %v350
      %v352 = vpop.xlane.xlu0 %351
      %v353 = vmul.f32 %v331, %v304
      %v354 = vmul.f32 %v334, %v304
      %v355 = vmul.f32 %v337, %v304
      %v356 = vmul.f32 %v340, %v304
      %v357 = vmul.f32 %v343, %v304
      %v358 = vmul.f32 %v346, %v304
      %v359 = vmul.f32 %v349, %v304
      %v360 = vmul.f32 %v352, %v304
      %v361 = vadd.f32 %v353, 1e-05
      %v362 = vadd.f32 %v354, 1e-05
      %v363 = vadd.f32 %v355, 1e-05
      %v364 = vadd.f32 %v356, 1e-05
      %v365 = vadd.f32 %v357, 1e-05
      %v366 = vadd.f32 %v358, 1e-05
      %v367 = vadd.f32 %v359, 1e-05
      %v368 = vadd.f32 %v360, 1e-05
      %v369 = vrsqrt.pop %v361
      %v370 = vrsqrt.pop %v362
      %v371 = vrsqrt.pop %v363
      %v372 = vrsqrt.pop %v364
      %v373 = vrsqrt.pop %v365
      %v374 = vrsqrt.pop %v366
      %v375 = vrsqrt.pop %v367
      %v376 = vrsqrt.pop %v368
      %v377 = vmul.f32 %v313, %v369
      %v378 = vmul.f32 %v314, %v370
      %v379 = vmul.f32 %v315, %v371
      %v380 = vmul.f32 %v316, %v372
      %v381 = vmul.f32 %v317, %v373
      %v382 = vmul.f32 %v318, %v374
      %v383 = vmul.f32 %v319, %v375
      %v384 = vmul.f32 %v320, %v376
      %v386 = vlaneseq
      %v387 = vshrl.u32 %v386, 7
      %v388 = vsub.s32 0, %v387
      %v389 = vrot.slane %v277, %v388
      %v391 = vmul.f32 %v377, %v389
      %v392 = vmul.f32 %v378, %v389
      %v393 = vmul.f32 %v379, %v389
      %v394 = vmul.f32 %v380, %v389
      %v395 = vmul.f32 %v381, %v389
      %v396 = vmul.f32 %v382, %v389
      %v397 = vmul.f32 %v383, %v389
      %v398 = vmul.f32 %v384, %v389
      %v400 = vlaneseq
      %v401 = vshrl.u32 %v400, 7
      %v402 = vsub.s32 0, %v401
      %v403 = vrot.slane %v278, %v402
      %v405 = vadd.f32 %v391, %v403
      %v406 = vadd.f32 %v392, %v403
      %v407 = vadd.f32 %v393, %v403
      %v408 = vadd.f32 %v394, %v403
      %v409 = vadd.f32 %v395, %v403
      %v410 = vadd.f32 %v396, %v403
      %v411 = vadd.f32 %v397, %v403
      %v412 = vadd.f32 %v398, %v403
      %v413 = vpack.c.bf16 %v406, %v405
      %v414 = vpack.c.bf16 %v408, %v407
      %v415 = vpack.c.bf16 %v410, %v409
      %v416 = vpack.c.bf16 %v412, %v411
      %v417 = vld [vmem:[%s3] sm:$0xf]
      %v418 = vld [vmem:[%s3 + $0x4] sm:$0xf]
      %v419 = vld [vmem:[%s3 + $0x8] sm:$0xf]
      %v420 = vld [vmem:[%s3 + $0xc] sm:$0xf]
      %v425 = vunpack.c.l.b16 %v417
      %v426 = vunpack.c.l.b16 %v418
      %v427 = vunpack.c.l.b16 %v419
      %v428 = vunpack.c.l.b16 %v420
      %v429 = vpack.c.b16 %v426, %v425
      %v430 = vpack.c.b16 %v428, %v427
      %v434 = vsel %vm279, %v413, 0
      %v437 = vsel %vm279, %v414, 0
      %v440 = vsel %vm279, %v415, 0
      %v443 = vsel %vm279, %v416, 0
      %445 = vmatprep.subr.bf16.mxu0 0
      %446 = vmatpush1.bf16.msra.mxu0 %v429
      %447 = vmatprep.subr.bf16.mxu0 0
      %448 = vmatpush1.bf16.msra.mxu0 %v430
      %449 = vmatprep.subr.bf16.mxu0 0
      %450 = vmatpush1.bf16.msra.mxu0 0
      %451 = vmatprep.subr.bf16.mxu0 0
      %452 = vmatpush1.bf16.msra.mxu0 0
      %453 = vmatprep.subr.bf16.mxu0 0
      %454 = vmatpush1.bf16.msra.mxu0 0
      %455 = vmatprep.subr.bf16.mxu0 0
      %456 = vmatpush1.bf16.msra.mxu0 0
      %457 = vmatprep.subr.bf16.mxu0 0
      %458 = vmatpush1.bf16.msra.mxu0 0
      %459 = vmatprep.subr.bf16.mxu0 0
      %460 = vmatpush1.bf16.msra.mxu0 0
      %461 = vmatprep.subr.bf16.mxu0 0
      %462 = vmatpush1.bf16.msra.mxu0 0
      %463 = vmatprep.subr.bf16.mxu0 0
      %464 = vmatpush1.bf16.msra.mxu0 0
      %465 = vmatprep.subr.bf16.mxu0 0
      %466 = vmatpush1.bf16.msra.mxu0 0
      %467 = vmatprep.subr.bf16.mxu0 0
      %468 = vmatpush1.bf16.msra.mxu0 0
      %469 = vmatprep.subr.bf16.mxu0 0
      %470 = vmatpush1.bf16.msra.mxu0 0
      %471 = vmatprep.subr.bf16.mxu0 0
      %472 = vmatpush1.bf16.msra.mxu0 0
      %473 = vmatprep.subr.bf16.mxu0 0
      %474 = vmatpush1.bf16.msra.mxu0 0
      %475 = vmatprep.subr.bf16.mxu0 0
      %476 = vmatpush1.bf16.msra.mxu0 0
      %477 = vmatprep.mubr.bf16.mxu0 0
      %478 = vmatmul.mubr.bf16.gmra.mrb[0].mxu0 %v434
      %v479 = vpop.f32.mrb[0].mxu0
      %v480 = vadd.f32 0.0, %v479
      %v481 = vpop.f32.mrb[0].mxu0
      %v482 = vpop.f32.mrb[0].mxu0
      %v483 = vadd.f32 0.0, %v482
      %v484 = vpop.f32.mrb[0].mxu0
      %485 = vmatprep.mubr.bf16.mxu0 0
      %486 = vmatmul.mubr.bf16.gmra.mrb[0].mxu0 %v437
      %v487 = vpop.f32.mrb[0].mxu0
      %v488 = vadd.f32 0.0, %v487
      %v489 = vpop.f32.mrb[0].mxu0
      %v490 = vpop.f32.mrb[0].mxu0
      %v491 = vadd.f32 0.0, %v490
      %v492 = vpop.f32.mrb[0].mxu0
      %493 = vmatprep.mubr.bf16.mxu0 0
      %494 = vmatmul.mubr.bf16.gmra.mrb[0].mxu0 %v440
      %v495 = vpop.f32.mrb[0].mxu0
      %v496 = vadd.f32 0.0, %v495
      %v497 = vpop.f32.mrb[0].mxu0
      %v498 = vpop.f32.mrb[0].mxu0
      %v499 = vadd.f32 0.0, %v498
      %v500 = vpop.f32.mrb[0].mxu0
      %501 = vmatprep.mubr.bf16.mxu0 0
      %502 = vmatmul.mubr.bf16.gmra.mrb[0].mxu0 %v443
      %v503 = vpop.f32.mrb[0].mxu0
      %v504 = vadd.f32 0.0, %v503
      %v505 = vpop.f32.mrb[0].mxu0
      %v506 = vpop.f32.mrb[0].mxu0
      %v507 = vadd.f32 0.0, %v506
      %v508 = vpop.f32.mrb[0].mxu0
      %509 = vdwg.mxu0
      %518 = vrot.lane.b32.xlu0 %v480, 112
      %v519 = vpop.permute.xlu0 %518
      %520 = vrot.lane.b32.xlu0 %v483, 112
      %v521 = vpop.permute.xlu0 %520
      %522 = vrot.lane.b32.xlu0 %v488, 112
      %v523 = vpop.permute.xlu0 %522
      %524 = vrot.lane.b32.xlu0 %v491, 112
      %v525 = vpop.permute.xlu0 %524
      %526 = vrot.lane.b32.xlu0 %v496, 112
      %v527 = vpop.permute.xlu0 %526
      %528 = vrot.lane.b32.xlu0 %v499, 112
      %v529 = vpop.permute.xlu0 %528
      %530 = vrot.lane.b32.xlu0 %v504, 112
      %v531 = vpop.permute.xlu0 %530
      %532 = vrot.lane.b32.xlu0 %v507, 112
      %v533 = vpop.permute.xlu0 %532
      %v542 = vmul.f32 %v480, 0.25
      %v543 = vmul.f32 %v483, 0.25
      %v544 = vmul.f32 %v488, 0.25
      %v545 = vmul.f32 %v491, 0.25
      %v546 = vmul.f32 %v496, 0.25
      %v547 = vmul.f32 %v499, 0.25
      %v548 = vmul.f32 %v504, 0.25
      %v549 = vmul.f32 %v507, 0.25
      %v550 = vmul.f32 %v519, 0.25
      %v551 = vmul.f32 %v521, 0.25
      %v552 = vmul.f32 %v523, 0.25
      %v553 = vmul.f32 %v525, 0.25
      %v554 = vmul.f32 %v527, 0.25
      %v555 = vmul.f32 %v529, 0.25
      %v556 = vmul.f32 %v531, 0.25
      %v557 = vmul.f32 %v533, 0.25
      %v558 = vpack.c.bf16 %v543, %v542
      %v559 = vpack.c.bf16 %v545, %v544
      %v560 = vpack.c.bf16 %v547, %v546
      %v561 = vpack.c.bf16 %v549, %v548
      %v562 = vpack.c.bf16 %v551, %v550
      %v563 = vpack.c.bf16 %v553, %v552
      %v564 = vpack.c.bf16 %v555, %v554
      %v565 = vpack.c.bf16 %v557, %v556
      %v566 = vpack.c.bf16 %v483, %v480
      %v567 = vpack.c.bf16 %v491, %v488
      %v568 = vpack.c.bf16 %v499, %v496
      %v569 = vpack.c.bf16 %v507, %v504
      %v570 = vpack.c.bf16 %v521, %v519
      %v571 = vpack.c.bf16 %v525, %v523
      %v572 = vpack.c.bf16 %v529, %v527
      %v573 = vpack.c.bf16 %v533, %v531
      %575 = vrot.lane.b32.xlu0 %v566, 96
      %v576 = vpop.permute.xlu0 %575
      %vm577 = vcmask 130048
      %v579 = vsel %vm577, %v558, 0
      %v582 = vsel %vm577, %v576, 0
      %584 = vmatprep.subr.bf16.mxu0 0
      %585 = vmatpush1.bf16.xpose.msra.mxu0 %v582
      %586 = vmatprep.subr.bf16.mxu0 0
      %587 = vmatpush1.bf16.xpose.msra.mxu0 0
      %588 = vmatprep.subr.bf16.mxu0 0
      %589 = vmatpush1.bf16.xpose.msra.mxu0 0
      %590 = vmatprep.subr.bf16.mxu0 0
      %591 = vmatpush1.bf16.xpose.msra.mxu0 0
      %592 = vmatprep.subr.bf16.mxu0 0
      %593 = vmatpush1.bf16.xpose.msra.mxu0 0
      %594 = vmatprep.subr.bf16.mxu0 0
      %595 = vmatpush1.bf16.xpose.msra.mxu0 0
      %596 = vmatprep.subr.bf16.mxu0 0
      %597 = vmatpush1.bf16.xpose.msra.mxu0 0
      %598 = vmatprep.subr.bf16.mxu0 0
      %599 = vmatpush1.bf16.xpose.msra.mxu0 0
      %600 = vmatprep.subr.bf16.mxu0 0
      %601 = vmatpush1.bf16.xpose.msra.mxu0 0
      %602 = vmatprep.subr.bf16.mxu0 0
      %603 = vmatpush1.bf16.xpose.msra.mxu0 0
      %604 = vmatprep.subr.bf16.mxu0 0
      %605 = vmatpush1.bf16.xpose.msra.mxu0 0
      %606 = vmatprep.subr.bf16.mxu0 0
      %607 = vmatpush1.bf16.xpose.msra.mxu0 0
      %608 = vmatprep.subr.bf16.mxu0 0
      %609 = vmatpush1.bf16.xpose.msra.mxu0 0
      %610 = vmatprep.subr.bf16.mxu0 0
      %611 = vmatpush1.bf16.xpose.msra.mxu0 0
      %612 = vmatprep.subr.bf16.mxu0 0
      %613 = vmatpush1.bf16.xpose.msra.mxu0 0
      %614 = vmatprep.subr.bf16.mxu0 0
      %615 = vmatpush1.bf16.xpose.msra.mxu0 0
      %616 = vmatprep.mubr.bf16.mxu0 0
      %617 = vmatmul.mubr.bf16.gmra.mrb[0].mxu0 %v579
      %v618 = vpop.f32.mrb[0].mxu0
      %v619 = vadd.f32 0.0, %v618
      %v620 = vpop.f32.mrb[0].mxu0
      %v621 = vpop.f32.mrb[0].mxu0
      %v622 = vadd.f32 0.0, %v621
      %v623 = vpop.f32.mrb[0].mxu0
      %624 = vdwg.mxu0
      %626 = vrot.lane.b32.xlu0 %v567, 96
      %v627 = vpop.permute.xlu0 %626
      %v629 = vsel %vm577, %v559, 0
      %v632 = vsel %vm577, %v627, 0
      %634 = vmatprep.subr.bf16.mxu0 0
      %635 = vmatpush1.bf16.xpose.msra.mxu0 %v632
      %636 = vmatprep.subr.bf16.mxu0 0
      %637 = vmatpush1.bf16.xpose.msra.mxu0 0
      %638 = vmatprep.subr.bf16.mxu0 0
      %639 = vmatpush1.bf16.xpose.msra.mxu0 0
      %640 = vmatprep.subr.bf16.mxu0 0
      %641 = vmatpush1.bf16.xpose.msra.mxu0 0
      %642 = vmatprep.subr.bf16.mxu0 0
      %643 = vmatpush1.bf16.xpose.msra.mxu0 0
      %644 = vmatprep.subr.bf16.mxu0 0
      %645 = vmatpush1.bf16.xpose.msra.mxu0 0
      %646 = vmatprep.subr.bf16.mxu0 0
      %647 = vmatpush1.bf16.xpose.msra.mxu0 0
      %648 = vmatprep.subr.bf16.mxu0 0
      %649 = vmatpush1.bf16.xpose.msra.mxu0 0
      %650 = vmatprep.subr.bf16.mxu0 0
      %651 = vmatpush1.bf16.xpose.msra.mxu0 0
      %652 = vmatprep.subr.bf16.mxu0 0
      %653 = vmatpush1.bf16.xpose.msra.mxu0 0
      %654 = vmatprep.subr.bf16.mxu0 0
      %655 = vmatpush1.bf16.xpose.msra.mxu0 0
      %656 = vmatprep.subr.bf16.mxu0 0
      %657 = vmatpush1.bf16.xpose.msra.mxu0 0
      %658 = vmatprep.subr.bf16.mxu0 0
      %659 = vmatpush1.bf16.xpose.msra.mxu0 0
      %660 = vmatprep.subr.bf16.mxu0 0
      %661 = vmatpush1.bf16.xpose.msra.mxu0 0
      %662 = vmatprep.subr.bf16.mxu0 0
      %663 = vmatpush1.bf16.xpose.msra.mxu0 0
      %664 = vmatprep.subr.bf16.mxu0 0
      %665 = vmatpush1.bf16.xpose.msra.mxu0 0
      %666 = vmatprep.mubr.bf16.mxu0 0
      %667 = vmatmul.mubr.bf16.gmra.mrb[0].mxu0 %v629
      %v668 = vpop.f32.mrb[0].mxu0
      %v669 = vadd.f32 0.0, %v668
      %v670 = vpop.f32.mrb[0].mxu0
      %v671 = vpop.f32.mrb[0].mxu0
      %v672 = vadd.f32 0.0, %v671
      %v673 = vpop.f32.mrb[0].mxu0
      %674 = vdwg.mxu0
      %676 = vrot.lane.b32.xlu0 %v568, 96
      %v677 = vpop.permute.xlu0 %676
      %v679 = vsel %vm577, %v560, 0
      %v682 = vsel %vm577, %v677, 0
      %684 = vmatprep.subr.bf16.mxu0 0
      %685 = vmatpush1.bf16.xpose.msra.mxu0 %v682
      %686 = vmatprep.subr.bf16.mxu0 0
      %687 = vmatpush1.bf16.xpose.msra.mxu0 0
      %688 = vmatprep.subr.bf16.mxu0 0
      %689 = vmatpush1.bf16.xpose.msra.mxu0 0
      %690 = vmatprep.subr.bf16.mxu0 0
      %691 = vmatpush1.bf16.xpose.msra.mxu0 0
      %692 = vmatprep.subr.bf16.mxu0 0
      %693 = vmatpush1.bf16.xpose.msra.mxu0 0
      %694 = vmatprep.subr.bf16.mxu0 0
      %695 = vmatpush1.bf16.xpose.msra.mxu0 0
      %696 = vmatprep.subr.bf16.mxu0 0
      %697 = vmatpush1.bf16.xpose.msra.mxu0 0
      %698 = vmatprep.subr.bf16.mxu0 0
      %699 = vmatpush1.bf16.xpose.msra.mxu0 0
      %700 = vmatprep.subr.bf16.mxu0 0
      %701 = vmatpush1.bf16.xpose.msra.mxu0 0
      %702 = vmatprep.subr.bf16.mxu0 0
      %703 = vmatpush1.bf16.xpose.msra.mxu0 0
      %704 = vmatprep.subr.bf16.mxu0 0
      %705 = vmatpush1.bf16.xpose.msra.mxu0 0
      %706 = vmatprep.subr.bf16.mxu0 0
      %707 = vmatpush1.bf16.xpose.msra.mxu0 0
      %708 = vmatprep.subr.bf16.mxu0 0
      %709 = vmatpush1.bf16.xpose.msra.mxu0 0
      %710 = vmatprep.subr.bf16.mxu0 0
      %711 = vmatpush1.bf16.xpose.msra.mxu0 0
      %712 = vmatprep.subr.bf16.mxu0 0
      %713 = vmatpush1.bf16.xpose.msra.mxu0 0
      %714 = vmatprep.subr.bf16.mxu0 0
      %715 = vmatpush1.bf16.xpose.msra.mxu0 0
      %716 = vmatprep.mubr.bf16.mxu0 0
      %717 = vmatmul.mubr.bf16.gmra.mrb[0].mxu0 %v679
      %v718 = vpop.f32.mrb[0].mxu0
      %v719 = vadd.f32 0.0, %v718
      %v720 = vpop.f32.mrb[0].mxu0
      %v721 = vpop.f32.mrb[0].mxu0
      %v722 = vadd.f32 0.0, %v721
      %v723 = vpop.f32.mrb[0].mxu0
      %724 = vdwg.mxu0
      %726 = vrot.lane.b32.xlu0 %v569, 96
      %v727 = vpop.permute.xlu0 %726
      %v729 = vsel %vm577, %v561, 0
      %v732 = vsel %vm577, %v727, 0
      %734 = vmatprep.subr.bf16.mxu0 0
      %735 = vmatpush1.bf16.xpose.msra.mxu0 %v732
      %736 = vmatprep.subr.bf16.mxu0 0
      %737 = vmatpush1.bf16.xpose.msra.mxu0 0
      %738 = vmatprep.subr.bf16.mxu0 0
      %739 = vmatpush1.bf16.xpose.msra.mxu0 0
      %740 = vmatprep.subr.bf16.mxu0 0
      %741 = vmatpush1.bf16.xpose.msra.mxu0 0
      %742 = vmatprep.subr.bf16.mxu0 0
      %743 = vmatpush1.bf16.xpose.msra.mxu0 0
      %744 = vmatprep.subr.bf16.mxu0 0
      %745 = vmatpush1.bf16.xpose.msra.mxu0 0
      %746 = vmatprep.subr.bf16.mxu0 0
      %747 = vmatpush1.bf16.xpose.msra.mxu0 0
      %748 = vmatprep.subr.bf16.mxu0 0
      %749 = vmatpush1.bf16.xpose.msra.mxu0 0
      %750 = vmatprep.subr.bf16.mxu0 0
      %751 = vmatpush1.bf16.xpose.msra.mxu0 0
      %752 = vmatprep.subr.bf16.mxu0 0
      %753 = vmatpush1.bf16.xpose.msra.mxu0 0
      %754 = vmatprep.subr.bf16.mxu0 0
      %755 = vmatpush1.bf16.xpose.msra.mxu0 0
      %756 = vmatprep.subr.bf16.mxu0 0
      %757 = vmatpush1.bf16.xpose.msra.mxu0 0
      %758 = vmatprep.subr.bf16.mxu0 0
      %759 = vmatpush1.bf16.xpose.msra.mxu0 0
      %760 = vmatprep.subr.bf16.mxu0 0
      %761 = vmatpush1.bf16.xpose.msra.mxu0 0
      %762 = vmatprep.subr.bf16.mxu0 0
      %763 = vmatpush1.bf16.xpose.msra.mxu0 0
      %764 = vmatprep.subr.bf16.mxu0 0
      %765 = vmatpush1.bf16.xpose.msra.mxu0 0
      %766 = vmatprep.mubr.bf16.mxu0 0
      %767 = vmatmul.mubr.bf16.gmra.mrb[0].mxu0 %v729
      %v768 = vpop.f32.mrb[0].mxu0
      %v769 = vadd.f32 0.0, %v768
      %v770 = vpop.f32.mrb[0].mxu0
      %v771 = vpop.f32.mrb[0].mxu0
      %v772 = vadd.f32 0.0, %v771
      %v773 = vpop.f32.mrb[0].mxu0
      %774 = vdwg.mxu0
      %776 = vrot.lane.b32.xlu0 %v570, 96
      %v777 = vpop.permute.xlu0 %776
      %v779 = vsel %vm577, %v562, 0
      %v782 = vsel %vm577, %v777, 0
      %784 = vmatprep.subr.bf16.mxu0 0
      %785 = vmatpush1.bf16.xpose.msra.mxu0 %v782
      %786 = vmatprep.subr.bf16.mxu0 0
      %787 = vmatpush1.bf16.xpose.msra.mxu0 0
      %788 = vmatprep.subr.bf16.mxu0 0
      %789 = vmatpush1.bf16.xpose.msra.mxu0 0
      %790 = vmatprep.subr.bf16.mxu0 0
      %791 = vmatpush1.bf16.xpose.msra.mxu0 0
      %792 = vmatprep.subr.bf16.mxu0 0
      %793 = vmatpush1.bf16.xpose.msra.mxu0 0
      %794 = vmatprep.subr.bf16.mxu0 0
      %795 = vmatpush1.bf16.xpose.msra.mxu0 0
      %796 = vmatprep.subr.bf16.mxu0 0
      %797 = vmatpush1.bf16.xpose.msra.mxu0 0
      %798 = vmatprep.subr.bf16.mxu0 0
      %799 = vmatpush1.bf16.xpose.msra.mxu0 0
      %800 = vmatprep.subr.bf16.mxu0 0
      %801 = vmatpush1.bf16.xpose.msra.mxu0 0
      %802 = vmatprep.subr.bf16.mxu0 0
      %803 = vmatpush1.bf16.xpose.msra.mxu0 0
      %804 = vmatprep.subr.bf16.mxu0 0
      %805 = vmatpush1.bf16.xpose.msra.mxu0 0
      %806 = vmatprep.subr.bf16.mxu0 0
      %807 = vmatpush1.bf16.xpose.msra.mxu0 0
      %808 = vmatprep.subr.bf16.mxu0 0
      %809 = vmatpush1.bf16.xpose.msra.mxu0 0
      %810 = vmatprep.subr.bf16.mxu0 0
      %811 = vmatpush1.bf16.xpose.msra.mxu0 0
      %812 = vmatprep.subr.bf16.mxu0 0
      %813 = vmatpush1.bf16.xpose.msra.mxu0 0
      %814 = vmatprep.subr.bf16.mxu0 0
      %815 = vmatpush1.bf16.xpose.msra.mxu0 0
      %816 = vmatprep.mubr.bf16.mxu0 0
      %817 = vmatmul.mubr.bf16.gmra.mrb[0].mxu0 %v779
      %v818 = vpop.f32.mrb[0].mxu0
      %v819 = vadd.f32 0.0, %v818
      %v820 = vpop.f32.mrb[0].mxu0
      %v821 = vpop.f32.mrb[0].mxu0
      %v822 = vadd.f32 0.0, %v821
      %v823 = vpop.f32.mrb[0].mxu0
      %824 = vdwg.mxu0
      %826 = vrot.lane.b32.xlu0 %v571, 96
      %v827 = vpop.permute.xlu0 %826
      %v829 = vsel %vm577, %v563, 0
      %v832 = vsel %vm577, %v827, 0
      %834 = vmatprep.subr.bf16.mxu0 0
      %835 = vmatpush1.bf16.xpose.msra.mxu0 %v832
      %836 = vmatprep.subr.bf16.mxu0 0
      %837 = vmatpush1.bf16.xpose.msra.mxu0 0
      %838 = vmatprep.subr.bf16.mxu0 0
      %839 = vmatpush1.bf16.xpose.msra.mxu0 0
      %840 = vmatprep.subr.bf16.mxu0 0
      %841 = vmatpush1.bf16.xpose.msra.mxu0 0
      %842 = vmatprep.subr.bf16.mxu0 0
      %843 = vmatpush1.bf16.xpose.msra.mxu0 0
      %844 = vmatprep.subr.bf16.mxu0 0
      %845 = vmatpush1.bf16.xpose.msra.mxu0 0
      %846 = vmatprep.subr.bf16.mxu0 0
      %847 = vmatpush1.bf16.xpose.msra.mxu0 0
      %848 = vmatprep.subr.bf16.mxu0 0
      %849 = vmatpush1.bf16.xpose.msra.mxu0 0
      %850 = vmatprep.subr.bf16.mxu0 0
      %851 = vmatpush1.bf16.xpose.msra.mxu0 0
      %852 = vmatprep.subr.bf16.mxu0 0
      %853 = vmatpush1.bf16.xpose.msra.mxu0 0
      %854 = vmatprep.subr.bf16.mxu0 0
      %855 = vmatpush1.bf16.xpose.msra.mxu0 0
      %856 = vmatprep.subr.bf16.mxu0 0
      %857 = vmatpush1.bf16.xpose.msra.mxu0 0
      %858 = vmatprep.subr.bf16.mxu0 0
      %859 = vmatpush1.bf16.xpose.msra.mxu0 0
      %860 = vmatprep.subr.bf16.mxu0 0
      %861 = vmatpush1.bf16.xpose.msra.mxu0 0
      %862 = vmatprep.subr.bf16.mxu0 0
      %863 = vmatpush1.bf16.xpose.msra.mxu0 0
      %864 = vmatprep.subr.bf16.mxu0 0
      %865 = vmatpush1.bf16.xpose.msra.mxu0 0
      %866 = vmatprep.mubr.bf16.mxu0 0
      %867 = vmatmul.mubr.bf16.gmra.mrb[0].mxu0 %v829
      %v868 = vpop.f32.mrb[0].mxu0
      %v869 = vadd.f32 0.0, %v868
      %v870 = vpop.f32.mrb[0].mxu0
      %v871 = vpop.f32.mrb[0].mxu0
      %v872 = vadd.f32 0.0, %v871
      %v873 = vpop.f32.mrb[0].mxu0
      %874 = vdwg.mxu0
      %876 = vrot.lane.b32.xlu0 %v572, 96
      %v877 = vpop.permute.xlu0 %876
      %v879 = vsel %vm577, %v564, 0
      %v882 = vsel %vm577, %v877, 0
      %884 = vmatprep.subr.bf16.mxu0 0
      %885 = vmatpush1.bf16.xpose.msra.mxu0 %v882
      %886 = vmatprep.subr.bf16.mxu0 0
      %887 = vmatpush1.bf16.xpose.msra.mxu0 0
      %888 = vmatprep.subr.bf16.mxu0 0
      %889 = vmatpush1.bf16.xpose.msra.mxu0 0
      %890 = vmatprep.subr.bf16.mxu0 0
      %891 = vmatpush1.bf16.xpose.msra.mxu0 0
      %892 = vmatprep.subr.bf16.mxu0 0
      %893 = vmatpush1.bf16.xpose.msra.mxu0 0
      %894 = vmatprep.subr.bf16.mxu0 0
      %895 = vmatpush1.bf16.xpose.msra.mxu0 0
      %896 = vmatprep.subr.bf16.mxu0 0
      %897 = vmatpush1.bf16.xpose.msra.mxu0 0
      %898 = vmatprep.subr.bf16.mxu0 0
      %899 = vmatpush1.bf16.xpose.msra.mxu0 0
      %900 = vmatprep.subr.bf16.mxu0 0
      %901 = vmatpush1.bf16.xpose.msra.mxu0 0
      %902 = vmatprep.subr.bf16.mxu0 0
      %903 = vmatpush1.bf16.xpose.msra.mxu0 0
      %904 = vmatprep.subr.bf16.mxu0 0
      %905 = vmatpush1.bf16.xpose.msra.mxu0 0
      %906 = vmatprep.subr.bf16.mxu0 0
      %907 = vmatpush1.bf16.xpose.msra.mxu0 0
      %908 = vmatprep.subr.bf16.mxu0 0
      %909 = vmatpush1.bf16.xpose.msra.mxu0 0
      %910 = vmatprep.subr.bf16.mxu0 0
      %911 = vmatpush1.bf16.xpose.msra.mxu0 0
      %912 = vmatprep.subr.bf16.mxu0 0
      %913 = vmatpush1.bf16.xpose.msra.mxu0 0
      %914 = vmatprep.subr.bf16.mxu0 0
      %915 = vmatpush1.bf16.xpose.msra.mxu0 0
      %916 = vmatprep.mubr.bf16.mxu0 0
      %917 = vmatmul.mubr.bf16.gmra.mrb[0].mxu0 %v879
      %v918 = vpop.f32.mrb[0].mxu0
      %v919 = vadd.f32 0.0, %v918
      %v920 = vpop.f32.mrb[0].mxu0
      %v921 = vpop.f32.mrb[0].mxu0
      %v922 = vadd.f32 0.0, %v921
      %v923 = vpop.f32.mrb[0].mxu0
      %924 = vdwg.mxu0
      %926 = vrot.lane.b32.xlu0 %v573, 96
      %v927 = vpop.permute.xlu0 %926
      %v929 = vsel %vm577, %v565, 0
      %v932 = vsel %vm577, %v927, 0
      %934 = vmatprep.subr.bf16.mxu0 0
      %935 = vmatpush1.bf16.xpose.msra.mxu0 %v932
      %936 = vmatprep.subr.bf16.mxu0 0
      %937 = vmatpush1.bf16.xpose.msra.mxu0 0
      %938 = vmatprep.subr.bf16.mxu0 0
      %939 = vmatpush1.bf16.xpose.msra.mxu0 0
      %940 = vmatprep.subr.bf16.mxu0 0
      %941 = vmatpush1.bf16.xpose.msra.mxu0 0
      %942 = vmatprep.subr.bf16.mxu0 0
      %943 = vmatpush1.bf16.xpose.msra.mxu0 0
      %944 = vmatprep.subr.bf16.mxu0 0
      %945 = vmatpush1.bf16.xpose.msra.mxu0 0
      %946 = vmatprep.subr.bf16.mxu0 0
      %947 = vmatpush1.bf16.xpose.msra.mxu0 0
      %948 = vmatprep.subr.bf16.mxu0 0
      %949 = vmatpush1.bf16.xpose.msra.mxu0 0
      %950 = vmatprep.subr.bf16.mxu0 0
      %951 = vmatpush1.bf16.xpose.msra.mxu0 0
      %952 = vmatprep.subr.bf16.mxu0 0
      %953 = vmatpush1.bf16.xpose.msra.mxu0 0
      %954 = vmatprep.subr.bf16.mxu0 0
      %955 = vmatpush1.bf16.xpose.msra.mxu0 0
      %956 = vmatprep.subr.bf16.mxu0 0
      %957 = vmatpush1.bf16.xpose.msra.mxu0 0
      %958 = vmatprep.subr.bf16.mxu0 0
      %959 = vmatpush1.bf16.xpose.msra.mxu0 0
      %960 = vmatprep.subr.bf16.mxu0 0
      %961 = vmatpush1.bf16.xpose.msra.mxu0 0
      %962 = vmatprep.subr.bf16.mxu0 0
      %963 = vmatpush1.bf16.xpose.msra.mxu0 0
      %964 = vmatprep.subr.bf16.mxu0 0
      %965 = vmatpush1.bf16.xpose.msra.mxu0 0
      %966 = vmatprep.mubr.bf16.mxu0 0
      %967 = vmatmul.mubr.bf16.gmra.mrb[0].mxu0 %v929
      %v968 = vpop.f32.mrb[0].mxu0
      %v969 = vadd.f32 0.0, %v968
      %v970 = vpop.f32.mrb[0].mxu0
      %v971 = vpop.f32.mrb[0].mxu0
      %v972 = vadd.f32 0.0, %v971
      %v973 = vpop.f32.mrb[0].mxu0
      %974 = vdwg.mxu0
      %v975 = vsel %vm577, %v619, -inf
      %976 = vmax.xlane.f32.xlu0 %v975
      %v977 = vpop.xlane.xlu0 %976
      %v978 = vsel %vm577, %v622, -inf
      %979 = vmax.xlane.f32.xlu0 %v978
      %v980 = vpop.xlane.xlu0 %979
      %v981 = vsel %vm577, %v669, -inf
      %982 = vmax.xlane.f32.xlu0 %v981
      %v983 = vpop.xlane.xlu0 %982
      %v984 = vsel %vm577, %v672, -inf
      %985 = vmax.xlane.f32.xlu0 %v984
      %v986 = vpop.xlane.xlu0 %985
      %v987 = vsel %vm577, %v719, -inf
      %988 = vmax.xlane.f32.xlu0 %v987
      %v989 = vpop.xlane.xlu0 %988
      %v990 = vsel %vm577, %v722, -inf
      %991 = vmax.xlane.f32.xlu0 %v990
      %v992 = vpop.xlane.xlu0 %991
      %v993 = vsel %vm577, %v769, -inf
      %994 = vmax.xlane.f32.xlu0 %v993
      %v995 = vpop.xlane.xlu0 %994
      %v996 = vsel %vm577, %v772, -inf
      %997 = vmax.xlane.f32.xlu0 %v996
      %v998 = vpop.xlane.xlu0 %997
      %v999 = vsel %vm577, %v819, -inf
      %1000 = vmax.xlane.f32.xlu0 %v999
      %v1001 = vpop.xlane.xlu0 %1000
      %v1002 = vsel %vm577, %v822, -inf
      %1003 = vmax.xlane.f32.xlu0 %v1002
      %v1004 = vpop.xlane.xlu0 %1003
      %v1005 = vsel %vm577, %v869, -inf
      %1006 = vmax.xlane.f32.xlu0 %v1005
      %v1007 = vpop.xlane.xlu0 %1006
      %v1008 = vsel %vm577, %v872, -inf
      %1009 = vmax.xlane.f32.xlu0 %v1008
      %v1010 = vpop.xlane.xlu0 %1009
      %v1011 = vsel %vm577, %v919, -inf
      %1012 = vmax.xlane.f32.xlu0 %v1011
      %v1013 = vpop.xlane.xlu0 %1012
      %v1014 = vsel %vm577, %v922, -inf
      %1015 = vmax.xlane.f32.xlu0 %v1014
      %v1016 = vpop.xlane.xlu0 %1015
      %v1017 = vsel %vm577, %v969, -inf
      %1018 = vmax.xlane.f32.xlu0 %v1017
      %v1019 = vpop.xlane.xlu0 %1018
      %v1020 = vsel %vm577, %v972, -inf
      %1021 = vmax.xlane.f32.xlu0 %v1020
      %v1022 = vpop.xlane.xlu0 %1021
      %v1023 = vsub.f32 %v619, %v977
      %v1024 = vsub.f32 %v622, %v980
      %v1025 = vsub.f32 %v669, %v983
      %v1026 = vsub.f32 %v672, %v986
      %v1027 = vsub.f32 %v719, %v989
      %v1028 = vsub.f32 %v722, %v992
      %v1029 = vsub.f32 %v769, %v995
      %v1030 = vsub.f32 %v772, %v998
      %v1031 = vsub.f32 %v819, %v1001
      %v1032 = vsub.f32 %v822, %v1004
      %v1033 = vsub.f32 %v869, %v1007
      %v1034 = vsub.f32 %v872, %v1010
      %v1035 = vsub.f32 %v919, %v1013
      %v1036 = vsub.f32 %v922, %v1016
      %v1037 = vsub.f32 %v969, %v1019
      %v1038 = vsub.f32 %v972, %v1022
      %v1039 = vmul.f32 %v1023, 1.442695
      %v1040 = vpow.pop %v1039
      %v1041 = vmul.f32 %v1024, 1.442695
      %v1042 = vpow.pop %v1041
      %v1043 = vmul.f32 %v1025, 1.442695
      %v1044 = vpow.pop %v1043
      %v1045 = vmul.f32 %v1026, 1.442695
      %v1046 = vpow.pop %v1045
      %v1047 = vmul.f32 %v1027, 1.442695
      %v1048 = vpow.pop %v1047
      %v1049 = vmul.f32 %v1028, 1.442695
      %v1050 = vpow.pop %v1049
      %v1051 = vmul.f32 %v1029, 1.442695
      %v1052 = vpow.pop %v1051
      %v1053 = vmul.f32 %v1030, 1.442695
      %v1054 = vpow.pop %v1053
      %v1055 = vmul.f32 %v1031, 1.442695
      %v1056 = vpow.pop %v1055
      %v1057 = vmul.f32 %v1032, 1.442695
      %v1058 = vpow.pop %v1057
      %v1059 = vmul.f32 %v1033, 1.442695
      %v1060 = vpow.pop %v1059
      %v1061 = vmul.f32 %v1034, 1.442695
      %v1062 = vpow.pop %v1061
      %v1063 = vmul.f32 %v1035, 1.442695
      %v1064 = vpow.pop %v1063
      %v1065 = vmul.f32 %v1036, 1.442695
      %v1066 = vpow.pop %v1065
      %v1067 = vmul.f32 %v1037, 1.442695
      %v1068 = vpow.pop %v1067
      %v1069 = vmul.f32 %v1038, 1.442695
      %v1070 = vpow.pop %v1069
      %v1071 = vsel %vm577, %v1040, 0.0
      %1072 = vadd.xlane.f32.xlu0 %v1071
      %v1073 = vpop.xlane.xlu0 %1072
      %v1074 = vsel %vm577, %v1042, 0.0
      %1075 = vadd.xlane.f32.xlu0 %v1074
      %v1076 = vpop.xlane.xlu0 %1075
      %v1077 = vsel %vm577, %v1044, 0.0
      %1078 = vadd.xlane.f32.xlu0 %v1077
      %v1079 = vpop.xlane.xlu0 %1078
      %v1080 = vsel %vm577, %v1046, 0.0
      %1081 = vadd.xlane.f32.xlu0 %v1080
      %v1082 = vpop.xlane.xlu0 %1081
      %v1083 = vsel %vm577, %v1048, 0.0
      %1084 = vadd.xlane.f32.xlu0 %v1083
      %v1085 = vpop.xlane.xlu0 %1084
      %v1086 = vsel %vm577, %v1050, 0.0
      %1087 = vadd.xlane.f32.xlu0 %v1086
      %v1088 = vpop.xlane.xlu0 %1087
      %v1089 = vsel %vm577, %v1052, 0.0
      %1090 = vadd.xlane.f32.xlu0 %v1089
      %v1091 = vpop.xlane.xlu0 %1090
      %v1092 = vsel %vm577, %v1054, 0.0
      %1093 = vadd.xlane.f32.xlu0 %v1092
      %v1094 = vpop.xlane.xlu0 %1093
      %v1095 = vsel %vm577, %v1056, 0.0
      %1096 = vadd.xlane.f32.xlu0 %v1095
      %v1097 = vpop.xlane.xlu0 %1096
      %v1098 = vsel %vm577, %v1058, 0.0
      %1099 = vadd.xlane.f32.xlu0 %v1098
      %v1100 = vpop.xlane.xlu0 %1099
      %v1101 = vsel %vm577, %v1060, 0.0
      %1102 = vadd.xlane.f32.xlu0 %v1101
      %v1103 = vpop.xlane.xlu0 %1102
      %v1104 = vsel %vm577, %v1062, 0.0
      %1105 = vadd.xlane.f32.xlu0 %v1104
      %v1106 = vpop.xlane.xlu0 %1105
      %v1107 = vsel %vm577, %v1064, 0.0
      %1108 = vadd.xlane.f32.xlu0 %v1107
      %v1109 = vpop.xlane.xlu0 %1108
      %v1110 = vsel %vm577, %v1066, 0.0
      %1111 = vadd.xlane.f32.xlu0 %v1110
      %v1112 = vpop.xlane.xlu0 %1111
      %v1113 = vsel %vm577, %v1068, 0.0
      %1114 = vadd.xlane.f32.xlu0 %v1113
      %v1115 = vpop.xlane.xlu0 %1114
      %v1116 = vsel %vm577, %v1070, 0.0
      %1117 = vadd.xlane.f32.xlu0 %v1116
      %v1118 = vpop.xlane.xlu0 %1117
      %v1119 = vrcp.pop %v1073
      %v1120 = vrcp.pop %v1076
      %v1121 = vrcp.pop %v1079
      %v1122 = vrcp.pop %v1082
      %v1123 = vrcp.pop %v1085
      %v1124 = vrcp.pop %v1088
      %v1125 = vrcp.pop %v1091
      %v1126 = vrcp.pop %v1094
      %v1127 = vrcp.pop %v1097
      %v1128 = vrcp.pop %v1100
      %v1129 = vrcp.pop %v1103
      %v1130 = vrcp.pop %v1106
      %v1131 = vrcp.pop %v1109
      %v1132 = vrcp.pop %v1112
      %v1133 = vrcp.pop %v1115
      %v1134 = vrcp.pop %v1118
      %v1135 = vmul.f32 %v1040, %v1119
      %v1136 = vmul.f32 %v1042, %v1120
      %v1137 = vmul.f32 %v1044, %v1121
      %v1138 = vmul.f32 %v1046, %v1122
      %v1139 = vmul.f32 %v1048, %v1123
      %v1140 = vmul.f32 %v1050, %v1124
      %v1141 = vmul.f32 %v1052, %v1125
      %v1142 = vmul.f32 %v1054, %v1126
      %v1143 = vmul.f32 %v1056, %v1127
      %v1144 = vmul.f32 %v1058, %v1128
      %v1145 = vmul.f32 %v1060, %v1129
      %v1146 = vmul.f32 %v1062, %v1130
      %v1147 = vmul.f32 %v1064, %v1131
      %v1148 = vmul.f32 %v1066, %v1132
      %v1149 = vmul.f32 %v1068, %v1133
      %v1150 = vmul.f32 %v1070, %v1134
      %v1151 = vpack.c.bf16 %v1136, %v1135
      %v1152 = vpack.c.bf16 %v1138, %v1137
      %v1153 = vpack.c.bf16 %v1140, %v1139
      %v1154 = vpack.c.bf16 %v1142, %v1141
      %v1155 = vpack.c.bf16 %v1144, %v1143
      %v1156 = vpack.c.bf16 %v1146, %v1145
      %v1157 = vpack.c.bf16 %v1148, %v1147
      %v1158 = vpack.c.bf16 %v1150, %v1149
      %1159 = vrot.lane.b32.xlu0 %v566, 64
      %v1160 = vpop.permute.xlu0 %1159
      %v1163 = vsel %vm577, %v1151, 0
      %1165 = vmatprep.subr.bf16.mxu0 0
      %1166 = vmatpush1.bf16.msra.mxu0 %v1160
      %1167 = vmatprep.subr.bf16.mxu0 0
      %1168 = vmatpush1.bf16.msra.mxu0 0
      %1169 = vmatprep.subr.bf16.mxu0 0
      %1170 = vmatpush1.bf16.msra.mxu0 0
      %1171 = vmatprep.subr.bf16.mxu0 0
      %1172 = vmatpush1.bf16.msra.mxu0 0
      %1173 = vmatprep.subr.bf16.mxu0 0
      %1174 = vmatpush1.bf16.msra.mxu0 0
      %1175 = vmatprep.subr.bf16.mxu0 0
      %1176 = vmatpush1.bf16.msra.mxu0 0
      %1177 = vmatprep.subr.bf16.mxu0 0
      %1178 = vmatpush1.bf16.msra.mxu0 0
      %1179 = vmatprep.subr.bf16.mxu0 0
      %1180 = vmatpush1.bf16.msra.mxu0 0
      %1181 = vmatprep.subr.bf16.mxu0 0
      %1182 = vmatpush1.bf16.msra.mxu0 0
      %1183 = vmatprep.subr.bf16.mxu0 0
      %1184 = vmatpush1.bf16.msra.mxu0 0
      %1185 = vmatprep.subr.bf16.mxu0 0
      %1186 = vmatpush1.bf16.msra.mxu0 0
      %1187 = vmatprep.subr.bf16.mxu0 0
      %1188 = vmatpush1.bf16.msra.mxu0 0
      %1189 = vmatprep.subr.bf16.mxu0 0
      %1190 = vmatpush1.bf16.msra.mxu0 0
      %1191 = vmatprep.subr.bf16.mxu0 0
      %1192 = vmatpush1.bf16.msra.mxu0 0
      %1193 = vmatprep.subr.bf16.mxu0 0
      %1194 = vmatpush1.bf16.msra.mxu0 0
      %1195 = vmatprep.subr.bf16.mxu0 0
      %1196 = vmatpush1.bf16.msra.mxu0 0
      %1197 = vmatprep.mubr.bf16.mxu0 0
      %1198 = vmatmul.mubr.bf16.gmra.mrb[0].mxu0 %v1163
      %v1199 = vpop.f32.mrb[0].mxu0
      %v1200 = vadd.f32 0.0, %v1199
      %v1201 = vpop.f32.mrb[0].mxu0
      %v1202 = vpop.f32.mrb[0].mxu0
      %v1203 = vadd.f32 0.0, %v1202
      %v1204 = vpop.f32.mrb[0].mxu0
      %1205 = vdwg.mxu0
      %1206 = vrot.lane.b32.xlu0 %v567, 64
      %v1207 = vpop.permute.xlu0 %1206
      %v1210 = vsel %vm577, %v1152, 0
      %1212 = vmatprep.subr.bf16.mxu0 0
      %1213 = vmatpush1.bf16.msra.mxu0 %v1207
      %1214 = vmatprep.subr.bf16.mxu0 0
      %1215 = vmatpush1.bf16.msra.mxu0 0
      %1216 = vmatprep.subr.bf16.mxu0 0
      %1217 = vmatpush1.bf16.msra.mxu0 0
      %1218 = vmatprep.subr.bf16.mxu0 0
      %1219 = vmatpush1.bf16.msra.mxu0 0
      %1220 = vmatprep.subr.bf16.mxu0 0
      %1221 = vmatpush1.bf16.msra.mxu0 0
      %1222 = vmatprep.subr.bf16.mxu0 0
      %1223 = vmatpush1.bf16.msra.mxu0 0
      %1224 = vmatprep.subr.bf16.mxu0 0
      %1225 = vmatpush1.bf16.msra.mxu0 0
      %1226 = vmatprep.subr.bf16.mxu0 0
      %1227 = vmatpush1.bf16.msra.mxu0 0
      %1228 = vmatprep.subr.bf16.mxu0 0
      %1229 = vmatpush1.bf16.msra.mxu0 0
      %1230 = vmatprep.subr.bf16.mxu0 0
      %1231 = vmatpush1.bf16.msra.mxu0 0
      %1232 = vmatprep.subr.bf16.mxu0 0
      %1233 = vmatpush1.bf16.msra.mxu0 0
      %1234 = vmatprep.subr.bf16.mxu0 0
      %1235 = vmatpush1.bf16.msra.mxu0 0
      %1236 = vmatprep.subr.bf16.mxu0 0
      %1237 = vmatpush1.bf16.msra.mxu0 0
      %1238 = vmatprep.subr.bf16.mxu0 0
      %1239 = vmatpush1.bf16.msra.mxu0 0
      %1240 = vmatprep.subr.bf16.mxu0 0
      %1241 = vmatpush1.bf16.msra.mxu0 0
      %1242 = vmatprep.subr.bf16.mxu0 0
      %1243 = vmatpush1.bf16.msra.mxu0 0
      %1244 = vmatprep.mubr.bf16.mxu0 0
      %1245 = vmatmul.mubr.bf16.gmra.mrb[0].mxu0 %v1210
      %v1246 = vpop.f32.mrb[0].mxu0
      %v1247 = vadd.f32 0.0, %v1246
      %v1248 = vpop.f32.mrb[0].mxu0
      %v1249 = vpop.f32.mrb[0].mxu0
      %v1250 = vadd.f32 0.0, %v1249
      %v1251 = vpop.f32.mrb[0].mxu0
      %1252 = vdwg.mxu0
      %1253 = vrot.lane.b32.xlu0 %v568, 64
      %v1254 = vpop.permute.xlu0 %1253
      %v1257 = vsel %vm577, %v1153, 0
      %1259 = vmatprep.subr.bf16.mxu0 0
      %1260 = vmatpush1.bf16.msra.mxu0 %v1254
      %1261 = vmatprep.subr.bf16.mxu0 0
      %1262 = vmatpush1.bf16.msra.mxu0 0
      %1263 = vmatprep.subr.bf16.mxu0 0
      %1264 = vmatpush1.bf16.msra.mxu0 0
      %1265 = vmatprep.subr.bf16.mxu0 0
      %1266 = vmatpush1.bf16.msra.mxu0 0
      %1267 = vmatprep.subr.bf16.mxu0 0
      %1268 = vmatpush1.bf16.msra.mxu0 0
      %1269 = vmatprep.subr.bf16.mxu0 0
      %1270 = vmatpush1.bf16.msra.mxu0 0
      %1271 = vmatprep.subr.bf16.mxu0 0
      %1272 = vmatpush1.bf16.msra.mxu0 0
      %1273 = vmatprep.subr.bf16.mxu0 0
      %1274 = vmatpush1.bf16.msra.mxu0 0
      %1275 = vmatprep.subr.bf16.mxu0 0
      %1276 = vmatpush1.bf16.msra.mxu0 0
      %1277 = vmatprep.subr.bf16.mxu0 0
      %1278 = vmatpush1.bf16.msra.mxu0 0
      %1279 = vmatprep.subr.bf16.mxu0 0
      %1280 = vmatpush1.bf16.msra.mxu0 0
      %1281 = vmatprep.subr.bf16.mxu0 0
      %1282 = vmatpush1.bf16.msra.mxu0 0
      %1283 = vmatprep.subr.bf16.mxu0 0
      %1284 = vmatpush1.bf16.msra.mxu0 0
      %1285 = vmatprep.subr.bf16.mxu0 0
      %1286 = vmatpush1.bf16.msra.mxu0 0
      %1287 = vmatprep.subr.bf16.mxu0 0
      %1288 = vmatpush1.bf16.msra.mxu0 0
      %1289 = vmatprep.subr.bf16.mxu0 0
      %1290 = vmatpush1.bf16.msra.mxu0 0
      %1291 = vmatprep.mubr.bf16.mxu0 0
      %1292 = vmatmul.mubr.bf16.gmra.mrb[0].mxu0 %v1257
      %v1293 = vpop.f32.mrb[0].mxu0
      %v1294 = vadd.f32 0.0, %v1293
      %v1295 = vpop.f32.mrb[0].mxu0
      %v1296 = vpop.f32.mrb[0].mxu0
      %v1297 = vadd.f32 0.0, %v1296
      %v1298 = vpop.f32.mrb[0].mxu0
      %1299 = vdwg.mxu0
      %1300 = vrot.lane.b32.xlu0 %v569, 64
      %v1301 = vpop.permute.xlu0 %1300
      %v1304 = vsel %vm577, %v1154, 0
      %1306 = vmatprep.subr.bf16.mxu0 0
      %1307 = vmatpush1.bf16.msra.mxu0 %v1301
      %1308 = vmatprep.subr.bf16.mxu0 0
      %1309 = vmatpush1.bf16.msra.mxu0 0
      %1310 = vmatprep.subr.bf16.mxu0 0
      %1311 = vmatpush1.bf16.msra.mxu0 0
      %1312 = vmatprep.subr.bf16.mxu0 0
      %1313 = vmatpush1.bf16.msra.mxu0 0
      %1314 = vmatprep.subr.bf16.mxu0 0
      %1315 = vmatpush1.bf16.msra.mxu0 0
      %1316 = vmatprep.subr.bf16.mxu0 0
      %1317 = vmatpush1.bf16.msra.mxu0 0
      %1318 = vmatprep.subr.bf16.mxu0 0
      %1319 = vmatpush1.bf16.msra.mxu0 0
      %1320 = vmatprep.subr.bf16.mxu0 0
      %1321 = vmatpush1.bf16.msra.mxu0 0
      %1322 = vmatprep.subr.bf16.mxu0 0
      %1323 = vmatpush1.bf16.msra.mxu0 0
      %1324 = vmatprep.subr.bf16.mxu0 0
      %1325 = vmatpush1.bf16.msra.mxu0 0
      %1326 = vmatprep.subr.bf16.mxu0 0
      %1327 = vmatpush1.bf16.msra.mxu0 0
      %1328 = vmatprep.subr.bf16.mxu0 0
      %1329 = vmatpush1.bf16.msra.mxu0 0
      %1330 = vmatprep.subr.bf16.mxu0 0
      %1331 = vmatpush1.bf16.msra.mxu0 0
      %1332 = vmatprep.subr.bf16.mxu0 0
      %1333 = vmatpush1.bf16.msra.mxu0 0
      %1334 = vmatprep.subr.bf16.mxu0 0
      %1335 = vmatpush1.bf16.msra.mxu0 0
      %1336 = vmatprep.subr.bf16.mxu0 0
      %1337 = vmatpush1.bf16.msra.mxu0 0
      %1338 = vmatprep.mubr.bf16.mxu0 0
      %1339 = vmatmul.mubr.bf16.gmra.mrb[0].mxu0 %v1304
      %v1340 = vpop.f32.mrb[0].mxu0
      %v1341 = vadd.f32 0.0, %v1340
      %v1342 = vpop.f32.mrb[0].mxu0
      %v1343 = vpop.f32.mrb[0].mxu0
      %v1344 = vadd.f32 0.0, %v1343
      %v1345 = vpop.f32.mrb[0].mxu0
      %1346 = vdwg.mxu0
      %1347 = vrot.lane.b32.xlu0 %v570, 64
      %v1348 = vpop.permute.xlu0 %1347
      %v1351 = vsel %vm577, %v1155, 0
      %1353 = vmatprep.subr.bf16.mxu0 0
      %1354 = vmatpush1.bf16.msra.mxu0 %v1348
      %1355 = vmatprep.subr.bf16.mxu0 0
      %1356 = vmatpush1.bf16.msra.mxu0 0
      %1357 = vmatprep.subr.bf16.mxu0 0
      %1358 = vmatpush1.bf16.msra.mxu0 0
      %1359 = vmatprep.subr.bf16.mxu0 0
      %1360 = vmatpush1.bf16.msra.mxu0 0
      %1361 = vmatprep.subr.bf16.mxu0 0
      %1362 = vmatpush1.bf16.msra.mxu0 0
      %1363 = vmatprep.subr.bf16.mxu0 0
      %1364 = vmatpush1.bf16.msra.mxu0 0
      %1365 = vmatprep.subr.bf16.mxu0 0
      %1366 = vmatpush1.bf16.msra.mxu0 0
      %1367 = vmatprep.subr.bf16.mxu0 0
      %1368 = vmatpush1.bf16.msra.mxu0 0
      %1369 = vmatprep.subr.bf16.mxu0 0
      %1370 = vmatpush1.bf16.msra.mxu0 0
      %1371 = vmatprep.subr.bf16.mxu0 0
      %1372 = vmatpush1.bf16.msra.mxu0 0
      %1373 = vmatprep.subr.bf16.mxu0 0
      %1374 = vmatpush1.bf16.msra.mxu0 0
      %1375 = vmatprep.subr.bf16.mxu0 0
      %1376 = vmatpush1.bf16.msra.mxu0 0
      %1377 = vmatprep.subr.bf16.mxu0 0
      %1378 = vmatpush1.bf16.msra.mxu0 0
      %1379 = vmatprep.subr.bf16.mxu0 0
      %1380 = vmatpush1.bf16.msra.mxu0 0
      %1381 = vmatprep.subr.bf16.mxu0 0
      %1382 = vmatpush1.bf16.msra.mxu0 0
      %1383 = vmatprep.subr.bf16.mxu0 0
      %1384 = vmatpush1.bf16.msra.mxu0 0
      %1385 = vmatprep.mubr.bf16.mxu0 0
      %1386 = vmatmul.mubr.bf16.gmra.mrb[0].mxu0 %v1351
      %v1387 = vpop.f32.mrb[0].mxu0
      %v1388 = vadd.f32 0.0, %v1387
      %v1389 = vpop.f32.mrb[0].mxu0
      %v1390 = vpop.f32.mrb[0].mxu0
      %v1391 = vadd.f32 0.0, %v1390
      %v1392 = vpop.f32.mrb[0].mxu0
      %1393 = vdwg.mxu0
      %1394 = vrot.lane.b32.xlu0 %v571, 64
      %v1395 = vpop.permute.xlu0 %1394
      %v1398 = vsel %vm577, %v1156, 0
      %1400 = vmatprep.subr.bf16.mxu0 0
      %1401 = vmatpush1.bf16.msra.mxu0 %v1395
      %1402 = vmatprep.subr.bf16.mxu0 0
      %1403 = vmatpush1.bf16.msra.mxu0 0
      %1404 = vmatprep.subr.bf16.mxu0 0
      %1405 = vmatpush1.bf16.msra.mxu0 0
      %1406 = vmatprep.subr.bf16.mxu0 0
      %1407 = vmatpush1.bf16.msra.mxu0 0
      %1408 = vmatprep.subr.bf16.mxu0 0
      %1409 = vmatpush1.bf16.msra.mxu0 0
      %1410 = vmatprep.subr.bf16.mxu0 0
      %1411 = vmatpush1.bf16.msra.mxu0 0
      %1412 = vmatprep.subr.bf16.mxu0 0
      %1413 = vmatpush1.bf16.msra.mxu0 0
      %1414 = vmatprep.subr.bf16.mxu0 0
      %1415 = vmatpush1.bf16.msra.mxu0 0
      %1416 = vmatprep.subr.bf16.mxu0 0
      %1417 = vmatpush1.bf16.msra.mxu0 0
      %1418 = vmatprep.subr.bf16.mxu0 0
      %1419 = vmatpush1.bf16.msra.mxu0 0
      %1420 = vmatprep.subr.bf16.mxu0 0
      %1421 = vmatpush1.bf16.msra.mxu0 0
      %1422 = vmatprep.subr.bf16.mxu0 0
      %1423 = vmatpush1.bf16.msra.mxu0 0
      %1424 = vmatprep.subr.bf16.mxu0 0
      %1425 = vmatpush1.bf16.msra.mxu0 0
      %1426 = vmatprep.subr.bf16.mxu0 0
      %1427 = vmatpush1.bf16.msra.mxu0 0
      %1428 = vmatprep.subr.bf16.mxu0 0
      %1429 = vmatpush1.bf16.msra.mxu0 0
      %1430 = vmatprep.subr.bf16.mxu0 0
      %1431 = vmatpush1.bf16.msra.mxu0 0
      %1432 = vmatprep.mubr.bf16.mxu0 0
      %1433 = vmatmul.mubr.bf16.gmra.mrb[0].mxu0 %v1398
      %v1434 = vpop.f32.mrb[0].mxu0
      %v1435 = vadd.f32 0.0, %v1434
      %v1436 = vpop.f32.mrb[0].mxu0
      %v1437 = vpop.f32.mrb[0].mxu0
      %v1438 = vadd.f32 0.0, %v1437
      %v1439 = vpop.f32.mrb[0].mxu0
      %1440 = vdwg.mxu0
      %1441 = vrot.lane.b32.xlu0 %v572, 64
      %v1442 = vpop.permute.xlu0 %1441
      %v1445 = vsel %vm577, %v1157, 0
      %1447 = vmatprep.subr.bf16.mxu0 0
      %1448 = vmatpush1.bf16.msra.mxu0 %v1442
      %1449 = vmatprep.subr.bf16.mxu0 0
      %1450 = vmatpush1.bf16.msra.mxu0 0
      %1451 = vmatprep.subr.bf16.mxu0 0
      %1452 = vmatpush1.bf16.msra.mxu0 0
      %1453 = vmatprep.subr.bf16.mxu0 0
      %1454 = vmatpush1.bf16.msra.mxu0 0
      %1455 = vmatprep.subr.bf16.mxu0 0
      %1456 = vmatpush1.bf16.msra.mxu0 0
      %1457 = vmatprep.subr.bf16.mxu0 0
      %1458 = vmatpush1.bf16.msra.mxu0 0
      %1459 = vmatprep.subr.bf16.mxu0 0
      %1460 = vmatpush1.bf16.msra.mxu0 0
      %1461 = vmatprep.subr.bf16.mxu0 0
      %1462 = vmatpush1.bf16.msra.mxu0 0
      %1463 = vmatprep.subr.bf16.mxu0 0
      %1464 = vmatpush1.bf16.msra.mxu0 0
      %1465 = vmatprep.subr.bf16.mxu0 0
      %1466 = vmatpush1.bf16.msra.mxu0 0
      %1467 = vmatprep.subr.bf16.mxu0 0
      %1468 = vmatpush1.bf16.msra.mxu0 0
      %1469 = vmatprep.subr.bf16.mxu0 0
      %1470 = vmatpush1.bf16.msra.mxu0 0
      %1471 = vmatprep.subr.bf16.mxu0 0
      %1472 = vmatpush1.bf16.msra.mxu0 0
      %1473 = vmatprep.subr.bf16.mxu0 0
      %1474 = vmatpush1.bf16.msra.mxu0 0
      %1475 = vmatprep.subr.bf16.mxu0 0
      %1476 = vmatpush1.bf16.msra.mxu0 0
      %1477 = vmatprep.subr.bf16.mxu0 0
      %1478 = vmatpush1.bf16.msra.mxu0 0
      %1479 = vmatprep.mubr.bf16.mxu0 0
      %1480 = vmatmul.mubr.bf16.gmra.mrb[0].mxu0 %v1445
      %v1481 = vpop.f32.mrb[0].mxu0
      %v1482 = vadd.f32 0.0, %v1481
      %v1483 = vpop.f32.mrb[0].mxu0
      %v1484 = vpop.f32.mrb[0].mxu0
      %v1485 = vadd.f32 0.0, %v1484
      %v1486 = vpop.f32.mrb[0].mxu0
      %1487 = vdwg.mxu0
      %1488 = vrot.lane.b32.xlu0 %v573, 64
      %v1489 = vpop.permute.xlu0 %1488
      %v1492 = vsel %vm577, %v1158, 0
      %1494 = vmatprep.subr.bf16.mxu0 0
      %1495 = vmatpush1.bf16.msra.mxu0 %v1489
      %1496 = vmatprep.subr.bf16.mxu0 0
      %1497 = vmatpush1.bf16.msra.mxu0 0
      %1498 = vmatprep.subr.bf16.mxu0 0
      %1499 = vmatpush1.bf16.msra.mxu0 0
      %1500 = vmatprep.subr.bf16.mxu0 0
      %1501 = vmatpush1.bf16.msra.mxu0 0
      %1502 = vmatprep.subr.bf16.mxu0 0
      %1503 = vmatpush1.bf16.msra.mxu0 0
      %1504 = vmatprep.subr.bf16.mxu0 0
      %1505 = vmatpush1.bf16.msra.mxu0 0
      %1506 = vmatprep.subr.bf16.mxu0 0
      %1507 = vmatpush1.bf16.msra.mxu0 0
      %1508 = vmatprep.subr.bf16.mxu0 0
      %1509 = vmatpush1.bf16.msra.mxu0 0
      %1510 = vmatprep.subr.bf16.mxu0 0
      %1511 = vmatpush1.bf16.msra.mxu0 0
      %1512 = vmatprep.subr.bf16.mxu0 0
      %1513 = vmatpush1.bf16.msra.mxu0 0
      %1514 = vmatprep.subr.bf16.mxu0 0
      %1515 = vmatpush1.bf16.msra.mxu0 0
      %1516 = vmatprep.subr.bf16.mxu0 0
      %1517 = vmatpush1.bf16.msra.mxu0 0
      %1518 = vmatprep.subr.bf16.mxu0 0
      %1519 = vmatpush1.bf16.msra.mxu0 0
      %1520 = vmatprep.subr.bf16.mxu0 0
      %1521 = vmatpush1.bf16.msra.mxu0 0
      %1522 = vmatprep.subr.bf16.mxu0 0
      %1523 = vmatpush1.bf16.msra.mxu0 0
      %1524 = vmatprep.subr.bf16.mxu0 0
      %1525 = vmatpush1.bf16.msra.mxu0 0
      %1526 = vmatprep.mubr.bf16.mxu0 0
      %1527 = vmatmul.mubr.bf16.gmra.mrb[0].mxu0 %v1492
      %v1528 = vpop.f32.mrb[0].mxu0
      %v1529 = vadd.f32 0.0, %v1528
      %v1530 = vpop.f32.mrb[0].mxu0
      %v1531 = vpop.f32.mrb[0].mxu0
      %v1532 = vadd.f32 0.0, %v1531
      %v1533 = vpop.f32.mrb[0].mxu0
      %1534 = vdwg.mxu0
      %1543 = vrot.lane.b32.xlu0 %v1388, 16
      %v1544 = vpop.permute.xlu0 %1543
      %1545 = vrot.lane.b32.xlu0 %v1391, 16
      %v1546 = vpop.permute.xlu0 %1545
      %1547 = vrot.lane.b32.xlu0 %v1435, 16
      %v1548 = vpop.permute.xlu0 %1547
      %1549 = vrot.lane.b32.xlu0 %v1438, 16
      %v1550 = vpop.permute.xlu0 %1549
      %1551 = vrot.lane.b32.xlu0 %v1482, 16
      %v1552 = vpop.permute.xlu0 %1551
      %1553 = vrot.lane.b32.xlu0 %v1485, 16
      %v1554 = vpop.permute.xlu0 %1553
      %1555 = vrot.lane.b32.xlu0 %v1529, 16
      %v1556 = vpop.permute.xlu0 %1555
      %1557 = vrot.lane.b32.xlu0 %v1532, 16
      %v1558 = vpop.permute.xlu0 %1557
      %v1567 = vsel %vm577, %v1200, %v1544
      %v1568 = vsel %vm577, %v1203, %v1546
      %v1569 = vsel %vm577, %v1247, %v1548
      %v1570 = vsel %vm577, %v1250, %v1550
      %v1571 = vsel %vm577, %v1294, %v1552
      %v1572 = vsel %vm577, %v1297, %v1554
      %v1573 = vsel %vm577, %v1341, %v1556
      %v1574 = vsel %vm577, %v1344, %v1558
      %v1575 = vpack.c.bf16 %v1568, %v1567
      %v1576 = vpack.c.bf16 %v1570, %v1569
      %v1577 = vpack.c.bf16 %v1572, %v1571
      %v1578 = vpack.c.bf16 %v1574, %v1573
      %v1579 = vld [vmem:[%s4] sm:$0xf]
      %v1580 = vld [vmem:[%s4 + $0x4] sm:$0xf]
      %v1581 = vld [vmem:[%s4 + $0x8] sm:$0xf]
      %v1582 = vld [vmem:[%s4 + $0xc] sm:$0xf]
      %v1583 = vld [vmem:[%s5] sm:$0x1]
      %v1585 = vlaneseq
      %v1586 = vshrl.u32 %v1585, 7
      %v1587 = vsub.s32 0, %v1586
      %v1588 = vrot.slane %v1583, %v1587
      %v1594 = vunpack.c.l.b16 %v1579
      %v1595 = vunpack.c.l.b16 %v1580
      %v1596 = vunpack.c.l.b16 %v1581
      %v1597 = vunpack.c.l.b16 %v1582
      %v1598 = vpack.c.b16 %v1595, %v1594
      %v1599 = vpack.c.b16 %v1597, %v1596
      %v1603 = vsel %vm279, %v1575, 0
      %v1606 = vsel %vm279, %v1576, 0
      %v1609 = vsel %vm279, %v1577, 0
      %v1612 = vsel %vm279, %v1578, 0
      %1614 = vmatprep.subr.bf16.mxu0 0
      %1615 = vmatpush1.bf16.msra.mxu0 %v1598
      %1616 = vmatprep.subr.bf16.mxu0 0
      %1617 = vmatpush1.bf16.msra.mxu0 %v1599
      %1618 = vmatprep.subr.bf16.mxu0 0
      %1619 = vmatpush1.bf16.msra.mxu0 0
      %1620 = vmatprep.subr.bf16.mxu0 0
      %1621 = vmatpush1.bf16.msra.mxu0 0
      %1622 = vmatprep.subr.bf16.mxu0 0
      %1623 = vmatpush1.bf16.msra.mxu0 0
      %1624 = vmatprep.subr.bf16.mxu0 0
      %1625 = vmatpush1.bf16.msra.mxu0 0
      %1626 = vmatprep.subr.bf16.mxu0 0
      %1627 = vmatpush1.bf16.msra.mxu0 0
      %1628 = vmatprep.subr.bf16.mxu0 0
      %1629 = vmatpush1.bf16.msra.mxu0 0
      %1630 = vmatprep.subr.bf16.mxu0 0
      %1631 = vmatpush1.bf16.msra.mxu0 0
      %1632 = vmatprep.subr.bf16.mxu0 0
      %1633 = vmatpush1.bf16.msra.mxu0 0
      %1634 = vmatprep.subr.bf16.mxu0 0
      %1635 = vmatpush1.bf16.msra.mxu0 0
      %1636 = vmatprep.subr.bf16.mxu0 0
      %1637 = vmatpush1.bf16.msra.mxu0 0
      %1638 = vmatprep.subr.bf16.mxu0 0
      %1639 = vmatpush1.bf16.msra.mxu0 0
      %1640 = vmatprep.subr.bf16.mxu0 0
      %1641 = vmatpush1.bf16.msra.mxu0 0
      %1642 = vmatprep.subr.bf16.mxu0 0
      %1643 = vmatpush1.bf16.msra.mxu0 0
      %1644 = vmatprep.subr.bf16.mxu0 0
      %1645 = vmatpush1.bf16.msra.mxu0 0
      %1646 = vmatprep.mubr.bf16.mxu0 0
      %1647 = vmatmul.mubr.bf16.gmra.mrb[0].mxu0 %v1603
      %v1648 = vpop.f32.mrb[0].mxu0
      %v1649 = vadd.f32 %v1588, %v1648
      %v1650 = vpop.f32.mrb[0].mxu0
      %v1651 = vpop.f32.mrb[0].mxu0
      %v1652 = vadd.f32 %v1588, %v1651
      %v1653 = vpop.f32.mrb[0].mxu0
      %1654 = vmatprep.mubr.bf16.mxu0 0
      %1655 = vmatmul.mubr.bf16.gmra.mrb[0].mxu0 %v1606
      %v1656 = vpop.f32.mrb[0].mxu0
      %v1657 = vadd.f32 %v1588, %v1656
      %v1658 = vpop.f32.mrb[0].mxu0
      %v1659 = vpop.f32.mrb[0].mxu0
      %v1660 = vadd.f32 %v1588, %v1659
      %v1661 = vpop.f32.mrb[0].mxu0
      %1662 = vmatprep.mubr.bf16.mxu0 0
      %1663 = vmatmul.mubr.bf16.gmra.mrb[0].mxu0 %v1609
      %v1664 = vpop.f32.mrb[0].mxu0
      %v1665 = vadd.f32 %v1588, %v1664
      %v1666 = vpop.f32.mrb[0].mxu0
      %v1667 = vpop.f32.mrb[0].mxu0
      %v1668 = vadd.f32 %v1588, %v1667
      %v1669 = vpop.f32.mrb[0].mxu0
      %1670 = vmatprep.mubr.bf16.mxu0 0
      %1671 = vmatmul.mubr.bf16.gmra.mrb[0].mxu0 %v1612
      %v1672 = vpop.f32.mrb[0].mxu0
      %v1673 = vadd.f32 %v1588, %v1672
      %v1674 = vpop.f32.mrb[0].mxu0
      %v1675 = vpop.f32.mrb[0].mxu0
      %v1676 = vadd.f32 %v1588, %v1675
      %v1677 = vpop.f32.mrb[0].mxu0
      %1678 = vdwg.mxu0
      %v1679 = vadd.f32 %v1649, %v269
      %v1680 = vadd.f32 %v1652, %v270
      %v1681 = vadd.f32 %v1657, %v271
      %v1682 = vadd.f32 %v1660, %v272
      %v1683 = vadd.f32 %v1665, %v273
      %v1684 = vadd.f32 %v1668, %v274
      %v1685 = vadd.f32 %v1673, %v275
      %v1686 = vadd.f32 %v1676, %v276
      %v1687 = vpack.c.bf16 %v1680, %v1679
      %v1688 = vpack.c.bf16 %v1682, %v1681
      %v1689 = vpack.c.bf16 %v1684, %v1683
      %v1690 = vpack.c.bf16 %v1686, %v1685
      %v1695 = vunpack.c.l.b16 %v1687
      %v1696 = vunpack.c.h.b16 %v1687
      %v1697 = vunpack.c.l.b16 %v1688
      %v1698 = vunpack.c.h.b16 %v1688
      %v1699 = vunpack.c.l.b16 %v1689
      %v1700 = vunpack.c.h.b16 %v1689
      %v1701 = vunpack.c.l.b16 %v1690
      %v1702 = vunpack.c.h.b16 %v1690
      %v1703 = vpack.c.b16 %v1695, %v1695
      %v1704 = vpack.c.b16 %v1696, %v1696
      %v1705 = vpack.c.b16 %v1697, %v1697
      %v1706 = vpack.c.b16 %v1698, %v1698
      %v1707 = vpack.c.b16 %v1699, %v1699
      %v1708 = vpack.c.b16 %v1700, %v1700
      %v1709 = vpack.c.b16 %v1701, %v1701
      %v1710 = vpack.c.b16 %v1702, %v1702
      %vm1719 = vcmask 257024
      %1720 = vst.msk [vmem:[%s258] sm:$0xf] %vm1719, %v1703
      %1721 = vst.msk [vmem:[%s258 + $0x4] sm:$0xf] %vm1719, %v1704
      %1722 = vst.msk [vmem:[%s258 + $0x8] sm:$0xf] %vm1719, %v1705
      %1723 = vst.msk [vmem:[%s258 + $0xc] sm:$0xf] %vm1719, %v1706
      %1724 = vst.msk [vmem:[%s258 + $0x10] sm:$0xf] %vm1719, %v1707
      %1725 = vst.msk [vmem:[%s258 + $0x14] sm:$0xf] %vm1719, %v1708
      %1726 = vst.msk [vmem:[%s258 + $0x18] sm:$0xf] %vm1719, %v1709
      %1727 = vst.msk [vmem:[%s258 + $0x1c] sm:$0xf] %vm1719, %v1710
      %s1728 = smul.u32 4, %s17
      %p1729 = scmp.lt.s32.totalorder %s1728, 7
      %s1730 = scalar_select %p1729, %s1728, 7
      %s1731 = smul.addr %s1730, 2
      %s1732 = smul.addr %s1731, 4
      %s1733 = scalar_lea.vmem %s6, %s1732
      // Predicated region
      $region45: #{tsvit_forward.11} parent=43 // pred_check
        %p1734 = pneg %p166
      $region46: #{tsvit_forward.11} parent=43 // pred_check_branch
        %1736 = sbr.rel (%p1734) target = $region48
      $region47: #{tsvit_forward.11} parent=43 // pred_region
        %s1737 = smul.u32 4, %s17
      $region48: #{tsvit_forward.11} parent=43 // pred_fallthru
        _
    $region44: #{tsvit_forward.11} parent=5 // pred_fallthru
      _
    %p1738 = scmp.le.s32.totalorder 2, %s12
    // Predicated region
    $region49: #{tsvit_forward.11} parent=5 // pred_check
      %p1739 = pneg %p1738
    $region50: #{tsvit_forward.11} parent=5 // pred_check_branch
      %1741 = sbr.rel (%p1739) target = $region52
    $region51: #{tsvit_forward.11} parent=5 // pred_region
      %s1742 = ssub.s32 %s12, 2
      // Predicated region
      $region53: #{tsvit_forward.11} parent=51 // pred_check
        %p1743 = pneg %p172
      $region54: #{tsvit_forward.11} parent=51 // pred_check_branch
        %1745 = sbr.rel (%p1743) target = $region56
      $region55: #{tsvit_forward.11} parent=51 // pred_region
        %s1746 = smul.u32 4, %s18
        %p1747 = scmp.lt.s32.totalorder %s1746, 7
        %s1748 = scalar_select %p1747, %s1746, 7
        %s1749 = smul.addr %s1748, 2
        %s1750 = smul.addr %s1749, 4
        %s1751 = scalar_lea.vmem %s6, %s1750
      $region56: #{tsvit_forward.11} parent=51 // pred_fallthru
        _
    $region52: #{tsvit_forward.11} parent=5 // pred_fallthru
      _
  $region6: #{tsvit_forward.11} parent=0 // loop_footer
    %s16 = sadd.s32 1, %s12
  $region7: #{tsvit_forward.11} parent=0 // loop_footer_branch
    %11 = sbr.rel target = $region3
  $region8: #{tsvit_forward.11} parent=0 // loop_exit
    _

// kernel: tsvit_forward.12
$region0: #{tsvit_forward.12}
  #allocation0 [shape = 'u32[]', space=smem, size = 0x4, offset = 0x4, fixed_abs, tag = 'smem constant byte address 0x4 - core index']
  #allocation1 [shape = 'u32[144,128]{1,0:T(1,128)}', space=vmem, size = 0x12000, scoped, tag = 'internal scratch']
  %s0 = inlined_call_operand.vmem [shape: bf16[128,32], index: 0, kind: input, shape index: {}]
  %s1 = inlined_call_operand.vmem [shape: f32[1,32], index: 1, kind: input, shape index: {}]
  %s2 = inlined_call_operand.vmem [shape: f32[1,32], index: 2, kind: input, shape index: {}]
  %s3 = inlined_call_operand.vmem [shape: bf16[32,64], index: 3, kind: input, shape index: {}]
  %s4 = inlined_call_operand.vmem [shape: f32[1,64], index: 4, kind: input, shape index: {}]
  %s5 = inlined_call_operand.vmem [shape: bf16[64,32], index: 5, kind: input, shape index: {}]
  %s6 = inlined_call_operand.vmem [shape: f32[1,32], index: 6, kind: input, shape index: {}]
  %s7 = inlined_call_operand.vmem [shape: bf16[128,32], index: 7, kind: output, shape index: {}]
  %s8 = sld [smem:[#allocation0]]
  $region38: #{tsvit_forward.12} parent=0
    _
  %s10 = ssub.s32 1, %s8
  %s11 = scalar_select 0, %s10, %s8
  // Predicated region
  $region2: #{tsvit_forward.12} parent=0 // pred_check
    _
  $region3: #{tsvit_forward.12} parent=0 // pred_check_branch
    %13 = sbr.rel (0) target = $region5
  $region4: #{tsvit_forward.12} parent=0 // pred_region
    _
  $region5: #{tsvit_forward.12} parent=0 // pred_fallthru
    _
  // Predicated region
  $region6: #{tsvit_forward.12} parent=0 // pred_check
    _
  $region7: #{tsvit_forward.12} parent=0 // pred_check_branch
    %15 = sbr.rel (0) target = $region9
  $region8: #{tsvit_forward.12} parent=0 // pred_region
    _
  $region9: #{tsvit_forward.12} parent=0 // pred_fallthru
    _
  // Predicated region
  $region10: #{tsvit_forward.12} parent=0 // pred_check
    _
  $region11: #{tsvit_forward.12} parent=0 // pred_check_branch
    %17 = sbr.rel (0) target = $region13
  $region12: #{tsvit_forward.12} parent=0 // pred_region
    _
  $region13: #{tsvit_forward.12} parent=0 // pred_fallthru
    _
  // Predicated region
  $region14: #{tsvit_forward.12} parent=0 // pred_check
    _
  $region15: #{tsvit_forward.12} parent=0 // pred_check_branch
    %19 = sbr.rel (0) target = $region17
  $region16: #{tsvit_forward.12} parent=0 // pred_region
    _
  $region17: #{tsvit_forward.12} parent=0 // pred_fallthru
    _
  // Predicated region
  $region18: #{tsvit_forward.12} parent=0 // pred_check
    _
  $region19: #{tsvit_forward.12} parent=0 // pred_check_branch
    %21 = sbr.rel (0) target = $region21
  $region20: #{tsvit_forward.12} parent=0 // pred_region
    _
  $region21: #{tsvit_forward.12} parent=0 // pred_fallthru
    _
  // Predicated region
  $region22: #{tsvit_forward.12} parent=0 // pred_check
    _
  $region23: #{tsvit_forward.12} parent=0 // pred_check_branch
    %23 = sbr.rel (0) target = $region25
  $region24: #{tsvit_forward.12} parent=0 // pred_region
    _
  $region25: #{tsvit_forward.12} parent=0 // pred_fallthru
    _
  // Predicated region
  $region26: #{tsvit_forward.12} parent=0 // pred_check
    _
  $region27: #{tsvit_forward.12} parent=0 // pred_check_branch
    %25 = sbr.rel (0) target = $region29
  $region28: #{tsvit_forward.12} parent=0 // pred_region
    _
  $region29: #{tsvit_forward.12} parent=0 // pred_fallthru
    _
  %v27 = vld [vmem:[%s0] sm:$0xf]
  %v28 = vld [vmem:[%s0 + $0x4] sm:$0xf]
  %v29 = vld [vmem:[%s0 + $0x8] sm:$0xf]
  %v30 = vld [vmem:[%s0 + $0xc] sm:$0xf]
  %v31 = vld [vmem:[%s0 + $0x10] sm:$0xf]
  %v32 = vld [vmem:[%s0 + $0x14] sm:$0xf]
  %v33 = vld [vmem:[%s0 + $0x18] sm:$0xf]
  %v34 = vld [vmem:[%s0 + $0x1c] sm:$0xf]
  %v35 = vld [vmem:[%s0 + $0x20] sm:$0xf]
  %v36 = vld [vmem:[%s0 + $0x24] sm:$0xf]
  %v37 = vld [vmem:[%s0 + $0x28] sm:$0xf]
  %v38 = vld [vmem:[%s0 + $0x2c] sm:$0xf]
  %v39 = vld [vmem:[%s0 + $0x30] sm:$0xf]
  %v40 = vld [vmem:[%s0 + $0x34] sm:$0xf]
  %v41 = vld [vmem:[%s0 + $0x38] sm:$0xf]
  %v42 = vld [vmem:[%s0 + $0x3c] sm:$0xf]
  %v43 = vunpack.c.l.bf16 %v27
  %v44 = vunpack.c.l.bf16 %v28
  %v45 = vunpack.c.l.bf16 %v29
  %v46 = vunpack.c.l.bf16 %v30
  %v47 = vunpack.c.l.bf16 %v31
  %v48 = vunpack.c.l.bf16 %v32
  %v49 = vunpack.c.l.bf16 %v33
  %v50 = vunpack.c.l.bf16 %v34
  %v51 = vunpack.c.l.bf16 %v35
  %v52 = vunpack.c.l.bf16 %v36
  %v53 = vunpack.c.l.bf16 %v37
  %v54 = vunpack.c.l.bf16 %v38
  %v55 = vunpack.c.l.bf16 %v39
  %v56 = vunpack.c.l.bf16 %v40
  %v57 = vunpack.c.l.bf16 %v41
  %v58 = vunpack.c.l.bf16 %v42
  %v59 = vld [vmem:[%s1] sm:$0x1]
  %v60 = vld [vmem:[%s2] sm:$0x1]
  %vm61 = vcmask 261120
  %v62 = vsel %vm61, %v43, 0.0
  %63 = vadd.xlane.f32.xlu0 %v62
  %v64 = vpop.xlane.xlu0 %63
  %v65 = vsel %vm61, %v44, 0.0
  %66 = vadd.xlane.f32.xlu0 %v65
  %v67 = vpop.xlane.xlu0 %66
  %v68 = vsel %vm61, %v45, 0.0
  %69 = vadd.xlane.f32.xlu0 %v68
  %v70 = vpop.xlane.xlu0 %69
  %v71 = vsel %vm61, %v46, 0.0
  %72 = vadd.xlane.f32.xlu0 %v71
  %v73 = vpop.xlane.xlu0 %72
  %v74 = vsel %vm61, %v47, 0.0
  %75 = vadd.xlane.f32.xlu0 %v74
  %v76 = vpop.xlane.xlu0 %75
  %v77 = vsel %vm61, %v48, 0.0
  %78 = vadd.xlane.f32.xlu0 %v77
  %v79 = vpop.xlane.xlu0 %78
  %v80 = vsel %vm61, %v49, 0.0
  %81 = vadd.xlane.f32.xlu0 %v80
  %v82 = vpop.xlane.xlu0 %81
  %v83 = vsel %vm61, %v50, 0.0
  %84 = vadd.xlane.f32.xlu0 %v83
  %v85 = vpop.xlane.xlu0 %84
  %v86 = vsel %vm61, %v51, 0.0
  %87 = vadd.xlane.f32.xlu0 %v86
  %v88 = vpop.xlane.xlu0 %87
  %v89 = vsel %vm61, %v52, 0.0
  %90 = vadd.xlane.f32.xlu0 %v89
  %v91 = vpop.xlane.xlu0 %90
  %v92 = vsel %vm61, %v53, 0.0
  %93 = vadd.xlane.f32.xlu0 %v92
  %v94 = vpop.xlane.xlu0 %93
  %v95 = vsel %vm61, %v54, 0.0
  %96 = vadd.xlane.f32.xlu0 %v95
  %v97 = vpop.xlane.xlu0 %96
  %v98 = vsel %vm61, %v55, 0.0
  %99 = vadd.xlane.f32.xlu0 %v98
  %v100 = vpop.xlane.xlu0 %99
  %v101 = vsel %vm61, %v56, 0.0
  %102 = vadd.xlane.f32.xlu0 %v101
  %v103 = vpop.xlane.xlu0 %102
  %v104 = vsel %vm61, %v57, 0.0
  %105 = vadd.xlane.f32.xlu0 %v104
  %v106 = vpop.xlane.xlu0 %105
  %v107 = vsel %vm61, %v58, 0.0
  %108 = vadd.xlane.f32.xlu0 %v107
  %v109 = vpop.xlane.xlu0 %108
  %v110 = vrcp.pop 32.0
  %v111 = vmul.f32 %v64, %v110
  %v112 = vmul.f32 %v67, %v110
  %v113 = vmul.f32 %v70, %v110
  %v114 = vmul.f32 %v73, %v110
  %v115 = vmul.f32 %v76, %v110
  %v116 = vmul.f32 %v79, %v110
  %v117 = vmul.f32 %v82, %v110
  %v118 = vmul.f32 %v85, %v110
  %v119 = vmul.f32 %v88, %v110
  %v120 = vmul.f32 %v91, %v110
  %v121 = vmul.f32 %v94, %v110
  %v122 = vmul.f32 %v97, %v110
  %v123 = vmul.f32 %v100, %v110
  %v124 = vmul.f32 %v103, %v110
  %v125 = vmul.f32 %v106, %v110
  %v126 = vmul.f32 %v109, %v110
  %v127 = vsub.f32 %v43, %v111
  %v128 = vsub.f32 %v44, %v112
  %v129 = vsub.f32 %v45, %v113
  %v130 = vsub.f32 %v46, %v114
  %v131 = vsub.f32 %v47, %v115
  %v132 = vsub.f32 %v48, %v116
  %v133 = vsub.f32 %v49, %v117
  %v134 = vsub.f32 %v50, %v118
  %v135 = vsub.f32 %v51, %v119
  %v136 = vsub.f32 %v52, %v120
  %v137 = vsub.f32 %v53, %v121
  %v138 = vsub.f32 %v54, %v122
  %v139 = vsub.f32 %v55, %v123
  %v140 = vsub.f32 %v56, %v124
  %v141 = vsub.f32 %v57, %v125
  %v142 = vsub.f32 %v58, %v126
  %v143 = vmul.f32 %v127, %v127
  %v144 = vmul.f32 %v128, %v128
  %v145 = vmul.f32 %v129, %v129
  %v146 = vmul.f32 %v130, %v130
  %v147 = vmul.f32 %v131, %v131
  %v148 = vmul.f32 %v132, %v132
  %v149 = vmul.f32 %v133, %v133
  %v150 = vmul.f32 %v134, %v134
  %v151 = vmul.f32 %v135, %v135
  %v152 = vmul.f32 %v136, %v136
  %v153 = vmul.f32 %v137, %v137
  %v154 = vmul.f32 %v138, %v138
  %v155 = vmul.f32 %v139, %v139
  %v156 = vmul.f32 %v140, %v140
  %v157 = vmul.f32 %v141, %v141
  %v158 = vmul.f32 %v142, %v142
  %v159 = vsel %vm61, %v143, 0.0
  %160 = vadd.xlane.f32.xlu0 %v159
  %v161 = vpop.xlane.xlu0 %160
  %v162 = vsel %vm61, %v144, 0.0
  %163 = vadd.xlane.f32.xlu0 %v162
  %v164 = vpop.xlane.xlu0 %163
  %v165 = vsel %vm61, %v145, 0.0
  %166 = vadd.xlane.f32.xlu0 %v165
  %v167 = vpop.xlane.xlu0 %166
  %v168 = vsel %vm61, %v146, 0.0
  %169 = vadd.xlane.f32.xlu0 %v168
  %v170 = vpop.xlane.xlu0 %169
  %v171 = vsel %vm61, %v147, 0.0
  %172 = vadd.xlane.f32.xlu0 %v171
  %v173 = vpop.xlane.xlu0 %172
  %v174 = vsel %vm61, %v148, 0.0
  %175 = vadd.xlane.f32.xlu0 %v174
  %v176 = vpop.xlane.xlu0 %175
  %v177 = vsel %vm61, %v149, 0.0
  %178 = vadd.xlane.f32.xlu0 %v177
  %v179 = vpop.xlane.xlu0 %178
  %v180 = vsel %vm61, %v150, 0.0
  %181 = vadd.xlane.f32.xlu0 %v180
  %v182 = vpop.xlane.xlu0 %181
  %v183 = vsel %vm61, %v151, 0.0
  %184 = vadd.xlane.f32.xlu0 %v183
  %v185 = vpop.xlane.xlu0 %184
  %v186 = vsel %vm61, %v152, 0.0
  %187 = vadd.xlane.f32.xlu0 %v186
  %v188 = vpop.xlane.xlu0 %187
  %v189 = vsel %vm61, %v153, 0.0
  %190 = vadd.xlane.f32.xlu0 %v189
  %v191 = vpop.xlane.xlu0 %190
  %v192 = vsel %vm61, %v154, 0.0
  %193 = vadd.xlane.f32.xlu0 %v192
  %v194 = vpop.xlane.xlu0 %193
  %v195 = vsel %vm61, %v155, 0.0
  %196 = vadd.xlane.f32.xlu0 %v195
  %v197 = vpop.xlane.xlu0 %196
  %v198 = vsel %vm61, %v156, 0.0
  %199 = vadd.xlane.f32.xlu0 %v198
  %v200 = vpop.xlane.xlu0 %199
  %v201 = vsel %vm61, %v157, 0.0
  %202 = vadd.xlane.f32.xlu0 %v201
  %v203 = vpop.xlane.xlu0 %202
  %v204 = vsel %vm61, %v158, 0.0
  %205 = vadd.xlane.f32.xlu0 %v204
  %v206 = vpop.xlane.xlu0 %205
  %v207 = vmul.f32 %v161, %v110
  %v208 = vmul.f32 %v164, %v110
  %v209 = vmul.f32 %v167, %v110
  %v210 = vmul.f32 %v170, %v110
  %v211 = vmul.f32 %v173, %v110
  %v212 = vmul.f32 %v176, %v110
  %v213 = vmul.f32 %v179, %v110
  %v214 = vmul.f32 %v182, %v110
  %v215 = vmul.f32 %v185, %v110
  %v216 = vmul.f32 %v188, %v110
  %v217 = vmul.f32 %v191, %v110
  %v218 = vmul.f32 %v194, %v110
  %v219 = vmul.f32 %v197, %v110
  %v220 = vmul.f32 %v200, %v110
  %v221 = vmul.f32 %v203, %v110
  %v222 = vmul.f32 %v206, %v110
  %v223 = vadd.f32 %v207, 1e-05
  %v224 = vadd.f32 %v208, 1e-05
  %v225 = vadd.f32 %v209, 1e-05
  %v226 = vadd.f32 %v210, 1e-05
  %v227 = vadd.f32 %v211, 1e-05
  %v228 = vadd.f32 %v212, 1e-05
  %v229 = vadd.f32 %v213, 1e-05
  %v230 = vadd.f32 %v214, 1e-05
  %v231 = vadd.f32 %v215, 1e-05
  %v232 = vadd.f32 %v216, 1e-05
  %v233 = vadd.f32 %v217, 1e-05
  %v234 = vadd.f32 %v218, 1e-05
  %v235 = vadd.f32 %v219, 1e-05
  %v236 = vadd.f32 %v220, 1e-05
  %v237 = vadd.f32 %v221, 1e-05
  %v238 = vadd.f32 %v222, 1e-05
  %v239 = vrsqrt.pop %v223
  %v240 = vrsqrt.pop %v224
  %v241 = vrsqrt.pop %v225
  %v242 = vrsqrt.pop %v226
  %v243 = vrsqrt.pop %v227
  %v244 = vrsqrt.pop %v228
  %v245 = vrsqrt.pop %v229
  %v246 = vrsqrt.pop %v230
  %v247 = vrsqrt.pop %v231
  %v248 = vrsqrt.pop %v232
  %v249 = vrsqrt.pop %v233
  %v250 = vrsqrt.pop %v234
  %v251 = vrsqrt.pop %v235
  %v252 = vrsqrt.pop %v236
  %v253 = vrsqrt.pop %v237
  %v254 = vrsqrt.pop %v238
  %v255 = vmul.f32 %v127, %v239
  %v256 = vmul.f32 %v128, %v240
  %v257 = vmul.f32 %v129, %v241
  %v258 = vmul.f32 %v130, %v242
  %v259 = vmul.f32 %v131, %v243
  %v260 = vmul.f32 %v132, %v244
  %v261 = vmul.f32 %v133, %v245
  %v262 = vmul.f32 %v134, %v246
  %v263 = vmul.f32 %v135, %v247
  %v264 = vmul.f32 %v136, %v248
  %v265 = vmul.f32 %v137, %v249
  %v266 = vmul.f32 %v138, %v250
  %v267 = vmul.f32 %v139, %v251
  %v268 = vmul.f32 %v140, %v252
  %v269 = vmul.f32 %v141, %v253
  %v270 = vmul.f32 %v142, %v254
  %v272 = vlaneseq
  %v273 = vshrl.u32 %v272, 7
  %v274 = vsub.s32 0, %v273
  %v275 = vrot.slane %v59, %v274
  %v277 = vmul.f32 %v255, %v275
  %v278 = vmul.f32 %v256, %v275
  %v279 = vmul.f32 %v257, %v275
  %v280 = vmul.f32 %v258, %v275
  %v281 = vmul.f32 %v259, %v275
  %v282 = vmul.f32 %v260, %v275
  %v283 = vmul.f32 %v261, %v275
  %v284 = vmul.f32 %v262, %v275
  %v285 = vmul.f32 %v263, %v275
  %v286 = vmul.f32 %v264, %v275
  %v287 = vmul.f32 %v265, %v275
  %v288 = vmul.f32 %v266, %v275
  %v289 = vmul.f32 %v267, %v275
  %v290 = vmul.f32 %v268, %v275
  %v291 = vmul.f32 %v269, %v275
  %v292 = vmul.f32 %v270, %v275
  %v294 = vlaneseq
  %v295 = vshrl.u32 %v294, 7
  %v296 = vsub.s32 0, %v295
  %v297 = vrot.slane %v60, %v296
  %v299 = vadd.f32 %v277, %v297
  %v300 = vadd.f32 %v278, %v297
  %v301 = vadd.f32 %v279, %v297
  %v302 = vadd.f32 %v280, %v297
  %v303 = vadd.f32 %v281, %v297
  %v304 = vadd.f32 %v282, %v297
  %v305 = vadd.f32 %v283, %v297
  %v306 = vadd.f32 %v284, %v297
  %v307 = vadd.f32 %v285, %v297
  %v308 = vadd.f32 %v286, %v297
  %v309 = vadd.f32 %v287, %v297
  %v310 = vadd.f32 %v288, %v297
  %v311 = vadd.f32 %v289, %v297
  %v312 = vadd.f32 %v290, %v297
  %v313 = vadd.f32 %v291, %v297
  %v314 = vadd.f32 %v292, %v297
  %v315 = vpack.c.bf16 %v300, %v299
  %v316 = vpack.c.bf16 %v302, %v301
  %v317 = vpack.c.bf16 %v304, %v303
  %v318 = vpack.c.bf16 %v306, %v305
  %v319 = vpack.c.bf16 %v308, %v307
  %v320 = vpack.c.bf16 %v310, %v309
  %v321 = vpack.c.bf16 %v312, %v311
  %v322 = vpack.c.bf16 %v314, %v313
  %v323 = vld [vmem:[%s3] sm:$0xf]
  %v324 = vld [vmem:[%s3 + $0x4] sm:$0xf]
  %v325 = vld [vmem:[%s3 + $0x8] sm:$0xf]
  %v326 = vld [vmem:[%s3 + $0xc] sm:$0xf]
  %v327 = vld [vmem:[%s4] sm:$0x1]
  %v329 = vlaneseq
  %v330 = vshrl.u32 %v329, 7
  %v331 = vsub.s32 0, %v330
  %v332 = vrot.slane %v327, %v331
  %v338 = vunpack.c.l.b16 %v323
  %v339 = vunpack.c.l.b16 %v324
  %v340 = vunpack.c.l.b16 %v325
  %v341 = vunpack.c.l.b16 %v326
  %v342 = vpack.c.b16 %v339, %v338
  %v343 = vpack.c.b16 %v341, %v340
  %v347 = vsel %vm61, %v315, 0
  %v350 = vsel %vm61, %v316, 0
  %v353 = vsel %vm61, %v317, 0
  %v356 = vsel %vm61, %v318, 0
  %v359 = vsel %vm61, %v319, 0
  %v362 = vsel %vm61, %v320, 0
  %v365 = vsel %vm61, %v321, 0
  %v368 = vsel %vm61, %v322, 0
  %370 = vmatprep.subr.bf16.mxu0 0
  %371 = vmatpush1.bf16.msra.mxu0 %v342
  %372 = vmatprep.subr.bf16.mxu0 0
  %373 = vmatpush1.bf16.msra.mxu0 %v343
  %374 = vmatprep.subr.bf16.mxu0 0
  %375 = vmatpush1.bf16.msra.mxu0 0
  %376 = vmatprep.subr.bf16.mxu0 0
  %377 = vmatpush1.bf16.msra.mxu0 0
  %378 = vmatprep.subr.bf16.mxu0 0
  %379 = vmatpush1.bf16.msra.mxu0 0
  %380 = vmatprep.subr.bf16.mxu0 0
  %381 = vmatpush1.bf16.msra.mxu0 0
  %382 = vmatprep.subr.bf16.mxu0 0
  %383 = vmatpush1.bf16.msra.mxu0 0
  %384 = vmatprep.subr.bf16.mxu0 0
  %385 = vmatpush1.bf16.msra.mxu0 0
  %386 = vmatprep.subr.bf16.mxu0 0
  %387 = vmatpush1.bf16.msra.mxu0 0
  %388 = vmatprep.subr.bf16.mxu0 0
  %389 = vmatpush1.bf16.msra.mxu0 0
  %390 = vmatprep.subr.bf16.mxu0 0
  %391 = vmatpush1.bf16.msra.mxu0 0
  %392 = vmatprep.subr.bf16.mxu0 0
  %393 = vmatpush1.bf16.msra.mxu0 0
  %394 = vmatprep.subr.bf16.mxu0 0
  %395 = vmatpush1.bf16.msra.mxu0 0
  %396 = vmatprep.subr.bf16.mxu0 0
  %397 = vmatpush1.bf16.msra.mxu0 0
  %398 = vmatprep.subr.bf16.mxu0 0
  %399 = vmatpush1.bf16.msra.mxu0 0
  %400 = vmatprep.subr.bf16.mxu0 0
  %401 = vmatpush1.bf16.msra.mxu0 0
  %402 = vmatprep.mubr.bf16.mxu0 0
  %403 = vmatmul.mubr.bf16.gmra.mrb[0].mxu0 %v347
  %v404 = vpop.f32.mrb[0].mxu0
  %v405 = vadd.f32 %v332, %v404
  %v406 = vpop.f32.mrb[0].mxu0
  %v407 = vpop.f32.mrb[0].mxu0
  %v408 = vadd.f32 %v332, %v407
  %v409 = vpop.f32.mrb[0].mxu0
  %410 = vmatprep.mubr.bf16.mxu0 0
  %411 = vmatmul.mubr.bf16.gmra.mrb[0].mxu0 %v350
  %v412 = vpop.f32.mrb[0].mxu0
  %v413 = vadd.f32 %v332, %v412
  %v414 = vpop.f32.mrb[0].mxu0
  %v415 = vpop.f32.mrb[0].mxu0
  %v416 = vadd.f32 %v332, %v415
  %v417 = vpop.f32.mrb[0].mxu0
  %418 = vmatprep.mubr.bf16.mxu0 0
  %419 = vmatmul.mubr.bf16.gmra.mrb[0].mxu0 %v353
  %v420 = vpop.f32.mrb[0].mxu0
  %v421 = vadd.f32 %v332, %v420
  %v422 = vpop.f32.mrb[0].mxu0
  %v423 = vpop.f32.mrb[0].mxu0
  %v424 = vadd.f32 %v332, %v423
  %v425 = vpop.f32.mrb[0].mxu0
  %426 = vmatprep.mubr.bf16.mxu0 0
  %427 = vmatmul.mubr.bf16.gmra.mrb[0].mxu0 %v356
  %v428 = vpop.f32.mrb[0].mxu0
  %v429 = vadd.f32 %v332, %v428
  %v430 = vpop.f32.mrb[0].mxu0
  %v431 = vpop.f32.mrb[0].mxu0
  %v432 = vadd.f32 %v332, %v431
  %v433 = vpop.f32.mrb[0].mxu0
  %434 = vmatprep.mubr.bf16.mxu0 0
  %435 = vmatmul.mubr.bf16.gmra.mrb[0].mxu0 %v359
  %v436 = vpop.f32.mrb[0].mxu0
  %v437 = vadd.f32 %v332, %v436
  %v438 = vpop.f32.mrb[0].mxu0
  %v439 = vpop.f32.mrb[0].mxu0
  %v440 = vadd.f32 %v332, %v439
  %v441 = vpop.f32.mrb[0].mxu0
  %442 = vmatprep.mubr.bf16.mxu0 0
  %443 = vmatmul.mubr.bf16.gmra.mrb[0].mxu0 %v362
  %v444 = vpop.f32.mrb[0].mxu0
  %v445 = vadd.f32 %v332, %v444
  %v446 = vpop.f32.mrb[0].mxu0
  %v447 = vpop.f32.mrb[0].mxu0
  %v448 = vadd.f32 %v332, %v447
  %v449 = vpop.f32.mrb[0].mxu0
  %450 = vmatprep.mubr.bf16.mxu0 0
  %451 = vmatmul.mubr.bf16.gmra.mrb[0].mxu0 %v365
  %v452 = vpop.f32.mrb[0].mxu0
  %v453 = vadd.f32 %v332, %v452
  %v454 = vpop.f32.mrb[0].mxu0
  %v455 = vpop.f32.mrb[0].mxu0
  %v456 = vadd.f32 %v332, %v455
  %v457 = vpop.f32.mrb[0].mxu0
  %458 = vmatprep.mubr.bf16.mxu0 0
  %459 = vmatmul.mubr.bf16.gmra.mrb[0].mxu0 %v368
  %v460 = vpop.f32.mrb[0].mxu0
  %v461 = vadd.f32 %v332, %v460
  %v462 = vpop.f32.mrb[0].mxu0
  %v463 = vpop.f32.mrb[0].mxu0
  %v464 = vadd.f32 %v332, %v463
  %v465 = vpop.f32.mrb[0].mxu0
  %466 = vdwg.mxu0
  %v467 = vmul.f32 %v405, 0.5
  %v468 = vmul.f32 %v408, 0.5
  %v469 = vmul.f32 %v413, 0.5
  %v470 = vmul.f32 %v416, 0.5
  %v471 = vmul.f32 %v421, 0.5
  %v472 = vmul.f32 %v424, 0.5
  %v473 = vmul.f32 %v429, 0.5
  %v474 = vmul.f32 %v432, 0.5
  %v475 = vmul.f32 %v437, 0.5
  %v476 = vmul.f32 %v440, 0.5
  %v477 = vmul.f32 %v445, 0.5
  %v478 = vmul.f32 %v448, 0.5
  %v479 = vmul.f32 %v453, 0.5
  %v480 = vmul.f32 %v456, 0.5
  %v481 = vmul.f32 %v461, 0.5
  %v482 = vmul.f32 %v464, 0.5
  %v483 = vmul.f32 %v405, 0.70710677
  %v484 = vmul.f32 %v408, 0.70710677
  %v485 = vmul.f32 %v413, 0.70710677
  %v486 = vmul.f32 %v416, 0.70710677
  %v487 = vmul.f32 %v421, 0.70710677
  %v488 = vmul.f32 %v424, 0.70710677
  %v489 = vmul.f32 %v429, 0.70710677
  %v490 = vmul.f32 %v432, 0.70710677
  %v491 = vmul.f32 %v437, 0.70710677
  %v492 = vmul.f32 %v440, 0.70710677
  %v493 = vmul.f32 %v445, 0.70710677
  %v494 = vmul.f32 %v448, 0.70710677
  %v495 = vmul.f32 %v453, 0.70710677
  %v496 = vmul.f32 %v456, 0.70710677
  %v497 = vmul.f32 %v461, 0.70710677
  %v498 = vmul.f32 %v464, 0.70710677
  %vm499 = vcmp.ge.f32.partialorder %v483, 0.0
  %vm500 = vcmp.ge.f32.partialorder %v484, 0.0
  %vm501 = vcmp.ge.f32.partialorder %v485, 0.0
  %vm502 = vcmp.ge.f32.partialorder %v486, 0.0
  %vm503 = vcmp.ge.f32.partialorder %v487, 0.0
  %vm504 = vcmp.ge.f32.partialorder %v488, 0.0
  %vm505 = vcmp.ge.f32.partialorder %v489, 0.0
  %vm506 = vcmp.ge.f32.partialorder %v490, 0.0
  %vm507 = vcmp.ge.f32.partialorder %v491, 0.0
  %vm508 = vcmp.ge.f32.partialorder %v492, 0.0
  %vm509 = vcmp.ge.f32.partialorder %v493, 0.0
  %vm510 = vcmp.ge.f32.partialorder %v494, 0.0
  %vm511 = vcmp.ge.f32.partialorder %v495, 0.0
  %vm512 = vcmp.ge.f32.partialorder %v496, 0.0
  %vm513 = vcmp.ge.f32.partialorder %v497, 0.0
  %vm514 = vcmp.ge.f32.partialorder %v498, 0.0
  %v515 = vsel %vm499, 1.0, -1.0
  %v516 = vsel %vm500, 1.0, -1.0
  %v517 = vsel %vm501, 1.0, -1.0
  %v518 = vsel %vm502, 1.0, -1.0
  %v519 = vsel %vm503, 1.0, -1.0
  %v520 = vsel %vm504, 1.0, -1.0
  %v521 = vsel %vm505, 1.0, -1.0
  %v522 = vsel %vm506, 1.0, -1.0
  %v523 = vsel %vm507, 1.0, -1.0
  %v524 = vsel %vm508, 1.0, -1.0
  %v525 = vsel %vm509, 1.0, -1.0
  %v526 = vsel %vm510, 1.0, -1.0
  %v527 = vsel %vm511, 1.0, -1.0
  %v528 = vsel %vm512, 1.0, -1.0
  %v529 = vsel %vm513, 1.0, -1.0
  %v530 = vsel %vm514, 1.0, -1.0
  %v531 = vand.u32 2147483647, %v483
  %v532 = vand.u32 2147483647, %v484
  %v533 = vand.u32 2147483647, %v485
  %v534 = vand.u32 2147483647, %v486
  %v535 = vand.u32 2147483647, %v487
  %v536 = vand.u32 2147483647, %v488
  %v537 = vand.u32 2147483647, %v489
  %v538 = vand.u32 2147483647, %v490
  %v539 = vand.u32 2147483647, %v491
  %v540 = vand.u32 2147483647, %v492
  %v541 = vand.u32 2147483647, %v493
  %v542 = vand.u32 2147483647, %v494
  %v543 = vand.u32 2147483647, %v495
  %v544 = vand.u32 2147483647, %v496
  %v545 = vand.u32 2147483647, %v497
  %v546 = vand.u32 2147483647, %v498
  %v547 = vmul.f32 %v531, 0.3275911
  %v548 = vmul.f32 %v532, 0.3275911
  %v549 = vmul.f32 %v533, 0.3275911
  %v550 = vmul.f32 %v534, 0.3275911
  %v551 = vmul.f32 %v535, 0.3275911
  %v552 = vmul.f32 %v536, 0.3275911
  %v553 = vmul.f32 %v537, 0.3275911
  %v554 = vmul.f32 %v538, 0.3275911
  %v555 = vmul.f32 %v539, 0.3275911
  %v556 = vmul.f32 %v540, 0.3275911
  %v557 = vmul.f32 %v541, 0.3275911
  %v558 = vmul.f32 %v542, 0.3275911
  %v559 = vmul.f32 %v543, 0.3275911
  %v560 = vmul.f32 %v544, 0.3275911
  %v561 = vmul.f32 %v545, 0.3275911
  %v562 = vmul.f32 %v546, 0.3275911
  %v563 = vadd.f32 %v547, 1.0
  %v564 = vadd.f32 %v548, 1.0
  %v565 = vadd.f32 %v549, 1.0
  %v566 = vadd.f32 %v550, 1.0
  %v567 = vadd.f32 %v551, 1.0
  %v568 = vadd.f32 %v552, 1.0
  %v569 = vadd.f32 %v553, 1.0
  %v570 = vadd.f32 %v554, 1.0
  %v571 = vadd.f32 %v555, 1.0
  %v572 = vadd.f32 %v556, 1.0
  %v573 = vadd.f32 %v557, 1.0
  %v574 = vadd.f32 %v558, 1.0
  %v575 = vadd.f32 %v559, 1.0
  %v576 = vadd.f32 %v560, 1.0
  %v577 = vadd.f32 %v561, 1.0
  %v578 = vadd.f32 %v562, 1.0
  %v579 = vrcp.pop %v563
  %v580 = vrcp.pop %v564
  %v581 = vrcp.pop %v565
  %v582 = vrcp.pop %v566
  %v583 = vrcp.pop %v567
  %v584 = vrcp.pop %v568
  %v585 = vrcp.pop %v569
  %v586 = vrcp.pop %v570
  %v587 = vrcp.pop %v571
  %v588 = vrcp.pop %v572
  %v589 = vrcp.pop %v573
  %v590 = vrcp.pop %v574
  %v591 = vrcp.pop %v575
  %v592 = vrcp.pop %v576
  %v593 = vrcp.pop %v577
  %v594 = vrcp.pop %v578
  %v595 = vmul.f32 %v579, 1.0614054
  %v596 = vmul.f32 %v580, 1.0614054
  %v597 = vmul.f32 %v581, 1.0614054
  %v598 = vmul.f32 %v582, 1.0614054
  %v599 = vmul.f32 %v583, 1.0614054
  %v600 = vmul.f32 %v584, 1.0614054
  %v601 = vmul.f32 %v585, 1.0614054
  %v602 = vmul.f32 %v586, 1.0614054
  %v603 = vmul.f32 %v587, 1.0614054
  %v604 = vmul.f32 %v588, 1.0614054
  %v605 = vmul.f32 %v589, 1.0614054
  %v606 = vmul.f32 %v590, 1.0614054
  %v607 = vmul.f32 %v591, 1.0614054
  %v608 = vmul.f32 %v592, 1.0614054
  %v609 = vmul.f32 %v593, 1.0614054
  %v610 = vmul.f32 %v594, 1.0614054
  %v611 = vadd.f32 %v595, -1.4531521
  %v612 = vadd.f32 %v596, -1.4531521
  %v613 = vadd.f32 %v597, -1.4531521
  %v614 = vadd.f32 %v598, -1.4531521
  %v615 = vadd.f32 %v599, -1.4531521
  %v616 = vadd.f32 %v600, -1.4531521
  %v617 = vadd.f32 %v601, -1.4531521
  %v618 = vadd.f32 %v602, -1.4531521
  %v619 = vadd.f32 %v603, -1.4531521
  %v620 = vadd.f32 %v604, -1.4531521
  %v621 = vadd.f32 %v605, -1.4531521
  %v622 = vadd.f32 %v606, -1.4531521
  %v623 = vadd.f32 %v607, -1.4531521
  %v624 = vadd.f32 %v608, -1.4531521
  %v625 = vadd.f32 %v609, -1.4531521
  %v626 = vadd.f32 %v610, -1.4531521
  %v627 = vmul.f32 %v579, %v611
  %v628 = vmul.f32 %v580, %v612
  %v629 = vmul.f32 %v581, %v613
  %v630 = vmul.f32 %v582, %v614
  %v631 = vmul.f32 %v583, %v615
  %v632 = vmul.f32 %v584, %v616
  %v633 = vmul.f32 %v585, %v617
  %v634 = vmul.f32 %v586, %v618
  %v635 = vmul.f32 %v587, %v619
  %v636 = vmul.f32 %v588, %v620
  %v637 = vmul.f32 %v589, %v621
  %v638 = vmul.f32 %v590, %v622
  %v639 = vmul.f32 %v591, %v623
  %v640 = vmul.f32 %v592, %v624
  %v641 = vmul.f32 %v593, %v625
  %v642 = vmul.f32 %v594, %v626
  %v643 = vadd.f32 %v627, 1.4214138
  %v644 = vadd.f32 %v628, 1.4214138
  %v645 = vadd.f32 %v629, 1.4214138
  %v646 = vadd.f32 %v630, 1.4214138
  %v647 = vadd.f32 %v631, 1.4214138
  %v648 = vadd.f32 %v632, 1.4214138
  %v649 = vadd.f32 %v633, 1.4214138
  %v650 = vadd.f32 %v634, 1.4214138
  %v651 = vadd.f32 %v635, 1.4214138
  %v652 = vadd.f32 %v636, 1.4214138
  %v653 = vadd.f32 %v637, 1.4214138
  %v654 = vadd.f32 %v638, 1.4214138
  %v655 = vadd.f32 %v639, 1.4214138
  %v656 = vadd.f32 %v640, 1.4214138
  %v657 = vadd.f32 %v641, 1.4214138
  %v658 = vadd.f32 %v642, 1.4214138
  %v659 = vmul.f32 %v579, %v643
  %v660 = vmul.f32 %v580, %v644
  %v661 = vmul.f32 %v581, %v645
  %v662 = vmul.f32 %v582, %v646
  %v663 = vmul.f32 %v583, %v647
  %v664 = vmul.f32 %v584, %v648
  %v665 = vmul.f32 %v585, %v649
  %v666 = vmul.f32 %v586, %v650
  %v667 = vmul.f32 %v587, %v651
  %v668 = vmul.f32 %v588, %v652
  %v669 = vmul.f32 %v589, %v653
  %v670 = vmul.f32 %v590, %v654
  %v671 = vmul.f32 %v591, %v655
  %v672 = vmul.f32 %v592, %v656
  %v673 = vmul.f32 %v593, %v657
  %v674 = vmul.f32 %v594, %v658
  %v675 = vadd.f32 %v659, -0.28449672
  %v676 = vadd.f32 %v660, -0.28449672
  %v677 = vadd.f32 %v661, -0.28449672
  %v678 = vadd.f32 %v662, -0.28449672
  %v679 = vadd.f32 %v663, -0.28449672
  %v680 = vadd.f32 %v664, -0.28449672
  %v681 = vadd.f32 %v665, -0.28449672
  %v682 = vadd.f32 %v666, -0.28449672
  %v683 = vadd.f32 %v667, -0.28449672
  %v684 = vadd.f32 %v668, -0.28449672
  %v685 = vadd.f32 %v669, -0.28449672
  %v686 = vadd.f32 %v670, -0.28449672
  %v687 = vadd.f32 %v671, -0.28449672
  %v688 = vadd.f32 %v672, -0.28449672
  %v689 = vadd.f32 %v673, -0.28449672
  %v690 = vadd.f32 %v674, -0.28449672
  %v691 = vmul.f32 %v579, %v675
  %v692 = vmul.f32 %v580, %v676
  %v693 = vmul.f32 %v581, %v677
  %v694 = vmul.f32 %v582, %v678
  %v695 = vmul.f32 %v583, %v679
  %v696 = vmul.f32 %v584, %v680
  %v697 = vmul.f32 %v585, %v681
  %v698 = vmul.f32 %v586, %v682
  %v699 = vmul.f32 %v587, %v683
  %v700 = vmul.f32 %v588, %v684
  %v701 = vmul.f32 %v589, %v685
  %v702 = vmul.f32 %v590, %v686
  %v703 = vmul.f32 %v591, %v687
  %v704 = vmul.f32 %v592, %v688
  %v705 = vmul.f32 %v593, %v689
  %v706 = vmul.f32 %v594, %v690
  %v707 = vadd.f32 %v691, 0.2548296
  %v708 = vadd.f32 %v692, 0.2548296
  %v709 = vadd.f32 %v693, 0.2548296
  %v710 = vadd.f32 %v694, 0.2548296
  %v711 = vadd.f32 %v695, 0.2548296
  %v712 = vadd.f32 %v696, 0.2548296
  %v713 = vadd.f32 %v697, 0.2548296
  %v714 = vadd.f32 %v698, 0.2548296
  %v715 = vadd.f32 %v699, 0.2548296
  %v716 = vadd.f32 %v700, 0.2548296
  %v717 = vadd.f32 %v701, 0.2548296
  %v718 = vadd.f32 %v702, 0.2548296
  %v719 = vadd.f32 %v703, 0.2548296
  %v720 = vadd.f32 %v704, 0.2548296
  %v721 = vadd.f32 %v705, 0.2548296
  %v722 = vadd.f32 %v706, 0.2548296
  %v723 = vmul.f32 %v579, %v707
  %v724 = vmul.f32 %v580, %v708
  %v725 = vmul.f32 %v581, %v709
  %v726 = vmul.f32 %v582, %v710
  %v727 = vmul.f32 %v583, %v711
  %v728 = vmul.f32 %v584, %v712
  %v729 = vmul.f32 %v585, %v713
  %v730 = vmul.f32 %v586, %v714
  %v731 = vmul.f32 %v587, %v715
  %v732 = vmul.f32 %v588, %v716
  %v733 = vmul.f32 %v589, %v717
  %v734 = vmul.f32 %v590, %v718
  %v735 = vmul.f32 %v591, %v719
  %v736 = vmul.f32 %v592, %v720
  %v737 = vmul.f32 %v593, %v721
  %v738 = vmul.f32 %v594, %v722
  %v739 = vsub.f32 0.0, %v531
  %v740 = vsub.f32 0.0, %v532
  %v741 = vsub.f32 0.0, %v533
  %v742 = vsub.f32 0.0, %v534
  %v743 = vsub.f32 0.0, %v535
  %v744 = vsub.f32 0.0, %v536
  %v745 = vsub.f32 0.0, %v537
  %v746 = vsub.f32 0.0, %v538
  %v747 = vsub.f32 0.0, %v539
  %v748 = vsub.f32 0.0, %v540
  %v749 = vsub.f32 0.0, %v541
  %v750 = vsub.f32 0.0, %v542
  %v751 = vsub.f32 0.0, %v543
  %v752 = vsub.f32 0.0, %v544
  %v753 = vsub.f32 0.0, %v545
  %v754 = vsub.f32 0.0, %v546
  %v755 = vmul.f32 %v739, %v531
  %v756 = vmul.f32 %v740, %v532
  %v757 = vmul.f32 %v741, %v533
  %v758 = vmul.f32 %v742, %v534
  %v759 = vmul.f32 %v743, %v535
  %v760 = vmul.f32 %v744, %v536
  %v761 = vmul.f32 %v745, %v537
  %v762 = vmul.f32 %v746, %v538
  %v763 = vmul.f32 %v747, %v539
  %v764 = vmul.f32 %v748, %v540
  %v765 = vmul.f32 %v749, %v541
  %v766 = vmul.f32 %v750, %v542
  %v767 = vmul.f32 %v751, %v543
  %v768 = vmul.f32 %v752, %v544
  %v769 = vmul.f32 %v753, %v545
  %v770 = vmul.f32 %v754, %v546
  %v771 = vmul.f32 %v755, 1.442695
  %v772 = vpow.pop %v771
  %v773 = vmul.f32 %v756, 1.442695
  %v774 = vpow.pop %v773
  %v775 = vmul.f32 %v757, 1.442695
  %v776 = vpow.pop %v775
  %v777 = vmul.f32 %v758, 1.442695
  %v778 = vpow.pop %v777
  %v779 = vmul.f32 %v759, 1.442695
  %v780 = vpow.pop %v779
  %v781 = vmul.f32 %v760, 1.442695
  %v782 = vpow.pop %v781
  %v783 = vmul.f32 %v761, 1.442695
  %v784 = vpow.pop %v783
  %v785 = vmul.f32 %v762, 1.442695
  %v786 = vpow.pop %v785
  %v787 = vmul.f32 %v763, 1.442695
  %v788 = vpow.pop %v787
  %v789 = vmul.f32 %v764, 1.442695
  %v790 = vpow.pop %v789
  %v791 = vmul.f32 %v765, 1.442695
  %v792 = vpow.pop %v791
  %v793 = vmul.f32 %v766, 1.442695
  %v794 = vpow.pop %v793
  %v795 = vmul.f32 %v767, 1.442695
  %v796 = vpow.pop %v795
  %v797 = vmul.f32 %v768, 1.442695
  %v798 = vpow.pop %v797
  %v799 = vmul.f32 %v769, 1.442695
  %v800 = vpow.pop %v799
  %v801 = vmul.f32 %v770, 1.442695
  %v802 = vpow.pop %v801
  %v803 = vmul.f32 %v723, %v772
  %v804 = vmul.f32 %v724, %v774
  %v805 = vmul.f32 %v725, %v776
  %v806 = vmul.f32 %v726, %v778
  %v807 = vmul.f32 %v727, %v780
  %v808 = vmul.f32 %v728, %v782
  %v809 = vmul.f32 %v729, %v784
  %v810 = vmul.f32 %v730, %v786
  %v811 = vmul.f32 %v731, %v788
  %v812 = vmul.f32 %v732, %v790
  %v813 = vmul.f32 %v733, %v792
  %v814 = vmul.f32 %v734, %v794
  %v815 = vmul.f32 %v735, %v796
  %v816 = vmul.f32 %v736, %v798
  %v817 = vmul.f32 %v737, %v800
  %v818 = vmul.f32 %v738, %v802
  %v819 = vsub.f32 1.0, %v803
  %v820 = vsub.f32 1.0, %v804
  %v821 = vsub.f32 1.0, %v805
  %v822 = vsub.f32 1.0, %v806
  %v823 = vsub.f32 1.0, %v807
  %v824 = vsub.f32 1.0, %v808
  %v825 = vsub.f32 1.0, %v809
  %v826 = vsub.f32 1.0, %v810
  %v827 = vsub.f32 1.0, %v811
  %v828 = vsub.f32 1.0, %v812
  %v829 = vsub.f32 1.0, %v813
  %v830 = vsub.f32 1.0, %v814
  %v831 = vsub.f32 1.0, %v815
  %v832 = vsub.f32 1.0, %v816
  %v833 = vsub.f32 1.0, %v817
  %v834 = vsub.f32 1.0, %v818
  %v835 = vmul.f32 %v515, %v819
  %v836 = vmul.f32 %v516, %v820
  %v837 = vmul.f32 %v517, %v821
  %v838 = vmul.f32 %v518, %v822
  %v839 = vmul.f32 %v519, %v823
  %v840 = vmul.f32 %v520, %v824
  %v841 = vmul.f32 %v521, %v825
  %v842 = vmul.f32 %v522, %v826
  %v843 = vmul.f32 %v523, %v827
  %v844 = vmul.f32 %v524, %v828
  %v845 = vmul.f32 %v525, %v829
  %v846 = vmul.f32 %v526, %v830
  %v847 = vmul.f32 %v527, %v831
  %v848 = vmul.f32 %v528, %v832
  %v849 = vmul.f32 %v529, %v833
  %v850 = vmul.f32 %v530, %v834
  %v851 = vadd.f32 %v835, 1.0
  %v852 = vadd.f32 %v836, 1.0
  %v853 = vadd.f32 %v837, 1.0
  %v854 = vadd.f32 %v838, 1.0
  %v855 = vadd.f32 %v839, 1.0
  %v856 = vadd.f32 %v840, 1.0
  %v857 = vadd.f32 %v841, 1.0
  %v858 = vadd.f32 %v842, 1.0
  %v859 = vadd.f32 %v843, 1.0
  %v860 = vadd.f32 %v844, 1.0
  %v861 = vadd.f32 %v845, 1.0
  %v862 = vadd.f32 %v846, 1.0
  %v863 = vadd.f32 %v847, 1.0
  %v864 = vadd.f32 %v848, 1.0
  %v865 = vadd.f32 %v849, 1.0
  %v866 = vadd.f32 %v850, 1.0
  %v867 = vmul.f32 %v467, %v851
  %v868 = vmul.f32 %v468, %v852
  %v869 = vmul.f32 %v469, %v853
  %v870 = vmul.f32 %v470, %v854
  %v871 = vmul.f32 %v471, %v855
  %v872 = vmul.f32 %v472, %v856
  %v873 = vmul.f32 %v473, %v857
  %v874 = vmul.f32 %v474, %v858
  %v875 = vmul.f32 %v475, %v859
  %v876 = vmul.f32 %v476, %v860
  %v877 = vmul.f32 %v477, %v861
  %v878 = vmul.f32 %v478, %v862
  %v879 = vmul.f32 %v479, %v863
  %v880 = vmul.f32 %v480, %v864
  %v881 = vmul.f32 %v481, %v865
  %v882 = vmul.f32 %v482, %v866
  %v883 = vpack.c.bf16 %v868, %v867
  %v884 = vpack.c.bf16 %v870, %v869
  %v885 = vpack.c.bf16 %v872, %v871
  %v886 = vpack.c.bf16 %v874, %v873
  %v887 = vpack.c.bf16 %v876, %v875
  %v888 = vpack.c.bf16 %v878, %v877
  %v889 = vpack.c.bf16 %v880, %v879
  %v890 = vpack.c.bf16 %v882, %v881
  %v891 = vld [vmem:[%s5] sm:$0xf]
  %v892 = vld [vmem:[%s5 + $0x4] sm:$0xf]
  %v893 = vld [vmem:[%s5 + $0x8] sm:$0xf]
  %v894 = vld [vmem:[%s5 + $0xc] sm:$0xf]
  %v895 = vld [vmem:[%s5 + $0x10] sm:$0xf]
  %v896 = vld [vmem:[%s5 + $0x14] sm:$0xf]
  %v897 = vld [vmem:[%s5 + $0x18] sm:$0xf]
  %v898 = vld [vmem:[%s5 + $0x1c] sm:$0xf]
  %v899 = vld [vmem:[%s6] sm:$0x1]
  %v901 = vlaneseq
  %v902 = vshrl.u32 %v901, 7
  %v903 = vsub.s32 0, %v902
  %v904 = vrot.slane %v899, %v903
  %v914 = vunpack.c.l.b16 %v891
  %v915 = vunpack.c.l.b16 %v892
  %v916 = vunpack.c.l.b16 %v893
  %v917 = vunpack.c.l.b16 %v894
  %v918 = vunpack.c.l.b16 %v895
  %v919 = vunpack.c.l.b16 %v896
  %v920 = vunpack.c.l.b16 %v897
  %v921 = vunpack.c.l.b16 %v898
  %v922 = vpack.c.b16 %v915, %v914
  %v923 = vpack.c.b16 %v917, %v916
  %v924 = vpack.c.b16 %v919, %v918
  %v925 = vpack.c.b16 %v921, %v920
  %vm930 = vcmask 523264
  %v932 = vsel %vm930, %v883, 0
  %v935 = vsel %vm930, %v884, 0
  %v938 = vsel %vm930, %v885, 0
  %v941 = vsel %vm930, %v886, 0
  %v944 = vsel %vm930, %v887, 0
  %v947 = vsel %vm930, %v888, 0
  %v950 = vsel %vm930, %v889, 0
  %v953 = vsel %vm930, %v890, 0
  %955 = vmatprep.subr.bf16.mxu0 0
  %956 = vmatpush1.bf16.msra.mxu0 %v922
  %957 = vmatprep.subr.bf16.mxu0 0
  %958 = vmatpush1.bf16.msra.mxu0 %v923
  %959 = vmatprep.subr.bf16.mxu0 0
  %960 = vmatpush1.bf16.msra.mxu0 %v924
  %961 = vmatprep.subr.bf16.mxu0 0
  %962 = vmatpush1.bf16.msra.mxu0 %v925
  %963 = vmatprep.subr.bf16.mxu0 0
  %964 = vmatpush1.bf16.msra.mxu0 0
  %965 = vmatprep.subr.bf16.mxu0 0
  %966 = vmatpush1.bf16.msra.mxu0 0
  %967 = vmatprep.subr.bf16.mxu0 0
  %968 = vmatpush1.bf16.msra.mxu0 0
  %969 = vmatprep.subr.bf16.mxu0 0
  %970 = vmatpush1.bf16.msra.mxu0 0
  %971 = vmatprep.subr.bf16.mxu0 0
  %972 = vmatpush1.bf16.msra.mxu0 0
  %973 = vmatprep.subr.bf16.mxu0 0
  %974 = vmatpush1.bf16.msra.mxu0 0
  %975 = vmatprep.subr.bf16.mxu0 0
  %976 = vmatpush1.bf16.msra.mxu0 0
  %977 = vmatprep.subr.bf16.mxu0 0
  %978 = vmatpush1.bf16.msra.mxu0 0
  %979 = vmatprep.subr.bf16.mxu0 0
  %980 = vmatpush1.bf16.msra.mxu0 0
  %981 = vmatprep.subr.bf16.mxu0 0
  %982 = vmatpush1.bf16.msra.mxu0 0
  %983 = vmatprep.subr.bf16.mxu0 0
  %984 = vmatpush1.bf16.msra.mxu0 0
  %985 = vmatprep.subr.bf16.mxu0 0
  %986 = vmatpush1.bf16.msra.mxu0 0
  %987 = vmatprep.mubr.bf16.mxu0 0
  %988 = vmatmul.mubr.bf16.gmra.mrb[0].mxu0 %v932
  %v989 = vpop.f32.mrb[0].mxu0
  %v990 = vadd.f32 %v904, %v989
  %v991 = vpop.f32.mrb[0].mxu0
  %v992 = vpop.f32.mrb[0].mxu0
  %v993 = vadd.f32 %v904, %v992
  %v994 = vpop.f32.mrb[0].mxu0
  %995 = vmatprep.mubr.bf16.mxu0 0
  %996 = vmatmul.mubr.bf16.gmra.mrb[0].mxu0 %v935
  %v997 = vpop.f32.mrb[0].mxu0
  %v998 = vadd.f32 %v904, %v997
  %v999 = vpop.f32.mrb[0].mxu0
  %v1000 = vpop.f32.mrb[0].mxu0
  %v1001 = vadd.f32 %v904, %v1000
  %v1002 = vpop.f32.mrb[0].mxu0
  %1003 = vmatprep.mubr.bf16.mxu0 0
  %1004 = vmatmul.mubr.bf16.gmra.mrb[0].mxu0 %v938
  %v1005 = vpop.f32.mrb[0].mxu0
  %v1006 = vadd.f32 %v904, %v1005
  %v1007 = vpop.f32.mrb[0].mxu0
  %v1008 = vpop.f32.mrb[0].mxu0
  %v1009 = vadd.f32 %v904, %v1008
  %v1010 = vpop.f32.mrb[0].mxu0
  %1011 = vmatprep.mubr.bf16.mxu0 0
  %1012 = vmatmul.mubr.bf16.gmra.mrb[0].mxu0 %v941
  %v1013 = vpop.f32.mrb[0].mxu0
  %v1014 = vadd.f32 %v904, %v1013
  %v1015 = vpop.f32.mrb[0].mxu0
  %v1016 = vpop.f32.mrb[0].mxu0
  %v1017 = vadd.f32 %v904, %v1016
  %v1018 = vpop.f32.mrb[0].mxu0
  %1019 = vmatprep.mubr.bf16.mxu0 0
  %1020 = vmatmul.mubr.bf16.gmra.mrb[0].mxu0 %v944
  %v1021 = vpop.f32.mrb[0].mxu0
  %v1022 = vadd.f32 %v904, %v1021
  %v1023 = vpop.f32.mrb[0].mxu0
  %v1024 = vpop.f32.mrb[0].mxu0
  %v1025 = vadd.f32 %v904, %v1024
  %v1026 = vpop.f32.mrb[0].mxu0
  %1027 = vmatprep.mubr.bf16.mxu0 0
  %1028 = vmatmul.mubr.bf16.gmra.mrb[0].mxu0 %v947
  %v1029 = vpop.f32.mrb[0].mxu0
  %v1030 = vadd.f32 %v904, %v1029
  %v1031 = vpop.f32.mrb[0].mxu0
  %v1032 = vpop.f32.mrb[0].mxu0
  %v1033 = vadd.f32 %v904, %v1032
  %v1034 = vpop.f32.mrb[0].mxu0
  %1035 = vmatprep.mubr.bf16.mxu0 0
  %1036 = vmatmul.mubr.bf16.gmra.mrb[0].mxu0 %v950
  %v1037 = vpop.f32.mrb[0].mxu0
  %v1038 = vadd.f32 %v904, %v1037
  %v1039 = vpop.f32.mrb[0].mxu0
  %v1040 = vpop.f32.mrb[0].mxu0
  %v1041 = vadd.f32 %v904, %v1040
  %v1042 = vpop.f32.mrb[0].mxu0
  %1043 = vmatprep.mubr.bf16.mxu0 0
  %1044 = vmatmul.mubr.bf16.gmra.mrb[0].mxu0 %v953
  %v1045 = vpop.f32.mrb[0].mxu0
  %v1046 = vadd.f32 %v904, %v1045
  %v1047 = vpop.f32.mrb[0].mxu0
  %v1048 = vpop.f32.mrb[0].mxu0
  %v1049 = vadd.f32 %v904, %v1048
  %v1050 = vpop.f32.mrb[0].mxu0
  %1051 = vdwg.mxu0
  %v1052 = vadd.f32 %v990, %v43
  %v1053 = vadd.f32 %v993, %v44
  %v1054 = vadd.f32 %v998, %v45
  %v1055 = vadd.f32 %v1001, %v46
  %v1056 = vadd.f32 %v1006, %v47
  %v1057 = vadd.f32 %v1009, %v48
  %v1058 = vadd.f32 %v1014, %v49
  %v1059 = vadd.f32 %v1017, %v50
  %v1060 = vadd.f32 %v1022, %v51
  %v1061 = vadd.f32 %v1025, %v52
  %v1062 = vadd.f32 %v1030, %v53
  %v1063 = vadd.f32 %v1033, %v54
  %v1064 = vadd.f32 %v1038, %v55
  %v1065 = vadd.f32 %v1041, %v56
  %v1066 = vadd.f32 %v1046, %v57
  %v1067 = vadd.f32 %v1049, %v58
  %v1068 = vpack.c.bf16 %v1053, %v1052
  %v1069 = vpack.c.bf16 %v1055, %v1054
  %v1070 = vpack.c.bf16 %v1057, %v1056
  %v1071 = vpack.c.bf16 %v1059, %v1058
  %v1072 = vpack.c.bf16 %v1061, %v1060
  %v1073 = vpack.c.bf16 %v1063, %v1062
  %v1074 = vpack.c.bf16 %v1065, %v1064
  %v1075 = vpack.c.bf16 %v1067, %v1066
  %v1084 = vunpack.c.l.b16 %v1068
  %v1085 = vunpack.c.h.b16 %v1068
  %v1086 = vunpack.c.l.b16 %v1069
  %v1087 = vunpack.c.h.b16 %v1069
  %v1088 = vunpack.c.l.b16 %v1070
  %v1089 = vunpack.c.h.b16 %v1070
  %v1090 = vunpack.c.l.b16 %v1071
  %v1091 = vunpack.c.h.b16 %v1071
  %v1092 = vunpack.c.l.b16 %v1072
  %v1093 = vunpack.c.h.b16 %v1072
  %v1094 = vunpack.c.l.b16 %v1073
  %v1095 = vunpack.c.h.b16 %v1073
  %v1096 = vunpack.c.l.b16 %v1074
  %v1097 = vunpack.c.h.b16 %v1074
  %v1098 = vunpack.c.l.b16 %v1075
  %v1099 = vunpack.c.h.b16 %v1075
  %v1100 = vpack.c.b16 %v1084, %v1084
  %v1101 = vpack.c.b16 %v1085, %v1085
  %v1102 = vpack.c.b16 %v1086, %v1086
  %v1103 = vpack.c.b16 %v1087, %v1087
  %v1104 = vpack.c.b16 %v1088, %v1088
  %v1105 = vpack.c.b16 %v1089, %v1089
  %v1106 = vpack.c.b16 %v1090, %v1090
  %v1107 = vpack.c.b16 %v1091, %v1091
  %v1108 = vpack.c.b16 %v1092, %v1092
  %v1109 = vpack.c.b16 %v1093, %v1093
  %v1110 = vpack.c.b16 %v1094, %v1094
  %v1111 = vpack.c.b16 %v1095, %v1095
  %v1112 = vpack.c.b16 %v1096, %v1096
  %v1113 = vpack.c.b16 %v1097, %v1097
  %v1114 = vpack.c.b16 %v1098, %v1098
  %v1115 = vpack.c.b16 %v1099, %v1099
  %vm1132 = vcmask 257024
  %1133 = vst.msk [vmem:[%s7] sm:$0xf] %vm1132, %v1100
  %1134 = vst.msk [vmem:[%s7 + $0x4] sm:$0xf] %vm1132, %v1101
  %1135 = vst.msk [vmem:[%s7 + $0x8] sm:$0xf] %vm1132, %v1102
  %1136 = vst.msk [vmem:[%s7 + $0xc] sm:$0xf] %vm1132, %v1103
  %1137 = vst.msk [vmem:[%s7 + $0x10] sm:$0xf] %vm1132, %v1104
  %1138 = vst.msk [vmem:[%s7 + $0x14] sm:$0xf] %vm1132, %v1105
  %1139 = vst.msk [vmem:[%s7 + $0x18] sm:$0xf] %vm1132, %v1106
  %1140 = vst.msk [vmem:[%s7 + $0x1c] sm:$0xf] %vm1132, %v1107
  %1141 = vst.msk [vmem:[%s7 + $0x20] sm:$0xf] %vm1132, %v1108
  %1142 = vst.msk [vmem:[%s7 + $0x24] sm:$0xf] %vm1132, %v1109
  %1143 = vst.msk [vmem:[%s7 + $0x28] sm:$0xf] %vm1132, %v1110
  %1144 = vst.msk [vmem:[%s7 + $0x2c] sm:$0xf] %vm1132, %v1111
  %1145 = vst.msk [vmem:[%s7 + $0x30] sm:$0xf] %vm1132, %v1112
  %1146 = vst.msk [vmem:[%s7 + $0x34] sm:$0xf] %vm1132, %v1113
  %1147 = vst.msk [vmem:[%s7 + $0x38] sm:$0xf] %vm1132, %v1114
  %1148 = vst.msk [vmem:[%s7 + $0x3c] sm:$0xf] %vm1132, %v1115
  // Predicated region
  $region30: #{tsvit_forward.12} parent=0 // pred_check
    _
  $region31: #{tsvit_forward.12} parent=0 // pred_check_branch
    %1150 = sbr.rel (0) target = $region33
  $region32: #{tsvit_forward.12} parent=0 // pred_region
    _
  $region33: #{tsvit_forward.12} parent=0 // pred_fallthru
    _
  // Predicated region
  $region34: #{tsvit_forward.12} parent=0 // pred_check
    _
  $region35: #{tsvit_forward.12} parent=0 // pred_check_branch
    %1152 = sbr.rel (0) target = $region37
  $region36: #{tsvit_forward.12} parent=0 // pred_region
    _
  $region37: #{tsvit_forward.12} parent=0 // pred_fallthru
    _

// kernel: tsvit_forward.13
$region0: #{tsvit_forward.13}
  #allocation0 [shape = 'u32[]', space=smem, size = 0x4, offset = 0x4, fixed_abs, tag = 'smem constant byte address 0x4 - core index']
  #allocation1 [shape = 'u32[144,128]{1,0:T(1,128)}', space=vmem, size = 0x12000, scoped, tag = 'internal scratch']
  %s0 = inlined_call_operand.vmem [shape: bf16[128,32], index: 0, kind: input, shape index: {}]
  %s1 = inlined_call_operand.vmem [shape: f32[1,32], index: 1, kind: input, shape index: {}]
  %s2 = inlined_call_operand.vmem [shape: f32[1,32], index: 2, kind: input, shape index: {}]
  %s3 = inlined_call_operand.vmem [shape: f32[1,32], index: 3, kind: input, shape index: {}]
  %s4 = inlined_call_operand.vmem [shape: f32[1,32], index: 4, kind: input, shape index: {}]
  %s5 = inlined_call_operand.vmem [shape: bf16[32,128], index: 5, kind: input, shape index: {}]
  %s6 = inlined_call_operand.vmem [shape: f32[1,128], index: 6, kind: input, shape index: {}]
  %s7 = inlined_call_operand.hbm [shape: f32[128,128], index: 7, kind: output, shape index: {}]
  %s8 = sld [smem:[#allocation0]]
  $region38: #{tsvit_forward.13} parent=0
    _
  %s10 = ssub.s32 1, %s8
  %s11 = scalar_select 0, %s10, %s8
  $region1: #{tsvit_forward.13} parent=0
    #allocation2 [shape = 'u8[65536]{0}', space=vmem, size = 0x10000, scoped, tag = 'output window, operand 0, single buffered']
    #allocation3 [shape = 's32[1]{0}', space=sflag, size = 0x4, scoped, tag = 'scoped memory for tsvit_forward.13']
    %12 = vsyncpa [#allocation3], 0
    // Predicated region
    $region2: #{tsvit_forward.13} parent=1 // pred_check
      _
    $region3: #{tsvit_forward.13} parent=1 // pred_check_branch
      %14 = sbr.rel (0) target = $region5
    $region4: #{tsvit_forward.13} parent=1 // pred_region
      _
    $region5: #{tsvit_forward.13} parent=1 // pred_fallthru
      _
    // Predicated region
    $region6: #{tsvit_forward.13} parent=1 // pred_check
      _
    $region7: #{tsvit_forward.13} parent=1 // pred_check_branch
      %16 = sbr.rel (0) target = $region9
    $region8: #{tsvit_forward.13} parent=1 // pred_region
      _
    $region9: #{tsvit_forward.13} parent=1 // pred_fallthru
      _
    // Predicated region
    $region10: #{tsvit_forward.13} parent=1 // pred_check
      _
    $region11: #{tsvit_forward.13} parent=1 // pred_check_branch
      %18 = sbr.rel (0) target = $region13
    $region12: #{tsvit_forward.13} parent=1 // pred_region
      _
    $region13: #{tsvit_forward.13} parent=1 // pred_fallthru
      _
    // Predicated region
    $region14: #{tsvit_forward.13} parent=1 // pred_check
      _
    $region15: #{tsvit_forward.13} parent=1 // pred_check_branch
      %20 = sbr.rel (0) target = $region17
    $region16: #{tsvit_forward.13} parent=1 // pred_region
      _
    $region17: #{tsvit_forward.13} parent=1 // pred_fallthru
      _
    // Predicated region
    $region18: #{tsvit_forward.13} parent=1 // pred_check
      _
    $region19: #{tsvit_forward.13} parent=1 // pred_check_branch
      %22 = sbr.rel (0) target = $region21
    $region20: #{tsvit_forward.13} parent=1 // pred_region
      _
    $region21: #{tsvit_forward.13} parent=1 // pred_fallthru
      _
    // Predicated region
    $region22: #{tsvit_forward.13} parent=1 // pred_check
      _
    $region23: #{tsvit_forward.13} parent=1 // pred_check_branch
      %24 = sbr.rel (0) target = $region25
    $region24: #{tsvit_forward.13} parent=1 // pred_region
      _
    $region25: #{tsvit_forward.13} parent=1 // pred_fallthru
      _
    // Predicated region
    $region26: #{tsvit_forward.13} parent=1 // pred_check
      _
    $region27: #{tsvit_forward.13} parent=1 // pred_check_branch
      %26 = sbr.rel (0) target = $region29
    $region28: #{tsvit_forward.13} parent=1 // pred_region
      _
    $region29: #{tsvit_forward.13} parent=1 // pred_fallthru
      _
    %v28 = vld [vmem:[%s0] sm:$0xf]
    %v29 = vld [vmem:[%s0 + $0x4] sm:$0xf]
    %v30 = vld [vmem:[%s0 + $0x8] sm:$0xf]
    %v31 = vld [vmem:[%s0 + $0xc] sm:$0xf]
    %v32 = vld [vmem:[%s0 + $0x10] sm:$0xf]
    %v33 = vld [vmem:[%s0 + $0x14] sm:$0xf]
    %v34 = vld [vmem:[%s0 + $0x18] sm:$0xf]
    %v35 = vld [vmem:[%s0 + $0x1c] sm:$0xf]
    %v36 = vld [vmem:[%s0 + $0x20] sm:$0xf]
    %v37 = vld [vmem:[%s0 + $0x24] sm:$0xf]
    %v38 = vld [vmem:[%s0 + $0x28] sm:$0xf]
    %v39 = vld [vmem:[%s0 + $0x2c] sm:$0xf]
    %v40 = vld [vmem:[%s0 + $0x30] sm:$0xf]
    %v41 = vld [vmem:[%s0 + $0x34] sm:$0xf]
    %v42 = vld [vmem:[%s0 + $0x38] sm:$0xf]
    %v43 = vld [vmem:[%s0 + $0x3c] sm:$0xf]
    %v44 = vunpack.c.l.bf16 %v28
    %v45 = vunpack.c.l.bf16 %v29
    %v46 = vunpack.c.l.bf16 %v30
    %v47 = vunpack.c.l.bf16 %v31
    %v48 = vunpack.c.l.bf16 %v32
    %v49 = vunpack.c.l.bf16 %v33
    %v50 = vunpack.c.l.bf16 %v34
    %v51 = vunpack.c.l.bf16 %v35
    %v52 = vunpack.c.l.bf16 %v36
    %v53 = vunpack.c.l.bf16 %v37
    %v54 = vunpack.c.l.bf16 %v38
    %v55 = vunpack.c.l.bf16 %v39
    %v56 = vunpack.c.l.bf16 %v40
    %v57 = vunpack.c.l.bf16 %v41
    %v58 = vunpack.c.l.bf16 %v42
    %v59 = vunpack.c.l.bf16 %v43
    %v60 = vld [vmem:[%s1] sm:$0x1]
    %v61 = vld [vmem:[%s2] sm:$0x1]
    %vm62 = vcmask 261120
    %v63 = vsel %vm62, %v44, 0.0
    %64 = vadd.xlane.f32.xlu0 %v63
    %v65 = vpop.xlane.xlu0 %64
    %v66 = vsel %vm62, %v45, 0.0
    %67 = vadd.xlane.f32.xlu0 %v66
    %v68 = vpop.xlane.xlu0 %67
    %v69 = vsel %vm62, %v46, 0.0
    %70 = vadd.xlane.f32.xlu0 %v69
    %v71 = vpop.xlane.xlu0 %70
    %v72 = vsel %vm62, %v47, 0.0
    %73 = vadd.xlane.f32.xlu0 %v72
    %v74 = vpop.xlane.xlu0 %73
    %v75 = vsel %vm62, %v48, 0.0
    %76 = vadd.xlane.f32.xlu0 %v75
    %v77 = vpop.xlane.xlu0 %76
    %v78 = vsel %vm62, %v49, 0.0
    %79 = vadd.xlane.f32.xlu0 %v78
    %v80 = vpop.xlane.xlu0 %79
    %v81 = vsel %vm62, %v50, 0.0
    %82 = vadd.xlane.f32.xlu0 %v81
    %v83 = vpop.xlane.xlu0 %82
    %v84 = vsel %vm62, %v51, 0.0
    %85 = vadd.xlane.f32.xlu0 %v84
    %v86 = vpop.xlane.xlu0 %85
    %v87 = vsel %vm62, %v52, 0.0
    %88 = vadd.xlane.f32.xlu0 %v87
    %v89 = vpop.xlane.xlu0 %88
    %v90 = vsel %vm62, %v53, 0.0
    %91 = vadd.xlane.f32.xlu0 %v90
    %v92 = vpop.xlane.xlu0 %91
    %v93 = vsel %vm62, %v54, 0.0
    %94 = vadd.xlane.f32.xlu0 %v93
    %v95 = vpop.xlane.xlu0 %94
    %v96 = vsel %vm62, %v55, 0.0
    %97 = vadd.xlane.f32.xlu0 %v96
    %v98 = vpop.xlane.xlu0 %97
    %v99 = vsel %vm62, %v56, 0.0
    %100 = vadd.xlane.f32.xlu0 %v99
    %v101 = vpop.xlane.xlu0 %100
    %v102 = vsel %vm62, %v57, 0.0
    %103 = vadd.xlane.f32.xlu0 %v102
    %v104 = vpop.xlane.xlu0 %103
    %v105 = vsel %vm62, %v58, 0.0
    %106 = vadd.xlane.f32.xlu0 %v105
    %v107 = vpop.xlane.xlu0 %106
    %v108 = vsel %vm62, %v59, 0.0
    %109 = vadd.xlane.f32.xlu0 %v108
    %v110 = vpop.xlane.xlu0 %109
    %v111 = vrcp.pop 32.0
    %v112 = vmul.f32 %v65, %v111
    %v113 = vmul.f32 %v68, %v111
    %v114 = vmul.f32 %v71, %v111
    %v115 = vmul.f32 %v74, %v111
    %v116 = vmul.f32 %v77, %v111
    %v117 = vmul.f32 %v80, %v111
    %v118 = vmul.f32 %v83, %v111
    %v119 = vmul.f32 %v86, %v111
    %v120 = vmul.f32 %v89, %v111
    %v121 = vmul.f32 %v92, %v111
    %v122 = vmul.f32 %v95, %v111
    %v123 = vmul.f32 %v98, %v111
    %v124 = vmul.f32 %v101, %v111
    %v125 = vmul.f32 %v104, %v111
    %v126 = vmul.f32 %v107, %v111
    %v127 = vmul.f32 %v110, %v111
    %v128 = vsub.f32 %v44, %v112
    %v129 = vsub.f32 %v45, %v113
    %v130 = vsub.f32 %v46, %v114
    %v131 = vsub.f32 %v47, %v115
    %v132 = vsub.f32 %v48, %v116
    %v133 = vsub.f32 %v49, %v117
    %v134 = vsub.f32 %v50, %v118
    %v135 = vsub.f32 %v51, %v119
    %v136 = vsub.f32 %v52, %v120
    %v137 = vsub.f32 %v53, %v121
    %v138 = vsub.f32 %v54, %v122
    %v139 = vsub.f32 %v55, %v123
    %v140 = vsub.f32 %v56, %v124
    %v141 = vsub.f32 %v57, %v125
    %v142 = vsub.f32 %v58, %v126
    %v143 = vsub.f32 %v59, %v127
    %v144 = vmul.f32 %v128, %v128
    %v145 = vmul.f32 %v129, %v129
    %v146 = vmul.f32 %v130, %v130
    %v147 = vmul.f32 %v131, %v131
    %v148 = vmul.f32 %v132, %v132
    %v149 = vmul.f32 %v133, %v133
    %v150 = vmul.f32 %v134, %v134
    %v151 = vmul.f32 %v135, %v135
    %v152 = vmul.f32 %v136, %v136
    %v153 = vmul.f32 %v137, %v137
    %v154 = vmul.f32 %v138, %v138
    %v155 = vmul.f32 %v139, %v139
    %v156 = vmul.f32 %v140, %v140
    %v157 = vmul.f32 %v141, %v141
    %v158 = vmul.f32 %v142, %v142
    %v159 = vmul.f32 %v143, %v143
    %v160 = vsel %vm62, %v144, 0.0
    %161 = vadd.xlane.f32.xlu0 %v160
    %v162 = vpop.xlane.xlu0 %161
    %v163 = vsel %vm62, %v145, 0.0
    %164 = vadd.xlane.f32.xlu0 %v163
    %v165 = vpop.xlane.xlu0 %164
    %v166 = vsel %vm62, %v146, 0.0
    %167 = vadd.xlane.f32.xlu0 %v166
    %v168 = vpop.xlane.xlu0 %167
    %v169 = vsel %vm62, %v147, 0.0
    %170 = vadd.xlane.f32.xlu0 %v169
    %v171 = vpop.xlane.xlu0 %170
    %v172 = vsel %vm62, %v148, 0.0
    %173 = vadd.xlane.f32.xlu0 %v172
    %v174 = vpop.xlane.xlu0 %173
    %v175 = vsel %vm62, %v149, 0.0
    %176 = vadd.xlane.f32.xlu0 %v175
    %v177 = vpop.xlane.xlu0 %176
    %v178 = vsel %vm62, %v150, 0.0
    %179 = vadd.xlane.f32.xlu0 %v178
    %v180 = vpop.xlane.xlu0 %179
    %v181 = vsel %vm62, %v151, 0.0
    %182 = vadd.xlane.f32.xlu0 %v181
    %v183 = vpop.xlane.xlu0 %182
    %v184 = vsel %vm62, %v152, 0.0
    %185 = vadd.xlane.f32.xlu0 %v184
    %v186 = vpop.xlane.xlu0 %185
    %v187 = vsel %vm62, %v153, 0.0
    %188 = vadd.xlane.f32.xlu0 %v187
    %v189 = vpop.xlane.xlu0 %188
    %v190 = vsel %vm62, %v154, 0.0
    %191 = vadd.xlane.f32.xlu0 %v190
    %v192 = vpop.xlane.xlu0 %191
    %v193 = vsel %vm62, %v155, 0.0
    %194 = vadd.xlane.f32.xlu0 %v193
    %v195 = vpop.xlane.xlu0 %194
    %v196 = vsel %vm62, %v156, 0.0
    %197 = vadd.xlane.f32.xlu0 %v196
    %v198 = vpop.xlane.xlu0 %197
    %v199 = vsel %vm62, %v157, 0.0
    %200 = vadd.xlane.f32.xlu0 %v199
    %v201 = vpop.xlane.xlu0 %200
    %v202 = vsel %vm62, %v158, 0.0
    %203 = vadd.xlane.f32.xlu0 %v202
    %v204 = vpop.xlane.xlu0 %203
    %v205 = vsel %vm62, %v159, 0.0
    %206 = vadd.xlane.f32.xlu0 %v205
    %v207 = vpop.xlane.xlu0 %206
    %v208 = vmul.f32 %v162, %v111
    %v209 = vmul.f32 %v165, %v111
    %v210 = vmul.f32 %v168, %v111
    %v211 = vmul.f32 %v171, %v111
    %v212 = vmul.f32 %v174, %v111
    %v213 = vmul.f32 %v177, %v111
    %v214 = vmul.f32 %v180, %v111
    %v215 = vmul.f32 %v183, %v111
    %v216 = vmul.f32 %v186, %v111
    %v217 = vmul.f32 %v189, %v111
    %v218 = vmul.f32 %v192, %v111
    %v219 = vmul.f32 %v195, %v111
    %v220 = vmul.f32 %v198, %v111
    %v221 = vmul.f32 %v201, %v111
    %v222 = vmul.f32 %v204, %v111
    %v223 = vmul.f32 %v207, %v111
    %v224 = vadd.f32 %v208, 1e-05
    %v225 = vadd.f32 %v209, 1e-05
    %v226 = vadd.f32 %v210, 1e-05
    %v227 = vadd.f32 %v211, 1e-05
    %v228 = vadd.f32 %v212, 1e-05
    %v229 = vadd.f32 %v213, 1e-05
    %v230 = vadd.f32 %v214, 1e-05
    %v231 = vadd.f32 %v215, 1e-05
    %v232 = vadd.f32 %v216, 1e-05
    %v233 = vadd.f32 %v217, 1e-05
    %v234 = vadd.f32 %v218, 1e-05
    %v235 = vadd.f32 %v219, 1e-05
    %v236 = vadd.f32 %v220, 1e-05
    %v237 = vadd.f32 %v221, 1e-05
    %v238 = vadd.f32 %v222, 1e-05
    %v239 = vadd.f32 %v223, 1e-05
    %v240 = vrsqrt.pop %v224
    %v241 = vrsqrt.pop %v225
    %v242 = vrsqrt.pop %v226
    %v243 = vrsqrt.pop %v227
    %v244 = vrsqrt.pop %v228
    %v245 = vrsqrt.pop %v229
    %v246 = vrsqrt.pop %v230
    %v247 = vrsqrt.pop %v231
    %v248 = vrsqrt.pop %v232
    %v249 = vrsqrt.pop %v233
    %v250 = vrsqrt.pop %v234
    %v251 = vrsqrt.pop %v235
    %v252 = vrsqrt.pop %v236
    %v253 = vrsqrt.pop %v237
    %v254 = vrsqrt.pop %v238
    %v255 = vrsqrt.pop %v239
    %v256 = vmul.f32 %v128, %v240
    %v257 = vmul.f32 %v129, %v241
    %v258 = vmul.f32 %v130, %v242
    %v259 = vmul.f32 %v131, %v243
    %v260 = vmul.f32 %v132, %v244
    %v261 = vmul.f32 %v133, %v245
    %v262 = vmul.f32 %v134, %v246
    %v263 = vmul.f32 %v135, %v247
    %v264 = vmul.f32 %v136, %v248
    %v265 = vmul.f32 %v137, %v249
    %v266 = vmul.f32 %v138, %v250
    %v267 = vmul.f32 %v139, %v251
    %v268 = vmul.f32 %v140, %v252
    %v269 = vmul.f32 %v141, %v253
    %v270 = vmul.f32 %v142, %v254
    %v271 = vmul.f32 %v143, %v255
    %v273 = vlaneseq
    %v274 = vshrl.u32 %v273, 7
    %v275 = vsub.s32 0, %v274
    %v276 = vrot.slane %v60, %v275
    %v278 = vmul.f32 %v256, %v276
    %v279 = vmul.f32 %v257, %v276
    %v280 = vmul.f32 %v258, %v276
    %v281 = vmul.f32 %v259, %v276
    %v282 = vmul.f32 %v260, %v276
    %v283 = vmul.f32 %v261, %v276
    %v284 = vmul.f32 %v262, %v276
    %v285 = vmul.f32 %v263, %v276
    %v286 = vmul.f32 %v264, %v276
    %v287 = vmul.f32 %v265, %v276
    %v288 = vmul.f32 %v266, %v276
    %v289 = vmul.f32 %v267, %v276
    %v290 = vmul.f32 %v268, %v276
    %v291 = vmul.f32 %v269, %v276
    %v292 = vmul.f32 %v270, %v276
    %v293 = vmul.f32 %v271, %v276
    %v295 = vlaneseq
    %v296 = vshrl.u32 %v295, 7
    %v297 = vsub.s32 0, %v296
    %v298 = vrot.slane %v61, %v297
    %v300 = vadd.f32 %v278, %v298
    %v301 = vadd.f32 %v279, %v298
    %v302 = vadd.f32 %v280, %v298
    %v303 = vadd.f32 %v281, %v298
    %v304 = vadd.f32 %v282, %v298
    %v305 = vadd.f32 %v283, %v298
    %v306 = vadd.f32 %v284, %v298
    %v307 = vadd.f32 %v285, %v298
    %v308 = vadd.f32 %v286, %v298
    %v309 = vadd.f32 %v287, %v298
    %v310 = vadd.f32 %v288, %v298
    %v311 = vadd.f32 %v289, %v298
    %v312 = vadd.f32 %v290, %v298
    %v313 = vadd.f32 %v291, %v298
    %v314 = vadd.f32 %v292, %v298
    %v315 = vadd.f32 %v293, %v298
    %v316 = vld [vmem:[%s3] sm:$0x1]
    %v317 = vld [vmem:[%s4] sm:$0x1]
    %v318 = vsel %vm62, %v300, 0.0
    %319 = vadd.xlane.f32.xlu0 %v318
    %v320 = vpop.xlane.xlu0 %319
    %v321 = vsel %vm62, %v301, 0.0
    %322 = vadd.xlane.f32.xlu0 %v321
    %v323 = vpop.xlane.xlu0 %322
    %v324 = vsel %vm62, %v302, 0.0
    %325 = vadd.xlane.f32.xlu0 %v324
    %v326 = vpop.xlane.xlu0 %325
    %v327 = vsel %vm62, %v303, 0.0
    %328 = vadd.xlane.f32.xlu0 %v327
    %v329 = vpop.xlane.xlu0 %328
    %v330 = vsel %vm62, %v304, 0.0
    %331 = vadd.xlane.f32.xlu0 %v330
    %v332 = vpop.xlane.xlu0 %331
    %v333 = vsel %vm62, %v305, 0.0
    %334 = vadd.xlane.f32.xlu0 %v333
    %v335 = vpop.xlane.xlu0 %334
    %v336 = vsel %vm62, %v306, 0.0
    %337 = vadd.xlane.f32.xlu0 %v336
    %v338 = vpop.xlane.xlu0 %337
    %v339 = vsel %vm62, %v307, 0.0
    %340 = vadd.xlane.f32.xlu0 %v339
    %v341 = vpop.xlane.xlu0 %340
    %v342 = vsel %vm62, %v308, 0.0
    %343 = vadd.xlane.f32.xlu0 %v342
    %v344 = vpop.xlane.xlu0 %343
    %v345 = vsel %vm62, %v309, 0.0
    %346 = vadd.xlane.f32.xlu0 %v345
    %v347 = vpop.xlane.xlu0 %346
    %v348 = vsel %vm62, %v310, 0.0
    %349 = vadd.xlane.f32.xlu0 %v348
    %v350 = vpop.xlane.xlu0 %349
    %v351 = vsel %vm62, %v311, 0.0
    %352 = vadd.xlane.f32.xlu0 %v351
    %v353 = vpop.xlane.xlu0 %352
    %v354 = vsel %vm62, %v312, 0.0
    %355 = vadd.xlane.f32.xlu0 %v354
    %v356 = vpop.xlane.xlu0 %355
    %v357 = vsel %vm62, %v313, 0.0
    %358 = vadd.xlane.f32.xlu0 %v357
    %v359 = vpop.xlane.xlu0 %358
    %v360 = vsel %vm62, %v314, 0.0
    %361 = vadd.xlane.f32.xlu0 %v360
    %v362 = vpop.xlane.xlu0 %361
    %v363 = vsel %vm62, %v315, 0.0
    %364 = vadd.xlane.f32.xlu0 %v363
    %v365 = vpop.xlane.xlu0 %364
    %v366 = vmul.f32 %v320, %v111
    %v367 = vmul.f32 %v323, %v111
    %v368 = vmul.f32 %v326, %v111
    %v369 = vmul.f32 %v329, %v111
    %v370 = vmul.f32 %v332, %v111
    %v371 = vmul.f32 %v335, %v111
    %v372 = vmul.f32 %v338, %v111
    %v373 = vmul.f32 %v341, %v111
    %v374 = vmul.f32 %v344, %v111
    %v375 = vmul.f32 %v347, %v111
    %v376 = vmul.f32 %v350, %v111
    %v377 = vmul.f32 %v353, %v111
    %v378 = vmul.f32 %v356, %v111
    %v379 = vmul.f32 %v359, %v111
    %v380 = vmul.f32 %v362, %v111
    %v381 = vmul.f32 %v365, %v111
    %v382 = vsub.f32 %v300, %v366
    %v383 = vsub.f32 %v301, %v367
    %v384 = vsub.f32 %v302, %v368
    %v385 = vsub.f32 %v303, %v369
    %v386 = vsub.f32 %v304, %v370
    %v387 = vsub.f32 %v305, %v371
    %v388 = vsub.f32 %v306, %v372
    %v389 = vsub.f32 %v307, %v373
    %v390 = vsub.f32 %v308, %v374
    %v391 = vsub.f32 %v309, %v375
    %v392 = vsub.f32 %v310, %v376
    %v393 = vsub.f32 %v311, %v377
    %v394 = vsub.f32 %v312, %v378
    %v395 = vsub.f32 %v313, %v379
    %v396 = vsub.f32 %v314, %v380
    %v397 = vsub.f32 %v315, %v381
    %v398 = vmul.f32 %v382, %v382
    %v399 = vmul.f32 %v383, %v383
    %v400 = vmul.f32 %v384, %v384
    %v401 = vmul.f32 %v385, %v385
    %v402 = vmul.f32 %v386, %v386
    %v403 = vmul.f32 %v387, %v387
    %v404 = vmul.f32 %v388, %v388
    %v405 = vmul.f32 %v389, %v389
    %v406 = vmul.f32 %v390, %v390
    %v407 = vmul.f32 %v391, %v391
    %v408 = vmul.f32 %v392, %v392
    %v409 = vmul.f32 %v393, %v393
    %v410 = vmul.f32 %v394, %v394
    %v411 = vmul.f32 %v395, %v395
    %v412 = vmul.f32 %v396, %v396
    %v413 = vmul.f32 %v397, %v397
    %v414 = vsel %vm62, %v398, 0.0
    %415 = vadd.xlane.f32.xlu0 %v414
    %v416 = vpop.xlane.xlu0 %415
    %v417 = vsel %vm62, %v399, 0.0
    %418 = vadd.xlane.f32.xlu0 %v417
    %v419 = vpop.xlane.xlu0 %418
    %v420 = vsel %vm62, %v400, 0.0
    %421 = vadd.xlane.f32.xlu0 %v420
    %v422 = vpop.xlane.xlu0 %421
    %v423 = vsel %vm62, %v401, 0.0
    %424 = vadd.xlane.f32.xlu0 %v423
    %v425 = vpop.xlane.xlu0 %424
    %v426 = vsel %vm62, %v402, 0.0
    %427 = vadd.xlane.f32.xlu0 %v426
    %v428 = vpop.xlane.xlu0 %427
    %v429 = vsel %vm62, %v403, 0.0
    %430 = vadd.xlane.f32.xlu0 %v429
    %v431 = vpop.xlane.xlu0 %430
    %v432 = vsel %vm62, %v404, 0.0
    %433 = vadd.xlane.f32.xlu0 %v432
    %v434 = vpop.xlane.xlu0 %433
    %v435 = vsel %vm62, %v405, 0.0
    %436 = vadd.xlane.f32.xlu0 %v435
    %v437 = vpop.xlane.xlu0 %436
    %v438 = vsel %vm62, %v406, 0.0
    %439 = vadd.xlane.f32.xlu0 %v438
    %v440 = vpop.xlane.xlu0 %439
    %v441 = vsel %vm62, %v407, 0.0
    %442 = vadd.xlane.f32.xlu0 %v441
    %v443 = vpop.xlane.xlu0 %442
    %v444 = vsel %vm62, %v408, 0.0
    %445 = vadd.xlane.f32.xlu0 %v444
    %v446 = vpop.xlane.xlu0 %445
    %v447 = vsel %vm62, %v409, 0.0
    %448 = vadd.xlane.f32.xlu0 %v447
    %v449 = vpop.xlane.xlu0 %448
    %v450 = vsel %vm62, %v410, 0.0
    %451 = vadd.xlane.f32.xlu0 %v450
    %v452 = vpop.xlane.xlu0 %451
    %v453 = vsel %vm62, %v411, 0.0
    %454 = vadd.xlane.f32.xlu0 %v453
    %v455 = vpop.xlane.xlu0 %454
    %v456 = vsel %vm62, %v412, 0.0
    %457 = vadd.xlane.f32.xlu0 %v456
    %v458 = vpop.xlane.xlu0 %457
    %v459 = vsel %vm62, %v413, 0.0
    %460 = vadd.xlane.f32.xlu0 %v459
    %v461 = vpop.xlane.xlu0 %460
    %v462 = vmul.f32 %v416, %v111
    %v463 = vmul.f32 %v419, %v111
    %v464 = vmul.f32 %v422, %v111
    %v465 = vmul.f32 %v425, %v111
    %v466 = vmul.f32 %v428, %v111
    %v467 = vmul.f32 %v431, %v111
    %v468 = vmul.f32 %v434, %v111
    %v469 = vmul.f32 %v437, %v111
    %v470 = vmul.f32 %v440, %v111
    %v471 = vmul.f32 %v443, %v111
    %v472 = vmul.f32 %v446, %v111
    %v473 = vmul.f32 %v449, %v111
    %v474 = vmul.f32 %v452, %v111
    %v475 = vmul.f32 %v455, %v111
    %v476 = vmul.f32 %v458, %v111
    %v477 = vmul.f32 %v461, %v111
    %v478 = vadd.f32 %v462, 1e-05
    %v479 = vadd.f32 %v463, 1e-05
    %v480 = vadd.f32 %v464, 1e-05
    %v481 = vadd.f32 %v465, 1e-05
    %v482 = vadd.f32 %v466, 1e-05
    %v483 = vadd.f32 %v467, 1e-05
    %v484 = vadd.f32 %v468, 1e-05
    %v485 = vadd.f32 %v469, 1e-05
    %v486 = vadd.f32 %v470, 1e-05
    %v487 = vadd.f32 %v471, 1e-05
    %v488 = vadd.f32 %v472, 1e-05
    %v489 = vadd.f32 %v473, 1e-05
    %v490 = vadd.f32 %v474, 1e-05
    %v491 = vadd.f32 %v475, 1e-05
    %v492 = vadd.f32 %v476, 1e-05
    %v493 = vadd.f32 %v477, 1e-05
    %v494 = vrsqrt.pop %v478
    %v495 = vrsqrt.pop %v479
    %v496 = vrsqrt.pop %v480
    %v497 = vrsqrt.pop %v481
    %v498 = vrsqrt.pop %v482
    %v499 = vrsqrt.pop %v483
    %v500 = vrsqrt.pop %v484
    %v501 = vrsqrt.pop %v485
    %v502 = vrsqrt.pop %v486
    %v503 = vrsqrt.pop %v487
    %v504 = vrsqrt.pop %v488
    %v505 = vrsqrt.pop %v489
    %v506 = vrsqrt.pop %v490
    %v507 = vrsqrt.pop %v491
    %v508 = vrsqrt.pop %v492
    %v509 = vrsqrt.pop %v493
    %v510 = vmul.f32 %v382, %v494
    %v511 = vmul.f32 %v383, %v495
    %v512 = vmul.f32 %v384, %v496
    %v513 = vmul.f32 %v385, %v497
    %v514 = vmul.f32 %v386, %v498
    %v515 = vmul.f32 %v387, %v499
    %v516 = vmul.f32 %v388, %v500
    %v517 = vmul.f32 %v389, %v501
    %v518 = vmul.f32 %v390, %v502
    %v519 = vmul.f32 %v391, %v503
    %v520 = vmul.f32 %v392, %v504
    %v521 = vmul.f32 %v393, %v505
    %v522 = vmul.f32 %v394, %v506
    %v523 = vmul.f32 %v395, %v507
    %v524 = vmul.f32 %v396, %v508
    %v525 = vmul.f32 %v397, %v509
    %v527 = vlaneseq
    %v528 = vshrl.u32 %v527, 7
    %v529 = vsub.s32 0, %v528
    %v530 = vrot.slane %v316, %v529
    %v532 = vmul.f32 %v510, %v530
    %v533 = vmul.f32 %v511, %v530
    %v534 = vmul.f32 %v512, %v530
    %v535 = vmul.f32 %v513, %v530
    %v536 = vmul.f32 %v514, %v530
    %v537 = vmul.f32 %v515, %v530
    %v538 = vmul.f32 %v516, %v530
    %v539 = vmul.f32 %v517, %v530
    %v540 = vmul.f32 %v518, %v530
    %v541 = vmul.f32 %v519, %v530
    %v542 = vmul.f32 %v520, %v530
    %v543 = vmul.f32 %v521, %v530
    %v544 = vmul.f32 %v522, %v530
    %v545 = vmul.f32 %v523, %v530
    %v546 = vmul.f32 %v524, %v530
    %v547 = vmul.f32 %v525, %v530
    %v549 = vlaneseq
    %v550 = vshrl.u32 %v549, 7
    %v551 = vsub.s32 0, %v550
    %v552 = vrot.slane %v317, %v551
    %v554 = vadd.f32 %v532, %v552
    %v555 = vadd.f32 %v533, %v552
    %v556 = vadd.f32 %v534, %v552
    %v557 = vadd.f32 %v535, %v552
    %v558 = vadd.f32 %v536, %v552
    %v559 = vadd.f32 %v537, %v552
    %v560 = vadd.f32 %v538, %v552
    %v561 = vadd.f32 %v539, %v552
    %v562 = vadd.f32 %v540, %v552
    %v563 = vadd.f32 %v541, %v552
    %v564 = vadd.f32 %v542, %v552
    %v565 = vadd.f32 %v543, %v552
    %v566 = vadd.f32 %v544, %v552
    %v567 = vadd.f32 %v545, %v552
    %v568 = vadd.f32 %v546, %v552
    %v569 = vadd.f32 %v547, %v552
    %v570 = vpack.c.bf16 %v555, %v554
    %v571 = vpack.c.bf16 %v557, %v556
    %v572 = vpack.c.bf16 %v559, %v558
    %v573 = vpack.c.bf16 %v561, %v560
    %v574 = vpack.c.bf16 %v563, %v562
    %v575 = vpack.c.bf16 %v565, %v564
    %v576 = vpack.c.bf16 %v567, %v566
    %v577 = vpack.c.bf16 %v569, %v568
    %v578 = vld [vmem:[%s5] sm:$0xf]
    %v579 = vld [vmem:[%s5 + $0x4] sm:$0xf]
    %v580 = vld [vmem:[%s5 + $0x8] sm:$0xf]
    %v581 = vld [vmem:[%s5 + $0xc] sm:$0xf]
    %v582 = vld [vmem:[%s6] sm:$0x1]
    %v584 = vlaneseq
    %v585 = vshrl.u32 %v584, 7
    %v586 = vsub.s32 0, %v585
    %v587 = vrot.slane %v582, %v586
    %v593 = vunpack.c.l.b16 %v578
    %v594 = vunpack.c.l.b16 %v579
    %v595 = vunpack.c.l.b16 %v580
    %v596 = vunpack.c.l.b16 %v581
    %v597 = vpack.c.b16 %v594, %v593
    %v598 = vpack.c.b16 %v596, %v595
    %v602 = vsel %vm62, %v570, 0
    %v605 = vsel %vm62, %v571, 0
    %v608 = vsel %vm62, %v572, 0
    %v611 = vsel %vm62, %v573, 0
    %v614 = vsel %vm62, %v574, 0
    %v617 = vsel %vm62, %v575, 0
    %v620 = vsel %vm62, %v576, 0
    %v623 = vsel %vm62, %v577, 0
    %625 = vmatprep.subr.bf16.mxu0 0
    %626 = vmatpush1.bf16.msra.mxu0 %v597
    %627 = vmatprep.subr.bf16.mxu0 0
    %628 = vmatpush1.bf16.msra.mxu0 %v598
    %629 = vmatprep.subr.bf16.mxu0 0
    %630 = vmatpush1.bf16.msra.mxu0 0
    %631 = vmatprep.subr.bf16.mxu0 0
    %632 = vmatpush1.bf16.msra.mxu0 0
    %633 = vmatprep.subr.bf16.mxu0 0
    %634 = vmatpush1.bf16.msra.mxu0 0
    %635 = vmatprep.subr.bf16.mxu0 0
    %636 = vmatpush1.bf16.msra.mxu0 0
    %637 = vmatprep.subr.bf16.mxu0 0
    %638 = vmatpush1.bf16.msra.mxu0 0
    %639 = vmatprep.subr.bf16.mxu0 0
    %640 = vmatpush1.bf16.msra.mxu0 0
    %641 = vmatprep.subr.bf16.mxu0 0
    %642 = vmatpush1.bf16.msra.mxu0 0
    %643 = vmatprep.subr.bf16.mxu0 0
    %644 = vmatpush1.bf16.msra.mxu0 0
    %645 = vmatprep.subr.bf16.mxu0 0
    %646 = vmatpush1.bf16.msra.mxu0 0
    %647 = vmatprep.subr.bf16.mxu0 0
    %648 = vmatpush1.bf16.msra.mxu0 0
    %649 = vmatprep.subr.bf16.mxu0 0
    %650 = vmatpush1.bf16.msra.mxu0 0
    %651 = vmatprep.subr.bf16.mxu0 0
    %652 = vmatpush1.bf16.msra.mxu0 0
    %653 = vmatprep.subr.bf16.mxu0 0
    %654 = vmatpush1.bf16.msra.mxu0 0
    %655 = vmatprep.subr.bf16.mxu0 0
    %656 = vmatpush1.bf16.msra.mxu0 0
    %657 = vmatprep.mubr.bf16.mxu0 0
    %658 = vmatmul.mubr.bf16.gmra.mrb[0].mxu0 %v602
    %v659 = vpop.f32.mrb[0].mxu0
    %v660 = vadd.f32 %v587, %v659
    %v661 = vpop.f32.mrb[0].mxu0
    %v662 = vpop.f32.mrb[0].mxu0
    %v663 = vadd.f32 %v587, %v662
    %v664 = vpop.f32.mrb[0].mxu0
    %665 = vmatprep.mubr.bf16.mxu0 0
    %666 = vmatmul.mubr.bf16.gmra.mrb[0].mxu0 %v605
    %v667 = vpop.f32.mrb[0].mxu0
    %v668 = vadd.f32 %v587, %v667
    %v669 = vpop.f32.mrb[0].mxu0
    %v670 = vpop.f32.mrb[0].mxu0
    %v671 = vadd.f32 %v587, %v670
    %v672 = vpop.f32.mrb[0].mxu0
    %673 = vmatprep.mubr.bf16.mxu0 0
    %674 = vmatmul.mubr.bf16.gmra.mrb[0].mxu0 %v608
    %v675 = vpop.f32.mrb[0].mxu0
    %v676 = vadd.f32 %v587, %v675
    %v677 = vpop.f32.mrb[0].mxu0
    %v678 = vpop.f32.mrb[0].mxu0
    %v679 = vadd.f32 %v587, %v678
    %v680 = vpop.f32.mrb[0].mxu0
    %681 = vmatprep.mubr.bf16.mxu0 0
    %682 = vmatmul.mubr.bf16.gmra.mrb[0].mxu0 %v611
    %v683 = vpop.f32.mrb[0].mxu0
    %v684 = vadd.f32 %v587, %v683
    %v685 = vpop.f32.mrb[0].mxu0
    %v686 = vpop.f32.mrb[0].mxu0
    %v687 = vadd.f32 %v587, %v686
    %v688 = vpop.f32.mrb[0].mxu0
    %689 = vmatprep.mubr.bf16.mxu0 0
    %690 = vmatmul.mubr.bf16.gmra.mrb[0].mxu0 %v614
    %v691 = vpop.f32.mrb[0].mxu0
    %v692 = vadd.f32 %v587, %v691
    %v693 = vpop.f32.mrb[0].mxu0
    %v694 = vpop.f32.mrb[0].mxu0
    %v695 = vadd.f32 %v587, %v694
    %v696 = vpop.f32.mrb[0].mxu0
    %697 = vmatprep.mubr.bf16.mxu0 0
    %698 = vmatmul.mubr.bf16.gmra.mrb[0].mxu0 %v617
    %v699 = vpop.f32.mrb[0].mxu0
    %v700 = vadd.f32 %v587, %v699
    %v701 = vpop.f32.mrb[0].mxu0
    %v702 = vpop.f32.mrb[0].mxu0
    %v703 = vadd.f32 %v587, %v702
    %v704 = vpop.f32.mrb[0].mxu0
    %705 = vmatprep.mubr.bf16.mxu0 0
    %706 = vmatmul.mubr.bf16.gmra.mrb[0].mxu0 %v620
    %v707 = vpop.f32.mrb[0].mxu0
    %v708 = vadd.f32 %v587, %v707
    %v709 = vpop.f32.mrb[0].mxu0
    %v710 = vpop.f32.mrb[0].mxu0
    %v711 = vadd.f32 %v587, %v710
    %v712 = vpop.f32.mrb[0].mxu0
    %713 = vmatprep.mubr.bf16.mxu0 0
    %714 = vmatmul.mubr.bf16.gmra.mrb[0].mxu0 %v623
    %v715 = vpop.f32.mrb[0].mxu0
    %v716 = vadd.f32 %v587, %v715
    %v717 = vpop.f32.mrb[0].mxu0
    %v718 = vpop.f32.mrb[0].mxu0
    %v719 = vadd.f32 %v587, %v718
    %v720 = vpop.f32.mrb[0].mxu0
    %721 = vdwg.mxu0
    %722 = vst [vmem:[#allocation2] sm:$0xff] %v660
    %723 = vst [vmem:[#allocation2 + $0x8] sm:$0xff] %v663
    %724 = vst [vmem:[#allocation2 + $0x10] sm:$0xff] %v668
    %725 = vst [vmem:[#allocation2 + $0x18] sm:$0xff] %v671
    %726 = vst [vmem:[#allocation2 + $0x20] sm:$0xff] %v676
    %727 = vst [vmem:[#allocation2 + $0x28] sm:$0xff] %v679
    %728 = vst [vmem:[#allocation2 + $0x30] sm:$0xff] %v684
    %729 = vst [vmem:[#allocation2 + $0x38] sm:$0xff] %v687
    %730 = vst [vmem:[#allocation2 + $0x40] sm:$0xff] %v692
    %731 = vst [vmem:[#allocation2 + $0x48] sm:$0xff] %v695
    %732 = vst [vmem:[#allocation2 + $0x50] sm:$0xff] %v700
    %733 = vst [vmem:[#allocation2 + $0x58] sm:$0xff] %v703
    %734 = vst [vmem:[#allocation2 + $0x60] sm:$0xff] %v708
    %735 = vst [vmem:[#allocation2 + $0x68] sm:$0xff] %v711
    %736 = vst [vmem:[#allocation2 + $0x70] sm:$0xff] %v716
    %737 = vst [vmem:[#allocation2 + $0x78] sm:$0xff] %v719
    // Predicated region
    $region30: #{tsvit_forward.13} parent=1 // pred_check
      _
    $region31: #{tsvit_forward.13} parent=1 // pred_check_branch
      %739 = sbr.rel (0) target = $region33
    $region32: #{tsvit_forward.13} parent=1 // pred_region
      %s741 = ssub.s32 2048, 2048
      %742 = vsyncadd [#allocation3], %s741
      %s743 = sshll.u32 [#allocation2], 4
      %s744 = int_to_ptr.vmem [resolvable:$true] %s743
      %749 = dma.vmem_to_hbm [thread:$0]  %s744, 2048, %s7, [#allocation3], 128, 128, 8
    $region33: #{tsvit_forward.13} parent=1 // pred_fallthru
      _
    // Predicated region
    $region34: #{tsvit_forward.13} parent=1 // pred_check
      _
    $region35: #{tsvit_forward.13} parent=1 // pred_check_branch
      %751 = sbr.rel (0) target = $region37
    $region36: #{tsvit_forward.13} parent=1 // pred_region
      %752 = dma.done [#allocation3], 2048
    $region37: #{tsvit_forward.13} parent=1 // pred_fallthru
      _
    %753 = vsyncpa [#allocation3], 1

</llo_original>
